<compile_context>
chip_gen: v5e
topology: v5e:2x2
jax: 0.10.0
libtpu: 0.0.40
codegen_flags: <defaults>
</compile_context>

<pallas_src>
import functools

import jax
import jax.numpy as jnp
from jax.experimental import pallas as pl
from jax.experimental.pallas import tpu as pltpu

# --- small, forward-consistent dimensions -----------------------------------
VOCAB_SIZE = 100
EMBED_DIM = 32          # d_model
NUM_HEADS = 8           # nhead=8 (must divide EMBED_DIM)
HEAD_DIM = EMBED_DIM // NUM_HEADS
FFN_DIM = 64            # scaled-down dim_feedforward
NUM_LAYERS = 6          # num_layers=6
LN_EPS = 1e-5           # nn.LayerNorm default
NORM_EPS = 1e-12        # F.normalize default


def _layer_norm(x, gamma, beta):
    mu = jnp.mean(x, axis=-1, keepdims=True)
    xc = x - mu
    var = jnp.mean(xc * xc, axis=-1, keepdims=True)
    return xc * jax.lax.rsqrt(var + LN_EPS) * gamma + beta


# --- fused Pallas kernel: gather + 6 post-norm layers + pool + normalize ----
def text_model_kernel(tok_ref, emb_ref,
                      wqk_ref, bqk_ref, wv_ref, bo_ref,
                      g1_ref, b1_ref, w1_ref, bf1_ref,
                      w2_ref, bf2_ref, g2_ref, b2_ref,
                      o_ref, *, seq_len, batch):
    S, N = seq_len, batch
    E, H, D = EMBED_DIM, NUM_HEADS, HEAD_DIM
    NS = N * S

    # ---- fused embedding lookup + n-major flattening ------------------------
    # tokens (S, N) int32 sit in SMEM; each row of x is a dynamic leading-axis
    # load from the (V, 1, E) embedding table in VMEM.  Rows [n*S, (n+1)*S)
    # hold one independent sequence (the PyTorch dim=1 axis).
    rows = []
    for n in range(N):
        for s in range(S):
            t = tok_ref[s, n]
            rows.append(emb_ref[t])                       # (1, E)
    x = jnp.concatenate(rows, axis=0)                     # (NS, E) f32

    for l in range(NUM_LAYERS):                           # static unroll over layers
        x_bf = x.astype(jnp.bfloat16)
        # fused Q/K projection (1/sqrt(D) folded into the Q half at pack time)
        qk = jnp.dot(x_bf, wqk_ref[l],
                     preferred_element_type=jnp.float32) + bqk_ref[l]   # (NS, 2E)
        # V projection with Wo folded in per head: cols [h*E,(h+1)*E) = x @ (Wv_h @ Wo_h)
        v = jnp.dot(x_bf, wv_ref[l],
                    preferred_element_type=jnp.float32)                 # (NS, H*E)

        # per-head attention, batched over the independent "batch" axis n
        attn = None
        for h in range(H):
            q_h = qk[:, h * D:(h + 1) * D].reshape(N, S, D)
            k_h = qk[:, E + h * D:E + (h + 1) * D].reshape(N, S, D)
            v_h = v[:, h * E:(h + 1) * E].reshape(N, S, E)
            s_h = jnp.einsum('nsd,ntd->nst', q_h, k_h,
                             preferred_element_type=jnp.float32)        # (N, S, S)
            s_h = s_h - jnp.max(s_h, axis=-1, keepdims=True)
            p_h = jnp.exp(s_h)
            p_h = p_h * pl.reciprocal(jnp.sum(p_h, axis=-1, keepdims=True),
                                      approx=True)                      # softmax (EUP recip)
            o_h = jnp.einsum('nst,nte->nse', p_h, v_h,
                             preferred_element_type=jnp.float32)        # (N, S, E)
            o_h = o_h.reshape(NS, E)
            attn = o_h if attn is None else attn + o_h
        attn = attn + bo_ref[l]        # bo' = bo + bv @ Wo (folded at pack time)

        x1 = _layer_norm(x + attn, g1_ref[l], b1_ref[l])                # post-norm 1
        ff = jnp.dot(x1.astype(jnp.bfloat16), w1_ref[l],
                     preferred_element_type=jnp.float32) + bf1_ref[l]
        ff = jnp.maximum(ff, 0.0)                                       # ReLU
        ff = jnp.dot(ff.astype(jnp.bfloat16), w2_ref[l],
                     preferred_element_type=jnp.float32) + bf2_ref[l]
        x = _layer_norm(x1 + ff, g2_ref[l], b2_ref[l])                  # post-norm 2

    # mean over the original dim=1 (the N axis) + F.normalize(dim=1)
    m = x[0:S, :]
    for n in range(1, N):
        m = m + x[n * S:(n + 1) * S, :]
    m = m * (1.0 / N)
    sumsq = jnp.sum(m * m, axis=-1, keepdims=True)
    o_ref[...] = m * jax.lax.rsqrt(jnp.maximum(sumsq, NORM_EPS * NORM_EPS))


# --- wrappers ----------------------------------------------------------------
def fused_text_encoder(tokens, embedding3, packed, *, seq_len, batch):
    kernel = functools.partial(text_model_kernel, seq_len=seq_len, batch=batch)
    smem = pl.BlockSpec(memory_space=pltpu.MemorySpace.SMEM)
    vmem = pl.BlockSpec(memory_space=pltpu.MemorySpace.VMEM)
    inputs = (tokens, embedding3,
              packed["wqk"], packed["bqk"], packed["wv"], packed["bo"],
              packed["g1"], packed["b1"], packed["w1"], packed["bf1"],
              packed["w2"], packed["bf2"], packed["g2"], packed["b2"])
    in_specs = [smem] + [vmem] * (len(inputs) - 1)   # built from the same tuple
    return pl.pallas_call(
        kernel,
        out_shape=jax.ShapeDtypeStruct((seq_len, EMBED_DIM), jnp.float32),
        in_specs=in_specs,
        out_specs=vmem,
    )(*inputs)


@jax.jit
def text_model_forward(tokens, embedding, packed):
    L0, L1 = tokens.shape
    # (V, 1, E) so the in-kernel gather is a dynamic *leading-axis* row load
    emb3 = embedding.reshape(VOCAB_SIZE, 1, EMBED_DIM)
    return fused_text_encoder(tokens, emb3, packed, seq_len=L0, batch=L1)  # (L0, E)


def init_params(key):
    keys = jax.random.split(key, 1 + NUM_LAYERS)
    E, F = EMBED_DIM, FFN_DIM
    params = {
        "embedding": jax.random.normal(keys[0], (VOCAB_SIZE, E),
                                       jnp.float32) * 0.02,
        "layers": [],
    }
    for i in range(NUM_LAYERS):
        ks = jax.random.split(keys[1 + i], 6)
        # linear weights stored pre-transposed (in_dim, out_dim) so the kernel
        # computes x @ W (PyTorch computes x @ W.T with W of shape (out, in)).
        layer = {
            "wq": jax.random.normal(ks[0], (E, E), jnp.float32) * 0.05,
            "wk": jax.random.normal(ks[1], (E, E), jnp.float32) * 0.05,
            "wv": jax.random.normal(ks[2], (E, E), jnp.float32) * 0.05,
            "bq": jnp.zeros((1, E), jnp.float32),
            "bk": jnp.zeros((1, E), jnp.float32),
            "bv": jnp.zeros((1, E), jnp.float32),
            "wo": jax.random.normal(ks[3], (E, E), jnp.float32) * 0.05,
            "bo": jnp.zeros((1, E), jnp.float32),
            "g1": jnp.ones((1, E), jnp.float32),
            "b1": jnp.zeros((1, E), jnp.float32),
            "w1": jax.random.normal(ks[4], (E, F), jnp.float32) * 0.05,
            "bf1": jnp.zeros((1, F), jnp.float32),
            "w2": jax.random.normal(ks[5], (F, E), jnp.float32) * 0.05,
            "bf2": jnp.zeros((1, E), jnp.float32),
            "g2": jnp.ones((1, E), jnp.float32),
            "b2": jnp.zeros((1, E), jnp.float32),
        }
        params["layers"].append(layer)
    return params


def pack_params(params):
    """Stack per-layer weights on a leading (NUM_LAYERS, ...) axis, fold the
    1/sqrt(head_dim) scale into the Q columns, fold Wo (and bv, bo) into the
    V projection per head, and cast the bulk weights to bf16 (one-time)."""
    E, H, D = EMBED_DIM, NUM_HEADS, HEAD_DIM
    scale = 1.0 / float(D) ** 0.5
    names = ("wqk", "bqk", "wv", "bo", "g1", "b1",
             "w1", "bf1", "w2", "bf2", "g2", "b2")
    stacked = {n: [] for n in names}
    for lp in params["layers"]:
        wqk = jnp.concatenate([lp["wq"] * scale, lp["wk"]], axis=1)     # (E, 2E)
        bqk = jnp.concatenate([lp["bq"] * scale, lp["bk"]], axis=1)     # (1, 2E)
        # Wv'_h = Wv_h @ Wo_h  (exact fold; softmax rows sum to 1)
        wv_fold = jnp.concatenate(
            [lp["wv"][:, h * D:(h + 1) * D] @ lp["wo"][h * D:(h + 1) * D, :]
             for h in range(H)], axis=1)                                # (E, H*E)
        bo_fold = lp["bo"] + lp["bv"] @ lp["wo"]                        # (1, E)
        stacked["wqk"].append(wqk)
        stacked["bqk"].append(bqk)
        stacked["wv"].append(wv_fold)
        stacked["bo"].append(bo_fold)
        for n in ("g1", "b1", "w1", "bf1", "w2", "bf2", "g2", "b2"):
            stacked[n].append(lp[n])
    packed = {n: jnp.stack(v, axis=0) for n, v in stacked.items()}
    # bf16 the bulk matmul weights (halves the parameter DMA); biases and
    # LayerNorm params stay f32 so all elementwise math stays f32 (v5e-safe).
    for n in ("wqk", "wv", "w1", "w2"):
        packed[n] = packed[n].astype(jnp.bfloat16)
    return packed


if __name__ == "__main__":
    key = jax.random.PRNGKey(0)
    pkey, tkey = jax.random.split(key)
    params = init_params(pkey)
    packed = pack_params(params)

    L0, L1 = 8, 2   # (seq, "batch") under batch_first=False
    tokens = jax.random.randint(tkey, (L0, L1), 0, VOCAB_SIZE, dtype=jnp.int32)

    out = text_model_forward(tokens, params["embedding"], packed)
    out = jax.block_until_ready(out)

    assert out.shape == (L0, EMBED_DIM), out.shape
    assert bool(jnp.all(jnp.isfinite(out)))
    # rows are L2-normalized
    assert bool(jnp.allclose(jnp.linalg.norm(out, axis=1), 1.0, atol=1e-3))
    print("KERNEL_OK")
</pallas_src>

<mosaic_0001>
module attributes {stable_mosaic.version = 11 : i64} {
  func.func @text_model_kernel(%arg0: memref<8x2xi32, #tpu.memory_space<smem>>, %arg1: memref<100x1x32xf32, #tpu.memory_space<vmem>>, %arg2: memref<6x32x64xbf16, #tpu.memory_space<vmem>>, %arg3: memref<6x1x64xf32, #tpu.memory_space<vmem>>, %arg4: memref<6x32x256xbf16, #tpu.memory_space<vmem>>, %arg5: memref<6x1x32xf32, #tpu.memory_space<vmem>>, %arg6: memref<6x1x32xf32, #tpu.memory_space<vmem>>, %arg7: memref<6x1x32xf32, #tpu.memory_space<vmem>>, %arg8: memref<6x32x64xbf16, #tpu.memory_space<vmem>>, %arg9: memref<6x1x64xf32, #tpu.memory_space<vmem>>, %arg10: memref<6x64x32xbf16, #tpu.memory_space<vmem>>, %arg11: memref<6x1x32xf32, #tpu.memory_space<vmem>>, %arg12: memref<6x1x32xf32, #tpu.memory_space<vmem>>, %arg13: memref<6x1x32xf32, #tpu.memory_space<vmem>>, %arg14: memref<8x32xf32, #tpu.memory_space<vmem>>) attributes {dimension_semantics = [], scalar_prefetch = 0 : i64, scratch_operands = 0 : i64, tpu.core_type = #tpu.core_type<tc>} {
    %c0 = arith.constant 0 : index
    %c0_0 = arith.constant 0 : index
    %0 = memref.load %arg0[%c0, %c0_0] : memref<8x2xi32, #tpu.memory_space<smem>>
    %1 = arith.index_cast %0 : i32 to index
    %c0_1 = arith.constant 0 : index
    %c0_2 = arith.constant 0 : index
    %2 = vector.load %arg1[%1, %c0_1, %c0_2] : memref<100x1x32xf32, #tpu.memory_space<vmem>>, vector<1x1x32xf32>
    %3 = vector.shape_cast %2 : vector<1x1x32xf32> to vector<1x32xf32>
    %c1 = arith.constant 1 : index
    %c0_3 = arith.constant 0 : index
    %4 = memref.load %arg0[%c1, %c0_3] : memref<8x2xi32, #tpu.memory_space<smem>>
    %5 = arith.index_cast %4 : i32 to index
    %c0_4 = arith.constant 0 : index
    %c0_5 = arith.constant 0 : index
    %6 = vector.load %arg1[%5, %c0_4, %c0_5] : memref<100x1x32xf32, #tpu.memory_space<vmem>>, vector<1x1x32xf32>
    %7 = vector.shape_cast %6 : vector<1x1x32xf32> to vector<1x32xf32>
    %c2 = arith.constant 2 : index
    %c0_6 = arith.constant 0 : index
    %8 = memref.load %arg0[%c2, %c0_6] : memref<8x2xi32, #tpu.memory_space<smem>>
    %9 = arith.index_cast %8 : i32 to index
    %c0_7 = arith.constant 0 : index
    %c0_8 = arith.constant 0 : index
    %10 = vector.load %arg1[%9, %c0_7, %c0_8] : memref<100x1x32xf32, #tpu.memory_space<vmem>>, vector<1x1x32xf32>
    %11 = vector.shape_cast %10 : vector<1x1x32xf32> to vector<1x32xf32>
    %c3 = arith.constant 3 : index
    %c0_9 = arith.constant 0 : index
    %12 = memref.load %arg0[%c3, %c0_9] : memref<8x2xi32, #tpu.memory_space<smem>>
    %13 = arith.index_cast %12 : i32 to index
    %c0_10 = arith.constant 0 : index
    %c0_11 = arith.constant 0 : index
    %14 = vector.load %arg1[%13, %c0_10, %c0_11] : memref<100x1x32xf32, #tpu.memory_space<vmem>>, vector<1x1x32xf32>
    %15 = vector.shape_cast %14 : vector<1x1x32xf32> to vector<1x32xf32>
    %c4 = arith.constant 4 : index
    %c0_12 = arith.constant 0 : index
    %16 = memref.load %arg0[%c4, %c0_12] : memref<8x2xi32, #tpu.memory_space<smem>>
    %17 = arith.index_cast %16 : i32 to index
    %c0_13 = arith.constant 0 : index
    %c0_14 = arith.constant 0 : index
    %18 = vector.load %arg1[%17, %c0_13, %c0_14] : memref<100x1x32xf32, #tpu.memory_space<vmem>>, vector<1x1x32xf32>
    %19 = vector.shape_cast %18 : vector<1x1x32xf32> to vector<1x32xf32>
    %c5 = arith.constant 5 : index
    %c0_15 = arith.constant 0 : index
    %20 = memref.load %arg0[%c5, %c0_15] : memref<8x2xi32, #tpu.memory_space<smem>>
    %21 = arith.index_cast %20 : i32 to index
    %c0_16 = arith.constant 0 : index
    %c0_17 = arith.constant 0 : index
    %22 = vector.load %arg1[%21, %c0_16, %c0_17] : memref<100x1x32xf32, #tpu.memory_space<vmem>>, vector<1x1x32xf32>
    %23 = vector.shape_cast %22 : vector<1x1x32xf32> to vector<1x32xf32>
    %c6 = arith.constant 6 : index
    %c0_18 = arith.constant 0 : index
    %24 = memref.load %arg0[%c6, %c0_18] : memref<8x2xi32, #tpu.memory_space<smem>>
    %25 = arith.index_cast %24 : i32 to index
    %c0_19 = arith.constant 0 : index
    %c0_20 = arith.constant 0 : index
    %26 = vector.load %arg1[%25, %c0_19, %c0_20] : memref<100x1x32xf32, #tpu.memory_space<vmem>>, vector<1x1x32xf32>
    %27 = vector.shape_cast %26 : vector<1x1x32xf32> to vector<1x32xf32>
    %c7 = arith.constant 7 : index
    %c0_21 = arith.constant 0 : index
    %28 = memref.load %arg0[%c7, %c0_21] : memref<8x2xi32, #tpu.memory_space<smem>>
    %29 = arith.index_cast %28 : i32 to index
    %c0_22 = arith.constant 0 : index
    %c0_23 = arith.constant 0 : index
    %30 = vector.load %arg1[%29, %c0_22, %c0_23] : memref<100x1x32xf32, #tpu.memory_space<vmem>>, vector<1x1x32xf32>
    %31 = vector.shape_cast %30 : vector<1x1x32xf32> to vector<1x32xf32>
    %c0_24 = arith.constant 0 : index
    %c1_25 = arith.constant 1 : index
    %32 = memref.load %arg0[%c0_24, %c1_25] : memref<8x2xi32, #tpu.memory_space<smem>>
    %33 = arith.index_cast %32 : i32 to index
    %c0_26 = arith.constant 0 : index
    %c0_27 = arith.constant 0 : index
    %34 = vector.load %arg1[%33, %c0_26, %c0_27] : memref<100x1x32xf32, #tpu.memory_space<vmem>>, vector<1x1x32xf32>
    %35 = vector.shape_cast %34 : vector<1x1x32xf32> to vector<1x32xf32>
    %c1_28 = arith.constant 1 : index
    %c1_29 = arith.constant 1 : index
    %36 = memref.load %arg0[%c1_28, %c1_29] : memref<8x2xi32, #tpu.memory_space<smem>>
    %37 = arith.index_cast %36 : i32 to index
    %c0_30 = arith.constant 0 : index
    %c0_31 = arith.constant 0 : index
    %38 = vector.load %arg1[%37, %c0_30, %c0_31] : memref<100x1x32xf32, #tpu.memory_space<vmem>>, vector<1x1x32xf32>
    %39 = vector.shape_cast %38 : vector<1x1x32xf32> to vector<1x32xf32>
    %c2_32 = arith.constant 2 : index
    %c1_33 = arith.constant 1 : index
    %40 = memref.load %arg0[%c2_32, %c1_33] : memref<8x2xi32, #tpu.memory_space<smem>>
    %41 = arith.index_cast %40 : i32 to index
    %c0_34 = arith.constant 0 : index
    %c0_35 = arith.constant 0 : index
    %42 = vector.load %arg1[%41, %c0_34, %c0_35] : memref<100x1x32xf32, #tpu.memory_space<vmem>>, vector<1x1x32xf32>
    %43 = vector.shape_cast %42 : vector<1x1x32xf32> to vector<1x32xf32>
    %c3_36 = arith.constant 3 : index
    %c1_37 = arith.constant 1 : index
    %44 = memref.load %arg0[%c3_36, %c1_37] : memref<8x2xi32, #tpu.memory_space<smem>>
    %45 = arith.index_cast %44 : i32 to index
    %c0_38 = arith.constant 0 : index
    %c0_39 = arith.constant 0 : index
    %46 = vector.load %arg1[%45, %c0_38, %c0_39] : memref<100x1x32xf32, #tpu.memory_space<vmem>>, vector<1x1x32xf32>
    %47 = vector.shape_cast %46 : vector<1x1x32xf32> to vector<1x32xf32>
    %c4_40 = arith.constant 4 : index
    %c1_41 = arith.constant 1 : index
    %48 = memref.load %arg0[%c4_40, %c1_41] : memref<8x2xi32, #tpu.memory_space<smem>>
    %49 = arith.index_cast %48 : i32 to index
    %c0_42 = arith.constant 0 : index
    %c0_43 = arith.constant 0 : index
    %50 = vector.load %arg1[%49, %c0_42, %c0_43] : memref<100x1x32xf32, #tpu.memory_space<vmem>>, vector<1x1x32xf32>
    %51 = vector.shape_cast %50 : vector<1x1x32xf32> to vector<1x32xf32>
    %c5_44 = arith.constant 5 : index
    %c1_45 = arith.constant 1 : index
    %52 = memref.load %arg0[%c5_44, %c1_45] : memref<8x2xi32, #tpu.memory_space<smem>>
    %53 = arith.index_cast %52 : i32 to index
    %c0_46 = arith.constant 0 : index
    %c0_47 = arith.constant 0 : index
    %54 = vector.load %arg1[%53, %c0_46, %c0_47] : memref<100x1x32xf32, #tpu.memory_space<vmem>>, vector<1x1x32xf32>
    %55 = vector.shape_cast %54 : vector<1x1x32xf32> to vector<1x32xf32>
    %c6_48 = arith.constant 6 : index
    %c1_49 = arith.constant 1 : index
    %56 = memref.load %arg0[%c6_48, %c1_49] : memref<8x2xi32, #tpu.memory_space<smem>>
    %57 = arith.index_cast %56 : i32 to index
    %c0_50 = arith.constant 0 : index
    %c0_51 = arith.constant 0 : index
    %58 = vector.load %arg1[%57, %c0_50, %c0_51] : memref<100x1x32xf32, #tpu.memory_space<vmem>>, vector<1x1x32xf32>
    %59 = vector.shape_cast %58 : vector<1x1x32xf32> to vector<1x32xf32>
    %c7_52 = arith.constant 7 : index
    %c1_53 = arith.constant 1 : index
    %60 = memref.load %arg0[%c7_52, %c1_53] : memref<8x2xi32, #tpu.memory_space<smem>>
    %61 = arith.index_cast %60 : i32 to index
    %c0_54 = arith.constant 0 : index
    %c0_55 = arith.constant 0 : index
    %62 = vector.load %arg1[%61, %c0_54, %c0_55] : memref<100x1x32xf32, #tpu.memory_space<vmem>>, vector<1x1x32xf32>
    %63 = vector.shape_cast %62 : vector<1x1x32xf32> to vector<1x32xf32>
    %64 = tpu.concatenate %3, %7, %11, %15, %19, %23, %27, %31, %35, %39, %43, %47, %51, %55, %59, %63 in 0 : vector<1x32xf32>, vector<1x32xf32>, vector<1x32xf32>, vector<1x32xf32>, vector<1x32xf32>, vector<1x32xf32>, vector<1x32xf32>, vector<1x32xf32>, vector<1x32xf32>, vector<1x32xf32>, vector<1x32xf32>, vector<1x32xf32>, vector<1x32xf32>, vector<1x32xf32>, vector<1x32xf32>, vector<1x32xf32> -> vector<16x32xf32>
    %65 = arith.truncf %64 : vector<16x32xf32> to vector<16x32xbf16>
    %c0_56 = arith.constant 0 : index
    %c0_57 = arith.constant 0 : index
    %c0_58 = arith.constant 0 : index
    %66 = vector.load %arg2[%c0_56, %c0_57, %c0_58] : memref<6x32x64xbf16, #tpu.memory_space<vmem>>, vector<1x32x64xbf16>
    %67 = vector.shape_cast %66 : vector<1x32x64xbf16> to vector<32x64xbf16>
    %cst = arith.constant dense<0.000000e+00> : vector<16x64xf32>
    %68 = tpu.matmul %65, %67, %cst {dimension_numbers = #tpu.dot_dimension_numbers<[1], [0], [0], [1], [0, 0, 1, 1], [], []>} : vector<16x32xbf16>, vector<32x64xbf16>, vector<16x64xf32> -> vector<16x64xf32>
    %c0_59 = arith.constant 0 : index
    %c0_60 = arith.constant 0 : index
    %c0_61 = arith.constant 0 : index
    %69 = vector.load %arg3[%c0_59, %c0_60, %c0_61] : memref<6x1x64xf32, #tpu.memory_space<vmem>>, vector<1x1x64xf32>
    %70 = vector.shape_cast %69 : vector<1x1x64xf32> to vector<1x64xf32>
    %71 = vector.broadcast %70 : vector<1x64xf32> to vector<16x64xf32>
    %72 = arith.addf %68, %71 : vector<16x64xf32>
    %c0_62 = arith.constant 0 : index
    %c0_63 = arith.constant 0 : index
    %c0_64 = arith.constant 0 : index
    %73 = vector.load %arg4[%c0_62, %c0_63, %c0_64] : memref<6x32x256xbf16, #tpu.memory_space<vmem>>, vector<1x32x256xbf16>
    %74 = vector.shape_cast %73 : vector<1x32x256xbf16> to vector<32x256xbf16>
    %cst_65 = arith.constant dense<0.000000e+00> : vector<16x256xf32>
    %75 = tpu.matmul %65, %74, %cst_65 {dimension_numbers = #tpu.dot_dimension_numbers<[1], [0], [0], [1], [0, 0, 1, 1], [], []>} : vector<16x32xbf16>, vector<32x256xbf16>, vector<16x256xf32> -> vector<16x256xf32>
    %76 = vector.extract_strided_slice %72 {offsets = [0, 0], sizes = [16, 4], strides = [1, 1]} : vector<16x64xf32> to vector<16x4xf32>
    %77 = vector.shape_cast %76 : vector<16x4xf32> to vector<2x8x4xf32>
    %78 = vector.extract_strided_slice %72 {offsets = [0, 32], sizes = [16, 4], strides = [1, 1]} : vector<16x64xf32> to vector<16x4xf32>
    %79 = vector.shape_cast %78 : vector<16x4xf32> to vector<2x8x4xf32>
    %80 = vector.extract_strided_slice %75 {offsets = [0, 0], sizes = [16, 32], strides = [1, 1]} : vector<16x256xf32> to vector<16x32xf32>
    %81 = vector.shape_cast %80 : vector<16x32xf32> to vector<2x8x32xf32>
    "tpu.trace_start"() <{level = 10 : i32, message = "nsd,ntd->nst"}> : () -> ()
    %cst_66 = arith.constant dense<0.000000e+00> : vector<2x8x8xf32>
    %82 = tpu.matmul %77, %79, %cst_66 {dimension_numbers = #tpu.dot_dimension_numbers<[2], [2], [1], [1], [0, 0, 0, 1, 1, 1], [0], [0]>} : vector<2x8x4xf32>, vector<2x8x4xf32>, vector<2x8x8xf32> -> vector<2x8x8xf32>
    "tpu.trace_stop"() : () -> ()
    %cst_67 = arith.constant dense<0xFF800000> : vector<2x8xf32>
    %83 = vector.multi_reduction <maximumf>, %82, %cst_67 [2] : vector<2x8x8xf32> to vector<2x8xf32>
    %84 = vector.shape_cast %83 : vector<2x8xf32> to vector<2x8x1xf32>
    %85 = vector.broadcast %84 : vector<2x8x1xf32> to vector<2x8x8xf32>
    %86 = arith.subf %82, %85 : vector<2x8x8xf32>
    %87 = math.exp %86 : vector<2x8x8xf32>
    %cst_68 = arith.constant dense<0.000000e+00> : vector<2x8xf32>
    %88 = vector.multi_reduction <add>, %87, %cst_68 [2] : vector<2x8x8xf32> to vector<2x8xf32>
    %89 = vector.shape_cast %88 : vector<2x8xf32> to vector<2x8x1xf32>
    %90 = tpu.reciprocal %89 {approx = true} : vector<2x8x1xf32> -> vector<2x8x1xf32>
    %91 = vector.broadcast %90 : vector<2x8x1xf32> to vector<2x8x8xf32>
    %92 = arith.mulf %87, %91 : vector<2x8x8xf32>
    "tpu.trace_start"() <{level = 10 : i32, message = "nst,nte->nse"}> : () -> ()
    %cst_69 = arith.constant dense<0.000000e+00> : vector<2x8x32xf32>
    %93 = tpu.matmul %92, %81, %cst_69 {dimension_numbers = #tpu.dot_dimension_numbers<[2], [1], [1], [2], [0, 0, 0, 1, 1, 2], [0], [0]>} : vector<2x8x8xf32>, vector<2x8x32xf32>, vector<2x8x32xf32> -> vector<2x8x32xf32>
    "tpu.trace_stop"() : () -> ()
    %94 = vector.shape_cast %93 : vector<2x8x32xf32> to vector<16x32xf32>
    %95 = vector.extract_strided_slice %72 {offsets = [0, 4], sizes = [16, 4], strides = [1, 1]} : vector<16x64xf32> to vector<16x4xf32>
    %96 = vector.shape_cast %95 : vector<16x4xf32> to vector<2x8x4xf32>
    %97 = vector.extract_strided_slice %72 {offsets = [0, 36], sizes = [16, 4], strides = [1, 1]} : vector<16x64xf32> to vector<16x4xf32>
    %98 = vector.shape_cast %97 : vector<16x4xf32> to vector<2x8x4xf32>
    %99 = vector.extract_strided_slice %75 {offsets = [0, 32], sizes = [16, 32], strides = [1, 1]} : vector<16x256xf32> to vector<16x32xf32>
    %100 = vector.shape_cast %99 : vector<16x32xf32> to vector<2x8x32xf32>
    "tpu.trace_start"() <{level = 10 : i32, message = "nsd,ntd->nst"}> : () -> ()
    %cst_70 = arith.constant dense<0.000000e+00> : vector<2x8x8xf32>
    %101 = tpu.matmul %96, %98, %cst_70 {dimension_numbers = #tpu.dot_dimension_numbers<[2], [2], [1], [1], [0, 0, 0, 1, 1, 1], [0], [0]>} : vector<2x8x4xf32>, vector<2x8x4xf32>, vector<2x8x8xf32> -> vector<2x8x8xf32>
    "tpu.trace_stop"() : () -> ()
    %cst_71 = arith.constant dense<0xFF800000> : vector<2x8xf32>
    %102 = vector.multi_reduction <maximumf>, %101, %cst_71 [2] : vector<2x8x8xf32> to vector<2x8xf32>
    %103 = vector.shape_cast %102 : vector<2x8xf32> to vector<2x8x1xf32>
    %104 = vector.broadcast %103 : vector<2x8x1xf32> to vector<2x8x8xf32>
    %105 = arith.subf %101, %104 : vector<2x8x8xf32>
    %106 = math.exp %105 : vector<2x8x8xf32>
    %cst_72 = arith.constant dense<0.000000e+00> : vector<2x8xf32>
    %107 = vector.multi_reduction <add>, %106, %cst_72 [2] : vector<2x8x8xf32> to vector<2x8xf32>
    %108 = vector.shape_cast %107 : vector<2x8xf32> to vector<2x8x1xf32>
    %109 = tpu.reciprocal %108 {approx = true} : vector<2x8x1xf32> -> vector<2x8x1xf32>
    %110 = vector.broadcast %109 : vector<2x8x1xf32> to vector<2x8x8xf32>
    %111 = arith.mulf %106, %110 : vector<2x8x8xf32>
    "tpu.trace_start"() <{level = 10 : i32, message = "nst,nte->nse"}> : () -> ()
    %cst_73 = arith.constant dense<0.000000e+00> : vector<2x8x32xf32>
    %112 = tpu.matmul %111, %100, %cst_73 {dimension_numbers = #tpu.dot_dimension_numbers<[2], [1], [1], [2], [0, 0, 0, 1, 1, 2], [0], [0]>} : vector<2x8x8xf32>, vector<2x8x32xf32>, vector<2x8x32xf32> -> vector<2x8x32xf32>
    "tpu.trace_stop"() : () -> ()
    %113 = vector.shape_cast %112 : vector<2x8x32xf32> to vector<16x32xf32>
    %114 = arith.addf %94, %113 : vector<16x32xf32>
    %115 = vector.extract_strided_slice %72 {offsets = [0, 8], sizes = [16, 4], strides = [1, 1]} : vector<16x64xf32> to vector<16x4xf32>
    %116 = vector.shape_cast %115 : vector<16x4xf32> to vector<2x8x4xf32>
    %117 = vector.extract_strided_slice %72 {offsets = [0, 40], sizes = [16, 4], strides = [1, 1]} : vector<16x64xf32> to vector<16x4xf32>
    %118 = vector.shape_cast %117 : vector<16x4xf32> to vector<2x8x4xf32>
    %119 = vector.extract_strided_slice %75 {offsets = [0, 64], sizes = [16, 32], strides = [1, 1]} : vector<16x256xf32> to vector<16x32xf32>
    %120 = vector.shape_cast %119 : vector<16x32xf32> to vector<2x8x32xf32>
    "tpu.trace_start"() <{level = 10 : i32, message = "nsd,ntd->nst"}> : () -> ()
    %cst_74 = arith.constant dense<0.000000e+00> : vector<2x8x8xf32>
    %121 = tpu.matmul %116, %118, %cst_74 {dimension_numbers = #tpu.dot_dimension_numbers<[2], [2], [1], [1], [0, 0, 0, 1, 1, 1], [0], [0]>} : vector<2x8x4xf32>, vector<2x8x4xf32>, vector<2x8x8xf32> -> vector<2x8x8xf32>
    "tpu.trace_stop"() : () -> ()
    %cst_75 = arith.constant dense<0xFF800000> : vector<2x8xf32>
    %122 = vector.multi_reduction <maximumf>, %121, %cst_75 [2] : vector<2x8x8xf32> to vector<2x8xf32>
    %123 = vector.shape_cast %122 : vector<2x8xf32> to vector<2x8x1xf32>
    %124 = vector.broadcast %123 : vector<2x8x1xf32> to vector<2x8x8xf32>
    %125 = arith.subf %121, %124 : vector<2x8x8xf32>
    %126 = math.exp %125 : vector<2x8x8xf32>
    %cst_76 = arith.constant dense<0.000000e+00> : vector<2x8xf32>
    %127 = vector.multi_reduction <add>, %126, %cst_76 [2] : vector<2x8x8xf32> to vector<2x8xf32>
    %128 = vector.shape_cast %127 : vector<2x8xf32> to vector<2x8x1xf32>
    %129 = tpu.reciprocal %128 {approx = true} : vector<2x8x1xf32> -> vector<2x8x1xf32>
    %130 = vector.broadcast %129 : vector<2x8x1xf32> to vector<2x8x8xf32>
    %131 = arith.mulf %126, %130 : vector<2x8x8xf32>
    "tpu.trace_start"() <{level = 10 : i32, message = "nst,nte->nse"}> : () -> ()
    %cst_77 = arith.constant dense<0.000000e+00> : vector<2x8x32xf32>
    %132 = tpu.matmul %131, %120, %cst_77 {dimension_numbers = #tpu.dot_dimension_numbers<[2], [1], [1], [2], [0, 0, 0, 1, 1, 2], [0], [0]>} : vector<2x8x8xf32>, vector<2x8x32xf32>, vector<2x8x32xf32> -> vector<2x8x32xf32>
    "tpu.trace_stop"() : () -> ()
    %133 = vector.shape_cast %132 : vector<2x8x32xf32> to vector<16x32xf32>
    %134 = arith.addf %114, %133 : vector<16x32xf32>
    %135 = vector.extract_strided_slice %72 {offsets = [0, 12], sizes = [16, 4], strides = [1, 1]} : vector<16x64xf32> to vector<16x4xf32>
    %136 = vector.shape_cast %135 : vector<16x4xf32> to vector<2x8x4xf32>
    %137 = vector.extract_strided_slice %72 {offsets = [0, 44], sizes = [16, 4], strides = [1, 1]} : vector<16x64xf32> to vector<16x4xf32>
    %138 = vector.shape_cast %137 : vector<16x4xf32> to vector<2x8x4xf32>
    %139 = vector.extract_strided_slice %75 {offsets = [0, 96], sizes = [16, 32], strides = [1, 1]} : vector<16x256xf32> to vector<16x32xf32>
    %140 = vector.shape_cast %139 : vector<16x32xf32> to vector<2x8x32xf32>
    "tpu.trace_start"() <{level = 10 : i32, message = "nsd,ntd->nst"}> : () -> ()
    %cst_78 = arith.constant dense<0.000000e+00> : vector<2x8x8xf32>
    %141 = tpu.matmul %136, %138, %cst_78 {dimension_numbers = #tpu.dot_dimension_numbers<[2], [2], [1], [1], [0, 0, 0, 1, 1, 1], [0], [0]>} : vector<2x8x4xf32>, vector<2x8x4xf32>, vector<2x8x8xf32> -> vector<2x8x8xf32>
    "tpu.trace_stop"() : () -> ()
    %cst_79 = arith.constant dense<0xFF800000> : vector<2x8xf32>
    %142 = vector.multi_reduction <maximumf>, %141, %cst_79 [2] : vector<2x8x8xf32> to vector<2x8xf32>
    %143 = vector.shape_cast %142 : vector<2x8xf32> to vector<2x8x1xf32>
    %144 = vector.broadcast %143 : vector<2x8x1xf32> to vector<2x8x8xf32>
    %145 = arith.subf %141, %144 : vector<2x8x8xf32>
    %146 = math.exp %145 : vector<2x8x8xf32>
    %cst_80 = arith.constant dense<0.000000e+00> : vector<2x8xf32>
    %147 = vector.multi_reduction <add>, %146, %cst_80 [2] : vector<2x8x8xf32> to vector<2x8xf32>
    %148 = vector.shape_cast %147 : vector<2x8xf32> to vector<2x8x1xf32>
    %149 = tpu.reciprocal %148 {approx = true} : vector<2x8x1xf32> -> vector<2x8x1xf32>
    %150 = vector.broadcast %149 : vector<2x8x1xf32> to vector<2x8x8xf32>
    %151 = arith.mulf %146, %150 : vector<2x8x8xf32>
    "tpu.trace_start"() <{level = 10 : i32, message = "nst,nte->nse"}> : () -> ()
    %cst_81 = arith.constant dense<0.000000e+00> : vector<2x8x32xf32>
    %152 = tpu.matmul %151, %140, %cst_81 {dimension_numbers = #tpu.dot_dimension_numbers<[2], [1], [1], [2], [0, 0, 0, 1, 1, 2], [0], [0]>} : vector<2x8x8xf32>, vector<2x8x32xf32>, vector<2x8x32xf32> -> vector<2x8x32xf32>
    "tpu.trace_stop"() : () -> ()
    %153 = vector.shape_cast %152 : vector<2x8x32xf32> to vector<16x32xf32>
    %154 = arith.addf %134, %153 : vector<16x32xf32>
    %155 = vector.extract_strided_slice %72 {offsets = [0, 16], sizes = [16, 4], strides = [1, 1]} : vector<16x64xf32> to vector<16x4xf32>
    %156 = vector.shape_cast %155 : vector<16x4xf32> to vector<2x8x4xf32>
    %157 = vector.extract_strided_slice %72 {offsets = [0, 48], sizes = [16, 4], strides = [1, 1]} : vector<16x64xf32> to vector<16x4xf32>
    %158 = vector.shape_cast %157 : vector<16x4xf32> to vector<2x8x4xf32>
    %159 = vector.extract_strided_slice %75 {offsets = [0, 128], sizes = [16, 32], strides = [1, 1]} : vector<16x256xf32> to vector<16x32xf32>
    %160 = vector.shape_cast %159 : vector<16x32xf32> to vector<2x8x32xf32>
    "tpu.trace_start"() <{level = 10 : i32, message = "nsd,ntd->nst"}> : () -> ()
    %cst_82 = arith.constant dense<0.000000e+00> : vector<2x8x8xf32>
    %161 = tpu.matmul %156, %158, %cst_82 {dimension_numbers = #tpu.dot_dimension_numbers<[2], [2], [1], [1], [0, 0, 0, 1, 1, 1], [0], [0]>} : vector<2x8x4xf32>, vector<2x8x4xf32>, vector<2x8x8xf32> -> vector<2x8x8xf32>
    "tpu.trace_stop"() : () -> ()
    %cst_83 = arith.constant dense<0xFF800000> : vector<2x8xf32>
    %162 = vector.multi_reduction <maximumf>, %161, %cst_83 [2] : vector<2x8x8xf32> to vector<2x8xf32>
    %163 = vector.shape_cast %162 : vector<2x8xf32> to vector<2x8x1xf32>
    %164 = vector.broadcast %163 : vector<2x8x1xf32> to vector<2x8x8xf32>
    %165 = arith.subf %161, %164 : vector<2x8x8xf32>
    %166 = math.exp %165 : vector<2x8x8xf32>
    %cst_84 = arith.constant dense<0.000000e+00> : vector<2x8xf32>
    %167 = vector.multi_reduction <add>, %166, %cst_84 [2] : vector<2x8x8xf32> to vector<2x8xf32>
    %168 = vector.shape_cast %167 : vector<2x8xf32> to vector<2x8x1xf32>
    %169 = tpu.reciprocal %168 {approx = true} : vector<2x8x1xf32> -> vector<2x8x1xf32>
    %170 = vector.broadcast %169 : vector<2x8x1xf32> to vector<2x8x8xf32>
    %171 = arith.mulf %166, %170 : vector<2x8x8xf32>
    "tpu.trace_start"() <{level = 10 : i32, message = "nst,nte->nse"}> : () -> ()
    %cst_85 = arith.constant dense<0.000000e+00> : vector<2x8x32xf32>
    %172 = tpu.matmul %171, %160, %cst_85 {dimension_numbers = #tpu.dot_dimension_numbers<[2], [1], [1], [2], [0, 0, 0, 1, 1, 2], [0], [0]>} : vector<2x8x8xf32>, vector<2x8x32xf32>, vector<2x8x32xf32> -> vector<2x8x32xf32>
    "tpu.trace_stop"() : () -> ()
    %173 = vector.shape_cast %172 : vector<2x8x32xf32> to vector<16x32xf32>
    %174 = arith.addf %154, %173 : vector<16x32xf32>
    %175 = vector.extract_strided_slice %72 {offsets = [0, 20], sizes = [16, 4], strides = [1, 1]} : vector<16x64xf32> to vector<16x4xf32>
    %176 = vector.shape_cast %175 : vector<16x4xf32> to vector<2x8x4xf32>
    %177 = vector.extract_strided_slice %72 {offsets = [0, 52], sizes = [16, 4], strides = [1, 1]} : vector<16x64xf32> to vector<16x4xf32>
    %178 = vector.shape_cast %177 : vector<16x4xf32> to vector<2x8x4xf32>
    %179 = vector.extract_strided_slice %75 {offsets = [0, 160], sizes = [16, 32], strides = [1, 1]} : vector<16x256xf32> to vector<16x32xf32>
    %180 = vector.shape_cast %179 : vector<16x32xf32> to vector<2x8x32xf32>
    "tpu.trace_start"() <{level = 10 : i32, message = "nsd,ntd->nst"}> : () -> ()
    %cst_86 = arith.constant dense<0.000000e+00> : vector<2x8x8xf32>
    %181 = tpu.matmul %176, %178, %cst_86 {dimension_numbers = #tpu.dot_dimension_numbers<[2], [2], [1], [1], [0, 0, 0, 1, 1, 1], [0], [0]>} : vector<2x8x4xf32>, vector<2x8x4xf32>, vector<2x8x8xf32> -> vector<2x8x8xf32>
    "tpu.trace_stop"() : () -> ()
    %cst_87 = arith.constant dense<0xFF800000> : vector<2x8xf32>
    %182 = vector.multi_reduction <maximumf>, %181, %cst_87 [2] : vector<2x8x8xf32> to vector<2x8xf32>
    %183 = vector.shape_cast %182 : vector<2x8xf32> to vector<2x8x1xf32>
    %184 = vector.broadcast %183 : vector<2x8x1xf32> to vector<2x8x8xf32>
    %185 = arith.subf %181, %184 : vector<2x8x8xf32>
    %186 = math.exp %185 : vector<2x8x8xf32>
    %cst_88 = arith.constant dense<0.000000e+00> : vector<2x8xf32>
    %187 = vector.multi_reduction <add>, %186, %cst_88 [2] : vector<2x8x8xf32> to vector<2x8xf32>
    %188 = vector.shape_cast %187 : vector<2x8xf32> to vector<2x8x1xf32>
    %189 = tpu.reciprocal %188 {approx = true} : vector<2x8x1xf32> -> vector<2x8x1xf32>
    %190 = vector.broadcast %189 : vector<2x8x1xf32> to vector<2x8x8xf32>
    %191 = arith.mulf %186, %190 : vector<2x8x8xf32>
    "tpu.trace_start"() <{level = 10 : i32, message = "nst,nte->nse"}> : () -> ()
    %cst_89 = arith.constant dense<0.000000e+00> : vector<2x8x32xf32>
    %192 = tpu.matmul %191, %180, %cst_89 {dimension_numbers = #tpu.dot_dimension_numbers<[2], [1], [1], [2], [0, 0, 0, 1, 1, 2], [0], [0]>} : vector<2x8x8xf32>, vector<2x8x32xf32>, vector<2x8x32xf32> -> vector<2x8x32xf32>
    "tpu.trace_stop"() : () -> ()
    %193 = vector.shape_cast %192 : vector<2x8x32xf32> to vector<16x32xf32>
    %194 = arith.addf %174, %193 : vector<16x32xf32>
    %195 = vector.extract_strided_slice %72 {offsets = [0, 24], sizes = [16, 4], strides = [1, 1]} : vector<16x64xf32> to vector<16x4xf32>
    %196 = vector.shape_cast %195 : vector<16x4xf32> to vector<2x8x4xf32>
    %197 = vector.extract_strided_slice %72 {offsets = [0, 56], sizes = [16, 4], strides = [1, 1]} : vector<16x64xf32> to vector<16x4xf32>
    %198 = vector.shape_cast %197 : vector<16x4xf32> to vector<2x8x4xf32>
    %199 = vector.extract_strided_slice %75 {offsets = [0, 192], sizes = [16, 32], strides = [1, 1]} : vector<16x256xf32> to vector<16x32xf32>
    %200 = vector.shape_cast %199 : vector<16x32xf32> to vector<2x8x32xf32>
    "tpu.trace_start"() <{level = 10 : i32, message = "nsd,ntd->nst"}> : () -> ()
    %cst_90 = arith.constant dense<0.000000e+00> : vector<2x8x8xf32>
    %201 = tpu.matmul %196, %198, %cst_90 {dimension_numbers = #tpu.dot_dimension_numbers<[2], [2], [1], [1], [0, 0, 0, 1, 1, 1], [0], [0]>} : vector<2x8x4xf32>, vector<2x8x4xf32>, vector<2x8x8xf32> -> vector<2x8x8xf32>
    "tpu.trace_stop"() : () -> ()
    %cst_91 = arith.constant dense<0xFF800000> : vector<2x8xf32>
    %202 = vector.multi_reduction <maximumf>, %201, %cst_91 [2] : vector<2x8x8xf32> to vector<2x8xf32>
    %203 = vector.shape_cast %202 : vector<2x8xf32> to vector<2x8x1xf32>
    %204 = vector.broadcast %203 : vector<2x8x1xf32> to vector<2x8x8xf32>
    %205 = arith.subf %201, %204 : vector<2x8x8xf32>
    %206 = math.exp %205 : vector<2x8x8xf32>
    %cst_92 = arith.constant dense<0.000000e+00> : vector<2x8xf32>
    %207 = vector.multi_reduction <add>, %206, %cst_92 [2] : vector<2x8x8xf32> to vector<2x8xf32>
    %208 = vector.shape_cast %207 : vector<2x8xf32> to vector<2x8x1xf32>
    %209 = tpu.reciprocal %208 {approx = true} : vector<2x8x1xf32> -> vector<2x8x1xf32>
    %210 = vector.broadcast %209 : vector<2x8x1xf32> to vector<2x8x8xf32>
    %211 = arith.mulf %206, %210 : vector<2x8x8xf32>
    "tpu.trace_start"() <{level = 10 : i32, message = "nst,nte->nse"}> : () -> ()
    %cst_93 = arith.constant dense<0.000000e+00> : vector<2x8x32xf32>
    %212 = tpu.matmul %211, %200, %cst_93 {dimension_numbers = #tpu.dot_dimension_numbers<[2], [1], [1], [2], [0, 0, 0, 1, 1, 2], [0], [0]>} : vector<2x8x8xf32>, vector<2x8x32xf32>, vector<2x8x32xf32> -> vector<2x8x32xf32>
    "tpu.trace_stop"() : () -> ()
    %213 = vector.shape_cast %212 : vector<2x8x32xf32> to vector<16x32xf32>
    %214 = arith.addf %194, %213 : vector<16x32xf32>
    %215 = vector.extract_strided_slice %72 {offsets = [0, 28], sizes = [16, 4], strides = [1, 1]} : vector<16x64xf32> to vector<16x4xf32>
    %216 = vector.shape_cast %215 : vector<16x4xf32> to vector<2x8x4xf32>
    %217 = vector.extract_strided_slice %72 {offsets = [0, 60], sizes = [16, 4], strides = [1, 1]} : vector<16x64xf32> to vector<16x4xf32>
    %218 = vector.shape_cast %217 : vector<16x4xf32> to vector<2x8x4xf32>
    %219 = vector.extract_strided_slice %75 {offsets = [0, 224], sizes = [16, 32], strides = [1, 1]} : vector<16x256xf32> to vector<16x32xf32>
    %220 = vector.shape_cast %219 : vector<16x32xf32> to vector<2x8x32xf32>
    "tpu.trace_start"() <{level = 10 : i32, message = "nsd,ntd->nst"}> : () -> ()
    %cst_94 = arith.constant dense<0.000000e+00> : vector<2x8x8xf32>
    %221 = tpu.matmul %216, %218, %cst_94 {dimension_numbers = #tpu.dot_dimension_numbers<[2], [2], [1], [1], [0, 0, 0, 1, 1, 1], [0], [0]>} : vector<2x8x4xf32>, vector<2x8x4xf32>, vector<2x8x8xf32> -> vector<2x8x8xf32>
    "tpu.trace_stop"() : () -> ()
    %cst_95 = arith.constant dense<0xFF800000> : vector<2x8xf32>
    %222 = vector.multi_reduction <maximumf>, %221, %cst_95 [2] : vector<2x8x8xf32> to vector<2x8xf32>
    %223 = vector.shape_cast %222 : vector<2x8xf32> to vector<2x8x1xf32>
    %224 = vector.broadcast %223 : vector<2x8x1xf32> to vector<2x8x8xf32>
    %225 = arith.subf %221, %224 : vector<2x8x8xf32>
    %226 = math.exp %225 : vector<2x8x8xf32>
    %cst_96 = arith.constant dense<0.000000e+00> : vector<2x8xf32>
    %227 = vector.multi_reduction <add>, %226, %cst_96 [2] : vector<2x8x8xf32> to vector<2x8xf32>
    %228 = vector.shape_cast %227 : vector<2x8xf32> to vector<2x8x1xf32>
    %229 = tpu.reciprocal %228 {approx = true} : vector<2x8x1xf32> -> vector<2x8x1xf32>
    %230 = vector.broadcast %229 : vector<2x8x1xf32> to vector<2x8x8xf32>
    %231 = arith.mulf %226, %230 : vector<2x8x8xf32>
    "tpu.trace_start"() <{level = 10 : i32, message = "nst,nte->nse"}> : () -> ()
    %cst_97 = arith.constant dense<0.000000e+00> : vector<2x8x32xf32>
    %232 = tpu.matmul %231, %220, %cst_97 {dimension_numbers = #tpu.dot_dimension_numbers<[2], [1], [1], [2], [0, 0, 0, 1, 1, 2], [0], [0]>} : vector<2x8x8xf32>, vector<2x8x32xf32>, vector<2x8x32xf32> -> vector<2x8x32xf32>
    "tpu.trace_stop"() : () -> ()
    %233 = vector.shape_cast %232 : vector<2x8x32xf32> to vector<16x32xf32>
    %234 = arith.addf %214, %233 : vector<16x32xf32>
    %c0_98 = arith.constant 0 : index
    %c0_99 = arith.constant 0 : index
    %c0_100 = arith.constant 0 : index
    %235 = vector.load %arg5[%c0_98, %c0_99, %c0_100] : memref<6x1x32xf32, #tpu.memory_space<vmem>>, vector<1x1x32xf32>
    %236 = vector.shape_cast %235 : vector<1x1x32xf32> to vector<1x32xf32>
    %237 = vector.broadcast %236 : vector<1x32xf32> to vector<16x32xf32>
    %238 = arith.addf %234, %237 : vector<16x32xf32>
    %239 = arith.addf %64, %238 : vector<16x32xf32>
    %c0_101 = arith.constant 0 : index
    %c0_102 = arith.constant 0 : index
    %c0_103 = arith.constant 0 : index
    %240 = vector.load %arg6[%c0_101, %c0_102, %c0_103] : memref<6x1x32xf32, #tpu.memory_space<vmem>>, vector<1x1x32xf32>
    %241 = vector.shape_cast %240 : vector<1x1x32xf32> to vector<1x32xf32>
    %c0_104 = arith.constant 0 : index
    %c0_105 = arith.constant 0 : index
    %c0_106 = arith.constant 0 : index
    %242 = vector.load %arg7[%c0_104, %c0_105, %c0_106] : memref<6x1x32xf32, #tpu.memory_space<vmem>>, vector<1x1x32xf32>
    %243 = vector.shape_cast %242 : vector<1x1x32xf32> to vector<1x32xf32>
    %cst_107 = arith.constant dense<0.000000e+00> : vector<16xf32>
    %244 = vector.multi_reduction <add>, %239, %cst_107 [1] : vector<16x32xf32> to vector<16xf32>
    %245 = vector.shape_cast %244 : vector<16xf32> to vector<16x1xf32>
    %cst_108 = arith.constant 3.200000e+01 : f32
    %246 = vector.broadcast %cst_108 : f32 to vector<16x1xf32>
    %247 = arith.divf %245, %246 : vector<16x1xf32>
    %248 = vector.broadcast %247 : vector<16x1xf32> to vector<16x32xf32>
    %249 = arith.subf %239, %248 : vector<16x32xf32>
    %250 = arith.mulf %249, %249 : vector<16x32xf32>
    %cst_109 = arith.constant dense<0.000000e+00> : vector<16xf32>
    %251 = vector.multi_reduction <add>, %250, %cst_109 [1] : vector<16x32xf32> to vector<16xf32>
    %252 = vector.shape_cast %251 : vector<16xf32> to vector<16x1xf32>
    %cst_110 = arith.constant 3.200000e+01 : f32
    %253 = vector.broadcast %cst_110 : f32 to vector<16x1xf32>
    %254 = arith.divf %252, %253 : vector<16x1xf32>
    %cst_111 = arith.constant 9.99999974E-6 : f32
    %255 = vector.broadcast %cst_111 : f32 to vector<16x1xf32>
    %256 = arith.addf %254, %255 : vector<16x1xf32>
    %257 = math.rsqrt %256 : vector<16x1xf32>
    %258 = vector.broadcast %257 : vector<16x1xf32> to vector<16x32xf32>
    %259 = arith.mulf %249, %258 : vector<16x32xf32>
    %260 = vector.broadcast %241 : vector<1x32xf32> to vector<16x32xf32>
    %261 = arith.mulf %259, %260 : vector<16x32xf32>
    %262 = vector.broadcast %243 : vector<1x32xf32> to vector<16x32xf32>
    %263 = arith.addf %261, %262 : vector<16x32xf32>
    %264 = arith.truncf %263 : vector<16x32xf32> to vector<16x32xbf16>
    %c0_112 = arith.constant 0 : index
    %c0_113 = arith.constant 0 : index
    %c0_114 = arith.constant 0 : index
    %265 = vector.load %arg8[%c0_112, %c0_113, %c0_114] : memref<6x32x64xbf16, #tpu.memory_space<vmem>>, vector<1x32x64xbf16>
    %266 = vector.shape_cast %265 : vector<1x32x64xbf16> to vector<32x64xbf16>
    %cst_115 = arith.constant dense<0.000000e+00> : vector<16x64xf32>
    %267 = tpu.matmul %264, %266, %cst_115 {dimension_numbers = #tpu.dot_dimension_numbers<[1], [0], [0], [1], [0, 0, 1, 1], [], []>} : vector<16x32xbf16>, vector<32x64xbf16>, vector<16x64xf32> -> vector<16x64xf32>
    %c0_116 = arith.constant 0 : index
    %c0_117 = arith.constant 0 : index
    %c0_118 = arith.constant 0 : index
    %268 = vector.load %arg9[%c0_116, %c0_117, %c0_118] : memref<6x1x64xf32, #tpu.memory_space<vmem>>, vector<1x1x64xf32>
    %269 = vector.shape_cast %268 : vector<1x1x64xf32> to vector<1x64xf32>
    %270 = vector.broadcast %269 : vector<1x64xf32> to vector<16x64xf32>
    %271 = arith.addf %267, %270 : vector<16x64xf32>
    %cst_119 = arith.constant 0.000000e+00 : f32
    %272 = vector.broadcast %cst_119 : f32 to vector<16x64xf32>
    %273 = arith.maximumf %271, %272 : vector<16x64xf32>
    %274 = arith.truncf %273 : vector<16x64xf32> to vector<16x64xbf16>
    %c0_120 = arith.constant 0 : index
    %c0_121 = arith.constant 0 : index
    %c0_122 = arith.constant 0 : index
    %275 = vector.load %arg10[%c0_120, %c0_121, %c0_122] : memref<6x64x32xbf16, #tpu.memory_space<vmem>>, vector<1x64x32xbf16>
    %276 = vector.shape_cast %275 : vector<1x64x32xbf16> to vector<64x32xbf16>
    %cst_123 = arith.constant dense<0.000000e+00> : vector<16x32xf32>
    %277 = tpu.matmul %274, %276, %cst_123 {dimension_numbers = #tpu.dot_dimension_numbers<[1], [0], [0], [1], [0, 0, 1, 1], [], []>} : vector<16x64xbf16>, vector<64x32xbf16>, vector<16x32xf32> -> vector<16x32xf32>
    %c0_124 = arith.constant 0 : index
    %c0_125 = arith.constant 0 : index
    %c0_126 = arith.constant 0 : index
    %278 = vector.load %arg11[%c0_124, %c0_125, %c0_126] : memref<6x1x32xf32, #tpu.memory_space<vmem>>, vector<1x1x32xf32>
    %279 = vector.shape_cast %278 : vector<1x1x32xf32> to vector<1x32xf32>
    %280 = vector.broadcast %279 : vector<1x32xf32> to vector<16x32xf32>
    %281 = arith.addf %277, %280 : vector<16x32xf32>
    %282 = arith.addf %263, %281 : vector<16x32xf32>
    %c0_127 = arith.constant 0 : index
    %c0_128 = arith.constant 0 : index
    %c0_129 = arith.constant 0 : index
    %283 = vector.load %arg12[%c0_127, %c0_128, %c0_129] : memref<6x1x32xf32, #tpu.memory_space<vmem>>, vector<1x1x32xf32>
    %284 = vector.shape_cast %283 : vector<1x1x32xf32> to vector<1x32xf32>
    %c0_130 = arith.constant 0 : index
    %c0_131 = arith.constant 0 : index
    %c0_132 = arith.constant 0 : index
    %285 = vector.load %arg13[%c0_130, %c0_131, %c0_132] : memref<6x1x32xf32, #tpu.memory_space<vmem>>, vector<1x1x32xf32>
    %286 = vector.shape_cast %285 : vector<1x1x32xf32> to vector<1x32xf32>
    %cst_133 = arith.constant dense<0.000000e+00> : vector<16xf32>
    %287 = vector.multi_reduction <add>, %282, %cst_133 [1] : vector<16x32xf32> to vector<16xf32>
    %288 = vector.shape_cast %287 : vector<16xf32> to vector<16x1xf32>
    %cst_134 = arith.constant 3.200000e+01 : f32
    %289 = vector.broadcast %cst_134 : f32 to vector<16x1xf32>
    %290 = arith.divf %288, %289 : vector<16x1xf32>
    %291 = vector.broadcast %290 : vector<16x1xf32> to vector<16x32xf32>
    %292 = arith.subf %282, %291 : vector<16x32xf32>
    %293 = arith.mulf %292, %292 : vector<16x32xf32>
    %cst_135 = arith.constant dense<0.000000e+00> : vector<16xf32>
    %294 = vector.multi_reduction <add>, %293, %cst_135 [1] : vector<16x32xf32> to vector<16xf32>
    %295 = vector.shape_cast %294 : vector<16xf32> to vector<16x1xf32>
    %cst_136 = arith.constant 3.200000e+01 : f32
    %296 = vector.broadcast %cst_136 : f32 to vector<16x1xf32>
    %297 = arith.divf %295, %296 : vector<16x1xf32>
    %cst_137 = arith.constant 9.99999974E-6 : f32
    %298 = vector.broadcast %cst_137 : f32 to vector<16x1xf32>
    %299 = arith.addf %297, %298 : vector<16x1xf32>
    %300 = math.rsqrt %299 : vector<16x1xf32>
    %301 = vector.broadcast %300 : vector<16x1xf32> to vector<16x32xf32>
    %302 = arith.mulf %292, %301 : vector<16x32xf32>
    %303 = vector.broadcast %284 : vector<1x32xf32> to vector<16x32xf32>
    %304 = arith.mulf %302, %303 : vector<16x32xf32>
    %305 = vector.broadcast %286 : vector<1x32xf32> to vector<16x32xf32>
    %306 = arith.addf %304, %305 : vector<16x32xf32>
    %307 = arith.truncf %306 : vector<16x32xf32> to vector<16x32xbf16>
    %c1_138 = arith.constant 1 : index
    %c0_139 = arith.constant 0 : index
    %c0_140 = arith.constant 0 : index
    %308 = vector.load %arg2[%c1_138, %c0_139, %c0_140] : memref<6x32x64xbf16, #tpu.memory_space<vmem>>, vector<1x32x64xbf16>
    %309 = vector.shape_cast %308 : vector<1x32x64xbf16> to vector<32x64xbf16>
    %cst_141 = arith.constant dense<0.000000e+00> : vector<16x64xf32>
    %310 = tpu.matmul %307, %309, %cst_141 {dimension_numbers = #tpu.dot_dimension_numbers<[1], [0], [0], [1], [0, 0, 1, 1], [], []>} : vector<16x32xbf16>, vector<32x64xbf16>, vector<16x64xf32> -> vector<16x64xf32>
    %c1_142 = arith.constant 1 : index
    %c0_143 = arith.constant 0 : index
    %c0_144 = arith.constant 0 : index
    %311 = vector.load %arg3[%c1_142, %c0_143, %c0_144] : memref<6x1x64xf32, #tpu.memory_space<vmem>>, vector<1x1x64xf32>
    %312 = vector.shape_cast %311 : vector<1x1x64xf32> to vector<1x64xf32>
    %313 = vector.broadcast %312 : vector<1x64xf32> to vector<16x64xf32>
    %314 = arith.addf %310, %313 : vector<16x64xf32>
    %c1_145 = arith.constant 1 : index
    %c0_146 = arith.constant 0 : index
    %c0_147 = arith.constant 0 : index
    %315 = vector.load %arg4[%c1_145, %c0_146, %c0_147] : memref<6x32x256xbf16, #tpu.memory_space<vmem>>, vector<1x32x256xbf16>
    %316 = vector.shape_cast %315 : vector<1x32x256xbf16> to vector<32x256xbf16>
    %cst_148 = arith.constant dense<0.000000e+00> : vector<16x256xf32>
    %317 = tpu.matmul %307, %316, %cst_148 {dimension_numbers = #tpu.dot_dimension_numbers<[1], [0], [0], [1], [0, 0, 1, 1], [], []>} : vector<16x32xbf16>, vector<32x256xbf16>, vector<16x256xf32> -> vector<16x256xf32>
    %318 = vector.extract_strided_slice %314 {offsets = [0, 0], sizes = [16, 4], strides = [1, 1]} : vector<16x64xf32> to vector<16x4xf32>
    %319 = vector.shape_cast %318 : vector<16x4xf32> to vector<2x8x4xf32>
    %320 = vector.extract_strided_slice %314 {offsets = [0, 32], sizes = [16, 4], strides = [1, 1]} : vector<16x64xf32> to vector<16x4xf32>
    %321 = vector.shape_cast %320 : vector<16x4xf32> to vector<2x8x4xf32>
    %322 = vector.extract_strided_slice %317 {offsets = [0, 0], sizes = [16, 32], strides = [1, 1]} : vector<16x256xf32> to vector<16x32xf32>
    %323 = vector.shape_cast %322 : vector<16x32xf32> to vector<2x8x32xf32>
    "tpu.trace_start"() <{level = 10 : i32, message = "nsd,ntd->nst"}> : () -> ()
    %cst_149 = arith.constant dense<0.000000e+00> : vector<2x8x8xf32>
    %324 = tpu.matmul %319, %321, %cst_149 {dimension_numbers = #tpu.dot_dimension_numbers<[2], [2], [1], [1], [0, 0, 0, 1, 1, 1], [0], [0]>} : vector<2x8x4xf32>, vector<2x8x4xf32>, vector<2x8x8xf32> -> vector<2x8x8xf32>
    "tpu.trace_stop"() : () -> ()
    %cst_150 = arith.constant dense<0xFF800000> : vector<2x8xf32>
    %325 = vector.multi_reduction <maximumf>, %324, %cst_150 [2] : vector<2x8x8xf32> to vector<2x8xf32>
    %326 = vector.shape_cast %325 : vector<2x8xf32> to vector<2x8x1xf32>
    %327 = vector.broadcast %326 : vector<2x8x1xf32> to vector<2x8x8xf32>
    %328 = arith.subf %324, %327 : vector<2x8x8xf32>
    %329 = math.exp %328 : vector<2x8x8xf32>
    %cst_151 = arith.constant dense<0.000000e+00> : vector<2x8xf32>
    %330 = vector.multi_reduction <add>, %329, %cst_151 [2] : vector<2x8x8xf32> to vector<2x8xf32>
    %331 = vector.shape_cast %330 : vector<2x8xf32> to vector<2x8x1xf32>
    %332 = tpu.reciprocal %331 {approx = true} : vector<2x8x1xf32> -> vector<2x8x1xf32>
    %333 = vector.broadcast %332 : vector<2x8x1xf32> to vector<2x8x8xf32>
    %334 = arith.mulf %329, %333 : vector<2x8x8xf32>
    "tpu.trace_start"() <{level = 10 : i32, message = "nst,nte->nse"}> : () -> ()
    %cst_152 = arith.constant dense<0.000000e+00> : vector<2x8x32xf32>
    %335 = tpu.matmul %334, %323, %cst_152 {dimension_numbers = #tpu.dot_dimension_numbers<[2], [1], [1], [2], [0, 0, 0, 1, 1, 2], [0], [0]>} : vector<2x8x8xf32>, vector<2x8x32xf32>, vector<2x8x32xf32> -> vector<2x8x32xf32>
    "tpu.trace_stop"() : () -> ()
    %336 = vector.shape_cast %335 : vector<2x8x32xf32> to vector<16x32xf32>
    %337 = vector.extract_strided_slice %314 {offsets = [0, 4], sizes = [16, 4], strides = [1, 1]} : vector<16x64xf32> to vector<16x4xf32>
    %338 = vector.shape_cast %337 : vector<16x4xf32> to vector<2x8x4xf32>
    %339 = vector.extract_strided_slice %314 {offsets = [0, 36], sizes = [16, 4], strides = [1, 1]} : vector<16x64xf32> to vector<16x4xf32>
    %340 = vector.shape_cast %339 : vector<16x4xf32> to vector<2x8x4xf32>
    %341 = vector.extract_strided_slice %317 {offsets = [0, 32], sizes = [16, 32], strides = [1, 1]} : vector<16x256xf32> to vector<16x32xf32>
    %342 = vector.shape_cast %341 : vector<16x32xf32> to vector<2x8x32xf32>
    "tpu.trace_start"() <{level = 10 : i32, message = "nsd,ntd->nst"}> : () -> ()
    %cst_153 = arith.constant dense<0.000000e+00> : vector<2x8x8xf32>
    %343 = tpu.matmul %338, %340, %cst_153 {dimension_numbers = #tpu.dot_dimension_numbers<[2], [2], [1], [1], [0, 0, 0, 1, 1, 1], [0], [0]>} : vector<2x8x4xf32>, vector<2x8x4xf32>, vector<2x8x8xf32> -> vector<2x8x8xf32>
    "tpu.trace_stop"() : () -> ()
    %cst_154 = arith.constant dense<0xFF800000> : vector<2x8xf32>
    %344 = vector.multi_reduction <maximumf>, %343, %cst_154 [2] : vector<2x8x8xf32> to vector<2x8xf32>
    %345 = vector.shape_cast %344 : vector<2x8xf32> to vector<2x8x1xf32>
    %346 = vector.broadcast %345 : vector<2x8x1xf32> to vector<2x8x8xf32>
    %347 = arith.subf %343, %346 : vector<2x8x8xf32>
    %348 = math.exp %347 : vector<2x8x8xf32>
    %cst_155 = arith.constant dense<0.000000e+00> : vector<2x8xf32>
    %349 = vector.multi_reduction <add>, %348, %cst_155 [2] : vector<2x8x8xf32> to vector<2x8xf32>
    %350 = vector.shape_cast %349 : vector<2x8xf32> to vector<2x8x1xf32>
    %351 = tpu.reciprocal %350 {approx = true} : vector<2x8x1xf32> -> vector<2x8x1xf32>
    %352 = vector.broadcast %351 : vector<2x8x1xf32> to vector<2x8x8xf32>
    %353 = arith.mulf %348, %352 : vector<2x8x8xf32>
    "tpu.trace_start"() <{level = 10 : i32, message = "nst,nte->nse"}> : () -> ()
    %cst_156 = arith.constant dense<0.000000e+00> : vector<2x8x32xf32>
    %354 = tpu.matmul %353, %342, %cst_156 {dimension_numbers = #tpu.dot_dimension_numbers<[2], [1], [1], [2], [0, 0, 0, 1, 1, 2], [0], [0]>} : vector<2x8x8xf32>, vector<2x8x32xf32>, vector<2x8x32xf32> -> vector<2x8x32xf32>
    "tpu.trace_stop"() : () -> ()
    %355 = vector.shape_cast %354 : vector<2x8x32xf32> to vector<16x32xf32>
    %356 = arith.addf %336, %355 : vector<16x32xf32>
    %357 = vector.extract_strided_slice %314 {offsets = [0, 8], sizes = [16, 4], strides = [1, 1]} : vector<16x64xf32> to vector<16x4xf32>
    %358 = vector.shape_cast %357 : vector<16x4xf32> to vector<2x8x4xf32>
    %359 = vector.extract_strided_slice %314 {offsets = [0, 40], sizes = [16, 4], strides = [1, 1]} : vector<16x64xf32> to vector<16x4xf32>
    %360 = vector.shape_cast %359 : vector<16x4xf32> to vector<2x8x4xf32>
    %361 = vector.extract_strided_slice %317 {offsets = [0, 64], sizes = [16, 32], strides = [1, 1]} : vector<16x256xf32> to vector<16x32xf32>
    %362 = vector.shape_cast %361 : vector<16x32xf32> to vector<2x8x32xf32>
    "tpu.trace_start"() <{level = 10 : i32, message = "nsd,ntd->nst"}> : () -> ()
    %cst_157 = arith.constant dense<0.000000e+00> : vector<2x8x8xf32>
    %363 = tpu.matmul %358, %360, %cst_157 {dimension_numbers = #tpu.dot_dimension_numbers<[2], [2], [1], [1], [0, 0, 0, 1, 1, 1], [0], [0]>} : vector<2x8x4xf32>, vector<2x8x4xf32>, vector<2x8x8xf32> -> vector<2x8x8xf32>
    "tpu.trace_stop"() : () -> ()
    %cst_158 = arith.constant dense<0xFF800000> : vector<2x8xf32>
    %364 = vector.multi_reduction <maximumf>, %363, %cst_158 [2] : vector<2x8x8xf32> to vector<2x8xf32>
    %365 = vector.shape_cast %364 : vector<2x8xf32> to vector<2x8x1xf32>
    %366 = vector.broadcast %365 : vector<2x8x1xf32> to vector<2x8x8xf32>
    %367 = arith.subf %363, %366 : vector<2x8x8xf32>
    %368 = math.exp %367 : vector<2x8x8xf32>
    %cst_159 = arith.constant dense<0.000000e+00> : vector<2x8xf32>
    %369 = vector.multi_reduction <add>, %368, %cst_159 [2] : vector<2x8x8xf32> to vector<2x8xf32>
    %370 = vector.shape_cast %369 : vector<2x8xf32> to vector<2x8x1xf32>
    %371 = tpu.reciprocal %370 {approx = true} : vector<2x8x1xf32> -> vector<2x8x1xf32>
    %372 = vector.broadcast %371 : vector<2x8x1xf32> to vector<2x8x8xf32>
    %373 = arith.mulf %368, %372 : vector<2x8x8xf32>
    "tpu.trace_start"() <{level = 10 : i32, message = "nst,nte->nse"}> : () -> ()
    %cst_160 = arith.constant dense<0.000000e+00> : vector<2x8x32xf32>
    %374 = tpu.matmul %373, %362, %cst_160 {dimension_numbers = #tpu.dot_dimension_numbers<[2], [1], [1], [2], [0, 0, 0, 1, 1, 2], [0], [0]>} : vector<2x8x8xf32>, vector<2x8x32xf32>, vector<2x8x32xf32> -> vector<2x8x32xf32>
    "tpu.trace_stop"() : () -> ()
    %375 = vector.shape_cast %374 : vector<2x8x32xf32> to vector<16x32xf32>
    %376 = arith.addf %356, %375 : vector<16x32xf32>
    %377 = vector.extract_strided_slice %314 {offsets = [0, 12], sizes = [16, 4], strides = [1, 1]} : vector<16x64xf32> to vector<16x4xf32>
    %378 = vector.shape_cast %377 : vector<16x4xf32> to vector<2x8x4xf32>
    %379 = vector.extract_strided_slice %314 {offsets = [0, 44], sizes = [16, 4], strides = [1, 1]} : vector<16x64xf32> to vector<16x4xf32>
    %380 = vector.shape_cast %379 : vector<16x4xf32> to vector<2x8x4xf32>
    %381 = vector.extract_strided_slice %317 {offsets = [0, 96], sizes = [16, 32], strides = [1, 1]} : vector<16x256xf32> to vector<16x32xf32>
    %382 = vector.shape_cast %381 : vector<16x32xf32> to vector<2x8x32xf32>
    "tpu.trace_start"() <{level = 10 : i32, message = "nsd,ntd->nst"}> : () -> ()
    %cst_161 = arith.constant dense<0.000000e+00> : vector<2x8x8xf32>
    %383 = tpu.matmul %378, %380, %cst_161 {dimension_numbers = #tpu.dot_dimension_numbers<[2], [2], [1], [1], [0, 0, 0, 1, 1, 1], [0], [0]>} : vector<2x8x4xf32>, vector<2x8x4xf32>, vector<2x8x8xf32> -> vector<2x8x8xf32>
    "tpu.trace_stop"() : () -> ()
    %cst_162 = arith.constant dense<0xFF800000> : vector<2x8xf32>
    %384 = vector.multi_reduction <maximumf>, %383, %cst_162 [2] : vector<2x8x8xf32> to vector<2x8xf32>
    %385 = vector.shape_cast %384 : vector<2x8xf32> to vector<2x8x1xf32>
    %386 = vector.broadcast %385 : vector<2x8x1xf32> to vector<2x8x8xf32>
    %387 = arith.subf %383, %386 : vector<2x8x8xf32>
    %388 = math.exp %387 : vector<2x8x8xf32>
    %cst_163 = arith.constant dense<0.000000e+00> : vector<2x8xf32>
    %389 = vector.multi_reduction <add>, %388, %cst_163 [2] : vector<2x8x8xf32> to vector<2x8xf32>
    %390 = vector.shape_cast %389 : vector<2x8xf32> to vector<2x8x1xf32>
    %391 = tpu.reciprocal %390 {approx = true} : vector<2x8x1xf32> -> vector<2x8x1xf32>
    %392 = vector.broadcast %391 : vector<2x8x1xf32> to vector<2x8x8xf32>
    %393 = arith.mulf %388, %392 : vector<2x8x8xf32>
    "tpu.trace_start"() <{level = 10 : i32, message = "nst,nte->nse"}> : () -> ()
    %cst_164 = arith.constant dense<0.000000e+00> : vector<2x8x32xf32>
    %394 = tpu.matmul %393, %382, %cst_164 {dimension_numbers = #tpu.dot_dimension_numbers<[2], [1], [1], [2], [0, 0, 0, 1, 1, 2], [0], [0]>} : vector<2x8x8xf32>, vector<2x8x32xf32>, vector<2x8x32xf32> -> vector<2x8x32xf32>
    "tpu.trace_stop"() : () -> ()
    %395 = vector.shape_cast %394 : vector<2x8x32xf32> to vector<16x32xf32>
    %396 = arith.addf %376, %395 : vector<16x32xf32>
    %397 = vector.extract_strided_slice %314 {offsets = [0, 16], sizes = [16, 4], strides = [1, 1]} : vector<16x64xf32> to vector<16x4xf32>
    %398 = vector.shape_cast %397 : vector<16x4xf32> to vector<2x8x4xf32>
    %399 = vector.extract_strided_slice %314 {offsets = [0, 48], sizes = [16, 4], strides = [1, 1]} : vector<16x64xf32> to vector<16x4xf32>
    %400 = vector.shape_cast %399 : vector<16x4xf32> to vector<2x8x4xf32>
    %401 = vector.extract_strided_slice %317 {offsets = [0, 128], sizes = [16, 32], strides = [1, 1]} : vector<16x256xf32> to vector<16x32xf32>
    %402 = vector.shape_cast %401 : vector<16x32xf32> to vector<2x8x32xf32>
    "tpu.trace_start"() <{level = 10 : i32, message = "nsd,ntd->nst"}> : () -> ()
    %cst_165 = arith.constant dense<0.000000e+00> : vector<2x8x8xf32>
    %403 = tpu.matmul %398, %400, %cst_165 {dimension_numbers = #tpu.dot_dimension_numbers<[2], [2], [1], [1], [0, 0, 0, 1, 1, 1], [0], [0]>} : vector<2x8x4xf32>, vector<2x8x4xf32>, vector<2x8x8xf32> -> vector<2x8x8xf32>
    "tpu.trace_stop"() : () -> ()
    %cst_166 = arith.constant dense<0xFF800000> : vector<2x8xf32>
    %404 = vector.multi_reduction <maximumf>, %403, %cst_166 [2] : vector<2x8x8xf32> to vector<2x8xf32>
    %405 = vector.shape_cast %404 : vector<2x8xf32> to vector<2x8x1xf32>
    %406 = vector.broadcast %405 : vector<2x8x1xf32> to vector<2x8x8xf32>
    %407 = arith.subf %403, %406 : vector<2x8x8xf32>
    %408 = math.exp %407 : vector<2x8x8xf32>
    %cst_167 = arith.constant dense<0.000000e+00> : vector<2x8xf32>
    %409 = vector.multi_reduction <add>, %408, %cst_167 [2] : vector<2x8x8xf32> to vector<2x8xf32>
    %410 = vector.shape_cast %409 : vector<2x8xf32> to vector<2x8x1xf32>
    %411 = tpu.reciprocal %410 {approx = true} : vector<2x8x1xf32> -> vector<2x8x1xf32>
    %412 = vector.broadcast %411 : vector<2x8x1xf32> to vector<2x8x8xf32>
    %413 = arith.mulf %408, %412 : vector<2x8x8xf32>
    "tpu.trace_start"() <{level = 10 : i32, message = "nst,nte->nse"}> : () -> ()
    %cst_168 = arith.constant dense<0.000000e+00> : vector<2x8x32xf32>
    %414 = tpu.matmul %413, %402, %cst_168 {dimension_numbers = #tpu.dot_dimension_numbers<[2], [1], [1], [2], [0, 0, 0, 1, 1, 2], [0], [0]>} : vector<2x8x8xf32>, vector<2x8x32xf32>, vector<2x8x32xf32> -> vector<2x8x32xf32>
    "tpu.trace_stop"() : () -> ()
    %415 = vector.shape_cast %414 : vector<2x8x32xf32> to vector<16x32xf32>
    %416 = arith.addf %396, %415 : vector<16x32xf32>
    %417 = vector.extract_strided_slice %314 {offsets = [0, 20], sizes = [16, 4], strides = [1, 1]} : vector<16x64xf32> to vector<16x4xf32>
    %418 = vector.shape_cast %417 : vector<16x4xf32> to vector<2x8x4xf32>
    %419 = vector.extract_strided_slice %314 {offsets = [0, 52], sizes = [16, 4], strides = [1, 1]} : vector<16x64xf32> to vector<16x4xf32>
    %420 = vector.shape_cast %419 : vector<16x4xf32> to vector<2x8x4xf32>
    %421 = vector.extract_strided_slice %317 {offsets = [0, 160], sizes = [16, 32], strides = [1, 1]} : vector<16x256xf32> to vector<16x32xf32>
    %422 = vector.shape_cast %421 : vector<16x32xf32> to vector<2x8x32xf32>
    "tpu.trace_start"() <{level = 10 : i32, message = "nsd,ntd->nst"}> : () -> ()
    %cst_169 = arith.constant dense<0.000000e+00> : vector<2x8x8xf32>
    %423 = tpu.matmul %418, %420, %cst_169 {dimension_numbers = #tpu.dot_dimension_numbers<[2], [2], [1], [1], [0, 0, 0, 1, 1, 1], [0], [0]>} : vector<2x8x4xf32>, vector<2x8x4xf32>, vector<2x8x8xf32> -> vector<2x8x8xf32>
    "tpu.trace_stop"() : () -> ()
    %cst_170 = arith.constant dense<0xFF800000> : vector<2x8xf32>
    %424 = vector.multi_reduction <maximumf>, %423, %cst_170 [2] : vector<2x8x8xf32> to vector<2x8xf32>
    %425 = vector.shape_cast %424 : vector<2x8xf32> to vector<2x8x1xf32>
    %426 = vector.broadcast %425 : vector<2x8x1xf32> to vector<2x8x8xf32>
    %427 = arith.subf %423, %426 : vector<2x8x8xf32>
    %428 = math.exp %427 : vector<2x8x8xf32>
    %cst_171 = arith.constant dense<0.000000e+00> : vector<2x8xf32>
    %429 = vector.multi_reduction <add>, %428, %cst_171 [2] : vector<2x8x8xf32> to vector<2x8xf32>
    %430 = vector.shape_cast %429 : vector<2x8xf32> to vector<2x8x1xf32>
    %431 = tpu.reciprocal %430 {approx = true} : vector<2x8x1xf32> -> vector<2x8x1xf32>
    %432 = vector.broadcast %431 : vector<2x8x1xf32> to vector<2x8x8xf32>
    %433 = arith.mulf %428, %432 : vector<2x8x8xf32>
    "tpu.trace_start"() <{level = 10 : i32, message = "nst,nte->nse"}> : () -> ()
    %cst_172 = arith.constant dense<0.000000e+00> : vector<2x8x32xf32>
    %434 = tpu.matmul %433, %422, %cst_172 {dimension_numbers = #tpu.dot_dimension_numbers<[2], [1], [1], [2], [0, 0, 0, 1, 1, 2], [0], [0]>} : vector<2x8x8xf32>, vector<2x8x32xf32>, vector<2x8x32xf32> -> vector<2x8x32xf32>
    "tpu.trace_stop"() : () -> ()
    %435 = vector.shape_cast %434 : vector<2x8x32xf32> to vector<16x32xf32>
    %436 = arith.addf %416, %435 : vector<16x32xf32>
    %437 = vector.extract_strided_slice %314 {offsets = [0, 24], sizes = [16, 4], strides = [1, 1]} : vector<16x64xf32> to vector<16x4xf32>
    %438 = vector.shape_cast %437 : vector<16x4xf32> to vector<2x8x4xf32>
    %439 = vector.extract_strided_slice %314 {offsets = [0, 56], sizes = [16, 4], strides = [1, 1]} : vector<16x64xf32> to vector<16x4xf32>
    %440 = vector.shape_cast %439 : vector<16x4xf32> to vector<2x8x4xf32>
    %441 = vector.extract_strided_slice %317 {offsets = [0, 192], sizes = [16, 32], strides = [1, 1]} : vector<16x256xf32> to vector<16x32xf32>
    %442 = vector.shape_cast %441 : vector<16x32xf32> to vector<2x8x32xf32>
    "tpu.trace_start"() <{level = 10 : i32, message = "nsd,ntd->nst"}> : () -> ()
    %cst_173 = arith.constant dense<0.000000e+00> : vector<2x8x8xf32>
    %443 = tpu.matmul %438, %440, %cst_173 {dimension_numbers = #tpu.dot_dimension_numbers<[2], [2], [1], [1], [0, 0, 0, 1, 1, 1], [0], [0]>} : vector<2x8x4xf32>, vector<2x8x4xf32>, vector<2x8x8xf32> -> vector<2x8x8xf32>
    "tpu.trace_stop"() : () -> ()
    %cst_174 = arith.constant dense<0xFF800000> : vector<2x8xf32>
    %444 = vector.multi_reduction <maximumf>, %443, %cst_174 [2] : vector<2x8x8xf32> to vector<2x8xf32>
    %445 = vector.shape_cast %444 : vector<2x8xf32> to vector<2x8x1xf32>
    %446 = vector.broadcast %445 : vector<2x8x1xf32> to vector<2x8x8xf32>
    %447 = arith.subf %443, %446 : vector<2x8x8xf32>
    %448 = math.exp %447 : vector<2x8x8xf32>
    %cst_175 = arith.constant dense<0.000000e+00> : vector<2x8xf32>
    %449 = vector.multi_reduction <add>, %448, %cst_175 [2] : vector<2x8x8xf32> to vector<2x8xf32>
    %450 = vector.shape_cast %449 : vector<2x8xf32> to vector<2x8x1xf32>
    %451 = tpu.reciprocal %450 {approx = true} : vector<2x8x1xf32> -> vector<2x8x1xf32>
    %452 = vector.broadcast %451 : vector<2x8x1xf32> to vector<2x8x8xf32>
    %453 = arith.mulf %448, %452 : vector<2x8x8xf32>
    "tpu.trace_start"() <{level = 10 : i32, message = "nst,nte->nse"}> : () -> ()
    %cst_176 = arith.constant dense<0.000000e+00> : vector<2x8x32xf32>
    %454 = tpu.matmul %453, %442, %cst_176 {dimension_numbers = #tpu.dot_dimension_numbers<[2], [1], [1], [2], [0, 0, 0, 1, 1, 2], [0], [0]>} : vector<2x8x8xf32>, vector<2x8x32xf32>, vector<2x8x32xf32> -> vector<2x8x32xf32>
    "tpu.trace_stop"() : () -> ()
    %455 = vector.shape_cast %454 : vector<2x8x32xf32> to vector<16x32xf32>
    %456 = arith.addf %436, %455 : vector<16x32xf32>
    %457 = vector.extract_strided_slice %314 {offsets = [0, 28], sizes = [16, 4], strides = [1, 1]} : vector<16x64xf32> to vector<16x4xf32>
    %458 = vector.shape_cast %457 : vector<16x4xf32> to vector<2x8x4xf32>
    %459 = vector.extract_strided_slice %314 {offsets = [0, 60], sizes = [16, 4], strides = [1, 1]} : vector<16x64xf32> to vector<16x4xf32>
    %460 = vector.shape_cast %459 : vector<16x4xf32> to vector<2x8x4xf32>
    %461 = vector.extract_strided_slice %317 {offsets = [0, 224], sizes = [16, 32], strides = [1, 1]} : vector<16x256xf32> to vector<16x32xf32>
    %462 = vector.shape_cast %461 : vector<16x32xf32> to vector<2x8x32xf32>
    "tpu.trace_start"() <{level = 10 : i32, message = "nsd,ntd->nst"}> : () -> ()
    %cst_177 = arith.constant dense<0.000000e+00> : vector<2x8x8xf32>
    %463 = tpu.matmul %458, %460, %cst_177 {dimension_numbers = #tpu.dot_dimension_numbers<[2], [2], [1], [1], [0, 0, 0, 1, 1, 1], [0], [0]>} : vector<2x8x4xf32>, vector<2x8x4xf32>, vector<2x8x8xf32> -> vector<2x8x8xf32>
    "tpu.trace_stop"() : () -> ()
    %cst_178 = arith.constant dense<0xFF800000> : vector<2x8xf32>
    %464 = vector.multi_reduction <maximumf>, %463, %cst_178 [2] : vector<2x8x8xf32> to vector<2x8xf32>
    %465 = vector.shape_cast %464 : vector<2x8xf32> to vector<2x8x1xf32>
    %466 = vector.broadcast %465 : vector<2x8x1xf32> to vector<2x8x8xf32>
    %467 = arith.subf %463, %466 : vector<2x8x8xf32>
    %468 = math.exp %467 : vector<2x8x8xf32>
    %cst_179 = arith.constant dense<0.000000e+00> : vector<2x8xf32>
    %469 = vector.multi_reduction <add>, %468, %cst_179 [2] : vector<2x8x8xf32> to vector<2x8xf32>
    %470 = vector.shape_cast %469 : vector<2x8xf32> to vector<2x8x1xf32>
    %471 = tpu.reciprocal %470 {approx = true} : vector<2x8x1xf32> -> vector<2x8x1xf32>
    %472 = vector.broadcast %471 : vector<2x8x1xf32> to vector<2x8x8xf32>
    %473 = arith.mulf %468, %472 : vector<2x8x8xf32>
    "tpu.trace_start"() <{level = 10 : i32, message = "nst,nte->nse"}> : () -> ()
    %cst_180 = arith.constant dense<0.000000e+00> : vector<2x8x32xf32>
    %474 = tpu.matmul %473, %462, %cst_180 {dimension_numbers = #tpu.dot_dimension_numbers<[2], [1], [1], [2], [0, 0, 0, 1, 1, 2], [0], [0]>} : vector<2x8x8xf32>, vector<2x8x32xf32>, vector<2x8x32xf32> -> vector<2x8x32xf32>
    "tpu.trace_stop"() : () -> ()
    %475 = vector.shape_cast %474 : vector<2x8x32xf32> to vector<16x32xf32>
    %476 = arith.addf %456, %475 : vector<16x32xf32>
    %c1_181 = arith.constant 1 : index
    %c0_182 = arith.constant 0 : index
    %c0_183 = arith.constant 0 : index
    %477 = vector.load %arg5[%c1_181, %c0_182, %c0_183] : memref<6x1x32xf32, #tpu.memory_space<vmem>>, vector<1x1x32xf32>
    %478 = vector.shape_cast %477 : vector<1x1x32xf32> to vector<1x32xf32>
    %479 = vector.broadcast %478 : vector<1x32xf32> to vector<16x32xf32>
    %480 = arith.addf %476, %479 : vector<16x32xf32>
    %481 = arith.addf %306, %480 : vector<16x32xf32>
    %c1_184 = arith.constant 1 : index
    %c0_185 = arith.constant 0 : index
    %c0_186 = arith.constant 0 : index
    %482 = vector.load %arg6[%c1_184, %c0_185, %c0_186] : memref<6x1x32xf32, #tpu.memory_space<vmem>>, vector<1x1x32xf32>
    %483 = vector.shape_cast %482 : vector<1x1x32xf32> to vector<1x32xf32>
    %c1_187 = arith.constant 1 : index
    %c0_188 = arith.constant 0 : index
    %c0_189 = arith.constant 0 : index
    %484 = vector.load %arg7[%c1_187, %c0_188, %c0_189] : memref<6x1x32xf32, #tpu.memory_space<vmem>>, vector<1x1x32xf32>
    %485 = vector.shape_cast %484 : vector<1x1x32xf32> to vector<1x32xf32>
    %cst_190 = arith.constant dense<0.000000e+00> : vector<16xf32>
    %486 = vector.multi_reduction <add>, %481, %cst_190 [1] : vector<16x32xf32> to vector<16xf32>
    %487 = vector.shape_cast %486 : vector<16xf32> to vector<16x1xf32>
    %cst_191 = arith.constant 3.200000e+01 : f32
    %488 = vector.broadcast %cst_191 : f32 to vector<16x1xf32>
    %489 = arith.divf %487, %488 : vector<16x1xf32>
    %490 = vector.broadcast %489 : vector<16x1xf32> to vector<16x32xf32>
    %491 = arith.subf %481, %490 : vector<16x32xf32>
    %492 = arith.mulf %491, %491 : vector<16x32xf32>
    %cst_192 = arith.constant dense<0.000000e+00> : vector<16xf32>
    %493 = vector.multi_reduction <add>, %492, %cst_192 [1] : vector<16x32xf32> to vector<16xf32>
    %494 = vector.shape_cast %493 : vector<16xf32> to vector<16x1xf32>
    %cst_193 = arith.constant 3.200000e+01 : f32
    %495 = vector.broadcast %cst_193 : f32 to vector<16x1xf32>
    %496 = arith.divf %494, %495 : vector<16x1xf32>
    %cst_194 = arith.constant 9.99999974E-6 : f32
    %497 = vector.broadcast %cst_194 : f32 to vector<16x1xf32>
    %498 = arith.addf %496, %497 : vector<16x1xf32>
    %499 = math.rsqrt %498 : vector<16x1xf32>
    %500 = vector.broadcast %499 : vector<16x1xf32> to vector<16x32xf32>
    %501 = arith.mulf %491, %500 : vector<16x32xf32>
    %502 = vector.broadcast %483 : vector<1x32xf32> to vector<16x32xf32>
    %503 = arith.mulf %501, %502 : vector<16x32xf32>
    %504 = vector.broadcast %485 : vector<1x32xf32> to vector<16x32xf32>
    %505 = arith.addf %503, %504 : vector<16x32xf32>
    %506 = arith.truncf %505 : vector<16x32xf32> to vector<16x32xbf16>
    %c1_195 = arith.constant 1 : index
    %c0_196 = arith.constant 0 : index
    %c0_197 = arith.constant 0 : index
    %507 = vector.load %arg8[%c1_195, %c0_196, %c0_197] : memref<6x32x64xbf16, #tpu.memory_space<vmem>>, vector<1x32x64xbf16>
    %508 = vector.shape_cast %507 : vector<1x32x64xbf16> to vector<32x64xbf16>
    %cst_198 = arith.constant dense<0.000000e+00> : vector<16x64xf32>
    %509 = tpu.matmul %506, %508, %cst_198 {dimension_numbers = #tpu.dot_dimension_numbers<[1], [0], [0], [1], [0, 0, 1, 1], [], []>} : vector<16x32xbf16>, vector<32x64xbf16>, vector<16x64xf32> -> vector<16x64xf32>
    %c1_199 = arith.constant 1 : index
    %c0_200 = arith.constant 0 : index
    %c0_201 = arith.constant 0 : index
    %510 = vector.load %arg9[%c1_199, %c0_200, %c0_201] : memref<6x1x64xf32, #tpu.memory_space<vmem>>, vector<1x1x64xf32>
    %511 = vector.shape_cast %510 : vector<1x1x64xf32> to vector<1x64xf32>
    %512 = vector.broadcast %511 : vector<1x64xf32> to vector<16x64xf32>
    %513 = arith.addf %509, %512 : vector<16x64xf32>
    %cst_202 = arith.constant 0.000000e+00 : f32
    %514 = vector.broadcast %cst_202 : f32 to vector<16x64xf32>
    %515 = arith.maximumf %513, %514 : vector<16x64xf32>
    %516 = arith.truncf %515 : vector<16x64xf32> to vector<16x64xbf16>
    %c1_203 = arith.constant 1 : index
    %c0_204 = arith.constant 0 : index
    %c0_205 = arith.constant 0 : index
    %517 = vector.load %arg10[%c1_203, %c0_204, %c0_205] : memref<6x64x32xbf16, #tpu.memory_space<vmem>>, vector<1x64x32xbf16>
    %518 = vector.shape_cast %517 : vector<1x64x32xbf16> to vector<64x32xbf16>
    %cst_206 = arith.constant dense<0.000000e+00> : vector<16x32xf32>
    %519 = tpu.matmul %516, %518, %cst_206 {dimension_numbers = #tpu.dot_dimension_numbers<[1], [0], [0], [1], [0, 0, 1, 1], [], []>} : vector<16x64xbf16>, vector<64x32xbf16>, vector<16x32xf32> -> vector<16x32xf32>
    %c1_207 = arith.constant 1 : index
    %c0_208 = arith.constant 0 : index
    %c0_209 = arith.constant 0 : index
    %520 = vector.load %arg11[%c1_207, %c0_208, %c0_209] : memref<6x1x32xf32, #tpu.memory_space<vmem>>, vector<1x1x32xf32>
    %521 = vector.shape_cast %520 : vector<1x1x32xf32> to vector<1x32xf32>
    %522 = vector.broadcast %521 : vector<1x32xf32> to vector<16x32xf32>
    %523 = arith.addf %519, %522 : vector<16x32xf32>
    %524 = arith.addf %505, %523 : vector<16x32xf32>
    %c1_210 = arith.constant 1 : index
    %c0_211 = arith.constant 0 : index
    %c0_212 = arith.constant 0 : index
    %525 = vector.load %arg12[%c1_210, %c0_211, %c0_212] : memref<6x1x32xf32, #tpu.memory_space<vmem>>, vector<1x1x32xf32>
    %526 = vector.shape_cast %525 : vector<1x1x32xf32> to vector<1x32xf32>
    %c1_213 = arith.constant 1 : index
    %c0_214 = arith.constant 0 : index
    %c0_215 = arith.constant 0 : index
    %527 = vector.load %arg13[%c1_213, %c0_214, %c0_215] : memref<6x1x32xf32, #tpu.memory_space<vmem>>, vector<1x1x32xf32>
    %528 = vector.shape_cast %527 : vector<1x1x32xf32> to vector<1x32xf32>
    %cst_216 = arith.constant dense<0.000000e+00> : vector<16xf32>
    %529 = vector.multi_reduction <add>, %524, %cst_216 [1] : vector<16x32xf32> to vector<16xf32>
    %530 = vector.shape_cast %529 : vector<16xf32> to vector<16x1xf32>
    %cst_217 = arith.constant 3.200000e+01 : f32
    %531 = vector.broadcast %cst_217 : f32 to vector<16x1xf32>
    %532 = arith.divf %530, %531 : vector<16x1xf32>
    %533 = vector.broadcast %532 : vector<16x1xf32> to vector<16x32xf32>
    %534 = arith.subf %524, %533 : vector<16x32xf32>
    %535 = arith.mulf %534, %534 : vector<16x32xf32>
    %cst_218 = arith.constant dense<0.000000e+00> : vector<16xf32>
    %536 = vector.multi_reduction <add>, %535, %cst_218 [1] : vector<16x32xf32> to vector<16xf32>
    %537 = vector.shape_cast %536 : vector<16xf32> to vector<16x1xf32>
    %cst_219 = arith.constant 3.200000e+01 : f32
    %538 = vector.broadcast %cst_219 : f32 to vector<16x1xf32>
    %539 = arith.divf %537, %538 : vector<16x1xf32>
    %cst_220 = arith.constant 9.99999974E-6 : f32
    %540 = vector.broadcast %cst_220 : f32 to vector<16x1xf32>
    %541 = arith.addf %539, %540 : vector<16x1xf32>
    %542 = math.rsqrt %541 : vector<16x1xf32>
    %543 = vector.broadcast %542 : vector<16x1xf32> to vector<16x32xf32>
    %544 = arith.mulf %534, %543 : vector<16x32xf32>
    %545 = vector.broadcast %526 : vector<1x32xf32> to vector<16x32xf32>
    %546 = arith.mulf %544, %545 : vector<16x32xf32>
    %547 = vector.broadcast %528 : vector<1x32xf32> to vector<16x32xf32>
    %548 = arith.addf %546, %547 : vector<16x32xf32>
    %549 = arith.truncf %548 : vector<16x32xf32> to vector<16x32xbf16>
    %c2_221 = arith.constant 2 : index
    %c0_222 = arith.constant 0 : index
    %c0_223 = arith.constant 0 : index
    %550 = vector.load %arg2[%c2_221, %c0_222, %c0_223] : memref<6x32x64xbf16, #tpu.memory_space<vmem>>, vector<1x32x64xbf16>
    %551 = vector.shape_cast %550 : vector<1x32x64xbf16> to vector<32x64xbf16>
    %cst_224 = arith.constant dense<0.000000e+00> : vector<16x64xf32>
    %552 = tpu.matmul %549, %551, %cst_224 {dimension_numbers = #tpu.dot_dimension_numbers<[1], [0], [0], [1], [0, 0, 1, 1], [], []>} : vector<16x32xbf16>, vector<32x64xbf16>, vector<16x64xf32> -> vector<16x64xf32>
    %c2_225 = arith.constant 2 : index
    %c0_226 = arith.constant 0 : index
    %c0_227 = arith.constant 0 : index
    %553 = vector.load %arg3[%c2_225, %c0_226, %c0_227] : memref<6x1x64xf32, #tpu.memory_space<vmem>>, vector<1x1x64xf32>
    %554 = vector.shape_cast %553 : vector<1x1x64xf32> to vector<1x64xf32>
    %555 = vector.broadcast %554 : vector<1x64xf32> to vector<16x64xf32>
    %556 = arith.addf %552, %555 : vector<16x64xf32>
    %c2_228 = arith.constant 2 : index
    %c0_229 = arith.constant 0 : index
    %c0_230 = arith.constant 0 : index
    %557 = vector.load %arg4[%c2_228, %c0_229, %c0_230] : memref<6x32x256xbf16, #tpu.memory_space<vmem>>, vector<1x32x256xbf16>
    %558 = vector.shape_cast %557 : vector<1x32x256xbf16> to vector<32x256xbf16>
    %cst_231 = arith.constant dense<0.000000e+00> : vector<16x256xf32>
    %559 = tpu.matmul %549, %558, %cst_231 {dimension_numbers = #tpu.dot_dimension_numbers<[1], [0], [0], [1], [0, 0, 1, 1], [], []>} : vector<16x32xbf16>, vector<32x256xbf16>, vector<16x256xf32> -> vector<16x256xf32>
    %560 = vector.extract_strided_slice %556 {offsets = [0, 0], sizes = [16, 4], strides = [1, 1]} : vector<16x64xf32> to vector<16x4xf32>
    %561 = vector.shape_cast %560 : vector<16x4xf32> to vector<2x8x4xf32>
    %562 = vector.extract_strided_slice %556 {offsets = [0, 32], sizes = [16, 4], strides = [1, 1]} : vector<16x64xf32> to vector<16x4xf32>
    %563 = vector.shape_cast %562 : vector<16x4xf32> to vector<2x8x4xf32>
    %564 = vector.extract_strided_slice %559 {offsets = [0, 0], sizes = [16, 32], strides = [1, 1]} : vector<16x256xf32> to vector<16x32xf32>
    %565 = vector.shape_cast %564 : vector<16x32xf32> to vector<2x8x32xf32>
    "tpu.trace_start"() <{level = 10 : i32, message = "nsd,ntd->nst"}> : () -> ()
    %cst_232 = arith.constant dense<0.000000e+00> : vector<2x8x8xf32>
    %566 = tpu.matmul %561, %563, %cst_232 {dimension_numbers = #tpu.dot_dimension_numbers<[2], [2], [1], [1], [0, 0, 0, 1, 1, 1], [0], [0]>} : vector<2x8x4xf32>, vector<2x8x4xf32>, vector<2x8x8xf32> -> vector<2x8x8xf32>
    "tpu.trace_stop"() : () -> ()
    %cst_233 = arith.constant dense<0xFF800000> : vector<2x8xf32>
    %567 = vector.multi_reduction <maximumf>, %566, %cst_233 [2] : vector<2x8x8xf32> to vector<2x8xf32>
    %568 = vector.shape_cast %567 : vector<2x8xf32> to vector<2x8x1xf32>
    %569 = vector.broadcast %568 : vector<2x8x1xf32> to vector<2x8x8xf32>
    %570 = arith.subf %566, %569 : vector<2x8x8xf32>
    %571 = math.exp %570 : vector<2x8x8xf32>
    %cst_234 = arith.constant dense<0.000000e+00> : vector<2x8xf32>
    %572 = vector.multi_reduction <add>, %571, %cst_234 [2] : vector<2x8x8xf32> to vector<2x8xf32>
    %573 = vector.shape_cast %572 : vector<2x8xf32> to vector<2x8x1xf32>
    %574 = tpu.reciprocal %573 {approx = true} : vector<2x8x1xf32> -> vector<2x8x1xf32>
    %575 = vector.broadcast %574 : vector<2x8x1xf32> to vector<2x8x8xf32>
    %576 = arith.mulf %571, %575 : vector<2x8x8xf32>
    "tpu.trace_start"() <{level = 10 : i32, message = "nst,nte->nse"}> : () -> ()
    %cst_235 = arith.constant dense<0.000000e+00> : vector<2x8x32xf32>
    %577 = tpu.matmul %576, %565, %cst_235 {dimension_numbers = #tpu.dot_dimension_numbers<[2], [1], [1], [2], [0, 0, 0, 1, 1, 2], [0], [0]>} : vector<2x8x8xf32>, vector<2x8x32xf32>, vector<2x8x32xf32> -> vector<2x8x32xf32>
    "tpu.trace_stop"() : () -> ()
    %578 = vector.shape_cast %577 : vector<2x8x32xf32> to vector<16x32xf32>
    %579 = vector.extract_strided_slice %556 {offsets = [0, 4], sizes = [16, 4], strides = [1, 1]} : vector<16x64xf32> to vector<16x4xf32>
    %580 = vector.shape_cast %579 : vector<16x4xf32> to vector<2x8x4xf32>
    %581 = vector.extract_strided_slice %556 {offsets = [0, 36], sizes = [16, 4], strides = [1, 1]} : vector<16x64xf32> to vector<16x4xf32>
    %582 = vector.shape_cast %581 : vector<16x4xf32> to vector<2x8x4xf32>
    %583 = vector.extract_strided_slice %559 {offsets = [0, 32], sizes = [16, 32], strides = [1, 1]} : vector<16x256xf32> to vector<16x32xf32>
    %584 = vector.shape_cast %583 : vector<16x32xf32> to vector<2x8x32xf32>
    "tpu.trace_start"() <{level = 10 : i32, message = "nsd,ntd->nst"}> : () -> ()
    %cst_236 = arith.constant dense<0.000000e+00> : vector<2x8x8xf32>
    %585 = tpu.matmul %580, %582, %cst_236 {dimension_numbers = #tpu.dot_dimension_numbers<[2], [2], [1], [1], [0, 0, 0, 1, 1, 1], [0], [0]>} : vector<2x8x4xf32>, vector<2x8x4xf32>, vector<2x8x8xf32> -> vector<2x8x8xf32>
    "tpu.trace_stop"() : () -> ()
    %cst_237 = arith.constant dense<0xFF800000> : vector<2x8xf32>
    %586 = vector.multi_reduction <maximumf>, %585, %cst_237 [2] : vector<2x8x8xf32> to vector<2x8xf32>
    %587 = vector.shape_cast %586 : vector<2x8xf32> to vector<2x8x1xf32>
    %588 = vector.broadcast %587 : vector<2x8x1xf32> to vector<2x8x8xf32>
    %589 = arith.subf %585, %588 : vector<2x8x8xf32>
    %590 = math.exp %589 : vector<2x8x8xf32>
    %cst_238 = arith.constant dense<0.000000e+00> : vector<2x8xf32>
    %591 = vector.multi_reduction <add>, %590, %cst_238 [2] : vector<2x8x8xf32> to vector<2x8xf32>
    %592 = vector.shape_cast %591 : vector<2x8xf32> to vector<2x8x1xf32>
    %593 = tpu.reciprocal %592 {approx = true} : vector<2x8x1xf32> -> vector<2x8x1xf32>
    %594 = vector.broadcast %593 : vector<2x8x1xf32> to vector<2x8x8xf32>
    %595 = arith.mulf %590, %594 : vector<2x8x8xf32>
    "tpu.trace_start"() <{level = 10 : i32, message = "nst,nte->nse"}> : () -> ()
    %cst_239 = arith.constant dense<0.000000e+00> : vector<2x8x32xf32>
    %596 = tpu.matmul %595, %584, %cst_239 {dimension_numbers = #tpu.dot_dimension_numbers<[2], [1], [1], [2], [0, 0, 0, 1, 1, 2], [0], [0]>} : vector<2x8x8xf32>, vector<2x8x32xf32>, vector<2x8x32xf32> -> vector<2x8x32xf32>
    "tpu.trace_stop"() : () -> ()
    %597 = vector.shape_cast %596 : vector<2x8x32xf32> to vector<16x32xf32>
    %598 = arith.addf %578, %597 : vector<16x32xf32>
    %599 = vector.extract_strided_slice %556 {offsets = [0, 8], sizes = [16, 4], strides = [1, 1]} : vector<16x64xf32> to vector<16x4xf32>
    %600 = vector.shape_cast %599 : vector<16x4xf32> to vector<2x8x4xf32>
    %601 = vector.extract_strided_slice %556 {offsets = [0, 40], sizes = [16, 4], strides = [1, 1]} : vector<16x64xf32> to vector<16x4xf32>
    %602 = vector.shape_cast %601 : vector<16x4xf32> to vector<2x8x4xf32>
    %603 = vector.extract_strided_slice %559 {offsets = [0, 64], sizes = [16, 32], strides = [1, 1]} : vector<16x256xf32> to vector<16x32xf32>
    %604 = vector.shape_cast %603 : vector<16x32xf32> to vector<2x8x32xf32>
    "tpu.trace_start"() <{level = 10 : i32, message = "nsd,ntd->nst"}> : () -> ()
    %cst_240 = arith.constant dense<0.000000e+00> : vector<2x8x8xf32>
    %605 = tpu.matmul %600, %602, %cst_240 {dimension_numbers = #tpu.dot_dimension_numbers<[2], [2], [1], [1], [0, 0, 0, 1, 1, 1], [0], [0]>} : vector<2x8x4xf32>, vector<2x8x4xf32>, vector<2x8x8xf32> -> vector<2x8x8xf32>
    "tpu.trace_stop"() : () -> ()
    %cst_241 = arith.constant dense<0xFF800000> : vector<2x8xf32>
    %606 = vector.multi_reduction <maximumf>, %605, %cst_241 [2] : vector<2x8x8xf32> to vector<2x8xf32>
    %607 = vector.shape_cast %606 : vector<2x8xf32> to vector<2x8x1xf32>
    %608 = vector.broadcast %607 : vector<2x8x1xf32> to vector<2x8x8xf32>
    %609 = arith.subf %605, %608 : vector<2x8x8xf32>
    %610 = math.exp %609 : vector<2x8x8xf32>
    %cst_242 = arith.constant dense<0.000000e+00> : vector<2x8xf32>
    %611 = vector.multi_reduction <add>, %610, %cst_242 [2] : vector<2x8x8xf32> to vector<2x8xf32>
    %612 = vector.shape_cast %611 : vector<2x8xf32> to vector<2x8x1xf32>
    %613 = tpu.reciprocal %612 {approx = true} : vector<2x8x1xf32> -> vector<2x8x1xf32>
    %614 = vector.broadcast %613 : vector<2x8x1xf32> to vector<2x8x8xf32>
    %615 = arith.mulf %610, %614 : vector<2x8x8xf32>
    "tpu.trace_start"() <{level = 10 : i32, message = "nst,nte->nse"}> : () -> ()
    %cst_243 = arith.constant dense<0.000000e+00> : vector<2x8x32xf32>
    %616 = tpu.matmul %615, %604, %cst_243 {dimension_numbers = #tpu.dot_dimension_numbers<[2], [1], [1], [2], [0, 0, 0, 1, 1, 2], [0], [0]>} : vector<2x8x8xf32>, vector<2x8x32xf32>, vector<2x8x32xf32> -> vector<2x8x32xf32>
    "tpu.trace_stop"() : () -> ()
    %617 = vector.shape_cast %616 : vector<2x8x32xf32> to vector<16x32xf32>
    %618 = arith.addf %598, %617 : vector<16x32xf32>
    %619 = vector.extract_strided_slice %556 {offsets = [0, 12], sizes = [16, 4], strides = [1, 1]} : vector<16x64xf32> to vector<16x4xf32>
    %620 = vector.shape_cast %619 : vector<16x4xf32> to vector<2x8x4xf32>
    %621 = vector.extract_strided_slice %556 {offsets = [0, 44], sizes = [16, 4], strides = [1, 1]} : vector<16x64xf32> to vector<16x4xf32>
    %622 = vector.shape_cast %621 : vector<16x4xf32> to vector<2x8x4xf32>
    %623 = vector.extract_strided_slice %559 {offsets = [0, 96], sizes = [16, 32], strides = [1, 1]} : vector<16x256xf32> to vector<16x32xf32>
    %624 = vector.shape_cast %623 : vector<16x32xf32> to vector<2x8x32xf32>
    "tpu.trace_start"() <{level = 10 : i32, message = "nsd,ntd->nst"}> : () -> ()
    %cst_244 = arith.constant dense<0.000000e+00> : vector<2x8x8xf32>
    %625 = tpu.matmul %620, %622, %cst_244 {dimension_numbers = #tpu.dot_dimension_numbers<[2], [2], [1], [1], [0, 0, 0, 1, 1, 1], [0], [0]>} : vector<2x8x4xf32>, vector<2x8x4xf32>, vector<2x8x8xf32> -> vector<2x8x8xf32>
    "tpu.trace_stop"() : () -> ()
    %cst_245 = arith.constant dense<0xFF800000> : vector<2x8xf32>
    %626 = vector.multi_reduction <maximumf>, %625, %cst_245 [2] : vector<2x8x8xf32> to vector<2x8xf32>
    %627 = vector.shape_cast %626 : vector<2x8xf32> to vector<2x8x1xf32>
    %628 = vector.broadcast %627 : vector<2x8x1xf32> to vector<2x8x8xf32>
    %629 = arith.subf %625, %628 : vector<2x8x8xf32>
    %630 = math.exp %629 : vector<2x8x8xf32>
    %cst_246 = arith.constant dense<0.000000e+00> : vector<2x8xf32>
    %631 = vector.multi_reduction <add>, %630, %cst_246 [2] : vector<2x8x8xf32> to vector<2x8xf32>
    %632 = vector.shape_cast %631 : vector<2x8xf32> to vector<2x8x1xf32>
    %633 = tpu.reciprocal %632 {approx = true} : vector<2x8x1xf32> -> vector<2x8x1xf32>
    %634 = vector.broadcast %633 : vector<2x8x1xf32> to vector<2x8x8xf32>
    %635 = arith.mulf %630, %634 : vector<2x8x8xf32>
    "tpu.trace_start"() <{level = 10 : i32, message = "nst,nte->nse"}> : () -> ()
    %cst_247 = arith.constant dense<0.000000e+00> : vector<2x8x32xf32>
    %636 = tpu.matmul %635, %624, %cst_247 {dimension_numbers = #tpu.dot_dimension_numbers<[2], [1], [1], [2], [0, 0, 0, 1, 1, 2], [0], [0]>} : vector<2x8x8xf32>, vector<2x8x32xf32>, vector<2x8x32xf32> -> vector<2x8x32xf32>
    "tpu.trace_stop"() : () -> ()
    %637 = vector.shape_cast %636 : vector<2x8x32xf32> to vector<16x32xf32>
    %638 = arith.addf %618, %637 : vector<16x32xf32>
    %639 = vector.extract_strided_slice %556 {offsets = [0, 16], sizes = [16, 4], strides = [1, 1]} : vector<16x64xf32> to vector<16x4xf32>
    %640 = vector.shape_cast %639 : vector<16x4xf32> to vector<2x8x4xf32>
    %641 = vector.extract_strided_slice %556 {offsets = [0, 48], sizes = [16, 4], strides = [1, 1]} : vector<16x64xf32> to vector<16x4xf32>
    %642 = vector.shape_cast %641 : vector<16x4xf32> to vector<2x8x4xf32>
    %643 = vector.extract_strided_slice %559 {offsets = [0, 128], sizes = [16, 32], strides = [1, 1]} : vector<16x256xf32> to vector<16x32xf32>
    %644 = vector.shape_cast %643 : vector<16x32xf32> to vector<2x8x32xf32>
    "tpu.trace_start"() <{level = 10 : i32, message = "nsd,ntd->nst"}> : () -> ()
    %cst_248 = arith.constant dense<0.000000e+00> : vector<2x8x8xf32>
    %645 = tpu.matmul %640, %642, %cst_248 {dimension_numbers = #tpu.dot_dimension_numbers<[2], [2], [1], [1], [0, 0, 0, 1, 1, 1], [0], [0]>} : vector<2x8x4xf32>, vector<2x8x4xf32>, vector<2x8x8xf32> -> vector<2x8x8xf32>
    "tpu.trace_stop"() : () -> ()
    %cst_249 = arith.constant dense<0xFF800000> : vector<2x8xf32>
    %646 = vector.multi_reduction <maximumf>, %645, %cst_249 [2] : vector<2x8x8xf32> to vector<2x8xf32>
    %647 = vector.shape_cast %646 : vector<2x8xf32> to vector<2x8x1xf32>
    %648 = vector.broadcast %647 : vector<2x8x1xf32> to vector<2x8x8xf32>
    %649 = arith.subf %645, %648 : vector<2x8x8xf32>
    %650 = math.exp %649 : vector<2x8x8xf32>
    %cst_250 = arith.constant dense<0.000000e+00> : vector<2x8xf32>
    %651 = vector.multi_reduction <add>, %650, %cst_250 [2] : vector<2x8x8xf32> to vector<2x8xf32>
    %652 = vector.shape_cast %651 : vector<2x8xf32> to vector<2x8x1xf32>
    %653 = tpu.reciprocal %652 {approx = true} : vector<2x8x1xf32> -> vector<2x8x1xf32>
    %654 = vector.broadcast %653 : vector<2x8x1xf32> to vector<2x8x8xf32>
    %655 = arith.mulf %650, %654 : vector<2x8x8xf32>
    "tpu.trace_start"() <{level = 10 : i32, message = "nst,nte->nse"}> : () -> ()
    %cst_251 = arith.constant dense<0.000000e+00> : vector<2x8x32xf32>
    %656 = tpu.matmul %655, %644, %cst_251 {dimension_numbers = #tpu.dot_dimension_numbers<[2], [1], [1], [2], [0, 0, 0, 1, 1, 2], [0], [0]>} : vector<2x8x8xf32>, vector<2x8x32xf32>, vector<2x8x32xf32> -> vector<2x8x32xf32>
    "tpu.trace_stop"() : () -> ()
    %657 = vector.shape_cast %656 : vector<2x8x32xf32> to vector<16x32xf32>
    %658 = arith.addf %638, %657 : vector<16x32xf32>
    %659 = vector.extract_strided_slice %556 {offsets = [0, 20], sizes = [16, 4], strides = [1, 1]} : vector<16x64xf32> to vector<16x4xf32>
    %660 = vector.shape_cast %659 : vector<16x4xf32> to vector<2x8x4xf32>
    %661 = vector.extract_strided_slice %556 {offsets = [0, 52], sizes = [16, 4], strides = [1, 1]} : vector<16x64xf32> to vector<16x4xf32>
    %662 = vector.shape_cast %661 : vector<16x4xf32> to vector<2x8x4xf32>
    %663 = vector.extract_strided_slice %559 {offsets = [0, 160], sizes = [16, 32], strides = [1, 1]} : vector<16x256xf32> to vector<16x32xf32>
    %664 = vector.shape_cast %663 : vector<16x32xf32> to vector<2x8x32xf32>
    "tpu.trace_start"() <{level = 10 : i32, message = "nsd,ntd->nst"}> : () -> ()
    %cst_252 = arith.constant dense<0.000000e+00> : vector<2x8x8xf32>
    %665 = tpu.matmul %660, %662, %cst_252 {dimension_numbers = #tpu.dot_dimension_numbers<[2], [2], [1], [1], [0, 0, 0, 1, 1, 1], [0], [0]>} : vector<2x8x4xf32>, vector<2x8x4xf32>, vector<2x8x8xf32> -> vector<2x8x8xf32>
    "tpu.trace_stop"() : () -> ()
    %cst_253 = arith.constant dense<0xFF800000> : vector<2x8xf32>
    %666 = vector.multi_reduction <maximumf>, %665, %cst_253 [2] : vector<2x8x8xf32> to vector<2x8xf32>
    %667 = vector.shape_cast %666 : vector<2x8xf32> to vector<2x8x1xf32>
    %668 = vector.broadcast %667 : vector<2x8x1xf32> to vector<2x8x8xf32>
    %669 = arith.subf %665, %668 : vector<2x8x8xf32>
    %670 = math.exp %669 : vector<2x8x8xf32>
    %cst_254 = arith.constant dense<0.000000e+00> : vector<2x8xf32>
    %671 = vector.multi_reduction <add>, %670, %cst_254 [2] : vector<2x8x8xf32> to vector<2x8xf32>
    %672 = vector.shape_cast %671 : vector<2x8xf32> to vector<2x8x1xf32>
    %673 = tpu.reciprocal %672 {approx = true} : vector<2x8x1xf32> -> vector<2x8x1xf32>
    %674 = vector.broadcast %673 : vector<2x8x1xf32> to vector<2x8x8xf32>
    %675 = arith.mulf %670, %674 : vector<2x8x8xf32>
    "tpu.trace_start"() <{level = 10 : i32, message = "nst,nte->nse"}> : () -> ()
    %cst_255 = arith.constant dense<0.000000e+00> : vector<2x8x32xf32>
    %676 = tpu.matmul %675, %664, %cst_255 {dimension_numbers = #tpu.dot_dimension_numbers<[2], [1], [1], [2], [0, 0, 0, 1, 1, 2], [0], [0]>} : vector<2x8x8xf32>, vector<2x8x32xf32>, vector<2x8x32xf32> -> vector<2x8x32xf32>
    "tpu.trace_stop"() : () -> ()
    %677 = vector.shape_cast %676 : vector<2x8x32xf32> to vector<16x32xf32>
    %678 = arith.addf %658, %677 : vector<16x32xf32>
    %679 = vector.extract_strided_slice %556 {offsets = [0, 24], sizes = [16, 4], strides = [1, 1]} : vector<16x64xf32> to vector<16x4xf32>
    %680 = vector.shape_cast %679 : vector<16x4xf32> to vector<2x8x4xf32>
    %681 = vector.extract_strided_slice %556 {offsets = [0, 56], sizes = [16, 4], strides = [1, 1]} : vector<16x64xf32> to vector<16x4xf32>
    %682 = vector.shape_cast %681 : vector<16x4xf32> to vector<2x8x4xf32>
    %683 = vector.extract_strided_slice %559 {offsets = [0, 192], sizes = [16, 32], strides = [1, 1]} : vector<16x256xf32> to vector<16x32xf32>
    %684 = vector.shape_cast %683 : vector<16x32xf32> to vector<2x8x32xf32>
    "tpu.trace_start"() <{level = 10 : i32, message = "nsd,ntd->nst"}> : () -> ()
    %cst_256 = arith.constant dense<0.000000e+00> : vector<2x8x8xf32>
    %685 = tpu.matmul %680, %682, %cst_256 {dimension_numbers = #tpu.dot_dimension_numbers<[2], [2], [1], [1], [0, 0, 0, 1, 1, 1], [0], [0]>} : vector<2x8x4xf32>, vector<2x8x4xf32>, vector<2x8x8xf32> -> vector<2x8x8xf32>
    "tpu.trace_stop"() : () -> ()
    %cst_257 = arith.constant dense<0xFF800000> : vector<2x8xf32>
    %686 = vector.multi_reduction <maximumf>, %685, %cst_257 [2] : vector<2x8x8xf32> to vector<2x8xf32>
    %687 = vector.shape_cast %686 : vector<2x8xf32> to vector<2x8x1xf32>
    %688 = vector.broadcast %687 : vector<2x8x1xf32> to vector<2x8x8xf32>
    %689 = arith.subf %685, %688 : vector<2x8x8xf32>
    %690 = math.exp %689 : vector<2x8x8xf32>
    %cst_258 = arith.constant dense<0.000000e+00> : vector<2x8xf32>
    %691 = vector.multi_reduction <add>, %690, %cst_258 [2] : vector<2x8x8xf32> to vector<2x8xf32>
    %692 = vector.shape_cast %691 : vector<2x8xf32> to vector<2x8x1xf32>
    %693 = tpu.reciprocal %692 {approx = true} : vector<2x8x1xf32> -> vector<2x8x1xf32>
    %694 = vector.broadcast %693 : vector<2x8x1xf32> to vector<2x8x8xf32>
    %695 = arith.mulf %690, %694 : vector<2x8x8xf32>
    "tpu.trace_start"() <{level = 10 : i32, message = "nst,nte->nse"}> : () -> ()
    %cst_259 = arith.constant dense<0.000000e+00> : vector<2x8x32xf32>
    %696 = tpu.matmul %695, %684, %cst_259 {dimension_numbers = #tpu.dot_dimension_numbers<[2], [1], [1], [2], [0, 0, 0, 1, 1, 2], [0], [0]>} : vector<2x8x8xf32>, vector<2x8x32xf32>, vector<2x8x32xf32> -> vector<2x8x32xf32>
    "tpu.trace_stop"() : () -> ()
    %697 = vector.shape_cast %696 : vector<2x8x32xf32> to vector<16x32xf32>
    %698 = arith.addf %678, %697 : vector<16x32xf32>
    %699 = vector.extract_strided_slice %556 {offsets = [0, 28], sizes = [16, 4], strides = [1, 1]} : vector<16x64xf32> to vector<16x4xf32>
    %700 = vector.shape_cast %699 : vector<16x4xf32> to vector<2x8x4xf32>
    %701 = vector.extract_strided_slice %556 {offsets = [0, 60], sizes = [16, 4], strides = [1, 1]} : vector<16x64xf32> to vector<16x4xf32>
    %702 = vector.shape_cast %701 : vector<16x4xf32> to vector<2x8x4xf32>
    %703 = vector.extract_strided_slice %559 {offsets = [0, 224], sizes = [16, 32], strides = [1, 1]} : vector<16x256xf32> to vector<16x32xf32>
    %704 = vector.shape_cast %703 : vector<16x32xf32> to vector<2x8x32xf32>
    "tpu.trace_start"() <{level = 10 : i32, message = "nsd,ntd->nst"}> : () -> ()
    %cst_260 = arith.constant dense<0.000000e+00> : vector<2x8x8xf32>
    %705 = tpu.matmul %700, %702, %cst_260 {dimension_numbers = #tpu.dot_dimension_numbers<[2], [2], [1], [1], [0, 0, 0, 1, 1, 1], [0], [0]>} : vector<2x8x4xf32>, vector<2x8x4xf32>, vector<2x8x8xf32> -> vector<2x8x8xf32>
    "tpu.trace_stop"() : () -> ()
    %cst_261 = arith.constant dense<0xFF800000> : vector<2x8xf32>
    %706 = vector.multi_reduction <maximumf>, %705, %cst_261 [2] : vector<2x8x8xf32> to vector<2x8xf32>
    %707 = vector.shape_cast %706 : vector<2x8xf32> to vector<2x8x1xf32>
    %708 = vector.broadcast %707 : vector<2x8x1xf32> to vector<2x8x8xf32>
    %709 = arith.subf %705, %708 : vector<2x8x8xf32>
    %710 = math.exp %709 : vector<2x8x8xf32>
    %cst_262 = arith.constant dense<0.000000e+00> : vector<2x8xf32>
    %711 = vector.multi_reduction <add>, %710, %cst_262 [2] : vector<2x8x8xf32> to vector<2x8xf32>
    %712 = vector.shape_cast %711 : vector<2x8xf32> to vector<2x8x1xf32>
    %713 = tpu.reciprocal %712 {approx = true} : vector<2x8x1xf32> -> vector<2x8x1xf32>
    %714 = vector.broadcast %713 : vector<2x8x1xf32> to vector<2x8x8xf32>
    %715 = arith.mulf %710, %714 : vector<2x8x8xf32>
    "tpu.trace_start"() <{level = 10 : i32, message = "nst,nte->nse"}> : () -> ()
    %cst_263 = arith.constant dense<0.000000e+00> : vector<2x8x32xf32>
    %716 = tpu.matmul %715, %704, %cst_263 {dimension_numbers = #tpu.dot_dimension_numbers<[2], [1], [1], [2], [0, 0, 0, 1, 1, 2], [0], [0]>} : vector<2x8x8xf32>, vector<2x8x32xf32>, vector<2x8x32xf32> -> vector<2x8x32xf32>
    "tpu.trace_stop"() : () -> ()
    %717 = vector.shape_cast %716 : vector<2x8x32xf32> to vector<16x32xf32>
    %718 = arith.addf %698, %717 : vector<16x32xf32>
    %c2_264 = arith.constant 2 : index
    %c0_265 = arith.constant 0 : index
    %c0_266 = arith.constant 0 : index
    %719 = vector.load %arg5[%c2_264, %c0_265, %c0_266] : memref<6x1x32xf32, #tpu.memory_space<vmem>>, vector<1x1x32xf32>
    %720 = vector.shape_cast %719 : vector<1x1x32xf32> to vector<1x32xf32>
    %721 = vector.broadcast %720 : vector<1x32xf32> to vector<16x32xf32>
    %722 = arith.addf %718, %721 : vector<16x32xf32>
    %723 = arith.addf %548, %722 : vector<16x32xf32>
    %c2_267 = arith.constant 2 : index
    %c0_268 = arith.constant 0 : index
    %c0_269 = arith.constant 0 : index
    %724 = vector.load %arg6[%c2_267, %c0_268, %c0_269] : memref<6x1x32xf32, #tpu.memory_space<vmem>>, vector<1x1x32xf32>
    %725 = vector.shape_cast %724 : vector<1x1x32xf32> to vector<1x32xf32>
    %c2_270 = arith.constant 2 : index
    %c0_271 = arith.constant 0 : index
    %c0_272 = arith.constant 0 : index
    %726 = vector.load %arg7[%c2_270, %c0_271, %c0_272] : memref<6x1x32xf32, #tpu.memory_space<vmem>>, vector<1x1x32xf32>
    %727 = vector.shape_cast %726 : vector<1x1x32xf32> to vector<1x32xf32>
    %cst_273 = arith.constant dense<0.000000e+00> : vector<16xf32>
    %728 = vector.multi_reduction <add>, %723, %cst_273 [1] : vector<16x32xf32> to vector<16xf32>
    %729 = vector.shape_cast %728 : vector<16xf32> to vector<16x1xf32>
    %cst_274 = arith.constant 3.200000e+01 : f32
    %730 = vector.broadcast %cst_274 : f32 to vector<16x1xf32>
    %731 = arith.divf %729, %730 : vector<16x1xf32>
    %732 = vector.broadcast %731 : vector<16x1xf32> to vector<16x32xf32>
    %733 = arith.subf %723, %732 : vector<16x32xf32>
    %734 = arith.mulf %733, %733 : vector<16x32xf32>
    %cst_275 = arith.constant dense<0.000000e+00> : vector<16xf32>
    %735 = vector.multi_reduction <add>, %734, %cst_275 [1] : vector<16x32xf32> to vector<16xf32>
    %736 = vector.shape_cast %735 : vector<16xf32> to vector<16x1xf32>
    %cst_276 = arith.constant 3.200000e+01 : f32
    %737 = vector.broadcast %cst_276 : f32 to vector<16x1xf32>
    %738 = arith.divf %736, %737 : vector<16x1xf32>
    %cst_277 = arith.constant 9.99999974E-6 : f32
    %739 = vector.broadcast %cst_277 : f32 to vector<16x1xf32>
    %740 = arith.addf %738, %739 : vector<16x1xf32>
    %741 = math.rsqrt %740 : vector<16x1xf32>
    %742 = vector.broadcast %741 : vector<16x1xf32> to vector<16x32xf32>
    %743 = arith.mulf %733, %742 : vector<16x32xf32>
    %744 = vector.broadcast %725 : vector<1x32xf32> to vector<16x32xf32>
    %745 = arith.mulf %743, %744 : vector<16x32xf32>
    %746 = vector.broadcast %727 : vector<1x32xf32> to vector<16x32xf32>
    %747 = arith.addf %745, %746 : vector<16x32xf32>
    %748 = arith.truncf %747 : vector<16x32xf32> to vector<16x32xbf16>
    %c2_278 = arith.constant 2 : index
    %c0_279 = arith.constant 0 : index
    %c0_280 = arith.constant 0 : index
    %749 = vector.load %arg8[%c2_278, %c0_279, %c0_280] : memref<6x32x64xbf16, #tpu.memory_space<vmem>>, vector<1x32x64xbf16>
    %750 = vector.shape_cast %749 : vector<1x32x64xbf16> to vector<32x64xbf16>
    %cst_281 = arith.constant dense<0.000000e+00> : vector<16x64xf32>
    %751 = tpu.matmul %748, %750, %cst_281 {dimension_numbers = #tpu.dot_dimension_numbers<[1], [0], [0], [1], [0, 0, 1, 1], [], []>} : vector<16x32xbf16>, vector<32x64xbf16>, vector<16x64xf32> -> vector<16x64xf32>
    %c2_282 = arith.constant 2 : index
    %c0_283 = arith.constant 0 : index
    %c0_284 = arith.constant 0 : index
    %752 = vector.load %arg9[%c2_282, %c0_283, %c0_284] : memref<6x1x64xf32, #tpu.memory_space<vmem>>, vector<1x1x64xf32>
    %753 = vector.shape_cast %752 : vector<1x1x64xf32> to vector<1x64xf32>
    %754 = vector.broadcast %753 : vector<1x64xf32> to vector<16x64xf32>
    %755 = arith.addf %751, %754 : vector<16x64xf32>
    %cst_285 = arith.constant 0.000000e+00 : f32
    %756 = vector.broadcast %cst_285 : f32 to vector<16x64xf32>
    %757 = arith.maximumf %755, %756 : vector<16x64xf32>
    %758 = arith.truncf %757 : vector<16x64xf32> to vector<16x64xbf16>
    %c2_286 = arith.constant 2 : index
    %c0_287 = arith.constant 0 : index
    %c0_288 = arith.constant 0 : index
    %759 = vector.load %arg10[%c2_286, %c0_287, %c0_288] : memref<6x64x32xbf16, #tpu.memory_space<vmem>>, vector<1x64x32xbf16>
    %760 = vector.shape_cast %759 : vector<1x64x32xbf16> to vector<64x32xbf16>
    %cst_289 = arith.constant dense<0.000000e+00> : vector<16x32xf32>
    %761 = tpu.matmul %758, %760, %cst_289 {dimension_numbers = #tpu.dot_dimension_numbers<[1], [0], [0], [1], [0, 0, 1, 1], [], []>} : vector<16x64xbf16>, vector<64x32xbf16>, vector<16x32xf32> -> vector<16x32xf32>
    %c2_290 = arith.constant 2 : index
    %c0_291 = arith.constant 0 : index
    %c0_292 = arith.constant 0 : index
    %762 = vector.load %arg11[%c2_290, %c0_291, %c0_292] : memref<6x1x32xf32, #tpu.memory_space<vmem>>, vector<1x1x32xf32>
    %763 = vector.shape_cast %762 : vector<1x1x32xf32> to vector<1x32xf32>
    %764 = vector.broadcast %763 : vector<1x32xf32> to vector<16x32xf32>
    %765 = arith.addf %761, %764 : vector<16x32xf32>
    %766 = arith.addf %747, %765 : vector<16x32xf32>
    %c2_293 = arith.constant 2 : index
    %c0_294 = arith.constant 0 : index
    %c0_295 = arith.constant 0 : index
    %767 = vector.load %arg12[%c2_293, %c0_294, %c0_295] : memref<6x1x32xf32, #tpu.memory_space<vmem>>, vector<1x1x32xf32>
    %768 = vector.shape_cast %767 : vector<1x1x32xf32> to vector<1x32xf32>
    %c2_296 = arith.constant 2 : index
    %c0_297 = arith.constant 0 : index
    %c0_298 = arith.constant 0 : index
    %769 = vector.load %arg13[%c2_296, %c0_297, %c0_298] : memref<6x1x32xf32, #tpu.memory_space<vmem>>, vector<1x1x32xf32>
    %770 = vector.shape_cast %769 : vector<1x1x32xf32> to vector<1x32xf32>
    %cst_299 = arith.constant dense<0.000000e+00> : vector<16xf32>
    %771 = vector.multi_reduction <add>, %766, %cst_299 [1] : vector<16x32xf32> to vector<16xf32>
    %772 = vector.shape_cast %771 : vector<16xf32> to vector<16x1xf32>
    %cst_300 = arith.constant 3.200000e+01 : f32
    %773 = vector.broadcast %cst_300 : f32 to vector<16x1xf32>
    %774 = arith.divf %772, %773 : vector<16x1xf32>
    %775 = vector.broadcast %774 : vector<16x1xf32> to vector<16x32xf32>
    %776 = arith.subf %766, %775 : vector<16x32xf32>
    %777 = arith.mulf %776, %776 : vector<16x32xf32>
    %cst_301 = arith.constant dense<0.000000e+00> : vector<16xf32>
    %778 = vector.multi_reduction <add>, %777, %cst_301 [1] : vector<16x32xf32> to vector<16xf32>
    %779 = vector.shape_cast %778 : vector<16xf32> to vector<16x1xf32>
    %cst_302 = arith.constant 3.200000e+01 : f32
    %780 = vector.broadcast %cst_302 : f32 to vector<16x1xf32>
    %781 = arith.divf %779, %780 : vector<16x1xf32>
    %cst_303 = arith.constant 9.99999974E-6 : f32
    %782 = vector.broadcast %cst_303 : f32 to vector<16x1xf32>
    %783 = arith.addf %781, %782 : vector<16x1xf32>
    %784 = math.rsqrt %783 : vector<16x1xf32>
    %785 = vector.broadcast %784 : vector<16x1xf32> to vector<16x32xf32>
    %786 = arith.mulf %776, %785 : vector<16x32xf32>
    %787 = vector.broadcast %768 : vector<1x32xf32> to vector<16x32xf32>
    %788 = arith.mulf %786, %787 : vector<16x32xf32>
    %789 = vector.broadcast %770 : vector<1x32xf32> to vector<16x32xf32>
    %790 = arith.addf %788, %789 : vector<16x32xf32>
    %791 = arith.truncf %790 : vector<16x32xf32> to vector<16x32xbf16>
    %c3_304 = arith.constant 3 : index
    %c0_305 = arith.constant 0 : index
    %c0_306 = arith.constant 0 : index
    %792 = vector.load %arg2[%c3_304, %c0_305, %c0_306] : memref<6x32x64xbf16, #tpu.memory_space<vmem>>, vector<1x32x64xbf16>
    %793 = vector.shape_cast %792 : vector<1x32x64xbf16> to vector<32x64xbf16>
    %cst_307 = arith.constant dense<0.000000e+00> : vector<16x64xf32>
    %794 = tpu.matmul %791, %793, %cst_307 {dimension_numbers = #tpu.dot_dimension_numbers<[1], [0], [0], [1], [0, 0, 1, 1], [], []>} : vector<16x32xbf16>, vector<32x64xbf16>, vector<16x64xf32> -> vector<16x64xf32>
    %c3_308 = arith.constant 3 : index
    %c0_309 = arith.constant 0 : index
    %c0_310 = arith.constant 0 : index
    %795 = vector.load %arg3[%c3_308, %c0_309, %c0_310] : memref<6x1x64xf32, #tpu.memory_space<vmem>>, vector<1x1x64xf32>
    %796 = vector.shape_cast %795 : vector<1x1x64xf32> to vector<1x64xf32>
    %797 = vector.broadcast %796 : vector<1x64xf32> to vector<16x64xf32>
    %798 = arith.addf %794, %797 : vector<16x64xf32>
    %c3_311 = arith.constant 3 : index
    %c0_312 = arith.constant 0 : index
    %c0_313 = arith.constant 0 : index
    %799 = vector.load %arg4[%c3_311, %c0_312, %c0_313] : memref<6x32x256xbf16, #tpu.memory_space<vmem>>, vector<1x32x256xbf16>
    %800 = vector.shape_cast %799 : vector<1x32x256xbf16> to vector<32x256xbf16>
    %cst_314 = arith.constant dense<0.000000e+00> : vector<16x256xf32>
    %801 = tpu.matmul %791, %800, %cst_314 {dimension_numbers = #tpu.dot_dimension_numbers<[1], [0], [0], [1], [0, 0, 1, 1], [], []>} : vector<16x32xbf16>, vector<32x256xbf16>, vector<16x256xf32> -> vector<16x256xf32>
    %802 = vector.extract_strided_slice %798 {offsets = [0, 0], sizes = [16, 4], strides = [1, 1]} : vector<16x64xf32> to vector<16x4xf32>
    %803 = vector.shape_cast %802 : vector<16x4xf32> to vector<2x8x4xf32>
    %804 = vector.extract_strided_slice %798 {offsets = [0, 32], sizes = [16, 4], strides = [1, 1]} : vector<16x64xf32> to vector<16x4xf32>
    %805 = vector.shape_cast %804 : vector<16x4xf32> to vector<2x8x4xf32>
    %806 = vector.extract_strided_slice %801 {offsets = [0, 0], sizes = [16, 32], strides = [1, 1]} : vector<16x256xf32> to vector<16x32xf32>
    %807 = vector.shape_cast %806 : vector<16x32xf32> to vector<2x8x32xf32>
    "tpu.trace_start"() <{level = 10 : i32, message = "nsd,ntd->nst"}> : () -> ()
    %cst_315 = arith.constant dense<0.000000e+00> : vector<2x8x8xf32>
    %808 = tpu.matmul %803, %805, %cst_315 {dimension_numbers = #tpu.dot_dimension_numbers<[2], [2], [1], [1], [0, 0, 0, 1, 1, 1], [0], [0]>} : vector<2x8x4xf32>, vector<2x8x4xf32>, vector<2x8x8xf32> -> vector<2x8x8xf32>
    "tpu.trace_stop"() : () -> ()
    %cst_316 = arith.constant dense<0xFF800000> : vector<2x8xf32>
    %809 = vector.multi_reduction <maximumf>, %808, %cst_316 [2] : vector<2x8x8xf32> to vector<2x8xf32>
    %810 = vector.shape_cast %809 : vector<2x8xf32> to vector<2x8x1xf32>
    %811 = vector.broadcast %810 : vector<2x8x1xf32> to vector<2x8x8xf32>
    %812 = arith.subf %808, %811 : vector<2x8x8xf32>
    %813 = math.exp %812 : vector<2x8x8xf32>
    %cst_317 = arith.constant dense<0.000000e+00> : vector<2x8xf32>
    %814 = vector.multi_reduction <add>, %813, %cst_317 [2] : vector<2x8x8xf32> to vector<2x8xf32>
    %815 = vector.shape_cast %814 : vector<2x8xf32> to vector<2x8x1xf32>
    %816 = tpu.reciprocal %815 {approx = true} : vector<2x8x1xf32> -> vector<2x8x1xf32>
    %817 = vector.broadcast %816 : vector<2x8x1xf32> to vector<2x8x8xf32>
    %818 = arith.mulf %813, %817 : vector<2x8x8xf32>
    "tpu.trace_start"() <{level = 10 : i32, message = "nst,nte->nse"}> : () -> ()
    %cst_318 = arith.constant dense<0.000000e+00> : vector<2x8x32xf32>
    %819 = tpu.matmul %818, %807, %cst_318 {dimension_numbers = #tpu.dot_dimension_numbers<[2], [1], [1], [2], [0, 0, 0, 1, 1, 2], [0], [0]>} : vector<2x8x8xf32>, vector<2x8x32xf32>, vector<2x8x32xf32> -> vector<2x8x32xf32>
    "tpu.trace_stop"() : () -> ()
    %820 = vector.shape_cast %819 : vector<2x8x32xf32> to vector<16x32xf32>
    %821 = vector.extract_strided_slice %798 {offsets = [0, 4], sizes = [16, 4], strides = [1, 1]} : vector<16x64xf32> to vector<16x4xf32>
    %822 = vector.shape_cast %821 : vector<16x4xf32> to vector<2x8x4xf32>
    %823 = vector.extract_strided_slice %798 {offsets = [0, 36], sizes = [16, 4], strides = [1, 1]} : vector<16x64xf32> to vector<16x4xf32>
    %824 = vector.shape_cast %823 : vector<16x4xf32> to vector<2x8x4xf32>
    %825 = vector.extract_strided_slice %801 {offsets = [0, 32], sizes = [16, 32], strides = [1, 1]} : vector<16x256xf32> to vector<16x32xf32>
    %826 = vector.shape_cast %825 : vector<16x32xf32> to vector<2x8x32xf32>
    "tpu.trace_start"() <{level = 10 : i32, message = "nsd,ntd->nst"}> : () -> ()
    %cst_319 = arith.constant dense<0.000000e+00> : vector<2x8x8xf32>
    %827 = tpu.matmul %822, %824, %cst_319 {dimension_numbers = #tpu.dot_dimension_numbers<[2], [2], [1], [1], [0, 0, 0, 1, 1, 1], [0], [0]>} : vector<2x8x4xf32>, vector<2x8x4xf32>, vector<2x8x8xf32> -> vector<2x8x8xf32>
    "tpu.trace_stop"() : () -> ()
    %cst_320 = arith.constant dense<0xFF800000> : vector<2x8xf32>
    %828 = vector.multi_reduction <maximumf>, %827, %cst_320 [2] : vector<2x8x8xf32> to vector<2x8xf32>
    %829 = vector.shape_cast %828 : vector<2x8xf32> to vector<2x8x1xf32>
    %830 = vector.broadcast %829 : vector<2x8x1xf32> to vector<2x8x8xf32>
    %831 = arith.subf %827, %830 : vector<2x8x8xf32>
    %832 = math.exp %831 : vector<2x8x8xf32>
    %cst_321 = arith.constant dense<0.000000e+00> : vector<2x8xf32>
    %833 = vector.multi_reduction <add>, %832, %cst_321 [2] : vector<2x8x8xf32> to vector<2x8xf32>
    %834 = vector.shape_cast %833 : vector<2x8xf32> to vector<2x8x1xf32>
    %835 = tpu.reciprocal %834 {approx = true} : vector<2x8x1xf32> -> vector<2x8x1xf32>
    %836 = vector.broadcast %835 : vector<2x8x1xf32> to vector<2x8x8xf32>
    %837 = arith.mulf %832, %836 : vector<2x8x8xf32>
    "tpu.trace_start"() <{level = 10 : i32, message = "nst,nte->nse"}> : () -> ()
    %cst_322 = arith.constant dense<0.000000e+00> : vector<2x8x32xf32>
    %838 = tpu.matmul %837, %826, %cst_322 {dimension_numbers = #tpu.dot_dimension_numbers<[2], [1], [1], [2], [0, 0, 0, 1, 1, 2], [0], [0]>} : vector<2x8x8xf32>, vector<2x8x32xf32>, vector<2x8x32xf32> -> vector<2x8x32xf32>
    "tpu.trace_stop"() : () -> ()
    %839 = vector.shape_cast %838 : vector<2x8x32xf32> to vector<16x32xf32>
    %840 = arith.addf %820, %839 : vector<16x32xf32>
    %841 = vector.extract_strided_slice %798 {offsets = [0, 8], sizes = [16, 4], strides = [1, 1]} : vector<16x64xf32> to vector<16x4xf32>
    %842 = vector.shape_cast %841 : vector<16x4xf32> to vector<2x8x4xf32>
    %843 = vector.extract_strided_slice %798 {offsets = [0, 40], sizes = [16, 4], strides = [1, 1]} : vector<16x64xf32> to vector<16x4xf32>
    %844 = vector.shape_cast %843 : vector<16x4xf32> to vector<2x8x4xf32>
    %845 = vector.extract_strided_slice %801 {offsets = [0, 64], sizes = [16, 32], strides = [1, 1]} : vector<16x256xf32> to vector<16x32xf32>
    %846 = vector.shape_cast %845 : vector<16x32xf32> to vector<2x8x32xf32>
    "tpu.trace_start"() <{level = 10 : i32, message = "nsd,ntd->nst"}> : () -> ()
    %cst_323 = arith.constant dense<0.000000e+00> : vector<2x8x8xf32>
    %847 = tpu.matmul %842, %844, %cst_323 {dimension_numbers = #tpu.dot_dimension_numbers<[2], [2], [1], [1], [0, 0, 0, 1, 1, 1], [0], [0]>} : vector<2x8x4xf32>, vector<2x8x4xf32>, vector<2x8x8xf32> -> vector<2x8x8xf32>
    "tpu.trace_stop"() : () -> ()
    %cst_324 = arith.constant dense<0xFF800000> : vector<2x8xf32>
    %848 = vector.multi_reduction <maximumf>, %847, %cst_324 [2] : vector<2x8x8xf32> to vector<2x8xf32>
    %849 = vector.shape_cast %848 : vector<2x8xf32> to vector<2x8x1xf32>
    %850 = vector.broadcast %849 : vector<2x8x1xf32> to vector<2x8x8xf32>
    %851 = arith.subf %847, %850 : vector<2x8x8xf32>
    %852 = math.exp %851 : vector<2x8x8xf32>
    %cst_325 = arith.constant dense<0.000000e+00> : vector<2x8xf32>
    %853 = vector.multi_reduction <add>, %852, %cst_325 [2] : vector<2x8x8xf32> to vector<2x8xf32>
    %854 = vector.shape_cast %853 : vector<2x8xf32> to vector<2x8x1xf32>
    %855 = tpu.reciprocal %854 {approx = true} : vector<2x8x1xf32> -> vector<2x8x1xf32>
    %856 = vector.broadcast %855 : vector<2x8x1xf32> to vector<2x8x8xf32>
    %857 = arith.mulf %852, %856 : vector<2x8x8xf32>
    "tpu.trace_start"() <{level = 10 : i32, message = "nst,nte->nse"}> : () -> ()
    %cst_326 = arith.constant dense<0.000000e+00> : vector<2x8x32xf32>
    %858 = tpu.matmul %857, %846, %cst_326 {dimension_numbers = #tpu.dot_dimension_numbers<[2], [1], [1], [2], [0, 0, 0, 1, 1, 2], [0], [0]>} : vector<2x8x8xf32>, vector<2x8x32xf32>, vector<2x8x32xf32> -> vector<2x8x32xf32>
    "tpu.trace_stop"() : () -> ()
    %859 = vector.shape_cast %858 : vector<2x8x32xf32> to vector<16x32xf32>
    %860 = arith.addf %840, %859 : vector<16x32xf32>
    %861 = vector.extract_strided_slice %798 {offsets = [0, 12], sizes = [16, 4], strides = [1, 1]} : vector<16x64xf32> to vector<16x4xf32>
    %862 = vector.shape_cast %861 : vector<16x4xf32> to vector<2x8x4xf32>
    %863 = vector.extract_strided_slice %798 {offsets = [0, 44], sizes = [16, 4], strides = [1, 1]} : vector<16x64xf32> to vector<16x4xf32>
    %864 = vector.shape_cast %863 : vector<16x4xf32> to vector<2x8x4xf32>
    %865 = vector.extract_strided_slice %801 {offsets = [0, 96], sizes = [16, 32], strides = [1, 1]} : vector<16x256xf32> to vector<16x32xf32>
    %866 = vector.shape_cast %865 : vector<16x32xf32> to vector<2x8x32xf32>
    "tpu.trace_start"() <{level = 10 : i32, message = "nsd,ntd->nst"}> : () -> ()
    %cst_327 = arith.constant dense<0.000000e+00> : vector<2x8x8xf32>
    %867 = tpu.matmul %862, %864, %cst_327 {dimension_numbers = #tpu.dot_dimension_numbers<[2], [2], [1], [1], [0, 0, 0, 1, 1, 1], [0], [0]>} : vector<2x8x4xf32>, vector<2x8x4xf32>, vector<2x8x8xf32> -> vector<2x8x8xf32>
    "tpu.trace_stop"() : () -> ()
    %cst_328 = arith.constant dense<0xFF800000> : vector<2x8xf32>
    %868 = vector.multi_reduction <maximumf>, %867, %cst_328 [2] : vector<2x8x8xf32> to vector<2x8xf32>
    %869 = vector.shape_cast %868 : vector<2x8xf32> to vector<2x8x1xf32>
    %870 = vector.broadcast %869 : vector<2x8x1xf32> to vector<2x8x8xf32>
    %871 = arith.subf %867, %870 : vector<2x8x8xf32>
    %872 = math.exp %871 : vector<2x8x8xf32>
    %cst_329 = arith.constant dense<0.000000e+00> : vector<2x8xf32>
    %873 = vector.multi_reduction <add>, %872, %cst_329 [2] : vector<2x8x8xf32> to vector<2x8xf32>
    %874 = vector.shape_cast %873 : vector<2x8xf32> to vector<2x8x1xf32>
    %875 = tpu.reciprocal %874 {approx = true} : vector<2x8x1xf32> -> vector<2x8x1xf32>
    %876 = vector.broadcast %875 : vector<2x8x1xf32> to vector<2x8x8xf32>
    %877 = arith.mulf %872, %876 : vector<2x8x8xf32>
    "tpu.trace_start"() <{level = 10 : i32, message = "nst,nte->nse"}> : () -> ()
    %cst_330 = arith.constant dense<0.000000e+00> : vector<2x8x32xf32>
    %878 = tpu.matmul %877, %866, %cst_330 {dimension_numbers = #tpu.dot_dimension_numbers<[2], [1], [1], [2], [0, 0, 0, 1, 1, 2], [0], [0]>} : vector<2x8x8xf32>, vector<2x8x32xf32>, vector<2x8x32xf32> -> vector<2x8x32xf32>
    "tpu.trace_stop"() : () -> ()
    %879 = vector.shape_cast %878 : vector<2x8x32xf32> to vector<16x32xf32>
    %880 = arith.addf %860, %879 : vector<16x32xf32>
    %881 = vector.extract_strided_slice %798 {offsets = [0, 16], sizes = [16, 4], strides = [1, 1]} : vector<16x64xf32> to vector<16x4xf32>
    %882 = vector.shape_cast %881 : vector<16x4xf32> to vector<2x8x4xf32>
    %883 = vector.extract_strided_slice %798 {offsets = [0, 48], sizes = [16, 4], strides = [1, 1]} : vector<16x64xf32> to vector<16x4xf32>
    %884 = vector.shape_cast %883 : vector<16x4xf32> to vector<2x8x4xf32>
    %885 = vector.extract_strided_slice %801 {offsets = [0, 128], sizes = [16, 32], strides = [1, 1]} : vector<16x256xf32> to vector<16x32xf32>
    %886 = vector.shape_cast %885 : vector<16x32xf32> to vector<2x8x32xf32>
    "tpu.trace_start"() <{level = 10 : i32, message = "nsd,ntd->nst"}> : () -> ()
    %cst_331 = arith.constant dense<0.000000e+00> : vector<2x8x8xf32>
    %887 = tpu.matmul %882, %884, %cst_331 {dimension_numbers = #tpu.dot_dimension_numbers<[2], [2], [1], [1], [0, 0, 0, 1, 1, 1], [0], [0]>} : vector<2x8x4xf32>, vector<2x8x4xf32>, vector<2x8x8xf32> -> vector<2x8x8xf32>
    "tpu.trace_stop"() : () -> ()
    %cst_332 = arith.constant dense<0xFF800000> : vector<2x8xf32>
    %888 = vector.multi_reduction <maximumf>, %887, %cst_332 [2] : vector<2x8x8xf32> to vector<2x8xf32>
    %889 = vector.shape_cast %888 : vector<2x8xf32> to vector<2x8x1xf32>
    %890 = vector.broadcast %889 : vector<2x8x1xf32> to vector<2x8x8xf32>
    %891 = arith.subf %887, %890 : vector<2x8x8xf32>
    %892 = math.exp %891 : vector<2x8x8xf32>
    %cst_333 = arith.constant dense<0.000000e+00> : vector<2x8xf32>
    %893 = vector.multi_reduction <add>, %892, %cst_333 [2] : vector<2x8x8xf32> to vector<2x8xf32>
    %894 = vector.shape_cast %893 : vector<2x8xf32> to vector<2x8x1xf32>
    %895 = tpu.reciprocal %894 {approx = true} : vector<2x8x1xf32> -> vector<2x8x1xf32>
    %896 = vector.broadcast %895 : vector<2x8x1xf32> to vector<2x8x8xf32>
    %897 = arith.mulf %892, %896 : vector<2x8x8xf32>
    "tpu.trace_start"() <{level = 10 : i32, message = "nst,nte->nse"}> : () -> ()
    %cst_334 = arith.constant dense<0.000000e+00> : vector<2x8x32xf32>
    %898 = tpu.matmul %897, %886, %cst_334 {dimension_numbers = #tpu.dot_dimension_numbers<[2], [1], [1], [2], [0, 0, 0, 1, 1, 2], [0], [0]>} : vector<2x8x8xf32>, vector<2x8x32xf32>, vector<2x8x32xf32> -> vector<2x8x32xf32>
    "tpu.trace_stop"() : () -> ()
    %899 = vector.shape_cast %898 : vector<2x8x32xf32> to vector<16x32xf32>
    %900 = arith.addf %880, %899 : vector<16x32xf32>
    %901 = vector.extract_strided_slice %798 {offsets = [0, 20], sizes = [16, 4], strides = [1, 1]} : vector<16x64xf32> to vector<16x4xf32>
    %902 = vector.shape_cast %901 : vector<16x4xf32> to vector<2x8x4xf32>
    %903 = vector.extract_strided_slice %798 {offsets = [0, 52], sizes = [16, 4], strides = [1, 1]} : vector<16x64xf32> to vector<16x4xf32>
    %904 = vector.shape_cast %903 : vector<16x4xf32> to vector<2x8x4xf32>
    %905 = vector.extract_strided_slice %801 {offsets = [0, 160], sizes = [16, 32], strides = [1, 1]} : vector<16x256xf32> to vector<16x32xf32>
    %906 = vector.shape_cast %905 : vector<16x32xf32> to vector<2x8x32xf32>
    "tpu.trace_start"() <{level = 10 : i32, message = "nsd,ntd->nst"}> : () -> ()
    %cst_335 = arith.constant dense<0.000000e+00> : vector<2x8x8xf32>
    %907 = tpu.matmul %902, %904, %cst_335 {dimension_numbers = #tpu.dot_dimension_numbers<[2], [2], [1], [1], [0, 0, 0, 1, 1, 1], [0], [0]>} : vector<2x8x4xf32>, vector<2x8x4xf32>, vector<2x8x8xf32> -> vector<2x8x8xf32>
    "tpu.trace_stop"() : () -> ()
    %cst_336 = arith.constant dense<0xFF800000> : vector<2x8xf32>
    %908 = vector.multi_reduction <maximumf>, %907, %cst_336 [2] : vector<2x8x8xf32> to vector<2x8xf32>
    %909 = vector.shape_cast %908 : vector<2x8xf32> to vector<2x8x1xf32>
    %910 = vector.broadcast %909 : vector<2x8x1xf32> to vector<2x8x8xf32>
    %911 = arith.subf %907, %910 : vector<2x8x8xf32>
    %912 = math.exp %911 : vector<2x8x8xf32>
    %cst_337 = arith.constant dense<0.000000e+00> : vector<2x8xf32>
    %913 = vector.multi_reduction <add>, %912, %cst_337 [2] : vector<2x8x8xf32> to vector<2x8xf32>
    %914 = vector.shape_cast %913 : vector<2x8xf32> to vector<2x8x1xf32>
    %915 = tpu.reciprocal %914 {approx = true} : vector<2x8x1xf32> -> vector<2x8x1xf32>
    %916 = vector.broadcast %915 : vector<2x8x1xf32> to vector<2x8x8xf32>
    %917 = arith.mulf %912, %916 : vector<2x8x8xf32>
    "tpu.trace_start"() <{level = 10 : i32, message = "nst,nte->nse"}> : () -> ()
    %cst_338 = arith.constant dense<0.000000e+00> : vector<2x8x32xf32>
    %918 = tpu.matmul %917, %906, %cst_338 {dimension_numbers = #tpu.dot_dimension_numbers<[2], [1], [1], [2], [0, 0, 0, 1, 1, 2], [0], [0]>} : vector<2x8x8xf32>, vector<2x8x32xf32>, vector<2x8x32xf32> -> vector<2x8x32xf32>
    "tpu.trace_stop"() : () -> ()
    %919 = vector.shape_cast %918 : vector<2x8x32xf32> to vector<16x32xf32>
    %920 = arith.addf %900, %919 : vector<16x32xf32>
    %921 = vector.extract_strided_slice %798 {offsets = [0, 24], sizes = [16, 4], strides = [1, 1]} : vector<16x64xf32> to vector<16x4xf32>
    %922 = vector.shape_cast %921 : vector<16x4xf32> to vector<2x8x4xf32>
    %923 = vector.extract_strided_slice %798 {offsets = [0, 56], sizes = [16, 4], strides = [1, 1]} : vector<16x64xf32> to vector<16x4xf32>
    %924 = vector.shape_cast %923 : vector<16x4xf32> to vector<2x8x4xf32>
    %925 = vector.extract_strided_slice %801 {offsets = [0, 192], sizes = [16, 32], strides = [1, 1]} : vector<16x256xf32> to vector<16x32xf32>
    %926 = vector.shape_cast %925 : vector<16x32xf32> to vector<2x8x32xf32>
    "tpu.trace_start"() <{level = 10 : i32, message = "nsd,ntd->nst"}> : () -> ()
    %cst_339 = arith.constant dense<0.000000e+00> : vector<2x8x8xf32>
    %927 = tpu.matmul %922, %924, %cst_339 {dimension_numbers = #tpu.dot_dimension_numbers<[2], [2], [1], [1], [0, 0, 0, 1, 1, 1], [0], [0]>} : vector<2x8x4xf32>, vector<2x8x4xf32>, vector<2x8x8xf32> -> vector<2x8x8xf32>
    "tpu.trace_stop"() : () -> ()
    %cst_340 = arith.constant dense<0xFF800000> : vector<2x8xf32>
    %928 = vector.multi_reduction <maximumf>, %927, %cst_340 [2] : vector<2x8x8xf32> to vector<2x8xf32>
    %929 = vector.shape_cast %928 : vector<2x8xf32> to vector<2x8x1xf32>
    %930 = vector.broadcast %929 : vector<2x8x1xf32> to vector<2x8x8xf32>
    %931 = arith.subf %927, %930 : vector<2x8x8xf32>
    %932 = math.exp %931 : vector<2x8x8xf32>
    %cst_341 = arith.constant dense<0.000000e+00> : vector<2x8xf32>
    %933 = vector.multi_reduction <add>, %932, %cst_341 [2] : vector<2x8x8xf32> to vector<2x8xf32>
    %934 = vector.shape_cast %933 : vector<2x8xf32> to vector<2x8x1xf32>
    %935 = tpu.reciprocal %934 {approx = true} : vector<2x8x1xf32> -> vector<2x8x1xf32>
    %936 = vector.broadcast %935 : vector<2x8x1xf32> to vector<2x8x8xf32>
    %937 = arith.mulf %932, %936 : vector<2x8x8xf32>
    "tpu.trace_start"() <{level = 10 : i32, message = "nst,nte->nse"}> : () -> ()
    %cst_342 = arith.constant dense<0.000000e+00> : vector<2x8x32xf32>
    %938 = tpu.matmul %937, %926, %cst_342 {dimension_numbers = #tpu.dot_dimension_numbers<[2], [1], [1], [2], [0, 0, 0, 1, 1, 2], [0], [0]>} : vector<2x8x8xf32>, vector<2x8x32xf32>, vector<2x8x32xf32> -> vector<2x8x32xf32>
    "tpu.trace_stop"() : () -> ()
    %939 = vector.shape_cast %938 : vector<2x8x32xf32> to vector<16x32xf32>
    %940 = arith.addf %920, %939 : vector<16x32xf32>
    %941 = vector.extract_strided_slice %798 {offsets = [0, 28], sizes = [16, 4], strides = [1, 1]} : vector<16x64xf32> to vector<16x4xf32>
    %942 = vector.shape_cast %941 : vector<16x4xf32> to vector<2x8x4xf32>
    %943 = vector.extract_strided_slice %798 {offsets = [0, 60], sizes = [16, 4], strides = [1, 1]} : vector<16x64xf32> to vector<16x4xf32>
    %944 = vector.shape_cast %943 : vector<16x4xf32> to vector<2x8x4xf32>
    %945 = vector.extract_strided_slice %801 {offsets = [0, 224], sizes = [16, 32], strides = [1, 1]} : vector<16x256xf32> to vector<16x32xf32>
    %946 = vector.shape_cast %945 : vector<16x32xf32> to vector<2x8x32xf32>
    "tpu.trace_start"() <{level = 10 : i32, message = "nsd,ntd->nst"}> : () -> ()
    %cst_343 = arith.constant dense<0.000000e+00> : vector<2x8x8xf32>
    %947 = tpu.matmul %942, %944, %cst_343 {dimension_numbers = #tpu.dot_dimension_numbers<[2], [2], [1], [1], [0, 0, 0, 1, 1, 1], [0], [0]>} : vector<2x8x4xf32>, vector<2x8x4xf32>, vector<2x8x8xf32> -> vector<2x8x8xf32>
    "tpu.trace_stop"() : () -> ()
    %cst_344 = arith.constant dense<0xFF800000> : vector<2x8xf32>
    %948 = vector.multi_reduction <maximumf>, %947, %cst_344 [2] : vector<2x8x8xf32> to vector<2x8xf32>
    %949 = vector.shape_cast %948 : vector<2x8xf32> to vector<2x8x1xf32>
    %950 = vector.broadcast %949 : vector<2x8x1xf32> to vector<2x8x8xf32>
    %951 = arith.subf %947, %950 : vector<2x8x8xf32>
    %952 = math.exp %951 : vector<2x8x8xf32>
    %cst_345 = arith.constant dense<0.000000e+00> : vector<2x8xf32>
    %953 = vector.multi_reduction <add>, %952, %cst_345 [2] : vector<2x8x8xf32> to vector<2x8xf32>
    %954 = vector.shape_cast %953 : vector<2x8xf32> to vector<2x8x1xf32>
    %955 = tpu.reciprocal %954 {approx = true} : vector<2x8x1xf32> -> vector<2x8x1xf32>
    %956 = vector.broadcast %955 : vector<2x8x1xf32> to vector<2x8x8xf32>
    %957 = arith.mulf %952, %956 : vector<2x8x8xf32>
    "tpu.trace_start"() <{level = 10 : i32, message = "nst,nte->nse"}> : () -> ()
    %cst_346 = arith.constant dense<0.000000e+00> : vector<2x8x32xf32>
    %958 = tpu.matmul %957, %946, %cst_346 {dimension_numbers = #tpu.dot_dimension_numbers<[2], [1], [1], [2], [0, 0, 0, 1, 1, 2], [0], [0]>} : vector<2x8x8xf32>, vector<2x8x32xf32>, vector<2x8x32xf32> -> vector<2x8x32xf32>
    "tpu.trace_stop"() : () -> ()
    %959 = vector.shape_cast %958 : vector<2x8x32xf32> to vector<16x32xf32>
    %960 = arith.addf %940, %959 : vector<16x32xf32>
    %c3_347 = arith.constant 3 : index
    %c0_348 = arith.constant 0 : index
    %c0_349 = arith.constant 0 : index
    %961 = vector.load %arg5[%c3_347, %c0_348, %c0_349] : memref<6x1x32xf32, #tpu.memory_space<vmem>>, vector<1x1x32xf32>
    %962 = vector.shape_cast %961 : vector<1x1x32xf32> to vector<1x32xf32>
    %963 = vector.broadcast %962 : vector<1x32xf32> to vector<16x32xf32>
    %964 = arith.addf %960, %963 : vector<16x32xf32>
    %965 = arith.addf %790, %964 : vector<16x32xf32>
    %c3_350 = arith.constant 3 : index
    %c0_351 = arith.constant 0 : index
    %c0_352 = arith.constant 0 : index
    %966 = vector.load %arg6[%c3_350, %c0_351, %c0_352] : memref<6x1x32xf32, #tpu.memory_space<vmem>>, vector<1x1x32xf32>
    %967 = vector.shape_cast %966 : vector<1x1x32xf32> to vector<1x32xf32>
    %c3_353 = arith.constant 3 : index
    %c0_354 = arith.constant 0 : index
    %c0_355 = arith.constant 0 : index
    %968 = vector.load %arg7[%c3_353, %c0_354, %c0_355] : memref<6x1x32xf32, #tpu.memory_space<vmem>>, vector<1x1x32xf32>
    %969 = vector.shape_cast %968 : vector<1x1x32xf32> to vector<1x32xf32>
    %cst_356 = arith.constant dense<0.000000e+00> : vector<16xf32>
    %970 = vector.multi_reduction <add>, %965, %cst_356 [1] : vector<16x32xf32> to vector<16xf32>
    %971 = vector.shape_cast %970 : vector<16xf32> to vector<16x1xf32>
    %cst_357 = arith.constant 3.200000e+01 : f32
    %972 = vector.broadcast %cst_357 : f32 to vector<16x1xf32>
    %973 = arith.divf %971, %972 : vector<16x1xf32>
    %974 = vector.broadcast %973 : vector<16x1xf32> to vector<16x32xf32>
    %975 = arith.subf %965, %974 : vector<16x32xf32>
    %976 = arith.mulf %975, %975 : vector<16x32xf32>
    %cst_358 = arith.constant dense<0.000000e+00> : vector<16xf32>
    %977 = vector.multi_reduction <add>, %976, %cst_358 [1] : vector<16x32xf32> to vector<16xf32>
    %978 = vector.shape_cast %977 : vector<16xf32> to vector<16x1xf32>
    %cst_359 = arith.constant 3.200000e+01 : f32
    %979 = vector.broadcast %cst_359 : f32 to vector<16x1xf32>
    %980 = arith.divf %978, %979 : vector<16x1xf32>
    %cst_360 = arith.constant 9.99999974E-6 : f32
    %981 = vector.broadcast %cst_360 : f32 to vector<16x1xf32>
    %982 = arith.addf %980, %981 : vector<16x1xf32>
    %983 = math.rsqrt %982 : vector<16x1xf32>
    %984 = vector.broadcast %983 : vector<16x1xf32> to vector<16x32xf32>
    %985 = arith.mulf %975, %984 : vector<16x32xf32>
    %986 = vector.broadcast %967 : vector<1x32xf32> to vector<16x32xf32>
    %987 = arith.mulf %985, %986 : vector<16x32xf32>
    %988 = vector.broadcast %969 : vector<1x32xf32> to vector<16x32xf32>
    %989 = arith.addf %987, %988 : vector<16x32xf32>
    %990 = arith.truncf %989 : vector<16x32xf32> to vector<16x32xbf16>
    %c3_361 = arith.constant 3 : index
    %c0_362 = arith.constant 0 : index
    %c0_363 = arith.constant 0 : index
    %991 = vector.load %arg8[%c3_361, %c0_362, %c0_363] : memref<6x32x64xbf16, #tpu.memory_space<vmem>>, vector<1x32x64xbf16>
    %992 = vector.shape_cast %991 : vector<1x32x64xbf16> to vector<32x64xbf16>
    %cst_364 = arith.constant dense<0.000000e+00> : vector<16x64xf32>
    %993 = tpu.matmul %990, %992, %cst_364 {dimension_numbers = #tpu.dot_dimension_numbers<[1], [0], [0], [1], [0, 0, 1, 1], [], []>} : vector<16x32xbf16>, vector<32x64xbf16>, vector<16x64xf32> -> vector<16x64xf32>
    %c3_365 = arith.constant 3 : index
    %c0_366 = arith.constant 0 : index
    %c0_367 = arith.constant 0 : index
    %994 = vector.load %arg9[%c3_365, %c0_366, %c0_367] : memref<6x1x64xf32, #tpu.memory_space<vmem>>, vector<1x1x64xf32>
    %995 = vector.shape_cast %994 : vector<1x1x64xf32> to vector<1x64xf32>
    %996 = vector.broadcast %995 : vector<1x64xf32> to vector<16x64xf32>
    %997 = arith.addf %993, %996 : vector<16x64xf32>
    %cst_368 = arith.constant 0.000000e+00 : f32
    %998 = vector.broadcast %cst_368 : f32 to vector<16x64xf32>
    %999 = arith.maximumf %997, %998 : vector<16x64xf32>
    %1000 = arith.truncf %999 : vector<16x64xf32> to vector<16x64xbf16>
    %c3_369 = arith.constant 3 : index
    %c0_370 = arith.constant 0 : index
    %c0_371 = arith.constant 0 : index
    %1001 = vector.load %arg10[%c3_369, %c0_370, %c0_371] : memref<6x64x32xbf16, #tpu.memory_space<vmem>>, vector<1x64x32xbf16>
    %1002 = vector.shape_cast %1001 : vector<1x64x32xbf16> to vector<64x32xbf16>
    %cst_372 = arith.constant dense<0.000000e+00> : vector<16x32xf32>
    %1003 = tpu.matmul %1000, %1002, %cst_372 {dimension_numbers = #tpu.dot_dimension_numbers<[1], [0], [0], [1], [0, 0, 1, 1], [], []>} : vector<16x64xbf16>, vector<64x32xbf16>, vector<16x32xf32> -> vector<16x32xf32>
    %c3_373 = arith.constant 3 : index
    %c0_374 = arith.constant 0 : index
    %c0_375 = arith.constant 0 : index
    %1004 = vector.load %arg11[%c3_373, %c0_374, %c0_375] : memref<6x1x32xf32, #tpu.memory_space<vmem>>, vector<1x1x32xf32>
    %1005 = vector.shape_cast %1004 : vector<1x1x32xf32> to vector<1x32xf32>
    %1006 = vector.broadcast %1005 : vector<1x32xf32> to vector<16x32xf32>
    %1007 = arith.addf %1003, %1006 : vector<16x32xf32>
    %1008 = arith.addf %989, %1007 : vector<16x32xf32>
    %c3_376 = arith.constant 3 : index
    %c0_377 = arith.constant 0 : index
    %c0_378 = arith.constant 0 : index
    %1009 = vector.load %arg12[%c3_376, %c0_377, %c0_378] : memref<6x1x32xf32, #tpu.memory_space<vmem>>, vector<1x1x32xf32>
    %1010 = vector.shape_cast %1009 : vector<1x1x32xf32> to vector<1x32xf32>
    %c3_379 = arith.constant 3 : index
    %c0_380 = arith.constant 0 : index
    %c0_381 = arith.constant 0 : index
    %1011 = vector.load %arg13[%c3_379, %c0_380, %c0_381] : memref<6x1x32xf32, #tpu.memory_space<vmem>>, vector<1x1x32xf32>
    %1012 = vector.shape_cast %1011 : vector<1x1x32xf32> to vector<1x32xf32>
    %cst_382 = arith.constant dense<0.000000e+00> : vector<16xf32>
    %1013 = vector.multi_reduction <add>, %1008, %cst_382 [1] : vector<16x32xf32> to vector<16xf32>
    %1014 = vector.shape_cast %1013 : vector<16xf32> to vector<16x1xf32>
    %cst_383 = arith.constant 3.200000e+01 : f32
    %1015 = vector.broadcast %cst_383 : f32 to vector<16x1xf32>
    %1016 = arith.divf %1014, %1015 : vector<16x1xf32>
    %1017 = vector.broadcast %1016 : vector<16x1xf32> to vector<16x32xf32>
    %1018 = arith.subf %1008, %1017 : vector<16x32xf32>
    %1019 = arith.mulf %1018, %1018 : vector<16x32xf32>
    %cst_384 = arith.constant dense<0.000000e+00> : vector<16xf32>
    %1020 = vector.multi_reduction <add>, %1019, %cst_384 [1] : vector<16x32xf32> to vector<16xf32>
    %1021 = vector.shape_cast %1020 : vector<16xf32> to vector<16x1xf32>
    %cst_385 = arith.constant 3.200000e+01 : f32
    %1022 = vector.broadcast %cst_385 : f32 to vector<16x1xf32>
    %1023 = arith.divf %1021, %1022 : vector<16x1xf32>
    %cst_386 = arith.constant 9.99999974E-6 : f32
    %1024 = vector.broadcast %cst_386 : f32 to vector<16x1xf32>
    %1025 = arith.addf %1023, %1024 : vector<16x1xf32>
    %1026 = math.rsqrt %1025 : vector<16x1xf32>
    %1027 = vector.broadcast %1026 : vector<16x1xf32> to vector<16x32xf32>
    %1028 = arith.mulf %1018, %1027 : vector<16x32xf32>
    %1029 = vector.broadcast %1010 : vector<1x32xf32> to vector<16x32xf32>
    %1030 = arith.mulf %1028, %1029 : vector<16x32xf32>
    %1031 = vector.broadcast %1012 : vector<1x32xf32> to vector<16x32xf32>
    %1032 = arith.addf %1030, %1031 : vector<16x32xf32>
    %1033 = arith.truncf %1032 : vector<16x32xf32> to vector<16x32xbf16>
    %c4_387 = arith.constant 4 : index
    %c0_388 = arith.constant 0 : index
    %c0_389 = arith.constant 0 : index
    %1034 = vector.load %arg2[%c4_387, %c0_388, %c0_389] : memref<6x32x64xbf16, #tpu.memory_space<vmem>>, vector<1x32x64xbf16>
    %1035 = vector.shape_cast %1034 : vector<1x32x64xbf16> to vector<32x64xbf16>
    %cst_390 = arith.constant dense<0.000000e+00> : vector<16x64xf32>
    %1036 = tpu.matmul %1033, %1035, %cst_390 {dimension_numbers = #tpu.dot_dimension_numbers<[1], [0], [0], [1], [0, 0, 1, 1], [], []>} : vector<16x32xbf16>, vector<32x64xbf16>, vector<16x64xf32> -> vector<16x64xf32>
    %c4_391 = arith.constant 4 : index
    %c0_392 = arith.constant 0 : index
    %c0_393 = arith.constant 0 : index
    %1037 = vector.load %arg3[%c4_391, %c0_392, %c0_393] : memref<6x1x64xf32, #tpu.memory_space<vmem>>, vector<1x1x64xf32>
    %1038 = vector.shape_cast %1037 : vector<1x1x64xf32> to vector<1x64xf32>
    %1039 = vector.broadcast %1038 : vector<1x64xf32> to vector<16x64xf32>
    %1040 = arith.addf %1036, %1039 : vector<16x64xf32>
    %c4_394 = arith.constant 4 : index
    %c0_395 = arith.constant 0 : index
    %c0_396 = arith.constant 0 : index
    %1041 = vector.load %arg4[%c4_394, %c0_395, %c0_396] : memref<6x32x256xbf16, #tpu.memory_space<vmem>>, vector<1x32x256xbf16>
    %1042 = vector.shape_cast %1041 : vector<1x32x256xbf16> to vector<32x256xbf16>
    %cst_397 = arith.constant dense<0.000000e+00> : vector<16x256xf32>
    %1043 = tpu.matmul %1033, %1042, %cst_397 {dimension_numbers = #tpu.dot_dimension_numbers<[1], [0], [0], [1], [0, 0, 1, 1], [], []>} : vector<16x32xbf16>, vector<32x256xbf16>, vector<16x256xf32> -> vector<16x256xf32>
    %1044 = vector.extract_strided_slice %1040 {offsets = [0, 0], sizes = [16, 4], strides = [1, 1]} : vector<16x64xf32> to vector<16x4xf32>
    %1045 = vector.shape_cast %1044 : vector<16x4xf32> to vector<2x8x4xf32>
    %1046 = vector.extract_strided_slice %1040 {offsets = [0, 32], sizes = [16, 4], strides = [1, 1]} : vector<16x64xf32> to vector<16x4xf32>
    %1047 = vector.shape_cast %1046 : vector<16x4xf32> to vector<2x8x4xf32>
    %1048 = vector.extract_strided_slice %1043 {offsets = [0, 0], sizes = [16, 32], strides = [1, 1]} : vector<16x256xf32> to vector<16x32xf32>
    %1049 = vector.shape_cast %1048 : vector<16x32xf32> to vector<2x8x32xf32>
    "tpu.trace_start"() <{level = 10 : i32, message = "nsd,ntd->nst"}> : () -> ()
    %cst_398 = arith.constant dense<0.000000e+00> : vector<2x8x8xf32>
    %1050 = tpu.matmul %1045, %1047, %cst_398 {dimension_numbers = #tpu.dot_dimension_numbers<[2], [2], [1], [1], [0, 0, 0, 1, 1, 1], [0], [0]>} : vector<2x8x4xf32>, vector<2x8x4xf32>, vector<2x8x8xf32> -> vector<2x8x8xf32>
    "tpu.trace_stop"() : () -> ()
    %cst_399 = arith.constant dense<0xFF800000> : vector<2x8xf32>
    %1051 = vector.multi_reduction <maximumf>, %1050, %cst_399 [2] : vector<2x8x8xf32> to vector<2x8xf32>
    %1052 = vector.shape_cast %1051 : vector<2x8xf32> to vector<2x8x1xf32>
    %1053 = vector.broadcast %1052 : vector<2x8x1xf32> to vector<2x8x8xf32>
    %1054 = arith.subf %1050, %1053 : vector<2x8x8xf32>
    %1055 = math.exp %1054 : vector<2x8x8xf32>
    %cst_400 = arith.constant dense<0.000000e+00> : vector<2x8xf32>
    %1056 = vector.multi_reduction <add>, %1055, %cst_400 [2] : vector<2x8x8xf32> to vector<2x8xf32>
    %1057 = vector.shape_cast %1056 : vector<2x8xf32> to vector<2x8x1xf32>
    %1058 = tpu.reciprocal %1057 {approx = true} : vector<2x8x1xf32> -> vector<2x8x1xf32>
    %1059 = vector.broadcast %1058 : vector<2x8x1xf32> to vector<2x8x8xf32>
    %1060 = arith.mulf %1055, %1059 : vector<2x8x8xf32>
    "tpu.trace_start"() <{level = 10 : i32, message = "nst,nte->nse"}> : () -> ()
    %cst_401 = arith.constant dense<0.000000e+00> : vector<2x8x32xf32>
    %1061 = tpu.matmul %1060, %1049, %cst_401 {dimension_numbers = #tpu.dot_dimension_numbers<[2], [1], [1], [2], [0, 0, 0, 1, 1, 2], [0], [0]>} : vector<2x8x8xf32>, vector<2x8x32xf32>, vector<2x8x32xf32> -> vector<2x8x32xf32>
    "tpu.trace_stop"() : () -> ()
    %1062 = vector.shape_cast %1061 : vector<2x8x32xf32> to vector<16x32xf32>
    %1063 = vector.extract_strided_slice %1040 {offsets = [0, 4], sizes = [16, 4], strides = [1, 1]} : vector<16x64xf32> to vector<16x4xf32>
    %1064 = vector.shape_cast %1063 : vector<16x4xf32> to vector<2x8x4xf32>
    %1065 = vector.extract_strided_slice %1040 {offsets = [0, 36], sizes = [16, 4], strides = [1, 1]} : vector<16x64xf32> to vector<16x4xf32>
    %1066 = vector.shape_cast %1065 : vector<16x4xf32> to vector<2x8x4xf32>
    %1067 = vector.extract_strided_slice %1043 {offsets = [0, 32], sizes = [16, 32], strides = [1, 1]} : vector<16x256xf32> to vector<16x32xf32>
    %1068 = vector.shape_cast %1067 : vector<16x32xf32> to vector<2x8x32xf32>
    "tpu.trace_start"() <{level = 10 : i32, message = "nsd,ntd->nst"}> : () -> ()
    %cst_402 = arith.constant dense<0.000000e+00> : vector<2x8x8xf32>
    %1069 = tpu.matmul %1064, %1066, %cst_402 {dimension_numbers = #tpu.dot_dimension_numbers<[2], [2], [1], [1], [0, 0, 0, 1, 1, 1], [0], [0]>} : vector<2x8x4xf32>, vector<2x8x4xf32>, vector<2x8x8xf32> -> vector<2x8x8xf32>
    "tpu.trace_stop"() : () -> ()
    %cst_403 = arith.constant dense<0xFF800000> : vector<2x8xf32>
    %1070 = vector.multi_reduction <maximumf>, %1069, %cst_403 [2] : vector<2x8x8xf32> to vector<2x8xf32>
    %1071 = vector.shape_cast %1070 : vector<2x8xf32> to vector<2x8x1xf32>
    %1072 = vector.broadcast %1071 : vector<2x8x1xf32> to vector<2x8x8xf32>
    %1073 = arith.subf %1069, %1072 : vector<2x8x8xf32>
    %1074 = math.exp %1073 : vector<2x8x8xf32>
    %cst_404 = arith.constant dense<0.000000e+00> : vector<2x8xf32>
    %1075 = vector.multi_reduction <add>, %1074, %cst_404 [2] : vector<2x8x8xf32> to vector<2x8xf32>
    %1076 = vector.shape_cast %1075 : vector<2x8xf32> to vector<2x8x1xf32>
    %1077 = tpu.reciprocal %1076 {approx = true} : vector<2x8x1xf32> -> vector<2x8x1xf32>
    %1078 = vector.broadcast %1077 : vector<2x8x1xf32> to vector<2x8x8xf32>
    %1079 = arith.mulf %1074, %1078 : vector<2x8x8xf32>
    "tpu.trace_start"() <{level = 10 : i32, message = "nst,nte->nse"}> : () -> ()
    %cst_405 = arith.constant dense<0.000000e+00> : vector<2x8x32xf32>
    %1080 = tpu.matmul %1079, %1068, %cst_405 {dimension_numbers = #tpu.dot_dimension_numbers<[2], [1], [1], [2], [0, 0, 0, 1, 1, 2], [0], [0]>} : vector<2x8x8xf32>, vector<2x8x32xf32>, vector<2x8x32xf32> -> vector<2x8x32xf32>
    "tpu.trace_stop"() : () -> ()
    %1081 = vector.shape_cast %1080 : vector<2x8x32xf32> to vector<16x32xf32>
    %1082 = arith.addf %1062, %1081 : vector<16x32xf32>
    %1083 = vector.extract_strided_slice %1040 {offsets = [0, 8], sizes = [16, 4], strides = [1, 1]} : vector<16x64xf32> to vector<16x4xf32>
    %1084 = vector.shape_cast %1083 : vector<16x4xf32> to vector<2x8x4xf32>
    %1085 = vector.extract_strided_slice %1040 {offsets = [0, 40], sizes = [16, 4], strides = [1, 1]} : vector<16x64xf32> to vector<16x4xf32>
    %1086 = vector.shape_cast %1085 : vector<16x4xf32> to vector<2x8x4xf32>
    %1087 = vector.extract_strided_slice %1043 {offsets = [0, 64], sizes = [16, 32], strides = [1, 1]} : vector<16x256xf32> to vector<16x32xf32>
    %1088 = vector.shape_cast %1087 : vector<16x32xf32> to vector<2x8x32xf32>
    "tpu.trace_start"() <{level = 10 : i32, message = "nsd,ntd->nst"}> : () -> ()
    %cst_406 = arith.constant dense<0.000000e+00> : vector<2x8x8xf32>
    %1089 = tpu.matmul %1084, %1086, %cst_406 {dimension_numbers = #tpu.dot_dimension_numbers<[2], [2], [1], [1], [0, 0, 0, 1, 1, 1], [0], [0]>} : vector<2x8x4xf32>, vector<2x8x4xf32>, vector<2x8x8xf32> -> vector<2x8x8xf32>
    "tpu.trace_stop"() : () -> ()
    %cst_407 = arith.constant dense<0xFF800000> : vector<2x8xf32>
    %1090 = vector.multi_reduction <maximumf>, %1089, %cst_407 [2] : vector<2x8x8xf32> to vector<2x8xf32>
    %1091 = vector.shape_cast %1090 : vector<2x8xf32> to vector<2x8x1xf32>
    %1092 = vector.broadcast %1091 : vector<2x8x1xf32> to vector<2x8x8xf32>
    %1093 = arith.subf %1089, %1092 : vector<2x8x8xf32>
    %1094 = math.exp %1093 : vector<2x8x8xf32>
    %cst_408 = arith.constant dense<0.000000e+00> : vector<2x8xf32>
    %1095 = vector.multi_reduction <add>, %1094, %cst_408 [2] : vector<2x8x8xf32> to vector<2x8xf32>
    %1096 = vector.shape_cast %1095 : vector<2x8xf32> to vector<2x8x1xf32>
    %1097 = tpu.reciprocal %1096 {approx = true} : vector<2x8x1xf32> -> vector<2x8x1xf32>
    %1098 = vector.broadcast %1097 : vector<2x8x1xf32> to vector<2x8x8xf32>
    %1099 = arith.mulf %1094, %1098 : vector<2x8x8xf32>
    "tpu.trace_start"() <{level = 10 : i32, message = "nst,nte->nse"}> : () -> ()
    %cst_409 = arith.constant dense<0.000000e+00> : vector<2x8x32xf32>
    %1100 = tpu.matmul %1099, %1088, %cst_409 {dimension_numbers = #tpu.dot_dimension_numbers<[2], [1], [1], [2], [0, 0, 0, 1, 1, 2], [0], [0]>} : vector<2x8x8xf32>, vector<2x8x32xf32>, vector<2x8x32xf32> -> vector<2x8x32xf32>
    "tpu.trace_stop"() : () -> ()
    %1101 = vector.shape_cast %1100 : vector<2x8x32xf32> to vector<16x32xf32>
    %1102 = arith.addf %1082, %1101 : vector<16x32xf32>
    %1103 = vector.extract_strided_slice %1040 {offsets = [0, 12], sizes = [16, 4], strides = [1, 1]} : vector<16x64xf32> to vector<16x4xf32>
    %1104 = vector.shape_cast %1103 : vector<16x4xf32> to vector<2x8x4xf32>
    %1105 = vector.extract_strided_slice %1040 {offsets = [0, 44], sizes = [16, 4], strides = [1, 1]} : vector<16x64xf32> to vector<16x4xf32>
    %1106 = vector.shape_cast %1105 : vector<16x4xf32> to vector<2x8x4xf32>
    %1107 = vector.extract_strided_slice %1043 {offsets = [0, 96], sizes = [16, 32], strides = [1, 1]} : vector<16x256xf32> to vector<16x32xf32>
    %1108 = vector.shape_cast %1107 : vector<16x32xf32> to vector<2x8x32xf32>
    "tpu.trace_start"() <{level = 10 : i32, message = "nsd,ntd->nst"}> : () -> ()
    %cst_410 = arith.constant dense<0.000000e+00> : vector<2x8x8xf32>
    %1109 = tpu.matmul %1104, %1106, %cst_410 {dimension_numbers = #tpu.dot_dimension_numbers<[2], [2], [1], [1], [0, 0, 0, 1, 1, 1], [0], [0]>} : vector<2x8x4xf32>, vector<2x8x4xf32>, vector<2x8x8xf32> -> vector<2x8x8xf32>
    "tpu.trace_stop"() : () -> ()
    %cst_411 = arith.constant dense<0xFF800000> : vector<2x8xf32>
    %1110 = vector.multi_reduction <maximumf>, %1109, %cst_411 [2] : vector<2x8x8xf32> to vector<2x8xf32>
    %1111 = vector.shape_cast %1110 : vector<2x8xf32> to vector<2x8x1xf32>
    %1112 = vector.broadcast %1111 : vector<2x8x1xf32> to vector<2x8x8xf32>
    %1113 = arith.subf %1109, %1112 : vector<2x8x8xf32>
    %1114 = math.exp %1113 : vector<2x8x8xf32>
    %cst_412 = arith.constant dense<0.000000e+00> : vector<2x8xf32>
    %1115 = vector.multi_reduction <add>, %1114, %cst_412 [2] : vector<2x8x8xf32> to vector<2x8xf32>
    %1116 = vector.shape_cast %1115 : vector<2x8xf32> to vector<2x8x1xf32>
    %1117 = tpu.reciprocal %1116 {approx = true} : vector<2x8x1xf32> -> vector<2x8x1xf32>
    %1118 = vector.broadcast %1117 : vector<2x8x1xf32> to vector<2x8x8xf32>
    %1119 = arith.mulf %1114, %1118 : vector<2x8x8xf32>
    "tpu.trace_start"() <{level = 10 : i32, message = "nst,nte->nse"}> : () -> ()
    %cst_413 = arith.constant dense<0.000000e+00> : vector<2x8x32xf32>
    %1120 = tpu.matmul %1119, %1108, %cst_413 {dimension_numbers = #tpu.dot_dimension_numbers<[2], [1], [1], [2], [0, 0, 0, 1, 1, 2], [0], [0]>} : vector<2x8x8xf32>, vector<2x8x32xf32>, vector<2x8x32xf32> -> vector<2x8x32xf32>
    "tpu.trace_stop"() : () -> ()
    %1121 = vector.shape_cast %1120 : vector<2x8x32xf32> to vector<16x32xf32>
    %1122 = arith.addf %1102, %1121 : vector<16x32xf32>
    %1123 = vector.extract_strided_slice %1040 {offsets = [0, 16], sizes = [16, 4], strides = [1, 1]} : vector<16x64xf32> to vector<16x4xf32>
    %1124 = vector.shape_cast %1123 : vector<16x4xf32> to vector<2x8x4xf32>
    %1125 = vector.extract_strided_slice %1040 {offsets = [0, 48], sizes = [16, 4], strides = [1, 1]} : vector<16x64xf32> to vector<16x4xf32>
    %1126 = vector.shape_cast %1125 : vector<16x4xf32> to vector<2x8x4xf32>
    %1127 = vector.extract_strided_slice %1043 {offsets = [0, 128], sizes = [16, 32], strides = [1, 1]} : vector<16x256xf32> to vector<16x32xf32>
    %1128 = vector.shape_cast %1127 : vector<16x32xf32> to vector<2x8x32xf32>
    "tpu.trace_start"() <{level = 10 : i32, message = "nsd,ntd->nst"}> : () -> ()
    %cst_414 = arith.constant dense<0.000000e+00> : vector<2x8x8xf32>
    %1129 = tpu.matmul %1124, %1126, %cst_414 {dimension_numbers = #tpu.dot_dimension_numbers<[2], [2], [1], [1], [0, 0, 0, 1, 1, 1], [0], [0]>} : vector<2x8x4xf32>, vector<2x8x4xf32>, vector<2x8x8xf32> -> vector<2x8x8xf32>
    "tpu.trace_stop"() : () -> ()
    %cst_415 = arith.constant dense<0xFF800000> : vector<2x8xf32>
    %1130 = vector.multi_reduction <maximumf>, %1129, %cst_415 [2] : vector<2x8x8xf32> to vector<2x8xf32>
    %1131 = vector.shape_cast %1130 : vector<2x8xf32> to vector<2x8x1xf32>
    %1132 = vector.broadcast %1131 : vector<2x8x1xf32> to vector<2x8x8xf32>
    %1133 = arith.subf %1129, %1132 : vector<2x8x8xf32>
    %1134 = math.exp %1133 : vector<2x8x8xf32>
    %cst_416 = arith.constant dense<0.000000e+00> : vector<2x8xf32>
    %1135 = vector.multi_reduction <add>, %1134, %cst_416 [2] : vector<2x8x8xf32> to vector<2x8xf32>
    %1136 = vector.shape_cast %1135 : vector<2x8xf32> to vector<2x8x1xf32>
    %1137 = tpu.reciprocal %1136 {approx = true} : vector<2x8x1xf32> -> vector<2x8x1xf32>
    %1138 = vector.broadcast %1137 : vector<2x8x1xf32> to vector<2x8x8xf32>
    %1139 = arith.mulf %1134, %1138 : vector<2x8x8xf32>
    "tpu.trace_start"() <{level = 10 : i32, message = "nst,nte->nse"}> : () -> ()
    %cst_417 = arith.constant dense<0.000000e+00> : vector<2x8x32xf32>
    %1140 = tpu.matmul %1139, %1128, %cst_417 {dimension_numbers = #tpu.dot_dimension_numbers<[2], [1], [1], [2], [0, 0, 0, 1, 1, 2], [0], [0]>} : vector<2x8x8xf32>, vector<2x8x32xf32>, vector<2x8x32xf32> -> vector<2x8x32xf32>
    "tpu.trace_stop"() : () -> ()
    %1141 = vector.shape_cast %1140 : vector<2x8x32xf32> to vector<16x32xf32>
    %1142 = arith.addf %1122, %1141 : vector<16x32xf32>
    %1143 = vector.extract_strided_slice %1040 {offsets = [0, 20], sizes = [16, 4], strides = [1, 1]} : vector<16x64xf32> to vector<16x4xf32>
    %1144 = vector.shape_cast %1143 : vector<16x4xf32> to vector<2x8x4xf32>
    %1145 = vector.extract_strided_slice %1040 {offsets = [0, 52], sizes = [16, 4], strides = [1, 1]} : vector<16x64xf32> to vector<16x4xf32>
    %1146 = vector.shape_cast %1145 : vector<16x4xf32> to vector<2x8x4xf32>
    %1147 = vector.extract_strided_slice %1043 {offsets = [0, 160], sizes = [16, 32], strides = [1, 1]} : vector<16x256xf32> to vector<16x32xf32>
    %1148 = vector.shape_cast %1147 : vector<16x32xf32> to vector<2x8x32xf32>
    "tpu.trace_start"() <{level = 10 : i32, message = "nsd,ntd->nst"}> : () -> ()
    %cst_418 = arith.constant dense<0.000000e+00> : vector<2x8x8xf32>
    %1149 = tpu.matmul %1144, %1146, %cst_418 {dimension_numbers = #tpu.dot_dimension_numbers<[2], [2], [1], [1], [0, 0, 0, 1, 1, 1], [0], [0]>} : vector<2x8x4xf32>, vector<2x8x4xf32>, vector<2x8x8xf32> -> vector<2x8x8xf32>
    "tpu.trace_stop"() : () -> ()
    %cst_419 = arith.constant dense<0xFF800000> : vector<2x8xf32>
    %1150 = vector.multi_reduction <maximumf>, %1149, %cst_419 [2] : vector<2x8x8xf32> to vector<2x8xf32>
    %1151 = vector.shape_cast %1150 : vector<2x8xf32> to vector<2x8x1xf32>
    %1152 = vector.broadcast %1151 : vector<2x8x1xf32> to vector<2x8x8xf32>
    %1153 = arith.subf %1149, %1152 : vector<2x8x8xf32>
    %1154 = math.exp %1153 : vector<2x8x8xf32>
    %cst_420 = arith.constant dense<0.000000e+00> : vector<2x8xf32>
    %1155 = vector.multi_reduction <add>, %1154, %cst_420 [2] : vector<2x8x8xf32> to vector<2x8xf32>
    %1156 = vector.shape_cast %1155 : vector<2x8xf32> to vector<2x8x1xf32>
    %1157 = tpu.reciprocal %1156 {approx = true} : vector<2x8x1xf32> -> vector<2x8x1xf32>
    %1158 = vector.broadcast %1157 : vector<2x8x1xf32> to vector<2x8x8xf32>
    %1159 = arith.mulf %1154, %1158 : vector<2x8x8xf32>
    "tpu.trace_start"() <{level = 10 : i32, message = "nst,nte->nse"}> : () -> ()
    %cst_421 = arith.constant dense<0.000000e+00> : vector<2x8x32xf32>
    %1160 = tpu.matmul %1159, %1148, %cst_421 {dimension_numbers = #tpu.dot_dimension_numbers<[2], [1], [1], [2], [0, 0, 0, 1, 1, 2], [0], [0]>} : vector<2x8x8xf32>, vector<2x8x32xf32>, vector<2x8x32xf32> -> vector<2x8x32xf32>
    "tpu.trace_stop"() : () -> ()
    %1161 = vector.shape_cast %1160 : vector<2x8x32xf32> to vector<16x32xf32>
    %1162 = arith.addf %1142, %1161 : vector<16x32xf32>
    %1163 = vector.extract_strided_slice %1040 {offsets = [0, 24], sizes = [16, 4], strides = [1, 1]} : vector<16x64xf32> to vector<16x4xf32>
    %1164 = vector.shape_cast %1163 : vector<16x4xf32> to vector<2x8x4xf32>
    %1165 = vector.extract_strided_slice %1040 {offsets = [0, 56], sizes = [16, 4], strides = [1, 1]} : vector<16x64xf32> to vector<16x4xf32>
    %1166 = vector.shape_cast %1165 : vector<16x4xf32> to vector<2x8x4xf32>
    %1167 = vector.extract_strided_slice %1043 {offsets = [0, 192], sizes = [16, 32], strides = [1, 1]} : vector<16x256xf32> to vector<16x32xf32>
    %1168 = vector.shape_cast %1167 : vector<16x32xf32> to vector<2x8x32xf32>
    "tpu.trace_start"() <{level = 10 : i32, message = "nsd,ntd->nst"}> : () -> ()
    %cst_422 = arith.constant dense<0.000000e+00> : vector<2x8x8xf32>
    %1169 = tpu.matmul %1164, %1166, %cst_422 {dimension_numbers = #tpu.dot_dimension_numbers<[2], [2], [1], [1], [0, 0, 0, 1, 1, 1], [0], [0]>} : vector<2x8x4xf32>, vector<2x8x4xf32>, vector<2x8x8xf32> -> vector<2x8x8xf32>
    "tpu.trace_stop"() : () -> ()
    %cst_423 = arith.constant dense<0xFF800000> : vector<2x8xf32>
    %1170 = vector.multi_reduction <maximumf>, %1169, %cst_423 [2] : vector<2x8x8xf32> to vector<2x8xf32>
    %1171 = vector.shape_cast %1170 : vector<2x8xf32> to vector<2x8x1xf32>
    %1172 = vector.broadcast %1171 : vector<2x8x1xf32> to vector<2x8x8xf32>
    %1173 = arith.subf %1169, %1172 : vector<2x8x8xf32>
    %1174 = math.exp %1173 : vector<2x8x8xf32>
    %cst_424 = arith.constant dense<0.000000e+00> : vector<2x8xf32>
    %1175 = vector.multi_reduction <add>, %1174, %cst_424 [2] : vector<2x8x8xf32> to vector<2x8xf32>
    %1176 = vector.shape_cast %1175 : vector<2x8xf32> to vector<2x8x1xf32>
    %1177 = tpu.reciprocal %1176 {approx = true} : vector<2x8x1xf32> -> vector<2x8x1xf32>
    %1178 = vector.broadcast %1177 : vector<2x8x1xf32> to vector<2x8x8xf32>
    %1179 = arith.mulf %1174, %1178 : vector<2x8x8xf32>
    "tpu.trace_start"() <{level = 10 : i32, message = "nst,nte->nse"}> : () -> ()
    %cst_425 = arith.constant dense<0.000000e+00> : vector<2x8x32xf32>
    %1180 = tpu.matmul %1179, %1168, %cst_425 {dimension_numbers = #tpu.dot_dimension_numbers<[2], [1], [1], [2], [0, 0, 0, 1, 1, 2], [0], [0]>} : vector<2x8x8xf32>, vector<2x8x32xf32>, vector<2x8x32xf32> -> vector<2x8x32xf32>
    "tpu.trace_stop"() : () -> ()
    %1181 = vector.shape_cast %1180 : vector<2x8x32xf32> to vector<16x32xf32>
    %1182 = arith.addf %1162, %1181 : vector<16x32xf32>
    %1183 = vector.extract_strided_slice %1040 {offsets = [0, 28], sizes = [16, 4], strides = [1, 1]} : vector<16x64xf32> to vector<16x4xf32>
    %1184 = vector.shape_cast %1183 : vector<16x4xf32> to vector<2x8x4xf32>
    %1185 = vector.extract_strided_slice %1040 {offsets = [0, 60], sizes = [16, 4], strides = [1, 1]} : vector<16x64xf32> to vector<16x4xf32>
    %1186 = vector.shape_cast %1185 : vector<16x4xf32> to vector<2x8x4xf32>
    %1187 = vector.extract_strided_slice %1043 {offsets = [0, 224], sizes = [16, 32], strides = [1, 1]} : vector<16x256xf32> to vector<16x32xf32>
    %1188 = vector.shape_cast %1187 : vector<16x32xf32> to vector<2x8x32xf32>
    "tpu.trace_start"() <{level = 10 : i32, message = "nsd,ntd->nst"}> : () -> ()
    %cst_426 = arith.constant dense<0.000000e+00> : vector<2x8x8xf32>
    %1189 = tpu.matmul %1184, %1186, %cst_426 {dimension_numbers = #tpu.dot_dimension_numbers<[2], [2], [1], [1], [0, 0, 0, 1, 1, 1], [0], [0]>} : vector<2x8x4xf32>, vector<2x8x4xf32>, vector<2x8x8xf32> -> vector<2x8x8xf32>
    "tpu.trace_stop"() : () -> ()
    %cst_427 = arith.constant dense<0xFF800000> : vector<2x8xf32>
    %1190 = vector.multi_reduction <maximumf>, %1189, %cst_427 [2] : vector<2x8x8xf32> to vector<2x8xf32>
    %1191 = vector.shape_cast %1190 : vector<2x8xf32> to vector<2x8x1xf32>
    %1192 = vector.broadcast %1191 : vector<2x8x1xf32> to vector<2x8x8xf32>
    %1193 = arith.subf %1189, %1192 : vector<2x8x8xf32>
    %1194 = math.exp %1193 : vector<2x8x8xf32>
    %cst_428 = arith.constant dense<0.000000e+00> : vector<2x8xf32>
    %1195 = vector.multi_reduction <add>, %1194, %cst_428 [2] : vector<2x8x8xf32> to vector<2x8xf32>
    %1196 = vector.shape_cast %1195 : vector<2x8xf32> to vector<2x8x1xf32>
    %1197 = tpu.reciprocal %1196 {approx = true} : vector<2x8x1xf32> -> vector<2x8x1xf32>
    %1198 = vector.broadcast %1197 : vector<2x8x1xf32> to vector<2x8x8xf32>
    %1199 = arith.mulf %1194, %1198 : vector<2x8x8xf32>
    "tpu.trace_start"() <{level = 10 : i32, message = "nst,nte->nse"}> : () -> ()
    %cst_429 = arith.constant dense<0.000000e+00> : vector<2x8x32xf32>
    %1200 = tpu.matmul %1199, %1188, %cst_429 {dimension_numbers = #tpu.dot_dimension_numbers<[2], [1], [1], [2], [0, 0, 0, 1, 1, 2], [0], [0]>} : vector<2x8x8xf32>, vector<2x8x32xf32>, vector<2x8x32xf32> -> vector<2x8x32xf32>
    "tpu.trace_stop"() : () -> ()
    %1201 = vector.shape_cast %1200 : vector<2x8x32xf32> to vector<16x32xf32>
    %1202 = arith.addf %1182, %1201 : vector<16x32xf32>
    %c4_430 = arith.constant 4 : index
    %c0_431 = arith.constant 0 : index
    %c0_432 = arith.constant 0 : index
    %1203 = vector.load %arg5[%c4_430, %c0_431, %c0_432] : memref<6x1x32xf32, #tpu.memory_space<vmem>>, vector<1x1x32xf32>
    %1204 = vector.shape_cast %1203 : vector<1x1x32xf32> to vector<1x32xf32>
    %1205 = vector.broadcast %1204 : vector<1x32xf32> to vector<16x32xf32>
    %1206 = arith.addf %1202, %1205 : vector<16x32xf32>
    %1207 = arith.addf %1032, %1206 : vector<16x32xf32>
    %c4_433 = arith.constant 4 : index
    %c0_434 = arith.constant 0 : index
    %c0_435 = arith.constant 0 : index
    %1208 = vector.load %arg6[%c4_433, %c0_434, %c0_435] : memref<6x1x32xf32, #tpu.memory_space<vmem>>, vector<1x1x32xf32>
    %1209 = vector.shape_cast %1208 : vector<1x1x32xf32> to vector<1x32xf32>
    %c4_436 = arith.constant 4 : index
    %c0_437 = arith.constant 0 : index
    %c0_438 = arith.constant 0 : index
    %1210 = vector.load %arg7[%c4_436, %c0_437, %c0_438] : memref<6x1x32xf32, #tpu.memory_space<vmem>>, vector<1x1x32xf32>
    %1211 = vector.shape_cast %1210 : vector<1x1x32xf32> to vector<1x32xf32>
    %cst_439 = arith.constant dense<0.000000e+00> : vector<16xf32>
    %1212 = vector.multi_reduction <add>, %1207, %cst_439 [1] : vector<16x32xf32> to vector<16xf32>
    %1213 = vector.shape_cast %1212 : vector<16xf32> to vector<16x1xf32>
    %cst_440 = arith.constant 3.200000e+01 : f32
    %1214 = vector.broadcast %cst_440 : f32 to vector<16x1xf32>
    %1215 = arith.divf %1213, %1214 : vector<16x1xf32>
    %1216 = vector.broadcast %1215 : vector<16x1xf32> to vector<16x32xf32>
    %1217 = arith.subf %1207, %1216 : vector<16x32xf32>
    %1218 = arith.mulf %1217, %1217 : vector<16x32xf32>
    %cst_441 = arith.constant dense<0.000000e+00> : vector<16xf32>
    %1219 = vector.multi_reduction <add>, %1218, %cst_441 [1] : vector<16x32xf32> to vector<16xf32>
    %1220 = vector.shape_cast %1219 : vector<16xf32> to vector<16x1xf32>
    %cst_442 = arith.constant 3.200000e+01 : f32
    %1221 = vector.broadcast %cst_442 : f32 to vector<16x1xf32>
    %1222 = arith.divf %1220, %1221 : vector<16x1xf32>
    %cst_443 = arith.constant 9.99999974E-6 : f32
    %1223 = vector.broadcast %cst_443 : f32 to vector<16x1xf32>
    %1224 = arith.addf %1222, %1223 : vector<16x1xf32>
    %1225 = math.rsqrt %1224 : vector<16x1xf32>
    %1226 = vector.broadcast %1225 : vector<16x1xf32> to vector<16x32xf32>
    %1227 = arith.mulf %1217, %1226 : vector<16x32xf32>
    %1228 = vector.broadcast %1209 : vector<1x32xf32> to vector<16x32xf32>
    %1229 = arith.mulf %1227, %1228 : vector<16x32xf32>
    %1230 = vector.broadcast %1211 : vector<1x32xf32> to vector<16x32xf32>
    %1231 = arith.addf %1229, %1230 : vector<16x32xf32>
    %1232 = arith.truncf %1231 : vector<16x32xf32> to vector<16x32xbf16>
    %c4_444 = arith.constant 4 : index
    %c0_445 = arith.constant 0 : index
    %c0_446 = arith.constant 0 : index
    %1233 = vector.load %arg8[%c4_444, %c0_445, %c0_446] : memref<6x32x64xbf16, #tpu.memory_space<vmem>>, vector<1x32x64xbf16>
    %1234 = vector.shape_cast %1233 : vector<1x32x64xbf16> to vector<32x64xbf16>
    %cst_447 = arith.constant dense<0.000000e+00> : vector<16x64xf32>
    %1235 = tpu.matmul %1232, %1234, %cst_447 {dimension_numbers = #tpu.dot_dimension_numbers<[1], [0], [0], [1], [0, 0, 1, 1], [], []>} : vector<16x32xbf16>, vector<32x64xbf16>, vector<16x64xf32> -> vector<16x64xf32>
    %c4_448 = arith.constant 4 : index
    %c0_449 = arith.constant 0 : index
    %c0_450 = arith.constant 0 : index
    %1236 = vector.load %arg9[%c4_448, %c0_449, %c0_450] : memref<6x1x64xf32, #tpu.memory_space<vmem>>, vector<1x1x64xf32>
    %1237 = vector.shape_cast %1236 : vector<1x1x64xf32> to vector<1x64xf32>
    %1238 = vector.broadcast %1237 : vector<1x64xf32> to vector<16x64xf32>
    %1239 = arith.addf %1235, %1238 : vector<16x64xf32>
    %cst_451 = arith.constant 0.000000e+00 : f32
    %1240 = vector.broadcast %cst_451 : f32 to vector<16x64xf32>
    %1241 = arith.maximumf %1239, %1240 : vector<16x64xf32>
    %1242 = arith.truncf %1241 : vector<16x64xf32> to vector<16x64xbf16>
    %c4_452 = arith.constant 4 : index
    %c0_453 = arith.constant 0 : index
    %c0_454 = arith.constant 0 : index
    %1243 = vector.load %arg10[%c4_452, %c0_453, %c0_454] : memref<6x64x32xbf16, #tpu.memory_space<vmem>>, vector<1x64x32xbf16>
    %1244 = vector.shape_cast %1243 : vector<1x64x32xbf16> to vector<64x32xbf16>
    %cst_455 = arith.constant dense<0.000000e+00> : vector<16x32xf32>
    %1245 = tpu.matmul %1242, %1244, %cst_455 {dimension_numbers = #tpu.dot_dimension_numbers<[1], [0], [0], [1], [0, 0, 1, 1], [], []>} : vector<16x64xbf16>, vector<64x32xbf16>, vector<16x32xf32> -> vector<16x32xf32>
    %c4_456 = arith.constant 4 : index
    %c0_457 = arith.constant 0 : index
    %c0_458 = arith.constant 0 : index
    %1246 = vector.load %arg11[%c4_456, %c0_457, %c0_458] : memref<6x1x32xf32, #tpu.memory_space<vmem>>, vector<1x1x32xf32>
    %1247 = vector.shape_cast %1246 : vector<1x1x32xf32> to vector<1x32xf32>
    %1248 = vector.broadcast %1247 : vector<1x32xf32> to vector<16x32xf32>
    %1249 = arith.addf %1245, %1248 : vector<16x32xf32>
    %1250 = arith.addf %1231, %1249 : vector<16x32xf32>
    %c4_459 = arith.constant 4 : index
    %c0_460 = arith.constant 0 : index
    %c0_461 = arith.constant 0 : index
    %1251 = vector.load %arg12[%c4_459, %c0_460, %c0_461] : memref<6x1x32xf32, #tpu.memory_space<vmem>>, vector<1x1x32xf32>
    %1252 = vector.shape_cast %1251 : vector<1x1x32xf32> to vector<1x32xf32>
    %c4_462 = arith.constant 4 : index
    %c0_463 = arith.constant 0 : index
    %c0_464 = arith.constant 0 : index
    %1253 = vector.load %arg13[%c4_462, %c0_463, %c0_464] : memref<6x1x32xf32, #tpu.memory_space<vmem>>, vector<1x1x32xf32>
    %1254 = vector.shape_cast %1253 : vector<1x1x32xf32> to vector<1x32xf32>
    %cst_465 = arith.constant dense<0.000000e+00> : vector<16xf32>
    %1255 = vector.multi_reduction <add>, %1250, %cst_465 [1] : vector<16x32xf32> to vector<16xf32>
    %1256 = vector.shape_cast %1255 : vector<16xf32> to vector<16x1xf32>
    %cst_466 = arith.constant 3.200000e+01 : f32
    %1257 = vector.broadcast %cst_466 : f32 to vector<16x1xf32>
    %1258 = arith.divf %1256, %1257 : vector<16x1xf32>
    %1259 = vector.broadcast %1258 : vector<16x1xf32> to vector<16x32xf32>
    %1260 = arith.subf %1250, %1259 : vector<16x32xf32>
    %1261 = arith.mulf %1260, %1260 : vector<16x32xf32>
    %cst_467 = arith.constant dense<0.000000e+00> : vector<16xf32>
    %1262 = vector.multi_reduction <add>, %1261, %cst_467 [1] : vector<16x32xf32> to vector<16xf32>
    %1263 = vector.shape_cast %1262 : vector<16xf32> to vector<16x1xf32>
    %cst_468 = arith.constant 3.200000e+01 : f32
    %1264 = vector.broadcast %cst_468 : f32 to vector<16x1xf32>
    %1265 = arith.divf %1263, %1264 : vector<16x1xf32>
    %cst_469 = arith.constant 9.99999974E-6 : f32
    %1266 = vector.broadcast %cst_469 : f32 to vector<16x1xf32>
    %1267 = arith.addf %1265, %1266 : vector<16x1xf32>
    %1268 = math.rsqrt %1267 : vector<16x1xf32>
    %1269 = vector.broadcast %1268 : vector<16x1xf32> to vector<16x32xf32>
    %1270 = arith.mulf %1260, %1269 : vector<16x32xf32>
    %1271 = vector.broadcast %1252 : vector<1x32xf32> to vector<16x32xf32>
    %1272 = arith.mulf %1270, %1271 : vector<16x32xf32>
    %1273 = vector.broadcast %1254 : vector<1x32xf32> to vector<16x32xf32>
    %1274 = arith.addf %1272, %1273 : vector<16x32xf32>
    %1275 = arith.truncf %1274 : vector<16x32xf32> to vector<16x32xbf16>
    %c5_470 = arith.constant 5 : index
    %c0_471 = arith.constant 0 : index
    %c0_472 = arith.constant 0 : index
    %1276 = vector.load %arg2[%c5_470, %c0_471, %c0_472] : memref<6x32x64xbf16, #tpu.memory_space<vmem>>, vector<1x32x64xbf16>
    %1277 = vector.shape_cast %1276 : vector<1x32x64xbf16> to vector<32x64xbf16>
    %cst_473 = arith.constant dense<0.000000e+00> : vector<16x64xf32>
    %1278 = tpu.matmul %1275, %1277, %cst_473 {dimension_numbers = #tpu.dot_dimension_numbers<[1], [0], [0], [1], [0, 0, 1, 1], [], []>} : vector<16x32xbf16>, vector<32x64xbf16>, vector<16x64xf32> -> vector<16x64xf32>
    %c5_474 = arith.constant 5 : index
    %c0_475 = arith.constant 0 : index
    %c0_476 = arith.constant 0 : index
    %1279 = vector.load %arg3[%c5_474, %c0_475, %c0_476] : memref<6x1x64xf32, #tpu.memory_space<vmem>>, vector<1x1x64xf32>
    %1280 = vector.shape_cast %1279 : vector<1x1x64xf32> to vector<1x64xf32>
    %1281 = vector.broadcast %1280 : vector<1x64xf32> to vector<16x64xf32>
    %1282 = arith.addf %1278, %1281 : vector<16x64xf32>
    %c5_477 = arith.constant 5 : index
    %c0_478 = arith.constant 0 : index
    %c0_479 = arith.constant 0 : index
    %1283 = vector.load %arg4[%c5_477, %c0_478, %c0_479] : memref<6x32x256xbf16, #tpu.memory_space<vmem>>, vector<1x32x256xbf16>
    %1284 = vector.shape_cast %1283 : vector<1x32x256xbf16> to vector<32x256xbf16>
    %cst_480 = arith.constant dense<0.000000e+00> : vector<16x256xf32>
    %1285 = tpu.matmul %1275, %1284, %cst_480 {dimension_numbers = #tpu.dot_dimension_numbers<[1], [0], [0], [1], [0, 0, 1, 1], [], []>} : vector<16x32xbf16>, vector<32x256xbf16>, vector<16x256xf32> -> vector<16x256xf32>
    %1286 = vector.extract_strided_slice %1282 {offsets = [0, 0], sizes = [16, 4], strides = [1, 1]} : vector<16x64xf32> to vector<16x4xf32>
    %1287 = vector.shape_cast %1286 : vector<16x4xf32> to vector<2x8x4xf32>
    %1288 = vector.extract_strided_slice %1282 {offsets = [0, 32], sizes = [16, 4], strides = [1, 1]} : vector<16x64xf32> to vector<16x4xf32>
    %1289 = vector.shape_cast %1288 : vector<16x4xf32> to vector<2x8x4xf32>
    %1290 = vector.extract_strided_slice %1285 {offsets = [0, 0], sizes = [16, 32], strides = [1, 1]} : vector<16x256xf32> to vector<16x32xf32>
    %1291 = vector.shape_cast %1290 : vector<16x32xf32> to vector<2x8x32xf32>
    "tpu.trace_start"() <{level = 10 : i32, message = "nsd,ntd->nst"}> : () -> ()
    %cst_481 = arith.constant dense<0.000000e+00> : vector<2x8x8xf32>
    %1292 = tpu.matmul %1287, %1289, %cst_481 {dimension_numbers = #tpu.dot_dimension_numbers<[2], [2], [1], [1], [0, 0, 0, 1, 1, 1], [0], [0]>} : vector<2x8x4xf32>, vector<2x8x4xf32>, vector<2x8x8xf32> -> vector<2x8x8xf32>
    "tpu.trace_stop"() : () -> ()
    %cst_482 = arith.constant dense<0xFF800000> : vector<2x8xf32>
    %1293 = vector.multi_reduction <maximumf>, %1292, %cst_482 [2] : vector<2x8x8xf32> to vector<2x8xf32>
    %1294 = vector.shape_cast %1293 : vector<2x8xf32> to vector<2x8x1xf32>
    %1295 = vector.broadcast %1294 : vector<2x8x1xf32> to vector<2x8x8xf32>
    %1296 = arith.subf %1292, %1295 : vector<2x8x8xf32>
    %1297 = math.exp %1296 : vector<2x8x8xf32>
    %cst_483 = arith.constant dense<0.000000e+00> : vector<2x8xf32>
    %1298 = vector.multi_reduction <add>, %1297, %cst_483 [2] : vector<2x8x8xf32> to vector<2x8xf32>
    %1299 = vector.shape_cast %1298 : vector<2x8xf32> to vector<2x8x1xf32>
    %1300 = tpu.reciprocal %1299 {approx = true} : vector<2x8x1xf32> -> vector<2x8x1xf32>
    %1301 = vector.broadcast %1300 : vector<2x8x1xf32> to vector<2x8x8xf32>
    %1302 = arith.mulf %1297, %1301 : vector<2x8x8xf32>
    "tpu.trace_start"() <{level = 10 : i32, message = "nst,nte->nse"}> : () -> ()
    %cst_484 = arith.constant dense<0.000000e+00> : vector<2x8x32xf32>
    %1303 = tpu.matmul %1302, %1291, %cst_484 {dimension_numbers = #tpu.dot_dimension_numbers<[2], [1], [1], [2], [0, 0, 0, 1, 1, 2], [0], [0]>} : vector<2x8x8xf32>, vector<2x8x32xf32>, vector<2x8x32xf32> -> vector<2x8x32xf32>
    "tpu.trace_stop"() : () -> ()
    %1304 = vector.shape_cast %1303 : vector<2x8x32xf32> to vector<16x32xf32>
    %1305 = vector.extract_strided_slice %1282 {offsets = [0, 4], sizes = [16, 4], strides = [1, 1]} : vector<16x64xf32> to vector<16x4xf32>
    %1306 = vector.shape_cast %1305 : vector<16x4xf32> to vector<2x8x4xf32>
    %1307 = vector.extract_strided_slice %1282 {offsets = [0, 36], sizes = [16, 4], strides = [1, 1]} : vector<16x64xf32> to vector<16x4xf32>
    %1308 = vector.shape_cast %1307 : vector<16x4xf32> to vector<2x8x4xf32>
    %1309 = vector.extract_strided_slice %1285 {offsets = [0, 32], sizes = [16, 32], strides = [1, 1]} : vector<16x256xf32> to vector<16x32xf32>
    %1310 = vector.shape_cast %1309 : vector<16x32xf32> to vector<2x8x32xf32>
    "tpu.trace_start"() <{level = 10 : i32, message = "nsd,ntd->nst"}> : () -> ()
    %cst_485 = arith.constant dense<0.000000e+00> : vector<2x8x8xf32>
    %1311 = tpu.matmul %1306, %1308, %cst_485 {dimension_numbers = #tpu.dot_dimension_numbers<[2], [2], [1], [1], [0, 0, 0, 1, 1, 1], [0], [0]>} : vector<2x8x4xf32>, vector<2x8x4xf32>, vector<2x8x8xf32> -> vector<2x8x8xf32>
    "tpu.trace_stop"() : () -> ()
    %cst_486 = arith.constant dense<0xFF800000> : vector<2x8xf32>
    %1312 = vector.multi_reduction <maximumf>, %1311, %cst_486 [2] : vector<2x8x8xf32> to vector<2x8xf32>
    %1313 = vector.shape_cast %1312 : vector<2x8xf32> to vector<2x8x1xf32>
    %1314 = vector.broadcast %1313 : vector<2x8x1xf32> to vector<2x8x8xf32>
    %1315 = arith.subf %1311, %1314 : vector<2x8x8xf32>
    %1316 = math.exp %1315 : vector<2x8x8xf32>
    %cst_487 = arith.constant dense<0.000000e+00> : vector<2x8xf32>
    %1317 = vector.multi_reduction <add>, %1316, %cst_487 [2] : vector<2x8x8xf32> to vector<2x8xf32>
    %1318 = vector.shape_cast %1317 : vector<2x8xf32> to vector<2x8x1xf32>
    %1319 = tpu.reciprocal %1318 {approx = true} : vector<2x8x1xf32> -> vector<2x8x1xf32>
    %1320 = vector.broadcast %1319 : vector<2x8x1xf32> to vector<2x8x8xf32>
    %1321 = arith.mulf %1316, %1320 : vector<2x8x8xf32>
    "tpu.trace_start"() <{level = 10 : i32, message = "nst,nte->nse"}> : () -> ()
    %cst_488 = arith.constant dense<0.000000e+00> : vector<2x8x32xf32>
    %1322 = tpu.matmul %1321, %1310, %cst_488 {dimension_numbers = #tpu.dot_dimension_numbers<[2], [1], [1], [2], [0, 0, 0, 1, 1, 2], [0], [0]>} : vector<2x8x8xf32>, vector<2x8x32xf32>, vector<2x8x32xf32> -> vector<2x8x32xf32>
    "tpu.trace_stop"() : () -> ()
    %1323 = vector.shape_cast %1322 : vector<2x8x32xf32> to vector<16x32xf32>
    %1324 = arith.addf %1304, %1323 : vector<16x32xf32>
    %1325 = vector.extract_strided_slice %1282 {offsets = [0, 8], sizes = [16, 4], strides = [1, 1]} : vector<16x64xf32> to vector<16x4xf32>
    %1326 = vector.shape_cast %1325 : vector<16x4xf32> to vector<2x8x4xf32>
    %1327 = vector.extract_strided_slice %1282 {offsets = [0, 40], sizes = [16, 4], strides = [1, 1]} : vector<16x64xf32> to vector<16x4xf32>
    %1328 = vector.shape_cast %1327 : vector<16x4xf32> to vector<2x8x4xf32>
    %1329 = vector.extract_strided_slice %1285 {offsets = [0, 64], sizes = [16, 32], strides = [1, 1]} : vector<16x256xf32> to vector<16x32xf32>
    %1330 = vector.shape_cast %1329 : vector<16x32xf32> to vector<2x8x32xf32>
    "tpu.trace_start"() <{level = 10 : i32, message = "nsd,ntd->nst"}> : () -> ()
    %cst_489 = arith.constant dense<0.000000e+00> : vector<2x8x8xf32>
    %1331 = tpu.matmul %1326, %1328, %cst_489 {dimension_numbers = #tpu.dot_dimension_numbers<[2], [2], [1], [1], [0, 0, 0, 1, 1, 1], [0], [0]>} : vector<2x8x4xf32>, vector<2x8x4xf32>, vector<2x8x8xf32> -> vector<2x8x8xf32>
    "tpu.trace_stop"() : () -> ()
    %cst_490 = arith.constant dense<0xFF800000> : vector<2x8xf32>
    %1332 = vector.multi_reduction <maximumf>, %1331, %cst_490 [2] : vector<2x8x8xf32> to vector<2x8xf32>
    %1333 = vector.shape_cast %1332 : vector<2x8xf32> to vector<2x8x1xf32>
    %1334 = vector.broadcast %1333 : vector<2x8x1xf32> to vector<2x8x8xf32>
    %1335 = arith.subf %1331, %1334 : vector<2x8x8xf32>
    %1336 = math.exp %1335 : vector<2x8x8xf32>
    %cst_491 = arith.constant dense<0.000000e+00> : vector<2x8xf32>
    %1337 = vector.multi_reduction <add>, %1336, %cst_491 [2] : vector<2x8x8xf32> to vector<2x8xf32>
    %1338 = vector.shape_cast %1337 : vector<2x8xf32> to vector<2x8x1xf32>
    %1339 = tpu.reciprocal %1338 {approx = true} : vector<2x8x1xf32> -> vector<2x8x1xf32>
    %1340 = vector.broadcast %1339 : vector<2x8x1xf32> to vector<2x8x8xf32>
    %1341 = arith.mulf %1336, %1340 : vector<2x8x8xf32>
    "tpu.trace_start"() <{level = 10 : i32, message = "nst,nte->nse"}> : () -> ()
    %cst_492 = arith.constant dense<0.000000e+00> : vector<2x8x32xf32>
    %1342 = tpu.matmul %1341, %1330, %cst_492 {dimension_numbers = #tpu.dot_dimension_numbers<[2], [1], [1], [2], [0, 0, 0, 1, 1, 2], [0], [0]>} : vector<2x8x8xf32>, vector<2x8x32xf32>, vector<2x8x32xf32> -> vector<2x8x32xf32>
    "tpu.trace_stop"() : () -> ()
    %1343 = vector.shape_cast %1342 : vector<2x8x32xf32> to vector<16x32xf32>
    %1344 = arith.addf %1324, %1343 : vector<16x32xf32>
    %1345 = vector.extract_strided_slice %1282 {offsets = [0, 12], sizes = [16, 4], strides = [1, 1]} : vector<16x64xf32> to vector<16x4xf32>
    %1346 = vector.shape_cast %1345 : vector<16x4xf32> to vector<2x8x4xf32>
    %1347 = vector.extract_strided_slice %1282 {offsets = [0, 44], sizes = [16, 4], strides = [1, 1]} : vector<16x64xf32> to vector<16x4xf32>
    %1348 = vector.shape_cast %1347 : vector<16x4xf32> to vector<2x8x4xf32>
    %1349 = vector.extract_strided_slice %1285 {offsets = [0, 96], sizes = [16, 32], strides = [1, 1]} : vector<16x256xf32> to vector<16x32xf32>
    %1350 = vector.shape_cast %1349 : vector<16x32xf32> to vector<2x8x32xf32>
    "tpu.trace_start"() <{level = 10 : i32, message = "nsd,ntd->nst"}> : () -> ()
    %cst_493 = arith.constant dense<0.000000e+00> : vector<2x8x8xf32>
    %1351 = tpu.matmul %1346, %1348, %cst_493 {dimension_numbers = #tpu.dot_dimension_numbers<[2], [2], [1], [1], [0, 0, 0, 1, 1, 1], [0], [0]>} : vector<2x8x4xf32>, vector<2x8x4xf32>, vector<2x8x8xf32> -> vector<2x8x8xf32>
    "tpu.trace_stop"() : () -> ()
    %cst_494 = arith.constant dense<0xFF800000> : vector<2x8xf32>
    %1352 = vector.multi_reduction <maximumf>, %1351, %cst_494 [2] : vector<2x8x8xf32> to vector<2x8xf32>
    %1353 = vector.shape_cast %1352 : vector<2x8xf32> to vector<2x8x1xf32>
    %1354 = vector.broadcast %1353 : vector<2x8x1xf32> to vector<2x8x8xf32>
    %1355 = arith.subf %1351, %1354 : vector<2x8x8xf32>
    %1356 = math.exp %1355 : vector<2x8x8xf32>
    %cst_495 = arith.constant dense<0.000000e+00> : vector<2x8xf32>
    %1357 = vector.multi_reduction <add>, %1356, %cst_495 [2] : vector<2x8x8xf32> to vector<2x8xf32>
    %1358 = vector.shape_cast %1357 : vector<2x8xf32> to vector<2x8x1xf32>
    %1359 = tpu.reciprocal %1358 {approx = true} : vector<2x8x1xf32> -> vector<2x8x1xf32>
    %1360 = vector.broadcast %1359 : vector<2x8x1xf32> to vector<2x8x8xf32>
    %1361 = arith.mulf %1356, %1360 : vector<2x8x8xf32>
    "tpu.trace_start"() <{level = 10 : i32, message = "nst,nte->nse"}> : () -> ()
    %cst_496 = arith.constant dense<0.000000e+00> : vector<2x8x32xf32>
    %1362 = tpu.matmul %1361, %1350, %cst_496 {dimension_numbers = #tpu.dot_dimension_numbers<[2], [1], [1], [2], [0, 0, 0, 1, 1, 2], [0], [0]>} : vector<2x8x8xf32>, vector<2x8x32xf32>, vector<2x8x32xf32> -> vector<2x8x32xf32>
    "tpu.trace_stop"() : () -> ()
    %1363 = vector.shape_cast %1362 : vector<2x8x32xf32> to vector<16x32xf32>
    %1364 = arith.addf %1344, %1363 : vector<16x32xf32>
    %1365 = vector.extract_strided_slice %1282 {offsets = [0, 16], sizes = [16, 4], strides = [1, 1]} : vector<16x64xf32> to vector<16x4xf32>
    %1366 = vector.shape_cast %1365 : vector<16x4xf32> to vector<2x8x4xf32>
    %1367 = vector.extract_strided_slice %1282 {offsets = [0, 48], sizes = [16, 4], strides = [1, 1]} : vector<16x64xf32> to vector<16x4xf32>
    %1368 = vector.shape_cast %1367 : vector<16x4xf32> to vector<2x8x4xf32>
    %1369 = vector.extract_strided_slice %1285 {offsets = [0, 128], sizes = [16, 32], strides = [1, 1]} : vector<16x256xf32> to vector<16x32xf32>
    %1370 = vector.shape_cast %1369 : vector<16x32xf32> to vector<2x8x32xf32>
    "tpu.trace_start"() <{level = 10 : i32, message = "nsd,ntd->nst"}> : () -> ()
    %cst_497 = arith.constant dense<0.000000e+00> : vector<2x8x8xf32>
    %1371 = tpu.matmul %1366, %1368, %cst_497 {dimension_numbers = #tpu.dot_dimension_numbers<[2], [2], [1], [1], [0, 0, 0, 1, 1, 1], [0], [0]>} : vector<2x8x4xf32>, vector<2x8x4xf32>, vector<2x8x8xf32> -> vector<2x8x8xf32>
    "tpu.trace_stop"() : () -> ()
    %cst_498 = arith.constant dense<0xFF800000> : vector<2x8xf32>
    %1372 = vector.multi_reduction <maximumf>, %1371, %cst_498 [2] : vector<2x8x8xf32> to vector<2x8xf32>
    %1373 = vector.shape_cast %1372 : vector<2x8xf32> to vector<2x8x1xf32>
    %1374 = vector.broadcast %1373 : vector<2x8x1xf32> to vector<2x8x8xf32>
    %1375 = arith.subf %1371, %1374 : vector<2x8x8xf32>
    %1376 = math.exp %1375 : vector<2x8x8xf32>
    %cst_499 = arith.constant dense<0.000000e+00> : vector<2x8xf32>
    %1377 = vector.multi_reduction <add>, %1376, %cst_499 [2] : vector<2x8x8xf32> to vector<2x8xf32>
    %1378 = vector.shape_cast %1377 : vector<2x8xf32> to vector<2x8x1xf32>
    %1379 = tpu.reciprocal %1378 {approx = true} : vector<2x8x1xf32> -> vector<2x8x1xf32>
    %1380 = vector.broadcast %1379 : vector<2x8x1xf32> to vector<2x8x8xf32>
    %1381 = arith.mulf %1376, %1380 : vector<2x8x8xf32>
    "tpu.trace_start"() <{level = 10 : i32, message = "nst,nte->nse"}> : () -> ()
    %cst_500 = arith.constant dense<0.000000e+00> : vector<2x8x32xf32>
    %1382 = tpu.matmul %1381, %1370, %cst_500 {dimension_numbers = #tpu.dot_dimension_numbers<[2], [1], [1], [2], [0, 0, 0, 1, 1, 2], [0], [0]>} : vector<2x8x8xf32>, vector<2x8x32xf32>, vector<2x8x32xf32> -> vector<2x8x32xf32>
    "tpu.trace_stop"() : () -> ()
    %1383 = vector.shape_cast %1382 : vector<2x8x32xf32> to vector<16x32xf32>
    %1384 = arith.addf %1364, %1383 : vector<16x32xf32>
    %1385 = vector.extract_strided_slice %1282 {offsets = [0, 20], sizes = [16, 4], strides = [1, 1]} : vector<16x64xf32> to vector<16x4xf32>
    %1386 = vector.shape_cast %1385 : vector<16x4xf32> to vector<2x8x4xf32>
    %1387 = vector.extract_strided_slice %1282 {offsets = [0, 52], sizes = [16, 4], strides = [1, 1]} : vector<16x64xf32> to vector<16x4xf32>
    %1388 = vector.shape_cast %1387 : vector<16x4xf32> to vector<2x8x4xf32>
    %1389 = vector.extract_strided_slice %1285 {offsets = [0, 160], sizes = [16, 32], strides = [1, 1]} : vector<16x256xf32> to vector<16x32xf32>
    %1390 = vector.shape_cast %1389 : vector<16x32xf32> to vector<2x8x32xf32>
    "tpu.trace_start"() <{level = 10 : i32, message = "nsd,ntd->nst"}> : () -> ()
    %cst_501 = arith.constant dense<0.000000e+00> : vector<2x8x8xf32>
    %1391 = tpu.matmul %1386, %1388, %cst_501 {dimension_numbers = #tpu.dot_dimension_numbers<[2], [2], [1], [1], [0, 0, 0, 1, 1, 1], [0], [0]>} : vector<2x8x4xf32>, vector<2x8x4xf32>, vector<2x8x8xf32> -> vector<2x8x8xf32>
    "tpu.trace_stop"() : () -> ()
    %cst_502 = arith.constant dense<0xFF800000> : vector<2x8xf32>
    %1392 = vector.multi_reduction <maximumf>, %1391, %cst_502 [2] : vector<2x8x8xf32> to vector<2x8xf32>
    %1393 = vector.shape_cast %1392 : vector<2x8xf32> to vector<2x8x1xf32>
    %1394 = vector.broadcast %1393 : vector<2x8x1xf32> to vector<2x8x8xf32>
    %1395 = arith.subf %1391, %1394 : vector<2x8x8xf32>
    %1396 = math.exp %1395 : vector<2x8x8xf32>
    %cst_503 = arith.constant dense<0.000000e+00> : vector<2x8xf32>
    %1397 = vector.multi_reduction <add>, %1396, %cst_503 [2] : vector<2x8x8xf32> to vector<2x8xf32>
    %1398 = vector.shape_cast %1397 : vector<2x8xf32> to vector<2x8x1xf32>
    %1399 = tpu.reciprocal %1398 {approx = true} : vector<2x8x1xf32> -> vector<2x8x1xf32>
    %1400 = vector.broadcast %1399 : vector<2x8x1xf32> to vector<2x8x8xf32>
    %1401 = arith.mulf %1396, %1400 : vector<2x8x8xf32>
    "tpu.trace_start"() <{level = 10 : i32, message = "nst,nte->nse"}> : () -> ()
    %cst_504 = arith.constant dense<0.000000e+00> : vector<2x8x32xf32>
    %1402 = tpu.matmul %1401, %1390, %cst_504 {dimension_numbers = #tpu.dot_dimension_numbers<[2], [1], [1], [2], [0, 0, 0, 1, 1, 2], [0], [0]>} : vector<2x8x8xf32>, vector<2x8x32xf32>, vector<2x8x32xf32> -> vector<2x8x32xf32>
    "tpu.trace_stop"() : () -> ()
    %1403 = vector.shape_cast %1402 : vector<2x8x32xf32> to vector<16x32xf32>
    %1404 = arith.addf %1384, %1403 : vector<16x32xf32>
    %1405 = vector.extract_strided_slice %1282 {offsets = [0, 24], sizes = [16, 4], strides = [1, 1]} : vector<16x64xf32> to vector<16x4xf32>
    %1406 = vector.shape_cast %1405 : vector<16x4xf32> to vector<2x8x4xf32>
    %1407 = vector.extract_strided_slice %1282 {offsets = [0, 56], sizes = [16, 4], strides = [1, 1]} : vector<16x64xf32> to vector<16x4xf32>
    %1408 = vector.shape_cast %1407 : vector<16x4xf32> to vector<2x8x4xf32>
    %1409 = vector.extract_strided_slice %1285 {offsets = [0, 192], sizes = [16, 32], strides = [1, 1]} : vector<16x256xf32> to vector<16x32xf32>
    %1410 = vector.shape_cast %1409 : vector<16x32xf32> to vector<2x8x32xf32>
    "tpu.trace_start"() <{level = 10 : i32, message = "nsd,ntd->nst"}> : () -> ()
    %cst_505 = arith.constant dense<0.000000e+00> : vector<2x8x8xf32>
    %1411 = tpu.matmul %1406, %1408, %cst_505 {dimension_numbers = #tpu.dot_dimension_numbers<[2], [2], [1], [1], [0, 0, 0, 1, 1, 1], [0], [0]>} : vector<2x8x4xf32>, vector<2x8x4xf32>, vector<2x8x8xf32> -> vector<2x8x8xf32>
    "tpu.trace_stop"() : () -> ()
    %cst_506 = arith.constant dense<0xFF800000> : vector<2x8xf32>
    %1412 = vector.multi_reduction <maximumf>, %1411, %cst_506 [2] : vector<2x8x8xf32> to vector<2x8xf32>
    %1413 = vector.shape_cast %1412 : vector<2x8xf32> to vector<2x8x1xf32>
    %1414 = vector.broadcast %1413 : vector<2x8x1xf32> to vector<2x8x8xf32>
    %1415 = arith.subf %1411, %1414 : vector<2x8x8xf32>
    %1416 = math.exp %1415 : vector<2x8x8xf32>
    %cst_507 = arith.constant dense<0.000000e+00> : vector<2x8xf32>
    %1417 = vector.multi_reduction <add>, %1416, %cst_507 [2] : vector<2x8x8xf32> to vector<2x8xf32>
    %1418 = vector.shape_cast %1417 : vector<2x8xf32> to vector<2x8x1xf32>
    %1419 = tpu.reciprocal %1418 {approx = true} : vector<2x8x1xf32> -> vector<2x8x1xf32>
    %1420 = vector.broadcast %1419 : vector<2x8x1xf32> to vector<2x8x8xf32>
    %1421 = arith.mulf %1416, %1420 : vector<2x8x8xf32>
    "tpu.trace_start"() <{level = 10 : i32, message = "nst,nte->nse"}> : () -> ()
    %cst_508 = arith.constant dense<0.000000e+00> : vector<2x8x32xf32>
    %1422 = tpu.matmul %1421, %1410, %cst_508 {dimension_numbers = #tpu.dot_dimension_numbers<[2], [1], [1], [2], [0, 0, 0, 1, 1, 2], [0], [0]>} : vector<2x8x8xf32>, vector<2x8x32xf32>, vector<2x8x32xf32> -> vector<2x8x32xf32>
    "tpu.trace_stop"() : () -> ()
    %1423 = vector.shape_cast %1422 : vector<2x8x32xf32> to vector<16x32xf32>
    %1424 = arith.addf %1404, %1423 : vector<16x32xf32>
    %1425 = vector.extract_strided_slice %1282 {offsets = [0, 28], sizes = [16, 4], strides = [1, 1]} : vector<16x64xf32> to vector<16x4xf32>
    %1426 = vector.shape_cast %1425 : vector<16x4xf32> to vector<2x8x4xf32>
    %1427 = vector.extract_strided_slice %1282 {offsets = [0, 60], sizes = [16, 4], strides = [1, 1]} : vector<16x64xf32> to vector<16x4xf32>
    %1428 = vector.shape_cast %1427 : vector<16x4xf32> to vector<2x8x4xf32>
    %1429 = vector.extract_strided_slice %1285 {offsets = [0, 224], sizes = [16, 32], strides = [1, 1]} : vector<16x256xf32> to vector<16x32xf32>
    %1430 = vector.shape_cast %1429 : vector<16x32xf32> to vector<2x8x32xf32>
    "tpu.trace_start"() <{level = 10 : i32, message = "nsd,ntd->nst"}> : () -> ()
    %cst_509 = arith.constant dense<0.000000e+00> : vector<2x8x8xf32>
    %1431 = tpu.matmul %1426, %1428, %cst_509 {dimension_numbers = #tpu.dot_dimension_numbers<[2], [2], [1], [1], [0, 0, 0, 1, 1, 1], [0], [0]>} : vector<2x8x4xf32>, vector<2x8x4xf32>, vector<2x8x8xf32> -> vector<2x8x8xf32>
    "tpu.trace_stop"() : () -> ()
    %cst_510 = arith.constant dense<0xFF800000> : vector<2x8xf32>
    %1432 = vector.multi_reduction <maximumf>, %1431, %cst_510 [2] : vector<2x8x8xf32> to vector<2x8xf32>
    %1433 = vector.shape_cast %1432 : vector<2x8xf32> to vector<2x8x1xf32>
    %1434 = vector.broadcast %1433 : vector<2x8x1xf32> to vector<2x8x8xf32>
    %1435 = arith.subf %1431, %1434 : vector<2x8x8xf32>
    %1436 = math.exp %1435 : vector<2x8x8xf32>
    %cst_511 = arith.constant dense<0.000000e+00> : vector<2x8xf32>
    %1437 = vector.multi_reduction <add>, %1436, %cst_511 [2] : vector<2x8x8xf32> to vector<2x8xf32>
    %1438 = vector.shape_cast %1437 : vector<2x8xf32> to vector<2x8x1xf32>
    %1439 = tpu.reciprocal %1438 {approx = true} : vector<2x8x1xf32> -> vector<2x8x1xf32>
    %1440 = vector.broadcast %1439 : vector<2x8x1xf32> to vector<2x8x8xf32>
    %1441 = arith.mulf %1436, %1440 : vector<2x8x8xf32>
    "tpu.trace_start"() <{level = 10 : i32, message = "nst,nte->nse"}> : () -> ()
    %cst_512 = arith.constant dense<0.000000e+00> : vector<2x8x32xf32>
    %1442 = tpu.matmul %1441, %1430, %cst_512 {dimension_numbers = #tpu.dot_dimension_numbers<[2], [1], [1], [2], [0, 0, 0, 1, 1, 2], [0], [0]>} : vector<2x8x8xf32>, vector<2x8x32xf32>, vector<2x8x32xf32> -> vector<2x8x32xf32>
    "tpu.trace_stop"() : () -> ()
    %1443 = vector.shape_cast %1442 : vector<2x8x32xf32> to vector<16x32xf32>
    %1444 = arith.addf %1424, %1443 : vector<16x32xf32>
    %c5_513 = arith.constant 5 : index
    %c0_514 = arith.constant 0 : index
    %c0_515 = arith.constant 0 : index
    %1445 = vector.load %arg5[%c5_513, %c0_514, %c0_515] : memref<6x1x32xf32, #tpu.memory_space<vmem>>, vector<1x1x32xf32>
    %1446 = vector.shape_cast %1445 : vector<1x1x32xf32> to vector<1x32xf32>
    %1447 = vector.broadcast %1446 : vector<1x32xf32> to vector<16x32xf32>
    %1448 = arith.addf %1444, %1447 : vector<16x32xf32>
    %1449 = arith.addf %1274, %1448 : vector<16x32xf32>
    %c5_516 = arith.constant 5 : index
    %c0_517 = arith.constant 0 : index
    %c0_518 = arith.constant 0 : index
    %1450 = vector.load %arg6[%c5_516, %c0_517, %c0_518] : memref<6x1x32xf32, #tpu.memory_space<vmem>>, vector<1x1x32xf32>
    %1451 = vector.shape_cast %1450 : vector<1x1x32xf32> to vector<1x32xf32>
    %c5_519 = arith.constant 5 : index
    %c0_520 = arith.constant 0 : index
    %c0_521 = arith.constant 0 : index
    %1452 = vector.load %arg7[%c5_519, %c0_520, %c0_521] : memref<6x1x32xf32, #tpu.memory_space<vmem>>, vector<1x1x32xf32>
    %1453 = vector.shape_cast %1452 : vector<1x1x32xf32> to vector<1x32xf32>
    %cst_522 = arith.constant dense<0.000000e+00> : vector<16xf32>
    %1454 = vector.multi_reduction <add>, %1449, %cst_522 [1] : vector<16x32xf32> to vector<16xf32>
    %1455 = vector.shape_cast %1454 : vector<16xf32> to vector<16x1xf32>
    %cst_523 = arith.constant 3.200000e+01 : f32
    %1456 = vector.broadcast %cst_523 : f32 to vector<16x1xf32>
    %1457 = arith.divf %1455, %1456 : vector<16x1xf32>
    %1458 = vector.broadcast %1457 : vector<16x1xf32> to vector<16x32xf32>
    %1459 = arith.subf %1449, %1458 : vector<16x32xf32>
    %1460 = arith.mulf %1459, %1459 : vector<16x32xf32>
    %cst_524 = arith.constant dense<0.000000e+00> : vector<16xf32>
    %1461 = vector.multi_reduction <add>, %1460, %cst_524 [1] : vector<16x32xf32> to vector<16xf32>
    %1462 = vector.shape_cast %1461 : vector<16xf32> to vector<16x1xf32>
    %cst_525 = arith.constant 3.200000e+01 : f32
    %1463 = vector.broadcast %cst_525 : f32 to vector<16x1xf32>
    %1464 = arith.divf %1462, %1463 : vector<16x1xf32>
    %cst_526 = arith.constant 9.99999974E-6 : f32
    %1465 = vector.broadcast %cst_526 : f32 to vector<16x1xf32>
    %1466 = arith.addf %1464, %1465 : vector<16x1xf32>
    %1467 = math.rsqrt %1466 : vector<16x1xf32>
    %1468 = vector.broadcast %1467 : vector<16x1xf32> to vector<16x32xf32>
    %1469 = arith.mulf %1459, %1468 : vector<16x32xf32>
    %1470 = vector.broadcast %1451 : vector<1x32xf32> to vector<16x32xf32>
    %1471 = arith.mulf %1469, %1470 : vector<16x32xf32>
    %1472 = vector.broadcast %1453 : vector<1x32xf32> to vector<16x32xf32>
    %1473 = arith.addf %1471, %1472 : vector<16x32xf32>
    %1474 = arith.truncf %1473 : vector<16x32xf32> to vector<16x32xbf16>
    %c5_527 = arith.constant 5 : index
    %c0_528 = arith.constant 0 : index
    %c0_529 = arith.constant 0 : index
    %1475 = vector.load %arg8[%c5_527, %c0_528, %c0_529] : memref<6x32x64xbf16, #tpu.memory_space<vmem>>, vector<1x32x64xbf16>
    %1476 = vector.shape_cast %1475 : vector<1x32x64xbf16> to vector<32x64xbf16>
    %cst_530 = arith.constant dense<0.000000e+00> : vector<16x64xf32>
    %1477 = tpu.matmul %1474, %1476, %cst_530 {dimension_numbers = #tpu.dot_dimension_numbers<[1], [0], [0], [1], [0, 0, 1, 1], [], []>} : vector<16x32xbf16>, vector<32x64xbf16>, vector<16x64xf32> -> vector<16x64xf32>
    %c5_531 = arith.constant 5 : index
    %c0_532 = arith.constant 0 : index
    %c0_533 = arith.constant 0 : index
    %1478 = vector.load %arg9[%c5_531, %c0_532, %c0_533] : memref<6x1x64xf32, #tpu.memory_space<vmem>>, vector<1x1x64xf32>
    %1479 = vector.shape_cast %1478 : vector<1x1x64xf32> to vector<1x64xf32>
    %1480 = vector.broadcast %1479 : vector<1x64xf32> to vector<16x64xf32>
    %1481 = arith.addf %1477, %1480 : vector<16x64xf32>
    %cst_534 = arith.constant 0.000000e+00 : f32
    %1482 = vector.broadcast %cst_534 : f32 to vector<16x64xf32>
    %1483 = arith.maximumf %1481, %1482 : vector<16x64xf32>
    %1484 = arith.truncf %1483 : vector<16x64xf32> to vector<16x64xbf16>
    %c5_535 = arith.constant 5 : index
    %c0_536 = arith.constant 0 : index
    %c0_537 = arith.constant 0 : index
    %1485 = vector.load %arg10[%c5_535, %c0_536, %c0_537] : memref<6x64x32xbf16, #tpu.memory_space<vmem>>, vector<1x64x32xbf16>
    %1486 = vector.shape_cast %1485 : vector<1x64x32xbf16> to vector<64x32xbf16>
    %cst_538 = arith.constant dense<0.000000e+00> : vector<16x32xf32>
    %1487 = tpu.matmul %1484, %1486, %cst_538 {dimension_numbers = #tpu.dot_dimension_numbers<[1], [0], [0], [1], [0, 0, 1, 1], [], []>} : vector<16x64xbf16>, vector<64x32xbf16>, vector<16x32xf32> -> vector<16x32xf32>
    %c5_539 = arith.constant 5 : index
    %c0_540 = arith.constant 0 : index
    %c0_541 = arith.constant 0 : index
    %1488 = vector.load %arg11[%c5_539, %c0_540, %c0_541] : memref<6x1x32xf32, #tpu.memory_space<vmem>>, vector<1x1x32xf32>
    %1489 = vector.shape_cast %1488 : vector<1x1x32xf32> to vector<1x32xf32>
    %1490 = vector.broadcast %1489 : vector<1x32xf32> to vector<16x32xf32>
    %1491 = arith.addf %1487, %1490 : vector<16x32xf32>
    %1492 = arith.addf %1473, %1491 : vector<16x32xf32>
    %c5_542 = arith.constant 5 : index
    %c0_543 = arith.constant 0 : index
    %c0_544 = arith.constant 0 : index
    %1493 = vector.load %arg12[%c5_542, %c0_543, %c0_544] : memref<6x1x32xf32, #tpu.memory_space<vmem>>, vector<1x1x32xf32>
    %1494 = vector.shape_cast %1493 : vector<1x1x32xf32> to vector<1x32xf32>
    %c5_545 = arith.constant 5 : index
    %c0_546 = arith.constant 0 : index
    %c0_547 = arith.constant 0 : index
    %1495 = vector.load %arg13[%c5_545, %c0_546, %c0_547] : memref<6x1x32xf32, #tpu.memory_space<vmem>>, vector<1x1x32xf32>
    %1496 = vector.shape_cast %1495 : vector<1x1x32xf32> to vector<1x32xf32>
    %cst_548 = arith.constant dense<0.000000e+00> : vector<16xf32>
    %1497 = vector.multi_reduction <add>, %1492, %cst_548 [1] : vector<16x32xf32> to vector<16xf32>
    %1498 = vector.shape_cast %1497 : vector<16xf32> to vector<16x1xf32>
    %cst_549 = arith.constant 3.200000e+01 : f32
    %1499 = vector.broadcast %cst_549 : f32 to vector<16x1xf32>
    %1500 = arith.divf %1498, %1499 : vector<16x1xf32>
    %1501 = vector.broadcast %1500 : vector<16x1xf32> to vector<16x32xf32>
    %1502 = arith.subf %1492, %1501 : vector<16x32xf32>
    %1503 = arith.mulf %1502, %1502 : vector<16x32xf32>
    %cst_550 = arith.constant dense<0.000000e+00> : vector<16xf32>
    %1504 = vector.multi_reduction <add>, %1503, %cst_550 [1] : vector<16x32xf32> to vector<16xf32>
    %1505 = vector.shape_cast %1504 : vector<16xf32> to vector<16x1xf32>
    %cst_551 = arith.constant 3.200000e+01 : f32
    %1506 = vector.broadcast %cst_551 : f32 to vector<16x1xf32>
    %1507 = arith.divf %1505, %1506 : vector<16x1xf32>
    %cst_552 = arith.constant 9.99999974E-6 : f32
    %1508 = vector.broadcast %cst_552 : f32 to vector<16x1xf32>
    %1509 = arith.addf %1507, %1508 : vector<16x1xf32>
    %1510 = math.rsqrt %1509 : vector<16x1xf32>
    %1511 = vector.broadcast %1510 : vector<16x1xf32> to vector<16x32xf32>
    %1512 = arith.mulf %1502, %1511 : vector<16x32xf32>
    %1513 = vector.broadcast %1494 : vector<1x32xf32> to vector<16x32xf32>
    %1514 = arith.mulf %1512, %1513 : vector<16x32xf32>
    %1515 = vector.broadcast %1496 : vector<1x32xf32> to vector<16x32xf32>
    %1516 = arith.addf %1514, %1515 : vector<16x32xf32>
    %1517 = vector.extract_strided_slice %1516 {offsets = [0, 0], sizes = [8, 32], strides = [1, 1]} : vector<16x32xf32> to vector<8x32xf32>
    %1518 = vector.extract_strided_slice %1516 {offsets = [8, 0], sizes = [8, 32], strides = [1, 1]} : vector<16x32xf32> to vector<8x32xf32>
    %1519 = arith.addf %1517, %1518 : vector<8x32xf32>
    %cst_553 = arith.constant 5.000000e-01 : f32
    %1520 = vector.broadcast %cst_553 : f32 to vector<8x32xf32>
    %1521 = arith.mulf %1519, %1520 : vector<8x32xf32>
    %1522 = arith.mulf %1521, %1521 : vector<8x32xf32>
    %cst_554 = arith.constant dense<0.000000e+00> : vector<8xf32>
    %1523 = vector.multi_reduction <add>, %1522, %cst_554 [1] : vector<8x32xf32> to vector<8xf32>
    %1524 = vector.shape_cast %1523 : vector<8xf32> to vector<8x1xf32>
    %cst_555 = arith.constant 1.000000e-24 : f32
    %1525 = vector.broadcast %cst_555 : f32 to vector<8x1xf32>
    %1526 = arith.maximumf %1524, %1525 : vector<8x1xf32>
    %1527 = math.rsqrt %1526 : vector<8x1xf32>
    %1528 = vector.broadcast %1527 : vector<8x1xf32> to vector<8x32xf32>
    %1529 = arith.mulf %1521, %1528 : vector<8x32xf32>
    %c0_556 = arith.constant 0 : index
    %c0_557 = arith.constant 0 : index
    %1530 = vector.load %arg14[%c0_556, %c0_557] : memref<8x32xf32, #tpu.memory_space<vmem>>, vector<8x32xf32>
    tpu.vector_store %arg14[%c0_556, %c0_557], %1529 {strides = array<i32>} : memref<8x32xf32, #tpu.memory_space<vmem>>, vector<8x32xf32>,
    return
  }
}

</mosaic_0001>

<llo_original>
// kernel: text_model_forward.1
$region0: #{text_model_forward.1}
  #allocation0 [shape = 'u32[]', space=smem, size = 0x4, offset = 0x4, fixed_abs, tag = 'smem constant byte address 0x4 - core index']
  #allocation1 [shape = 'u32[72,128]{1,0:T(1,128)}', space=vmem, size = 0x9000, scoped, tag = 'internal scratch']
  %s0 = inlined_call_operand.vmem [shape: s32[8,2], index: 0, kind: input, shape index: {}]
  %s1 = inlined_call_operand.vmem [shape: f32[100,1,32], index: 1, kind: input, shape index: {}]
  %s2 = inlined_call_operand.vmem [shape: bf16[6,32,64], index: 2, kind: input, shape index: {}]
  %s3 = inlined_call_operand.vmem [shape: f32[6,1,64], index: 3, kind: input, shape index: {}]
  %s4 = inlined_call_operand.vmem [shape: bf16[6,32,256], index: 4, kind: input, shape index: {}]
  %s5 = inlined_call_operand.vmem [shape: f32[6,1,32], index: 5, kind: input, shape index: {}]
  %s6 = inlined_call_operand.vmem [shape: f32[6,1,32], index: 6, kind: input, shape index: {}]
  %s7 = inlined_call_operand.vmem [shape: f32[6,1,32], index: 7, kind: input, shape index: {}]
  %s8 = inlined_call_operand.hbm [shape: bf16[6,32,64], index: 8, kind: input, shape index: {}]
  %s9 = inlined_call_operand.vmem [shape: f32[6,1,64], index: 9, kind: input, shape index: {}]
  %s10 = inlined_call_operand.vmem [shape: bf16[6,64,32], index: 10, kind: input, shape index: {}]
  %s11 = inlined_call_operand.vmem [shape: f32[6,1,32], index: 11, kind: input, shape index: {}]
  %s12 = inlined_call_operand.vmem [shape: f32[6,1,32], index: 12, kind: input, shape index: {}]
  %s13 = inlined_call_operand.vmem [shape: f32[6,1,32], index: 13, kind: input, shape index: {}]
  %s14 = inlined_call_operand.hbm [shape: f32[8,32], index: 14, kind: output, shape index: {}]
  %s15 = sld [smem:[#allocation0]]
  $region74: #{text_model_forward.1} parent=0
    _
  %s17 = ssub.s32 1, %s15
  %s18 = scalar_select 0, %s17, %s15
  $region1: #{text_model_forward.1} parent=0
    #allocation2 [shape = 'u8[4096]{0}', space=smem, size = 0x1000, scoped, tag = 'input window, operand 0, single buffered']
    #allocation3 [shape = 's32[1]{0}', space=sflag, size = 0x4, scoped, tag = 'scoped memory for text_model_forward.1']
    #allocation4 [shape = 's32[1]{0}', space=sflag, size = 0x4, scoped, tag = 'scoped memory for text_model_forward.1']
    #allocation5 [shape = 's32[1]{0}', space=sflag, size = 0x4, scoped, tag = 'scoped memory for text_model_forward.1']
    #allocation6 [shape = 'u8[49152]{0}', space=vmem, size = 0xc000, scoped, tag = 'input window, operand 8, single buffered']
    #allocation7 [shape = 'u8[4096]{0}', space=vmem, size = 0x1000, scoped, tag = 'output window, operand 0, single buffered']
    %19 = vsyncpa [#allocation5], 0
    %20 = vsyncpa [#allocation3], 0
    %21 = vsyncpa [#allocation4], 0
    // Predicated region
    $region2: #{text_model_forward.1} parent=1 // pred_check
      _
    $region3: #{text_model_forward.1} parent=1 // pred_check_branch
      %23 = sbr.rel (0) target = $region5
    $region4: #{text_model_forward.1} parent=1 // pred_region
      %25 = vsyncadd [#allocation5], 0
      %s27 = sshll.u32 %s0, 4
      %s28 = int_to_ptr.vmem [resolvable:$true] %s27
      %30 = dma.vmem_to_smem %s28, 128, [#allocation2], [#allocation5]
    $region5: #{text_model_forward.1} parent=1 // pred_fallthru
      _
    // Predicated region
    $region6: #{text_model_forward.1} parent=1 // pred_check
      _
    $region7: #{text_model_forward.1} parent=1 // pred_check_branch
      %32 = sbr.rel (0) target = $region9
    $region8: #{text_model_forward.1} parent=1 // pred_region
      _
    $region9: #{text_model_forward.1} parent=1 // pred_fallthru
      _
    // Predicated region
    $region10: #{text_model_forward.1} parent=1 // pred_check
      _
    $region11: #{text_model_forward.1} parent=1 // pred_check_branch
      %34 = sbr.rel (0) target = $region13
    $region12: #{text_model_forward.1} parent=1 // pred_region
      _
    $region13: #{text_model_forward.1} parent=1 // pred_fallthru
      _
    // Predicated region
    $region14: #{text_model_forward.1} parent=1 // pred_check
      _
    $region15: #{text_model_forward.1} parent=1 // pred_check_branch
      %36 = sbr.rel (0) target = $region17
    $region16: #{text_model_forward.1} parent=1 // pred_region
      _
    $region17: #{text_model_forward.1} parent=1 // pred_fallthru
      _
    // Predicated region
    $region18: #{text_model_forward.1} parent=1 // pred_check
      _
    $region19: #{text_model_forward.1} parent=1 // pred_check_branch
      %38 = sbr.rel (0) target = $region21
    $region20: #{text_model_forward.1} parent=1 // pred_region
      _
    $region21: #{text_model_forward.1} parent=1 // pred_fallthru
      _
    // Predicated region
    $region22: #{text_model_forward.1} parent=1 // pred_check
      _
    $region23: #{text_model_forward.1} parent=1 // pred_check_branch
      %40 = sbr.rel (0) target = $region25
    $region24: #{text_model_forward.1} parent=1 // pred_region
      _
    $region25: #{text_model_forward.1} parent=1 // pred_fallthru
      _
    // Predicated region
    $region26: #{text_model_forward.1} parent=1 // pred_check
      _
    $region27: #{text_model_forward.1} parent=1 // pred_check_branch
      %42 = sbr.rel (0) target = $region29
    $region28: #{text_model_forward.1} parent=1 // pred_region
      _
    $region29: #{text_model_forward.1} parent=1 // pred_fallthru
      _
    // Predicated region
    $region30: #{text_model_forward.1} parent=1 // pred_check
      _
    $region31: #{text_model_forward.1} parent=1 // pred_check_branch
      %44 = sbr.rel (0) target = $region33
    $region32: #{text_model_forward.1} parent=1 // pred_region
      _
    $region33: #{text_model_forward.1} parent=1 // pred_fallthru
      _
    // Predicated region
    $region34: #{text_model_forward.1} parent=1 // pred_check
      _
    $region35: #{text_model_forward.1} parent=1 // pred_check_branch
      %46 = sbr.rel (0) target = $region37
    $region36: #{text_model_forward.1} parent=1 // pred_region
      %48 = vsyncadd [#allocation3], 0
      %s49 = sshll.u32 %s8, 4
      %s50 = int_to_ptr.hbm [resolvable:$true] %s49
      %s51 = sshll.u32 [#allocation6], 4
      %s52 = int_to_ptr.vmem [resolvable:$true] %s51
      %57 = dma.hbm_to_vmem [thread:$0]  %s50, 1536, %s52, [#allocation3], 64, 64, 4
    $region37: #{text_model_forward.1} parent=1 // pred_fallthru
      _
    // Predicated region
    $region38: #{text_model_forward.1} parent=1 // pred_check
      _
    $region39: #{text_model_forward.1} parent=1 // pred_check_branch
      %59 = sbr.rel (0) target = $region41
    $region40: #{text_model_forward.1} parent=1 // pred_region
      _
    $region41: #{text_model_forward.1} parent=1 // pred_fallthru
      _
    // Predicated region
    $region42: #{text_model_forward.1} parent=1 // pred_check
      _
    $region43: #{text_model_forward.1} parent=1 // pred_check_branch
      %61 = sbr.rel (0) target = $region45
    $region44: #{text_model_forward.1} parent=1 // pred_region
      _
    $region45: #{text_model_forward.1} parent=1 // pred_fallthru
      _
    // Predicated region
    $region46: #{text_model_forward.1} parent=1 // pred_check
      _
    $region47: #{text_model_forward.1} parent=1 // pred_check_branch
      %63 = sbr.rel (0) target = $region49
    $region48: #{text_model_forward.1} parent=1 // pred_region
      _
    $region49: #{text_model_forward.1} parent=1 // pred_fallthru
      _
    // Predicated region
    $region50: #{text_model_forward.1} parent=1 // pred_check
      _
    $region51: #{text_model_forward.1} parent=1 // pred_check_branch
      %65 = sbr.rel (0) target = $region53
    $region52: #{text_model_forward.1} parent=1 // pred_region
      _
    $region53: #{text_model_forward.1} parent=1 // pred_fallthru
      _
    // Predicated region
    $region54: #{text_model_forward.1} parent=1 // pred_check
      _
    $region55: #{text_model_forward.1} parent=1 // pred_check_branch
      %67 = sbr.rel (0) target = $region57
    $region56: #{text_model_forward.1} parent=1 // pred_region
      _
    $region57: #{text_model_forward.1} parent=1 // pred_fallthru
      _
    // Predicated region
    $region58: #{text_model_forward.1} parent=1 // pred_check
      _
    $region59: #{text_model_forward.1} parent=1 // pred_check_branch
      %69 = sbr.rel (0) target = $region61
    $region60: #{text_model_forward.1} parent=1 // pred_region
      %71 = dma.done [#allocation5], 128
    $region61: #{text_model_forward.1} parent=1 // pred_fallthru
      _
    // Predicated region
    $region62: #{text_model_forward.1} parent=1 // pred_check
      _
    $region63: #{text_model_forward.1} parent=1 // pred_check_branch
      %73 = sbr.rel (0) target = $region65
    $region64: #{text_model_forward.1} parent=1 // pred_region
      %75 = dma.done [#allocation3], 1536
    $region65: #{text_model_forward.1} parent=1 // pred_fallthru
      _
    %76 = sfence
    %s78 = sld [smem:[#allocation2]]
    %s79 = scalar_lea.vmem %s1, %s78
    %v80 = vld [vmem:[%s79] sm:$0x1]
    %s81 = sld [smem:[#allocation2 + $0x80]]
    %s82 = scalar_lea.vmem %s1, %s81
    %v83 = vld [vmem:[%s82] sm:$0x1]
    %s84 = sld [smem:[#allocation2 + $0x100]]
    %s85 = scalar_lea.vmem %s1, %s84
    %v86 = vld [vmem:[%s85] sm:$0x1]
    %s87 = sld [smem:[#allocation2 + $0x180]]
    %s88 = scalar_lea.vmem %s1, %s87
    %v89 = vld [vmem:[%s88] sm:$0x1]
    %s90 = sld [smem:[#allocation2 + $0x200]]
    %s91 = scalar_lea.vmem %s1, %s90
    %v92 = vld [vmem:[%s91] sm:$0x1]
    %s93 = sld [smem:[#allocation2 + $0x280]]
    %s94 = scalar_lea.vmem %s1, %s93
    %v95 = vld [vmem:[%s94] sm:$0x1]
    %s96 = sld [smem:[#allocation2 + $0x300]]
    %s97 = scalar_lea.vmem %s1, %s96
    %v98 = vld [vmem:[%s97] sm:$0x1]
    %s99 = sld [smem:[#allocation2 + $0x380]]
    %s100 = scalar_lea.vmem %s1, %s99
    %v101 = vld [vmem:[%s100] sm:$0x1]
    %s102 = sld [smem:[#allocation2 + $0x1]]
    %s103 = scalar_lea.vmem %s1, %s102
    %v104 = vld [vmem:[%s103] sm:$0x1]
    %s105 = sld [smem:[#allocation2 + $0x81]]
    %s106 = scalar_lea.vmem %s1, %s105
    %v107 = vld [vmem:[%s106] sm:$0x1]
    %s108 = sld [smem:[#allocation2 + $0x101]]
    %s109 = scalar_lea.vmem %s1, %s108
    %v110 = vld [vmem:[%s109] sm:$0x1]
    %s111 = sld [smem:[#allocation2 + $0x181]]
    %s112 = scalar_lea.vmem %s1, %s111
    %v113 = vld [vmem:[%s112] sm:$0x1]
    %s114 = sld [smem:[#allocation2 + $0x201]]
    %s115 = scalar_lea.vmem %s1, %s114
    %v116 = vld [vmem:[%s115] sm:$0x1]
    %s117 = sld [smem:[#allocation2 + $0x281]]
    %s118 = scalar_lea.vmem %s1, %s117
    %v119 = vld [vmem:[%s118] sm:$0x1]
    %s120 = sld [smem:[#allocation2 + $0x301]]
    %s121 = scalar_lea.vmem %s1, %s120
    %v122 = vld [vmem:[%s121] sm:$0x1]
    %s123 = sld [smem:[#allocation2 + $0x381]]
    %s124 = scalar_lea.vmem %s1, %s123
    %v125 = vld [vmem:[%s124] sm:$0x1]
    %v127 = vperm.slane %v83, 0
    %v130 = vperm.slane %v86, 0
    %v133 = vperm.slane %v89, 0
    %v136 = vperm.slane %v92, 0
    %v139 = vperm.slane %v95, 0
    %v142 = vperm.slane %v98, 0
    %v145 = vperm.slane %v101, 0
    %v148 = vperm.slane %v107, 0
    %v151 = vperm.slane %v110, 0
    %v154 = vperm.slane %v113, 0
    %v157 = vperm.slane %v116, 0
    %v160 = vperm.slane %v119, 0
    %v163 = vperm.slane %v122, 0
    %v166 = vperm.slane %v125, 0
    %vm168 = vcmask 1040384
    %v169 = vsel %vm168, %v80, %v127
    %vm170 = vcmask 1041408
    %v171 = vsel %vm170, %v169, %v130
    %vm172 = vcmask 1042432
    %v173 = vsel %vm172, %v171, %v133
    %vm174 = vcmask 1043456
    %v175 = vsel %vm174, %v173, %v136
    %vm176 = vcmask 1044480
    %v177 = vsel %vm176, %v175, %v139
    %vm178 = vcmask 1045504
    %v179 = vsel %vm178, %v177, %v142
    %vm180 = vcmask 1046528
    %v181 = vsel %vm180, %v179, %v145
    %v182 = vsel %vm168, %v104, %v148
    %v183 = vsel %vm170, %v182, %v151
    %v184 = vsel %vm172, %v183, %v154
    %v185 = vsel %vm174, %v184, %v157
    %v186 = vsel %vm176, %v185, %v160
    %v187 = vsel %vm178, %v186, %v163
    %v188 = vsel %vm180, %v187, %v166
    %v189 = vpack.c.bf16 %v188, %v181
    %v190 = vld [vmem:[%s2] sm:$0xf]
    %v191 = vld [vmem:[%s2 + $0x4] sm:$0xf]
    %v192 = vld [vmem:[%s2 + $0x8] sm:$0xf]
    %v193 = vld [vmem:[%s2 + $0xc] sm:$0xf]
    %v194 = vld [vmem:[%s3] sm:$0x1]
    %v196 = vperm.slane %v194, 0
    %v202 = vunpack.c.l.b16 %v190
    %v203 = vunpack.c.l.b16 %v191
    %v204 = vunpack.c.l.b16 %v192
    %v205 = vunpack.c.l.b16 %v193
    %v206 = vpack.c.b16 %v203, %v202
    %v207 = vpack.c.b16 %v205, %v204
    %vm210 = vcmask 261120
    %v212 = vsel %vm210, %v189, 0
    %214 = vmatpush.bf16.msra.mxu0 0
    %215 = vmatpush.bf16.msra.mxu0 0
    %216 = vmatpush.bf16.msra.mxu0 0
    %217 = vmatpush.bf16.msra.mxu0 0
    %218 = vmatpush.bf16.msra.mxu0 0
    %219 = vmatpush.bf16.msra.mxu0 0
    %220 = vmatpush.bf16.msra.mxu0 %v207
    %221 = vmatpush.bf16.msra.mxu0 %v206
    %222 = vmatmul.bf16.gmra.mxu0 %v212
    %v223 = vpop.f32.mrf.mxu0
    %v224 = vadd.f32 %v196, %v223
    %v225 = vpop.f32.mrf.mxu0
    %v226 = vadd.f32 %v196, %v225
    %227 = vdwg.mxu0
    %v228 = vld [vmem:[%s4] sm:$0xff]
    %v229 = vld [vmem:[%s4 + $0x8] sm:$0xff]
    %v230 = vld [vmem:[%s4 + $0x10] sm:$0xff]
    %v231 = vld [vmem:[%s4 + $0x18] sm:$0xff]
    %v236 = vunpack.c.l.b16 %v228
    %v237 = vunpack.c.h.b16 %v228
    %v238 = vunpack.c.l.b16 %v229
    %v239 = vunpack.c.h.b16 %v229
    %v240 = vunpack.c.l.b16 %v230
    %v241 = vunpack.c.h.b16 %v230
    %v242 = vunpack.c.l.b16 %v231
    %v243 = vunpack.c.h.b16 %v231
    %v244 = vpack.c.b16 %v238, %v236
    %v245 = vpack.c.b16 %v239, %v237
    %v246 = vpack.c.b16 %v242, %v240
    %v247 = vpack.c.b16 %v243, %v241
    %252 = vmatpush.bf16.msra.mxu0 0
    %253 = vmatpush.bf16.msra.mxu0 0
    %254 = vmatpush.bf16.msra.mxu0 0
    %255 = vmatpush.bf16.msra.mxu0 0
    %256 = vmatpush.bf16.msra.mxu0 0
    %257 = vmatpush.bf16.msra.mxu0 0
    %258 = vmatpush.bf16.msra.mxu0 %v246
    %259 = vmatpush.bf16.msra.mxu0 %v244
    %260 = vmatmul.bf16.gmra.mxu0 %v212
    %v261 = vpop.f32.mrf.mxu0
    %v262 = vadd.f32 0.0, %v261
    %v263 = vpop.f32.mrf.mxu0
    %v264 = vadd.f32 0.0, %v263
    %265 = vdwg.mxu0
    %266 = vmatpush.bf16.msra.mxu0 0
    %267 = vmatpush.bf16.msra.mxu0 0
    %268 = vmatpush.bf16.msra.mxu0 0
    %269 = vmatpush.bf16.msra.mxu0 0
    %270 = vmatpush.bf16.msra.mxu0 0
    %271 = vmatpush.bf16.msra.mxu0 0
    %272 = vmatpush.bf16.msra.mxu0 %v247
    %273 = vmatpush.bf16.msra.mxu0 %v245
    %274 = vmatmul.bf16.gmra.mxu0 %v212
    %v275 = vpop.f32.mrf.mxu0
    %v276 = vadd.f32 0.0, %v275
    %v277 = vpop.f32.mrf.mxu0
    %v278 = vadd.f32 0.0, %v277
    %279 = vdwg.mxu0
    %281 = vrot.lane.b32.xlu0 %v224, 96
    %v282 = vpop.permute.xlu0 %281
    %vm283 = vcmask 31744
    %v284 = vsel %vm283, %v224, 0
    %v286 = vsel %vm283, %v282, 0
    %288 = vmatpush.xpose.msra.mxu0 0.0
    %289 = vmatpush.xpose.msra.mxu0 0.0
    %290 = vmatpush.xpose.msra.mxu0 0.0
    %291 = vmatpush.xpose.msra.mxu0 0.0
    %292 = vmatpush.xpose.msra.mxu0 0.0
    %293 = vmatpush.xpose.msra.mxu0 0.0
    %294 = vmatpush.xpose.msra.mxu0 0.0
    %295 = vmatpush.xpose.msra.mxu0 0.0
    %296 = vmatpush.xpose.msra.mxu0 0.0
    %297 = vmatpush.xpose.msra.mxu0 0.0
    %298 = vmatpush.xpose.msra.mxu0 0.0
    %299 = vmatpush.xpose.msra.mxu0 0.0
    %300 = vmatpush.xpose.msra.mxu0 0.0
    %301 = vmatpush.xpose.msra.mxu0 0.0
    %302 = vmatpush.xpose.msra.mxu0 0.0
    %303 = vmatpush.xpose.msra.mxu0 %v286
    %304 = vmatmul.f32.gmra.mxu0 %v284
    %v305 = vpop.f32.mrf.mxu0
    %v306 = vadd.f32 0.0, %v305
    %307 = vdwg.mxu0
    %309 = vrot.lane.b32.xlu0 %v226, 96
    %v310 = vpop.permute.xlu0 %309
    %v311 = vsel %vm283, %v226, 0
    %v313 = vsel %vm283, %v310, 0
    %315 = vmatpush.xpose.msra.mxu0 0.0
    %316 = vmatpush.xpose.msra.mxu0 0.0
    %317 = vmatpush.xpose.msra.mxu0 0.0
    %318 = vmatpush.xpose.msra.mxu0 0.0
    %319 = vmatpush.xpose.msra.mxu0 0.0
    %320 = vmatpush.xpose.msra.mxu0 0.0
    %321 = vmatpush.xpose.msra.mxu0 0.0
    %322 = vmatpush.xpose.msra.mxu0 0.0
    %323 = vmatpush.xpose.msra.mxu0 0.0
    %324 = vmatpush.xpose.msra.mxu0 0.0
    %325 = vmatpush.xpose.msra.mxu0 0.0
    %326 = vmatpush.xpose.msra.mxu0 0.0
    %327 = vmatpush.xpose.msra.mxu0 0.0
    %328 = vmatpush.xpose.msra.mxu0 0.0
    %329 = vmatpush.xpose.msra.mxu0 0.0
    %330 = vmatpush.xpose.msra.mxu0 %v313
    %331 = vmatmul.f32.gmra.mxu0 %v311
    %v332 = vpop.f32.mrf.mxu0
    %v333 = vadd.f32 0.0, %v332
    %334 = vdwg.mxu0
    %vm335 = vcmask 64512
    %v336 = vsel %vm335, %v306, -inf
    %337 = vmax.xlane.f32.xlu0 %v336
    %v338 = vpop.xlane.xlu0 %337
    %v339 = vsel %vm335, %v333, -inf
    %340 = vmax.xlane.f32.xlu0 %v339
    %v341 = vpop.xlane.xlu0 %340
    %v342 = vsub.f32 %v306, %v338
    %v343 = vsub.f32 %v333, %v341
    %v344 = vmul.f32 %v342, 1.442695
    %v345 = vpow.pop %v344
    %v346 = vmul.f32 %v343, 1.442695
    %v347 = vpow.pop %v346
    %v348 = vsel %vm335, %v345, 0.0
    %349 = vadd.xlane.f32.xlu0 %v348
    %v350 = vpop.xlane.xlu0 %349
    %v351 = vsel %vm335, %v347, 0.0
    %352 = vadd.xlane.f32.xlu0 %v351
    %v353 = vpop.xlane.xlu0 %352
    %v354 = vrcp.pop %v350
    %v355 = vrcp.pop %v353
    %v356 = vmul.f32 %v345, %v354
    %v357 = vmul.f32 %v347, %v355
    %v359 = vsel %vm335, %v356, 0
    %361 = vmatpush.msra.mxu0 0.0
    %362 = vmatpush.msra.mxu0 0.0
    %363 = vmatpush.msra.mxu0 0.0
    %364 = vmatpush.msra.mxu0 0.0
    %365 = vmatpush.msra.mxu0 0.0
    %366 = vmatpush.msra.mxu0 0.0
    %367 = vmatpush.msra.mxu0 0.0
    %368 = vmatpush.msra.mxu0 0.0
    %369 = vmatpush.msra.mxu0 0.0
    %370 = vmatpush.msra.mxu0 0.0
    %371 = vmatpush.msra.mxu0 0.0
    %372 = vmatpush.msra.mxu0 0.0
    %373 = vmatpush.msra.mxu0 0.0
    %374 = vmatpush.msra.mxu0 0.0
    %375 = vmatpush.msra.mxu0 0.0
    %376 = vmatpush.msra.mxu0 %v262
    %377 = vmatmul.f32.gmra.mxu0 %v359
    %v378 = vpop.f32.mrf.mxu0
    %v379 = vadd.f32 0.0, %v378
    %380 = vdwg.mxu0
    %v382 = vsel %vm335, %v357, 0
    %384 = vmatpush.msra.mxu0 0.0
    %385 = vmatpush.msra.mxu0 0.0
    %386 = vmatpush.msra.mxu0 0.0
    %387 = vmatpush.msra.mxu0 0.0
    %388 = vmatpush.msra.mxu0 0.0
    %389 = vmatpush.msra.mxu0 0.0
    %390 = vmatpush.msra.mxu0 0.0
    %391 = vmatpush.msra.mxu0 0.0
    %392 = vmatpush.msra.mxu0 0.0
    %393 = vmatpush.msra.mxu0 0.0
    %394 = vmatpush.msra.mxu0 0.0
    %395 = vmatpush.msra.mxu0 0.0
    %396 = vmatpush.msra.mxu0 0.0
    %397 = vmatpush.msra.mxu0 0.0
    %398 = vmatpush.msra.mxu0 0.0
    %399 = vmatpush.msra.mxu0 %v264
    %400 = vmatmul.f32.gmra.mxu0 %v382
    %v401 = vpop.f32.mrf.mxu0
    %v402 = vadd.f32 0.0, %v401
    %403 = vdwg.mxu0
    %404 = vrot.lane.b32.xlu0 %v224, 124
    %v405 = vpop.permute.xlu0 %404
    %406 = vrot.lane.b32.xlu0 %v224, 92
    %v407 = vpop.permute.xlu0 %406
    %v408 = vsel %vm283, %v405, 0
    %v410 = vsel %vm283, %v407, 0
    %412 = vmatpush.xpose.msra.mxu0 0.0
    %413 = vmatpush.xpose.msra.mxu0 0.0
    %414 = vmatpush.xpose.msra.mxu0 0.0
    %415 = vmatpush.xpose.msra.mxu0 0.0
    %416 = vmatpush.xpose.msra.mxu0 0.0
    %417 = vmatpush.xpose.msra.mxu0 0.0
    %418 = vmatpush.xpose.msra.mxu0 0.0
    %419 = vmatpush.xpose.msra.mxu0 0.0
    %420 = vmatpush.xpose.msra.mxu0 0.0
    %421 = vmatpush.xpose.msra.mxu0 0.0
    %422 = vmatpush.xpose.msra.mxu0 0.0
    %423 = vmatpush.xpose.msra.mxu0 0.0
    %424 = vmatpush.xpose.msra.mxu0 0.0
    %425 = vmatpush.xpose.msra.mxu0 0.0
    %426 = vmatpush.xpose.msra.mxu0 0.0
    %427 = vmatpush.xpose.msra.mxu0 %v410
    %428 = vmatmul.f32.gmra.mxu0 %v408
    %v429 = vpop.f32.mrf.mxu0
    %v430 = vadd.f32 0.0, %v429
    %431 = vdwg.mxu0
    %432 = vrot.lane.b32.xlu0 %v226, 124
    %v433 = vpop.permute.xlu0 %432
    %434 = vrot.lane.b32.xlu0 %v226, 92
    %v435 = vpop.permute.xlu0 %434
    %v436 = vsel %vm283, %v433, 0
    %v438 = vsel %vm283, %v435, 0
    %440 = vmatpush.xpose.msra.mxu0 0.0
    %441 = vmatpush.xpose.msra.mxu0 0.0
    %442 = vmatpush.xpose.msra.mxu0 0.0
    %443 = vmatpush.xpose.msra.mxu0 0.0
    %444 = vmatpush.xpose.msra.mxu0 0.0
    %445 = vmatpush.xpose.msra.mxu0 0.0
    %446 = vmatpush.xpose.msra.mxu0 0.0
    %447 = vmatpush.xpose.msra.mxu0 0.0
    %448 = vmatpush.xpose.msra.mxu0 0.0
    %449 = vmatpush.xpose.msra.mxu0 0.0
    %450 = vmatpush.xpose.msra.mxu0 0.0
    %451 = vmatpush.xpose.msra.mxu0 0.0
    %452 = vmatpush.xpose.msra.mxu0 0.0
    %453 = vmatpush.xpose.msra.mxu0 0.0
    %454 = vmatpush.xpose.msra.mxu0 0.0
    %455 = vmatpush.xpose.msra.mxu0 %v438
    %456 = vmatmul.f32.gmra.mxu0 %v436
    %v457 = vpop.f32.mrf.mxu0
    %v458 = vadd.f32 0.0, %v457
    %459 = vdwg.mxu0
    %v460 = vsel %vm335, %v430, -inf
    %461 = vmax.xlane.f32.xlu0 %v460
    %v462 = vpop.xlane.xlu0 %461
    %v463 = vsel %vm335, %v458, -inf
    %464 = vmax.xlane.f32.xlu0 %v463
    %v465 = vpop.xlane.xlu0 %464
    %v466 = vsub.f32 %v430, %v462
    %v467 = vsub.f32 %v458, %v465
    %v468 = vmul.f32 %v466, 1.442695
    %v469 = vpow.pop %v468
    %v470 = vmul.f32 %v467, 1.442695
    %v471 = vpow.pop %v470
    %v472 = vsel %vm335, %v469, 0.0
    %473 = vadd.xlane.f32.xlu0 %v472
    %v474 = vpop.xlane.xlu0 %473
    %v475 = vsel %vm335, %v471, 0.0
    %476 = vadd.xlane.f32.xlu0 %v475
    %v477 = vpop.xlane.xlu0 %476
    %v478 = vrcp.pop %v474
    %v479 = vrcp.pop %v477
    %v480 = vmul.f32 %v469, %v478
    %v481 = vmul.f32 %v471, %v479
    %483 = vrot.lane.b32.xlu0 %v262, 96
    %v484 = vpop.permute.xlu0 %483
    %v487 = vsel %vm335, %v480, 0
    %489 = vmatpush.msra.mxu0 0.0
    %490 = vmatpush.msra.mxu0 0.0
    %491 = vmatpush.msra.mxu0 0.0
    %492 = vmatpush.msra.mxu0 0.0
    %493 = vmatpush.msra.mxu0 0.0
    %494 = vmatpush.msra.mxu0 0.0
    %495 = vmatpush.msra.mxu0 0.0
    %496 = vmatpush.msra.mxu0 0.0
    %497 = vmatpush.msra.mxu0 0.0
    %498 = vmatpush.msra.mxu0 0.0
    %499 = vmatpush.msra.mxu0 0.0
    %500 = vmatpush.msra.mxu0 0.0
    %501 = vmatpush.msra.mxu0 0.0
    %502 = vmatpush.msra.mxu0 0.0
    %503 = vmatpush.msra.mxu0 0.0
    %504 = vmatpush.msra.mxu0 %v484
    %505 = vmatmul.f32.gmra.mxu0 %v487
    %v506 = vpop.f32.mrf.mxu0
    %v507 = vadd.f32 0.0, %v506
    %508 = vdwg.mxu0
    %510 = vrot.lane.b32.xlu0 %v264, 96
    %v511 = vpop.permute.xlu0 %510
    %v514 = vsel %vm335, %v481, 0
    %516 = vmatpush.msra.mxu0 0.0
    %517 = vmatpush.msra.mxu0 0.0
    %518 = vmatpush.msra.mxu0 0.0
    %519 = vmatpush.msra.mxu0 0.0
    %520 = vmatpush.msra.mxu0 0.0
    %521 = vmatpush.msra.mxu0 0.0
    %522 = vmatpush.msra.mxu0 0.0
    %523 = vmatpush.msra.mxu0 0.0
    %524 = vmatpush.msra.mxu0 0.0
    %525 = vmatpush.msra.mxu0 0.0
    %526 = vmatpush.msra.mxu0 0.0
    %527 = vmatpush.msra.mxu0 0.0
    %528 = vmatpush.msra.mxu0 0.0
    %529 = vmatpush.msra.mxu0 0.0
    %530 = vmatpush.msra.mxu0 0.0
    %531 = vmatpush.msra.mxu0 %v511
    %532 = vmatmul.f32.gmra.mxu0 %v514
    %v533 = vpop.f32.mrf.mxu0
    %v534 = vadd.f32 0.0, %v533
    %535 = vdwg.mxu0
    %v536 = vadd.f32 %v379, %v507
    %v537 = vadd.f32 %v402, %v534
    %538 = vrot.lane.b32.xlu0 %v224, 120
    %v539 = vpop.permute.xlu0 %538
    %540 = vrot.lane.b32.xlu0 %v224, 88
    %v541 = vpop.permute.xlu0 %540
    %v542 = vsel %vm283, %v539, 0
    %v544 = vsel %vm283, %v541, 0
    %546 = vmatpush.xpose.msra.mxu0 0.0
    %547 = vmatpush.xpose.msra.mxu0 0.0
    %548 = vmatpush.xpose.msra.mxu0 0.0
    %549 = vmatpush.xpose.msra.mxu0 0.0
    %550 = vmatpush.xpose.msra.mxu0 0.0
    %551 = vmatpush.xpose.msra.mxu0 0.0
    %552 = vmatpush.xpose.msra.mxu0 0.0
    %553 = vmatpush.xpose.msra.mxu0 0.0
    %554 = vmatpush.xpose.msra.mxu0 0.0
    %555 = vmatpush.xpose.msra.mxu0 0.0
    %556 = vmatpush.xpose.msra.mxu0 0.0
    %557 = vmatpush.xpose.msra.mxu0 0.0
    %558 = vmatpush.xpose.msra.mxu0 0.0
    %559 = vmatpush.xpose.msra.mxu0 0.0
    %560 = vmatpush.xpose.msra.mxu0 0.0
    %561 = vmatpush.xpose.msra.mxu0 %v544
    %562 = vmatmul.f32.gmra.mxu0 %v542
    %v563 = vpop.f32.mrf.mxu0
    %v564 = vadd.f32 0.0, %v563
    %565 = vdwg.mxu0
    %566 = vrot.lane.b32.xlu0 %v226, 120
    %v567 = vpop.permute.xlu0 %566
    %568 = vrot.lane.b32.xlu0 %v226, 88
    %v569 = vpop.permute.xlu0 %568
    %v570 = vsel %vm283, %v567, 0
    %v572 = vsel %vm283, %v569, 0
    %574 = vmatpush.xpose.msra.mxu0 0.0
    %575 = vmatpush.xpose.msra.mxu0 0.0
    %576 = vmatpush.xpose.msra.mxu0 0.0
    %577 = vmatpush.xpose.msra.mxu0 0.0
    %578 = vmatpush.xpose.msra.mxu0 0.0
    %579 = vmatpush.xpose.msra.mxu0 0.0
    %580 = vmatpush.xpose.msra.mxu0 0.0
    %581 = vmatpush.xpose.msra.mxu0 0.0
    %582 = vmatpush.xpose.msra.mxu0 0.0
    %583 = vmatpush.xpose.msra.mxu0 0.0
    %584 = vmatpush.xpose.msra.mxu0 0.0
    %585 = vmatpush.xpose.msra.mxu0 0.0
    %586 = vmatpush.xpose.msra.mxu0 0.0
    %587 = vmatpush.xpose.msra.mxu0 0.0
    %588 = vmatpush.xpose.msra.mxu0 0.0
    %589 = vmatpush.xpose.msra.mxu0 %v572
    %590 = vmatmul.f32.gmra.mxu0 %v570
    %v591 = vpop.f32.mrf.mxu0
    %v592 = vadd.f32 0.0, %v591
    %593 = vdwg.mxu0
    %v594 = vsel %vm335, %v564, -inf
    %595 = vmax.xlane.f32.xlu0 %v594
    %v596 = vpop.xlane.xlu0 %595
    %v597 = vsel %vm335, %v592, -inf
    %598 = vmax.xlane.f32.xlu0 %v597
    %v599 = vpop.xlane.xlu0 %598
    %v600 = vsub.f32 %v564, %v596
    %v601 = vsub.f32 %v592, %v599
    %v602 = vmul.f32 %v600, 1.442695
    %v603 = vpow.pop %v602
    %v604 = vmul.f32 %v601, 1.442695
    %v605 = vpow.pop %v604
    %v606 = vsel %vm335, %v603, 0.0
    %607 = vadd.xlane.f32.xlu0 %v606
    %v608 = vpop.xlane.xlu0 %607
    %v609 = vsel %vm335, %v605, 0.0
    %610 = vadd.xlane.f32.xlu0 %v609
    %v611 = vpop.xlane.xlu0 %610
    %v612 = vrcp.pop %v608
    %v613 = vrcp.pop %v611
    %v614 = vmul.f32 %v603, %v612
    %v615 = vmul.f32 %v605, %v613
    %616 = vrot.lane.b32.xlu0 %v262, 64
    %v617 = vpop.permute.xlu0 %616
    %v620 = vsel %vm335, %v614, 0
    %622 = vmatpush.msra.mxu0 0.0
    %623 = vmatpush.msra.mxu0 0.0
    %624 = vmatpush.msra.mxu0 0.0
    %625 = vmatpush.msra.mxu0 0.0
    %626 = vmatpush.msra.mxu0 0.0
    %627 = vmatpush.msra.mxu0 0.0
    %628 = vmatpush.msra.mxu0 0.0
    %629 = vmatpush.msra.mxu0 0.0
    %630 = vmatpush.msra.mxu0 0.0
    %631 = vmatpush.msra.mxu0 0.0
    %632 = vmatpush.msra.mxu0 0.0
    %633 = vmatpush.msra.mxu0 0.0
    %634 = vmatpush.msra.mxu0 0.0
    %635 = vmatpush.msra.mxu0 0.0
    %636 = vmatpush.msra.mxu0 0.0
    %637 = vmatpush.msra.mxu0 %v617
    %638 = vmatmul.f32.gmra.mxu0 %v620
    %v639 = vpop.f32.mrf.mxu0
    %v640 = vadd.f32 0.0, %v639
    %641 = vdwg.mxu0
    %642 = vrot.lane.b32.xlu0 %v264, 64
    %v643 = vpop.permute.xlu0 %642
    %v646 = vsel %vm335, %v615, 0
    %648 = vmatpush.msra.mxu0 0.0
    %649 = vmatpush.msra.mxu0 0.0
    %650 = vmatpush.msra.mxu0 0.0
    %651 = vmatpush.msra.mxu0 0.0
    %652 = vmatpush.msra.mxu0 0.0
    %653 = vmatpush.msra.mxu0 0.0
    %654 = vmatpush.msra.mxu0 0.0
    %655 = vmatpush.msra.mxu0 0.0
    %656 = vmatpush.msra.mxu0 0.0
    %657 = vmatpush.msra.mxu0 0.0
    %658 = vmatpush.msra.mxu0 0.0
    %659 = vmatpush.msra.mxu0 0.0
    %660 = vmatpush.msra.mxu0 0.0
    %661 = vmatpush.msra.mxu0 0.0
    %662 = vmatpush.msra.mxu0 0.0
    %663 = vmatpush.msra.mxu0 %v643
    %664 = vmatmul.f32.gmra.mxu0 %v646
    %v665 = vpop.f32.mrf.mxu0
    %v666 = vadd.f32 0.0, %v665
    %667 = vdwg.mxu0
    %v668 = vadd.f32 %v536, %v640
    %v669 = vadd.f32 %v537, %v666
    %670 = vrot.lane.b32.xlu0 %v224, 116
    %v671 = vpop.permute.xlu0 %670
    %672 = vrot.lane.b32.xlu0 %v224, 84
    %v673 = vpop.permute.xlu0 %672
    %v674 = vsel %vm283, %v671, 0
    %v676 = vsel %vm283, %v673, 0
    %678 = vmatpush.xpose.msra.mxu0 0.0
    %679 = vmatpush.xpose.msra.mxu0 0.0
    %680 = vmatpush.xpose.msra.mxu0 0.0
    %681 = vmatpush.xpose.msra.mxu0 0.0
    %682 = vmatpush.xpose.msra.mxu0 0.0
    %683 = vmatpush.xpose.msra.mxu0 0.0
    %684 = vmatpush.xpose.msra.mxu0 0.0
    %685 = vmatpush.xpose.msra.mxu0 0.0
    %686 = vmatpush.xpose.msra.mxu0 0.0
    %687 = vmatpush.xpose.msra.mxu0 0.0
    %688 = vmatpush.xpose.msra.mxu0 0.0
    %689 = vmatpush.xpose.msra.mxu0 0.0
    %690 = vmatpush.xpose.msra.mxu0 0.0
    %691 = vmatpush.xpose.msra.mxu0 0.0
    %692 = vmatpush.xpose.msra.mxu0 0.0
    %693 = vmatpush.xpose.msra.mxu0 %v676
    %694 = vmatmul.f32.gmra.mxu0 %v674
    %v695 = vpop.f32.mrf.mxu0
    %v696 = vadd.f32 0.0, %v695
    %697 = vdwg.mxu0
    %698 = vrot.lane.b32.xlu0 %v226, 116
    %v699 = vpop.permute.xlu0 %698
    %700 = vrot.lane.b32.xlu0 %v226, 84
    %v701 = vpop.permute.xlu0 %700
    %v702 = vsel %vm283, %v699, 0
    %v704 = vsel %vm283, %v701, 0
    %706 = vmatpush.xpose.msra.mxu0 0.0
    %707 = vmatpush.xpose.msra.mxu0 0.0
    %708 = vmatpush.xpose.msra.mxu0 0.0
    %709 = vmatpush.xpose.msra.mxu0 0.0
    %710 = vmatpush.xpose.msra.mxu0 0.0
    %711 = vmatpush.xpose.msra.mxu0 0.0
    %712 = vmatpush.xpose.msra.mxu0 0.0
    %713 = vmatpush.xpose.msra.mxu0 0.0
    %714 = vmatpush.xpose.msra.mxu0 0.0
    %715 = vmatpush.xpose.msra.mxu0 0.0
    %716 = vmatpush.xpose.msra.mxu0 0.0
    %717 = vmatpush.xpose.msra.mxu0 0.0
    %718 = vmatpush.xpose.msra.mxu0 0.0
    %719 = vmatpush.xpose.msra.mxu0 0.0
    %720 = vmatpush.xpose.msra.mxu0 0.0
    %721 = vmatpush.xpose.msra.mxu0 %v704
    %722 = vmatmul.f32.gmra.mxu0 %v702
    %v723 = vpop.f32.mrf.mxu0
    %v724 = vadd.f32 0.0, %v723
    %725 = vdwg.mxu0
    %v726 = vsel %vm335, %v696, -inf
    %727 = vmax.xlane.f32.xlu0 %v726
    %v728 = vpop.xlane.xlu0 %727
    %v729 = vsel %vm335, %v724, -inf
    %730 = vmax.xlane.f32.xlu0 %v729
    %v731 = vpop.xlane.xlu0 %730
    %v732 = vsub.f32 %v696, %v728
    %v733 = vsub.f32 %v724, %v731
    %v734 = vmul.f32 %v732, 1.442695
    %v735 = vpow.pop %v734
    %v736 = vmul.f32 %v733, 1.442695
    %v737 = vpow.pop %v736
    %v738 = vsel %vm335, %v735, 0.0
    %739 = vadd.xlane.f32.xlu0 %v738
    %v740 = vpop.xlane.xlu0 %739
    %v741 = vsel %vm335, %v737, 0.0
    %742 = vadd.xlane.f32.xlu0 %v741
    %v743 = vpop.xlane.xlu0 %742
    %v744 = vrcp.pop %v740
    %v745 = vrcp.pop %v743
    %v746 = vmul.f32 %v735, %v744
    %v747 = vmul.f32 %v737, %v745
    %748 = vrot.lane.b32.xlu0 %v262, 32
    %v749 = vpop.permute.xlu0 %748
    %v752 = vsel %vm335, %v746, 0
    %754 = vmatpush.msra.mxu0 0.0
    %755 = vmatpush.msra.mxu0 0.0
    %756 = vmatpush.msra.mxu0 0.0
    %757 = vmatpush.msra.mxu0 0.0
    %758 = vmatpush.msra.mxu0 0.0
    %759 = vmatpush.msra.mxu0 0.0
    %760 = vmatpush.msra.mxu0 0.0
    %761 = vmatpush.msra.mxu0 0.0
    %762 = vmatpush.msra.mxu0 0.0
    %763 = vmatpush.msra.mxu0 0.0
    %764 = vmatpush.msra.mxu0 0.0
    %765 = vmatpush.msra.mxu0 0.0
    %766 = vmatpush.msra.mxu0 0.0
    %767 = vmatpush.msra.mxu0 0.0
    %768 = vmatpush.msra.mxu0 0.0
    %769 = vmatpush.msra.mxu0 %v749
    %770 = vmatmul.f32.gmra.mxu0 %v752
    %v771 = vpop.f32.mrf.mxu0
    %v772 = vadd.f32 0.0, %v771
    %773 = vdwg.mxu0
    %774 = vrot.lane.b32.xlu0 %v264, 32
    %v775 = vpop.permute.xlu0 %774
    %v778 = vsel %vm335, %v747, 0
    %780 = vmatpush.msra.mxu0 0.0
    %781 = vmatpush.msra.mxu0 0.0
    %782 = vmatpush.msra.mxu0 0.0
    %783 = vmatpush.msra.mxu0 0.0
    %784 = vmatpush.msra.mxu0 0.0
    %785 = vmatpush.msra.mxu0 0.0
    %786 = vmatpush.msra.mxu0 0.0
    %787 = vmatpush.msra.mxu0 0.0
    %788 = vmatpush.msra.mxu0 0.0
    %789 = vmatpush.msra.mxu0 0.0
    %790 = vmatpush.msra.mxu0 0.0
    %791 = vmatpush.msra.mxu0 0.0
    %792 = vmatpush.msra.mxu0 0.0
    %793 = vmatpush.msra.mxu0 0.0
    %794 = vmatpush.msra.mxu0 0.0
    %795 = vmatpush.msra.mxu0 %v775
    %796 = vmatmul.f32.gmra.mxu0 %v778
    %v797 = vpop.f32.mrf.mxu0
    %v798 = vadd.f32 0.0, %v797
    %799 = vdwg.mxu0
    %v800 = vadd.f32 %v668, %v772
    %v801 = vadd.f32 %v669, %v798
    %802 = vrot.lane.b32.xlu0 %v224, 112
    %v803 = vpop.permute.xlu0 %802
    %804 = vrot.lane.b32.xlu0 %v224, 80
    %v805 = vpop.permute.xlu0 %804
    %v806 = vsel %vm283, %v803, 0
    %v808 = vsel %vm283, %v805, 0
    %810 = vmatpush.xpose.msra.mxu0 0.0
    %811 = vmatpush.xpose.msra.mxu0 0.0
    %812 = vmatpush.xpose.msra.mxu0 0.0
    %813 = vmatpush.xpose.msra.mxu0 0.0
    %814 = vmatpush.xpose.msra.mxu0 0.0
    %815 = vmatpush.xpose.msra.mxu0 0.0
    %816 = vmatpush.xpose.msra.mxu0 0.0
    %817 = vmatpush.xpose.msra.mxu0 0.0
    %818 = vmatpush.xpose.msra.mxu0 0.0
    %819 = vmatpush.xpose.msra.mxu0 0.0
    %820 = vmatpush.xpose.msra.mxu0 0.0
    %821 = vmatpush.xpose.msra.mxu0 0.0
    %822 = vmatpush.xpose.msra.mxu0 0.0
    %823 = vmatpush.xpose.msra.mxu0 0.0
    %824 = vmatpush.xpose.msra.mxu0 0.0
    %825 = vmatpush.xpose.msra.mxu0 %v808
    %826 = vmatmul.f32.gmra.mxu0 %v806
    %v827 = vpop.f32.mrf.mxu0
    %v828 = vadd.f32 0.0, %v827
    %829 = vdwg.mxu0
    %830 = vrot.lane.b32.xlu0 %v226, 112
    %v831 = vpop.permute.xlu0 %830
    %832 = vrot.lane.b32.xlu0 %v226, 80
    %v833 = vpop.permute.xlu0 %832
    %v834 = vsel %vm283, %v831, 0
    %v836 = vsel %vm283, %v833, 0
    %838 = vmatpush.xpose.msra.mxu0 0.0
    %839 = vmatpush.xpose.msra.mxu0 0.0
    %840 = vmatpush.xpose.msra.mxu0 0.0
    %841 = vmatpush.xpose.msra.mxu0 0.0
    %842 = vmatpush.xpose.msra.mxu0 0.0
    %843 = vmatpush.xpose.msra.mxu0 0.0
    %844 = vmatpush.xpose.msra.mxu0 0.0
    %845 = vmatpush.xpose.msra.mxu0 0.0
    %846 = vmatpush.xpose.msra.mxu0 0.0
    %847 = vmatpush.xpose.msra.mxu0 0.0
    %848 = vmatpush.xpose.msra.mxu0 0.0
    %849 = vmatpush.xpose.msra.mxu0 0.0
    %850 = vmatpush.xpose.msra.mxu0 0.0
    %851 = vmatpush.xpose.msra.mxu0 0.0
    %852 = vmatpush.xpose.msra.mxu0 0.0
    %853 = vmatpush.xpose.msra.mxu0 %v836
    %854 = vmatmul.f32.gmra.mxu0 %v834
    %v855 = vpop.f32.mrf.mxu0
    %v856 = vadd.f32 0.0, %v855
    %857 = vdwg.mxu0
    %v858 = vsel %vm335, %v828, -inf
    %859 = vmax.xlane.f32.xlu0 %v858
    %v860 = vpop.xlane.xlu0 %859
    %v861 = vsel %vm335, %v856, -inf
    %862 = vmax.xlane.f32.xlu0 %v861
    %v863 = vpop.xlane.xlu0 %862
    %v864 = vsub.f32 %v828, %v860
    %v865 = vsub.f32 %v856, %v863
    %v866 = vmul.f32 %v864, 1.442695
    %v867 = vpow.pop %v866
    %v868 = vmul.f32 %v865, 1.442695
    %v869 = vpow.pop %v868
    %v870 = vsel %vm335, %v867, 0.0
    %871 = vadd.xlane.f32.xlu0 %v870
    %v872 = vpop.xlane.xlu0 %871
    %v873 = vsel %vm335, %v869, 0.0
    %874 = vadd.xlane.f32.xlu0 %v873
    %v875 = vpop.xlane.xlu0 %874
    %v876 = vrcp.pop %v872
    %v877 = vrcp.pop %v875
    %v878 = vmul.f32 %v867, %v876
    %v879 = vmul.f32 %v869, %v877
    %v881 = vsel %vm335, %v878, 0
    %883 = vmatpush.msra.mxu0 0.0
    %884 = vmatpush.msra.mxu0 0.0
    %885 = vmatpush.msra.mxu0 0.0
    %886 = vmatpush.msra.mxu0 0.0
    %887 = vmatpush.msra.mxu0 0.0
    %888 = vmatpush.msra.mxu0 0.0
    %889 = vmatpush.msra.mxu0 0.0
    %890 = vmatpush.msra.mxu0 0.0
    %891 = vmatpush.msra.mxu0 0.0
    %892 = vmatpush.msra.mxu0 0.0
    %893 = vmatpush.msra.mxu0 0.0
    %894 = vmatpush.msra.mxu0 0.0
    %895 = vmatpush.msra.mxu0 0.0
    %896 = vmatpush.msra.mxu0 0.0
    %897 = vmatpush.msra.mxu0 0.0
    %898 = vmatpush.msra.mxu0 %v276
    %899 = vmatmul.f32.gmra.mxu0 %v881
    %v900 = vpop.f32.mrf.mxu0
    %v901 = vadd.f32 0.0, %v900
    %902 = vdwg.mxu0
    %v904 = vsel %vm335, %v879, 0
    %906 = vmatpush.msra.mxu0 0.0
    %907 = vmatpush.msra.mxu0 0.0
    %908 = vmatpush.msra.mxu0 0.0
    %909 = vmatpush.msra.mxu0 0.0
    %910 = vmatpush.msra.mxu0 0.0
    %911 = vmatpush.msra.mxu0 0.0
    %912 = vmatpush.msra.mxu0 0.0
    %913 = vmatpush.msra.mxu0 0.0
    %914 = vmatpush.msra.mxu0 0.0
    %915 = vmatpush.msra.mxu0 0.0
    %916 = vmatpush.msra.mxu0 0.0
    %917 = vmatpush.msra.mxu0 0.0
    %918 = vmatpush.msra.mxu0 0.0
    %919 = vmatpush.msra.mxu0 0.0
    %920 = vmatpush.msra.mxu0 0.0
    %921 = vmatpush.msra.mxu0 %v278
    %922 = vmatmul.f32.gmra.mxu0 %v904
    %v923 = vpop.f32.mrf.mxu0
    %v924 = vadd.f32 0.0, %v923
    %925 = vdwg.mxu0
    %v926 = vadd.f32 %v800, %v901
    %v927 = vadd.f32 %v801, %v924
    %928 = vrot.lane.b32.xlu0 %v224, 108
    %v929 = vpop.permute.xlu0 %928
    %930 = vrot.lane.b32.xlu0 %v224, 76
    %v931 = vpop.permute.xlu0 %930
    %v932 = vsel %vm283, %v929, 0
    %v934 = vsel %vm283, %v931, 0
    %936 = vmatpush.xpose.msra.mxu0 0.0
    %937 = vmatpush.xpose.msra.mxu0 0.0
    %938 = vmatpush.xpose.msra.mxu0 0.0
    %939 = vmatpush.xpose.msra.mxu0 0.0
    %940 = vmatpush.xpose.msra.mxu0 0.0
    %941 = vmatpush.xpose.msra.mxu0 0.0
    %942 = vmatpush.xpose.msra.mxu0 0.0
    %943 = vmatpush.xpose.msra.mxu0 0.0
    %944 = vmatpush.xpose.msra.mxu0 0.0
    %945 = vmatpush.xpose.msra.mxu0 0.0
    %946 = vmatpush.xpose.msra.mxu0 0.0
    %947 = vmatpush.xpose.msra.mxu0 0.0
    %948 = vmatpush.xpose.msra.mxu0 0.0
    %949 = vmatpush.xpose.msra.mxu0 0.0
    %950 = vmatpush.xpose.msra.mxu0 0.0
    %951 = vmatpush.xpose.msra.mxu0 %v934
    %952 = vmatmul.f32.gmra.mxu0 %v932
    %v953 = vpop.f32.mrf.mxu0
    %v954 = vadd.f32 0.0, %v953
    %955 = vdwg.mxu0
    %956 = vrot.lane.b32.xlu0 %v226, 108
    %v957 = vpop.permute.xlu0 %956
    %958 = vrot.lane.b32.xlu0 %v226, 76
    %v959 = vpop.permute.xlu0 %958
    %v960 = vsel %vm283, %v957, 0
    %v962 = vsel %vm283, %v959, 0
    %964 = vmatpush.xpose.msra.mxu0 0.0
    %965 = vmatpush.xpose.msra.mxu0 0.0
    %966 = vmatpush.xpose.msra.mxu0 0.0
    %967 = vmatpush.xpose.msra.mxu0 0.0
    %968 = vmatpush.xpose.msra.mxu0 0.0
    %969 = vmatpush.xpose.msra.mxu0 0.0
    %970 = vmatpush.xpose.msra.mxu0 0.0
    %971 = vmatpush.xpose.msra.mxu0 0.0
    %972 = vmatpush.xpose.msra.mxu0 0.0
    %973 = vmatpush.xpose.msra.mxu0 0.0
    %974 = vmatpush.xpose.msra.mxu0 0.0
    %975 = vmatpush.xpose.msra.mxu0 0.0
    %976 = vmatpush.xpose.msra.mxu0 0.0
    %977 = vmatpush.xpose.msra.mxu0 0.0
    %978 = vmatpush.xpose.msra.mxu0 0.0
    %979 = vmatpush.xpose.msra.mxu0 %v962
    %980 = vmatmul.f32.gmra.mxu0 %v960
    %v981 = vpop.f32.mrf.mxu0
    %v982 = vadd.f32 0.0, %v981
    %983 = vdwg.mxu0
    %v984 = vsel %vm335, %v954, -inf
    %985 = vmax.xlane.f32.xlu0 %v984
    %v986 = vpop.xlane.xlu0 %985
    %v987 = vsel %vm335, %v982, -inf
    %988 = vmax.xlane.f32.xlu0 %v987
    %v989 = vpop.xlane.xlu0 %988
    %v990 = vsub.f32 %v954, %v986
    %v991 = vsub.f32 %v982, %v989
    %v992 = vmul.f32 %v990, 1.442695
    %v993 = vpow.pop %v992
    %v994 = vmul.f32 %v991, 1.442695
    %v995 = vpow.pop %v994
    %v996 = vsel %vm335, %v993, 0.0
    %997 = vadd.xlane.f32.xlu0 %v996
    %v998 = vpop.xlane.xlu0 %997
    %v999 = vsel %vm335, %v995, 0.0
    %1000 = vadd.xlane.f32.xlu0 %v999
    %v1001 = vpop.xlane.xlu0 %1000
    %v1002 = vrcp.pop %v998
    %v1003 = vrcp.pop %v1001
    %v1004 = vmul.f32 %v993, %v1002
    %v1005 = vmul.f32 %v995, %v1003
    %1007 = vrot.lane.b32.xlu0 %v276, 96
    %v1008 = vpop.permute.xlu0 %1007
    %v1011 = vsel %vm335, %v1004, 0
    %1013 = vmatpush.msra.mxu0 0.0
    %1014 = vmatpush.msra.mxu0 0.0
    %1015 = vmatpush.msra.mxu0 0.0
    %1016 = vmatpush.msra.mxu0 0.0
    %1017 = vmatpush.msra.mxu0 0.0
    %1018 = vmatpush.msra.mxu0 0.0
    %1019 = vmatpush.msra.mxu0 0.0
    %1020 = vmatpush.msra.mxu0 0.0
    %1021 = vmatpush.msra.mxu0 0.0
    %1022 = vmatpush.msra.mxu0 0.0
    %1023 = vmatpush.msra.mxu0 0.0
    %1024 = vmatpush.msra.mxu0 0.0
    %1025 = vmatpush.msra.mxu0 0.0
    %1026 = vmatpush.msra.mxu0 0.0
    %1027 = vmatpush.msra.mxu0 0.0
    %1028 = vmatpush.msra.mxu0 %v1008
    %1029 = vmatmul.f32.gmra.mxu0 %v1011
    %v1030 = vpop.f32.mrf.mxu0
    %v1031 = vadd.f32 0.0, %v1030
    %1032 = vdwg.mxu0
    %1034 = vrot.lane.b32.xlu0 %v278, 96
    %v1035 = vpop.permute.xlu0 %1034
    %v1038 = vsel %vm335, %v1005, 0
    %1040 = vmatpush.msra.mxu0 0.0
    %1041 = vmatpush.msra.mxu0 0.0
    %1042 = vmatpush.msra.mxu0 0.0
    %1043 = vmatpush.msra.mxu0 0.0
    %1044 = vmatpush.msra.mxu0 0.0
    %1045 = vmatpush.msra.mxu0 0.0
    %1046 = vmatpush.msra.mxu0 0.0
    %1047 = vmatpush.msra.mxu0 0.0
    %1048 = vmatpush.msra.mxu0 0.0
    %1049 = vmatpush.msra.mxu0 0.0
    %1050 = vmatpush.msra.mxu0 0.0
    %1051 = vmatpush.msra.mxu0 0.0
    %1052 = vmatpush.msra.mxu0 0.0
    %1053 = vmatpush.msra.mxu0 0.0
    %1054 = vmatpush.msra.mxu0 0.0
    %1055 = vmatpush.msra.mxu0 %v1035
    %1056 = vmatmul.f32.gmra.mxu0 %v1038
    %v1057 = vpop.f32.mrf.mxu0
    %v1058 = vadd.f32 0.0, %v1057
    %1059 = vdwg.mxu0
    %v1060 = vadd.f32 %v926, %v1031
    %v1061 = vadd.f32 %v927, %v1058
    %1062 = vrot.lane.b32.xlu0 %v224, 104
    %v1063 = vpop.permute.xlu0 %1062
    %1064 = vrot.lane.b32.xlu0 %v224, 72
    %v1065 = vpop.permute.xlu0 %1064
    %v1066 = vsel %vm283, %v1063, 0
    %v1068 = vsel %vm283, %v1065, 0
    %1070 = vmatpush.xpose.msra.mxu0 0.0
    %1071 = vmatpush.xpose.msra.mxu0 0.0
    %1072 = vmatpush.xpose.msra.mxu0 0.0
    %1073 = vmatpush.xpose.msra.mxu0 0.0
    %1074 = vmatpush.xpose.msra.mxu0 0.0
    %1075 = vmatpush.xpose.msra.mxu0 0.0
    %1076 = vmatpush.xpose.msra.mxu0 0.0
    %1077 = vmatpush.xpose.msra.mxu0 0.0
    %1078 = vmatpush.xpose.msra.mxu0 0.0
    %1079 = vmatpush.xpose.msra.mxu0 0.0
    %1080 = vmatpush.xpose.msra.mxu0 0.0
    %1081 = vmatpush.xpose.msra.mxu0 0.0
    %1082 = vmatpush.xpose.msra.mxu0 0.0
    %1083 = vmatpush.xpose.msra.mxu0 0.0
    %1084 = vmatpush.xpose.msra.mxu0 0.0
    %1085 = vmatpush.xpose.msra.mxu0 %v1068
    %1086 = vmatmul.f32.gmra.mxu0 %v1066
    %v1087 = vpop.f32.mrf.mxu0
    %v1088 = vadd.f32 0.0, %v1087
    %1089 = vdwg.mxu0
    %1090 = vrot.lane.b32.xlu0 %v226, 104
    %v1091 = vpop.permute.xlu0 %1090
    %1092 = vrot.lane.b32.xlu0 %v226, 72
    %v1093 = vpop.permute.xlu0 %1092
    %v1094 = vsel %vm283, %v1091, 0
    %v1096 = vsel %vm283, %v1093, 0
    %1098 = vmatpush.xpose.msra.mxu0 0.0
    %1099 = vmatpush.xpose.msra.mxu0 0.0
    %1100 = vmatpush.xpose.msra.mxu0 0.0
    %1101 = vmatpush.xpose.msra.mxu0 0.0
    %1102 = vmatpush.xpose.msra.mxu0 0.0
    %1103 = vmatpush.xpose.msra.mxu0 0.0
    %1104 = vmatpush.xpose.msra.mxu0 0.0
    %1105 = vmatpush.xpose.msra.mxu0 0.0
    %1106 = vmatpush.xpose.msra.mxu0 0.0
    %1107 = vmatpush.xpose.msra.mxu0 0.0
    %1108 = vmatpush.xpose.msra.mxu0 0.0
    %1109 = vmatpush.xpose.msra.mxu0 0.0
    %1110 = vmatpush.xpose.msra.mxu0 0.0
    %1111 = vmatpush.xpose.msra.mxu0 0.0
    %1112 = vmatpush.xpose.msra.mxu0 0.0
    %1113 = vmatpush.xpose.msra.mxu0 %v1096
    %1114 = vmatmul.f32.gmra.mxu0 %v1094
    %v1115 = vpop.f32.mrf.mxu0
    %v1116 = vadd.f32 0.0, %v1115
    %1117 = vdwg.mxu0
    %v1118 = vsel %vm335, %v1088, -inf
    %1119 = vmax.xlane.f32.xlu0 %v1118
    %v1120 = vpop.xlane.xlu0 %1119
    %v1121 = vsel %vm335, %v1116, -inf
    %1122 = vmax.xlane.f32.xlu0 %v1121
    %v1123 = vpop.xlane.xlu0 %1122
    %v1124 = vsub.f32 %v1088, %v1120
    %v1125 = vsub.f32 %v1116, %v1123
    %v1126 = vmul.f32 %v1124, 1.442695
    %v1127 = vpow.pop %v1126
    %v1128 = vmul.f32 %v1125, 1.442695
    %v1129 = vpow.pop %v1128
    %v1130 = vsel %vm335, %v1127, 0.0
    %1131 = vadd.xlane.f32.xlu0 %v1130
    %v1132 = vpop.xlane.xlu0 %1131
    %v1133 = vsel %vm335, %v1129, 0.0
    %1134 = vadd.xlane.f32.xlu0 %v1133
    %v1135 = vpop.xlane.xlu0 %1134
    %v1136 = vrcp.pop %v1132
    %v1137 = vrcp.pop %v1135
    %v1138 = vmul.f32 %v1127, %v1136
    %v1139 = vmul.f32 %v1129, %v1137
    %1140 = vrot.lane.b32.xlu0 %v276, 64
    %v1141 = vpop.permute.xlu0 %1140
    %v1144 = vsel %vm335, %v1138, 0
    %1146 = vmatpush.msra.mxu0 0.0
    %1147 = vmatpush.msra.mxu0 0.0
    %1148 = vmatpush.msra.mxu0 0.0
    %1149 = vmatpush.msra.mxu0 0.0
    %1150 = vmatpush.msra.mxu0 0.0
    %1151 = vmatpush.msra.mxu0 0.0
    %1152 = vmatpush.msra.mxu0 0.0
    %1153 = vmatpush.msra.mxu0 0.0
    %1154 = vmatpush.msra.mxu0 0.0
    %1155 = vmatpush.msra.mxu0 0.0
    %1156 = vmatpush.msra.mxu0 0.0
    %1157 = vmatpush.msra.mxu0 0.0
    %1158 = vmatpush.msra.mxu0 0.0
    %1159 = vmatpush.msra.mxu0 0.0
    %1160 = vmatpush.msra.mxu0 0.0
    %1161 = vmatpush.msra.mxu0 %v1141
    %1162 = vmatmul.f32.gmra.mxu0 %v1144
    %v1163 = vpop.f32.mrf.mxu0
    %v1164 = vadd.f32 0.0, %v1163
    %1165 = vdwg.mxu0
    %1166 = vrot.lane.b32.xlu0 %v278, 64
    %v1167 = vpop.permute.xlu0 %1166
    %v1170 = vsel %vm335, %v1139, 0
    %1172 = vmatpush.msra.mxu0 0.0
    %1173 = vmatpush.msra.mxu0 0.0
    %1174 = vmatpush.msra.mxu0 0.0
    %1175 = vmatpush.msra.mxu0 0.0
    %1176 = vmatpush.msra.mxu0 0.0
    %1177 = vmatpush.msra.mxu0 0.0
    %1178 = vmatpush.msra.mxu0 0.0
    %1179 = vmatpush.msra.mxu0 0.0
    %1180 = vmatpush.msra.mxu0 0.0
    %1181 = vmatpush.msra.mxu0 0.0
    %1182 = vmatpush.msra.mxu0 0.0
    %1183 = vmatpush.msra.mxu0 0.0
    %1184 = vmatpush.msra.mxu0 0.0
    %1185 = vmatpush.msra.mxu0 0.0
    %1186 = vmatpush.msra.mxu0 0.0
    %1187 = vmatpush.msra.mxu0 %v1167
    %1188 = vmatmul.f32.gmra.mxu0 %v1170
    %v1189 = vpop.f32.mrf.mxu0
    %v1190 = vadd.f32 0.0, %v1189
    %1191 = vdwg.mxu0
    %v1192 = vadd.f32 %v1060, %v1164
    %v1193 = vadd.f32 %v1061, %v1190
    %1194 = vrot.lane.b32.xlu0 %v224, 100
    %v1195 = vpop.permute.xlu0 %1194
    %1196 = vrot.lane.b32.xlu0 %v224, 68
    %v1197 = vpop.permute.xlu0 %1196
    %v1198 = vsel %vm283, %v1195, 0
    %v1200 = vsel %vm283, %v1197, 0
    %1202 = vmatpush.xpose.msra.mxu0 0.0
    %1203 = vmatpush.xpose.msra.mxu0 0.0
    %1204 = vmatpush.xpose.msra.mxu0 0.0
    %1205 = vmatpush.xpose.msra.mxu0 0.0
    %1206 = vmatpush.xpose.msra.mxu0 0.0
    %1207 = vmatpush.xpose.msra.mxu0 0.0
    %1208 = vmatpush.xpose.msra.mxu0 0.0
    %1209 = vmatpush.xpose.msra.mxu0 0.0
    %1210 = vmatpush.xpose.msra.mxu0 0.0
    %1211 = vmatpush.xpose.msra.mxu0 0.0
    %1212 = vmatpush.xpose.msra.mxu0 0.0
    %1213 = vmatpush.xpose.msra.mxu0 0.0
    %1214 = vmatpush.xpose.msra.mxu0 0.0
    %1215 = vmatpush.xpose.msra.mxu0 0.0
    %1216 = vmatpush.xpose.msra.mxu0 0.0
    %1217 = vmatpush.xpose.msra.mxu0 %v1200
    %1218 = vmatmul.f32.gmra.mxu0 %v1198
    %v1219 = vpop.f32.mrf.mxu0
    %v1220 = vadd.f32 0.0, %v1219
    %1221 = vdwg.mxu0
    %1222 = vrot.lane.b32.xlu0 %v226, 100
    %v1223 = vpop.permute.xlu0 %1222
    %1224 = vrot.lane.b32.xlu0 %v226, 68
    %v1225 = vpop.permute.xlu0 %1224
    %v1226 = vsel %vm283, %v1223, 0
    %v1228 = vsel %vm283, %v1225, 0
    %1230 = vmatpush.xpose.msra.mxu0 0.0
    %1231 = vmatpush.xpose.msra.mxu0 0.0
    %1232 = vmatpush.xpose.msra.mxu0 0.0
    %1233 = vmatpush.xpose.msra.mxu0 0.0
    %1234 = vmatpush.xpose.msra.mxu0 0.0
    %1235 = vmatpush.xpose.msra.mxu0 0.0
    %1236 = vmatpush.xpose.msra.mxu0 0.0
    %1237 = vmatpush.xpose.msra.mxu0 0.0
    %1238 = vmatpush.xpose.msra.mxu0 0.0
    %1239 = vmatpush.xpose.msra.mxu0 0.0
    %1240 = vmatpush.xpose.msra.mxu0 0.0
    %1241 = vmatpush.xpose.msra.mxu0 0.0
    %1242 = vmatpush.xpose.msra.mxu0 0.0
    %1243 = vmatpush.xpose.msra.mxu0 0.0
    %1244 = vmatpush.xpose.msra.mxu0 0.0
    %1245 = vmatpush.xpose.msra.mxu0 %v1228
    %1246 = vmatmul.f32.gmra.mxu0 %v1226
    %v1247 = vpop.f32.mrf.mxu0
    %v1248 = vadd.f32 0.0, %v1247
    %1249 = vdwg.mxu0
    %v1250 = vsel %vm335, %v1220, -inf
    %1251 = vmax.xlane.f32.xlu0 %v1250
    %v1252 = vpop.xlane.xlu0 %1251
    %v1253 = vsel %vm335, %v1248, -inf
    %1254 = vmax.xlane.f32.xlu0 %v1253
    %v1255 = vpop.xlane.xlu0 %1254
    %v1256 = vsub.f32 %v1220, %v1252
    %v1257 = vsub.f32 %v1248, %v1255
    %v1258 = vmul.f32 %v1256, 1.442695
    %v1259 = vpow.pop %v1258
    %v1260 = vmul.f32 %v1257, 1.442695
    %v1261 = vpow.pop %v1260
    %v1262 = vsel %vm335, %v1259, 0.0
    %1263 = vadd.xlane.f32.xlu0 %v1262
    %v1264 = vpop.xlane.xlu0 %1263
    %v1265 = vsel %vm335, %v1261, 0.0
    %1266 = vadd.xlane.f32.xlu0 %v1265
    %v1267 = vpop.xlane.xlu0 %1266
    %v1268 = vrcp.pop %v1264
    %v1269 = vrcp.pop %v1267
    %v1270 = vmul.f32 %v1259, %v1268
    %v1271 = vmul.f32 %v1261, %v1269
    %1272 = vrot.lane.b32.xlu0 %v276, 32
    %v1273 = vpop.permute.xlu0 %1272
    %v1276 = vsel %vm335, %v1270, 0
    %1278 = vmatpush.msra.mxu0 0.0
    %1279 = vmatpush.msra.mxu0 0.0
    %1280 = vmatpush.msra.mxu0 0.0
    %1281 = vmatpush.msra.mxu0 0.0
    %1282 = vmatpush.msra.mxu0 0.0
    %1283 = vmatpush.msra.mxu0 0.0
    %1284 = vmatpush.msra.mxu0 0.0
    %1285 = vmatpush.msra.mxu0 0.0
    %1286 = vmatpush.msra.mxu0 0.0
    %1287 = vmatpush.msra.mxu0 0.0
    %1288 = vmatpush.msra.mxu0 0.0
    %1289 = vmatpush.msra.mxu0 0.0
    %1290 = vmatpush.msra.mxu0 0.0
    %1291 = vmatpush.msra.mxu0 0.0
    %1292 = vmatpush.msra.mxu0 0.0
    %1293 = vmatpush.msra.mxu0 %v1273
    %1294 = vmatmul.f32.gmra.mxu0 %v1276
    %v1295 = vpop.f32.mrf.mxu0
    %v1296 = vadd.f32 0.0, %v1295
    %1297 = vdwg.mxu0
    %1298 = vrot.lane.b32.xlu0 %v278, 32
    %v1299 = vpop.permute.xlu0 %1298
    %v1302 = vsel %vm335, %v1271, 0
    %1304 = vmatpush.msra.mxu0 0.0
    %1305 = vmatpush.msra.mxu0 0.0
    %1306 = vmatpush.msra.mxu0 0.0
    %1307 = vmatpush.msra.mxu0 0.0
    %1308 = vmatpush.msra.mxu0 0.0
    %1309 = vmatpush.msra.mxu0 0.0
    %1310 = vmatpush.msra.mxu0 0.0
    %1311 = vmatpush.msra.mxu0 0.0
    %1312 = vmatpush.msra.mxu0 0.0
    %1313 = vmatpush.msra.mxu0 0.0
    %1314 = vmatpush.msra.mxu0 0.0
    %1315 = vmatpush.msra.mxu0 0.0
    %1316 = vmatpush.msra.mxu0 0.0
    %1317 = vmatpush.msra.mxu0 0.0
    %1318 = vmatpush.msra.mxu0 0.0
    %1319 = vmatpush.msra.mxu0 %v1299
    %1320 = vmatmul.f32.gmra.mxu0 %v1302
    %v1321 = vpop.f32.mrf.mxu0
    %v1322 = vadd.f32 0.0, %v1321
    %1323 = vdwg.mxu0
    %v1324 = vadd.f32 %v1192, %v1296
    %v1325 = vadd.f32 %v1193, %v1322
    %v1326 = vld [vmem:[%s5] sm:$0x1]
    %v1328 = vperm.slane %v1326, 0
    %v1330 = vadd.f32 %v1324, %v1328
    %v1331 = vadd.f32 %v1325, %v1328
    %v1332 = vadd.f32 %v181, %v1330
    %v1333 = vadd.f32 %v188, %v1331
    %v1334 = vld [vmem:[%s6] sm:$0x1]
    %v1335 = vld [vmem:[%s7] sm:$0x1]
    %v1336 = vsel %vm210, %v1332, 0.0
    %1337 = vadd.xlane.f32.xlu0 %v1336
    %v1338 = vpop.xlane.xlu0 %1337
    %v1339 = vsel %vm210, %v1333, 0.0
    %1340 = vadd.xlane.f32.xlu0 %v1339
    %v1341 = vpop.xlane.xlu0 %1340
    %v1342 = vrcp.pop 32.0
    %v1343 = vmul.f32 32.0, %v1342
    %v1344 = vsub.f32 1.0, %v1343
    %v1345 = vmul.f32 %v1342, %v1344
    %v1346 = vadd.f32 %v1342, %v1345
    %vm1347 = vweird.f32 %v1342
    %v1348 = vsel %vm1347, %v1342, %v1346
    %v1349 = vmul.f32 %v1338, %v1348
    %v1350 = vmul.f32 %v1341, %v1348
    %v1351 = vsub.f32 %v1332, %v1349
    %v1352 = vsub.f32 %v1333, %v1350
    %v1353 = vmul.f32 %v1351, %v1351
    %v1354 = vmul.f32 %v1352, %v1352
    %v1355 = vsel %vm210, %v1353, 0.0
    %1356 = vadd.xlane.f32.xlu0 %v1355
    %v1357 = vpop.xlane.xlu0 %1356
    %v1358 = vsel %vm210, %v1354, 0.0
    %1359 = vadd.xlane.f32.xlu0 %v1358
    %v1360 = vpop.xlane.xlu0 %1359
    %v1361 = vmul.f32 %v1357, %v1348
    %v1362 = vmul.f32 %v1360, %v1348
    %v1363 = vadd.f32 %v1361, 1e-05
    %v1364 = vadd.f32 %v1362, 1e-05
    %v1365 = vrsqrt.pop %v1363
    %v1366 = vmul.f32 %v1365, %v1363
    %v1367 = vmul.f32 %v1366, %v1365
    %v1368 = vmul.f32 0.5, %v1367
    %v1369 = vsub.f32 1.5, %v1368
    %v1370 = vmul.f32 %v1365, %v1369
    %vm1371 = vweird.f32 %v1363
    %vm1372 = vweird.f32 %v1365
    %vm1373 = vmor %vm1371, %vm1372
    %v1374 = vsel %vm1373, %v1365, %v1370
    %v1375 = vrsqrt.pop %v1364
    %v1376 = vmul.f32 %v1375, %v1364
    %v1377 = vmul.f32 %v1376, %v1375
    %v1378 = vmul.f32 0.5, %v1377
    %v1379 = vsub.f32 1.5, %v1378
    %v1380 = vmul.f32 %v1375, %v1379
    %vm1381 = vweird.f32 %v1364
    %vm1382 = vweird.f32 %v1375
    %vm1383 = vmor %vm1381, %vm1382
    %v1384 = vsel %vm1383, %v1375, %v1380
    %v1385 = vmul.f32 %v1351, %v1374
    %v1386 = vmul.f32 %v1352, %v1384
    %v1388 = vperm.slane %v1334, 0
    %v1390 = vmul.f32 %v1385, %v1388
    %v1391 = vmul.f32 %v1386, %v1388
    %v1393 = vperm.slane %v1335, 0
    %v1395 = vadd.f32 %v1390, %v1393
    %v1396 = vadd.f32 %v1391, %v1393
    %v1397 = vpack.c.bf16 %v1396, %v1395
    %v1398 = vld [vmem:[#allocation6] sm:$0xf]
    %v1399 = vld [vmem:[#allocation6 + $0x4] sm:$0xf]
    %v1400 = vld [vmem:[#allocation6 + $0x8] sm:$0xf]
    %v1401 = vld [vmem:[#allocation6 + $0xc] sm:$0xf]
    %v1402 = vld [vmem:[%s9] sm:$0x1]
    %v1404 = vperm.slane %v1402, 0
    %v1410 = vunpack.c.l.b16 %v1398
    %v1411 = vunpack.c.l.b16 %v1399
    %v1412 = vunpack.c.l.b16 %v1400
    %v1413 = vunpack.c.l.b16 %v1401
    %v1414 = vpack.c.b16 %v1411, %v1410
    %v1415 = vpack.c.b16 %v1413, %v1412
    %v1419 = vsel %vm210, %v1397, 0
    %1421 = vmatpush.bf16.msra.mxu0 0
    %1422 = vmatpush.bf16.msra.mxu0 0
    %1423 = vmatpush.bf16.msra.mxu0 0
    %1424 = vmatpush.bf16.msra.mxu0 0
    %1425 = vmatpush.bf16.msra.mxu0 0
    %1426 = vmatpush.bf16.msra.mxu0 0
    %1427 = vmatpush.bf16.msra.mxu0 %v1415
    %1428 = vmatpush.bf16.msra.mxu0 %v1414
    %1429 = vmatmul.bf16.gmra.mxu0 %v1419
    %v1430 = vpop.f32.mrf.mxu0
    %v1431 = vadd.f32 %v1404, %v1430
    %v1432 = vpop.f32.mrf.mxu0
    %v1433 = vadd.f32 %v1404, %v1432
    %1434 = vdwg.mxu0
    %v1435 = vmax.f32 %v1431, 0.0
    %v1436 = vmax.f32 %v1433, 0.0
    %v1437 = vpack.c.bf16 %v1436, %v1435
    %v1438 = vld [vmem:[%s10] sm:$0xf]
    %v1439 = vld [vmem:[%s10 + $0x4] sm:$0xf]
    %v1440 = vld [vmem:[%s10 + $0x8] sm:$0xf]
    %v1441 = vld [vmem:[%s10 + $0xc] sm:$0xf]
    %v1442 = vld [vmem:[%s10 + $0x10] sm:$0xf]
    %v1443 = vld [vmem:[%s10 + $0x14] sm:$0xf]
    %v1444 = vld [vmem:[%s10 + $0x18] sm:$0xf]
    %v1445 = vld [vmem:[%s10 + $0x1c] sm:$0xf]
    %v1446 = vld [vmem:[%s11] sm:$0x1]
    %v1448 = vperm.slane %v1446, 0
    %v1458 = vunpack.c.l.b16 %v1438
    %v1459 = vunpack.c.l.b16 %v1439
    %v1460 = vunpack.c.l.b16 %v1440
    %v1461 = vunpack.c.l.b16 %v1441
    %v1462 = vunpack.c.l.b16 %v1442
    %v1463 = vunpack.c.l.b16 %v1443
    %v1464 = vunpack.c.l.b16 %v1444
    %v1465 = vunpack.c.l.b16 %v1445
    %v1466 = vpack.c.b16 %v1459, %v1458
    %v1467 = vpack.c.b16 %v1461, %v1460
    %v1468 = vpack.c.b16 %v1463, %v1462
    %v1469 = vpack.c.b16 %v1465, %v1464
    %vm1474 = vcmask 523264
    %v1476 = vsel %vm1474, %v1437, 0
    %1478 = vmatpush.bf16.msra.mxu0 0
    %1479 = vmatpush.bf16.msra.mxu0 0
    %1480 = vmatpush.bf16.msra.mxu0 0
    %1481 = vmatpush.bf16.msra.mxu0 0
    %1482 = vmatpush.bf16.msra.mxu0 %v1469
    %1483 = vmatpush.bf16.msra.mxu0 %v1468
    %1484 = vmatpush.bf16.msra.mxu0 %v1467
    %1485 = vmatpush.bf16.msra.mxu0 %v1466
    %1486 = vmatmul.bf16.gmra.mxu0 %v1476
    %v1487 = vpop.f32.mrf.mxu0
    %v1488 = vadd.f32 %v1448, %v1487
    %v1489 = vpop.f32.mrf.mxu0
    %v1490 = vadd.f32 %v1448, %v1489
    %1491 = vdwg.mxu0
    %v1492 = vadd.f32 %v1395, %v1488
    %v1493 = vadd.f32 %v1396, %v1490
    %v1494 = vld [vmem:[%s12] sm:$0x1]
    %v1495 = vld [vmem:[%s13] sm:$0x1]
    %v1496 = vsel %vm210, %v1492, 0.0
    %1497 = vadd.xlane.f32.xlu0 %v1496
    %v1498 = vpop.xlane.xlu0 %1497
    %v1499 = vsel %vm210, %v1493, 0.0
    %1500 = vadd.xlane.f32.xlu0 %v1499
    %v1501 = vpop.xlane.xlu0 %1500
    %v1502 = vmul.f32 %v1498, %v1348
    %v1503 = vmul.f32 %v1501, %v1348
    %v1504 = vsub.f32 %v1492, %v1502
    %v1505 = vsub.f32 %v1493, %v1503
    %v1506 = vmul.f32 %v1504, %v1504
    %v1507 = vmul.f32 %v1505, %v1505
    %v1508 = vsel %vm210, %v1506, 0.0
    %1509 = vadd.xlane.f32.xlu0 %v1508
    %v1510 = vpop.xlane.xlu0 %1509
    %v1511 = vsel %vm210, %v1507, 0.0
    %1512 = vadd.xlane.f32.xlu0 %v1511
    %v1513 = vpop.xlane.xlu0 %1512
    %v1514 = vmul.f32 %v1510, %v1348
    %v1515 = vmul.f32 %v1513, %v1348
    %v1516 = vadd.f32 %v1514, 1e-05
    %v1517 = vadd.f32 %v1515, 1e-05
    %v1518 = vrsqrt.pop %v1516
    %v1519 = vmul.f32 %v1518, %v1516
    %v1520 = vmul.f32 %v1519, %v1518
    %v1521 = vmul.f32 0.5, %v1520
    %v1522 = vsub.f32 1.5, %v1521
    %v1523 = vmul.f32 %v1518, %v1522
    %vm1524 = vweird.f32 %v1516
    %vm1525 = vweird.f32 %v1518
    %vm1526 = vmor %vm1524, %vm1525
    %v1527 = vsel %vm1526, %v1518, %v1523
    %v1528 = vrsqrt.pop %v1517
    %v1529 = vmul.f32 %v1528, %v1517
    %v1530 = vmul.f32 %v1529, %v1528
    %v1531 = vmul.f32 0.5, %v1530
    %v1532 = vsub.f32 1.5, %v1531
    %v1533 = vmul.f32 %v1528, %v1532
    %vm1534 = vweird.f32 %v1517
    %vm1535 = vweird.f32 %v1528
    %vm1536 = vmor %vm1534, %vm1535
    %v1537 = vsel %vm1536, %v1528, %v1533
    %v1538 = vmul.f32 %v1504, %v1527
    %v1539 = vmul.f32 %v1505, %v1537
    %v1541 = vperm.slane %v1494, 0
    %v1543 = vmul.f32 %v1538, %v1541
    %v1544 = vmul.f32 %v1539, %v1541
    %v1546 = vperm.slane %v1495, 0
    %v1548 = vadd.f32 %v1543, %v1546
    %v1549 = vadd.f32 %v1544, %v1546
    %v1550 = vpack.c.bf16 %v1549, %v1548
    %s1551 = scalar_lea.vmem %s2, 16
    %v1552 = vld [vmem:[%s1551] sm:$0xf]
    %v1553 = vld [vmem:[%s1551 + $0x4] sm:$0xf]
    %v1554 = vld [vmem:[%s1551 + $0x8] sm:$0xf]
    %v1555 = vld [vmem:[%s1551 + $0xc] sm:$0xf]
    %s1556 = scalar_lea.vmem %s3, 1
    %v1557 = vld [vmem:[%s1556] sm:$0x1]
    %v1559 = vperm.slane %v1557, 0
    %v1565 = vunpack.c.l.b16 %v1552
    %v1566 = vunpack.c.l.b16 %v1553
    %v1567 = vunpack.c.l.b16 %v1554
    %v1568 = vunpack.c.l.b16 %v1555
    %v1569 = vpack.c.b16 %v1566, %v1565
    %v1570 = vpack.c.b16 %v1568, %v1567
    %v1574 = vsel %vm210, %v1550, 0
    %1576 = vmatpush.bf16.msra.mxu0 0
    %1577 = vmatpush.bf16.msra.mxu0 0
    %1578 = vmatpush.bf16.msra.mxu0 0
    %1579 = vmatpush.bf16.msra.mxu0 0
    %1580 = vmatpush.bf16.msra.mxu0 0
    %1581 = vmatpush.bf16.msra.mxu0 0
    %1582 = vmatpush.bf16.msra.mxu0 %v1570
    %1583 = vmatpush.bf16.msra.mxu0 %v1569
    %1584 = vmatmul.bf16.gmra.mxu0 %v1574
    %v1585 = vpop.f32.mrf.mxu0
    %v1586 = vadd.f32 %v1559, %v1585
    %v1587 = vpop.f32.mrf.mxu0
    %v1588 = vadd.f32 %v1559, %v1587
    %1589 = vdwg.mxu0
    %s1590 = scalar_lea.vmem %s4, 32
    %v1591 = vld [vmem:[%s1590] sm:$0xff]
    %v1592 = vld [vmem:[%s1590 + $0x8] sm:$0xff]
    %v1593 = vld [vmem:[%s1590 + $0x10] sm:$0xff]
    %v1594 = vld [vmem:[%s1590 + $0x18] sm:$0xff]
    %v1599 = vunpack.c.l.b16 %v1591
    %v1600 = vunpack.c.h.b16 %v1591
    %v1601 = vunpack.c.l.b16 %v1592
    %v1602 = vunpack.c.h.b16 %v1592
    %v1603 = vunpack.c.l.b16 %v1593
    %v1604 = vunpack.c.h.b16 %v1593
    %v1605 = vunpack.c.l.b16 %v1594
    %v1606 = vunpack.c.h.b16 %v1594
    %v1607 = vpack.c.b16 %v1601, %v1599
    %v1608 = vpack.c.b16 %v1602, %v1600
    %v1609 = vpack.c.b16 %v1605, %v1603
    %v1610 = vpack.c.b16 %v1606, %v1604
    %1615 = vmatpush.bf16.msra.mxu0 0
    %1616 = vmatpush.bf16.msra.mxu0 0
    %1617 = vmatpush.bf16.msra.mxu0 0
    %1618 = vmatpush.bf16.msra.mxu0 0
    %1619 = vmatpush.bf16.msra.mxu0 0
    %1620 = vmatpush.bf16.msra.mxu0 0
    %1621 = vmatpush.bf16.msra.mxu0 %v1609
    %1622 = vmatpush.bf16.msra.mxu0 %v1607
    %1623 = vmatmul.bf16.gmra.mxu0 %v1574
    %v1624 = vpop.f32.mrf.mxu0
    %v1625 = vadd.f32 0.0, %v1624
    %v1626 = vpop.f32.mrf.mxu0
    %v1627 = vadd.f32 0.0, %v1626
    %1628 = vdwg.mxu0
    %1629 = vmatpush.bf16.msra.mxu0 0
    %1630 = vmatpush.bf16.msra.mxu0 0
    %1631 = vmatpush.bf16.msra.mxu0 0
    %1632 = vmatpush.bf16.msra.mxu0 0
    %1633 = vmatpush.bf16.msra.mxu0 0
    %1634 = vmatpush.bf16.msra.mxu0 0
    %1635 = vmatpush.bf16.msra.mxu0 %v1610
    %1636 = vmatpush.bf16.msra.mxu0 %v1608
    %1637 = vmatmul.bf16.gmra.mxu0 %v1574
    %v1638 = vpop.f32.mrf.mxu0
    %v1639 = vadd.f32 0.0, %v1638
    %v1640 = vpop.f32.mrf.mxu0
    %v1641 = vadd.f32 0.0, %v1640
    %1642 = vdwg.mxu0
    %1644 = vrot.lane.b32.xlu0 %v1586, 96
    %v1645 = vpop.permute.xlu0 %1644
    %v1646 = vsel %vm283, %v1586, 0
    %v1648 = vsel %vm283, %v1645, 0
    %1650 = vmatpush.xpose.msra.mxu0 0.0
    %1651 = vmatpush.xpose.msra.mxu0 0.0
    %1652 = vmatpush.xpose.msra.mxu0 0.0
    %1653 = vmatpush.xpose.msra.mxu0 0.0
    %1654 = vmatpush.xpose.msra.mxu0 0.0
    %1655 = vmatpush.xpose.msra.mxu0 0.0
    %1656 = vmatpush.xpose.msra.mxu0 0.0
    %1657 = vmatpush.xpose.msra.mxu0 0.0
    %1658 = vmatpush.xpose.msra.mxu0 0.0
    %1659 = vmatpush.xpose.msra.mxu0 0.0
    %1660 = vmatpush.xpose.msra.mxu0 0.0
    %1661 = vmatpush.xpose.msra.mxu0 0.0
    %1662 = vmatpush.xpose.msra.mxu0 0.0
    %1663 = vmatpush.xpose.msra.mxu0 0.0
    %1664 = vmatpush.xpose.msra.mxu0 0.0
    %1665 = vmatpush.xpose.msra.mxu0 %v1648
    %1666 = vmatmul.f32.gmra.mxu0 %v1646
    %v1667 = vpop.f32.mrf.mxu0
    %v1668 = vadd.f32 0.0, %v1667
    %1669 = vdwg.mxu0
    %1671 = vrot.lane.b32.xlu0 %v1588, 96
    %v1672 = vpop.permute.xlu0 %1671
    %v1673 = vsel %vm283, %v1588, 0
    %v1675 = vsel %vm283, %v1672, 0
    %1677 = vmatpush.xpose.msra.mxu0 0.0
    %1678 = vmatpush.xpose.msra.mxu0 0.0
    %1679 = vmatpush.xpose.msra.mxu0 0.0
    %1680 = vmatpush.xpose.msra.mxu0 0.0
    %1681 = vmatpush.xpose.msra.mxu0 0.0
    %1682 = vmatpush.xpose.msra.mxu0 0.0
    %1683 = vmatpush.xpose.msra.mxu0 0.0
    %1684 = vmatpush.xpose.msra.mxu0 0.0
    %1685 = vmatpush.xpose.msra.mxu0 0.0
    %1686 = vmatpush.xpose.msra.mxu0 0.0
    %1687 = vmatpush.xpose.msra.mxu0 0.0
    %1688 = vmatpush.xpose.msra.mxu0 0.0
    %1689 = vmatpush.xpose.msra.mxu0 0.0
    %1690 = vmatpush.xpose.msra.mxu0 0.0
    %1691 = vmatpush.xpose.msra.mxu0 0.0
    %1692 = vmatpush.xpose.msra.mxu0 %v1675
    %1693 = vmatmul.f32.gmra.mxu0 %v1673
    %v1694 = vpop.f32.mrf.mxu0
    %v1695 = vadd.f32 0.0, %v1694
    %1696 = vdwg.mxu0
    %v1697 = vsel %vm335, %v1668, -inf
    %1698 = vmax.xlane.f32.xlu0 %v1697
    %v1699 = vpop.xlane.xlu0 %1698
    %v1700 = vsel %vm335, %v1695, -inf
    %1701 = vmax.xlane.f32.xlu0 %v1700
    %v1702 = vpop.xlane.xlu0 %1701
    %v1703 = vsub.f32 %v1668, %v1699
    %v1704 = vsub.f32 %v1695, %v1702
    %v1705 = vmul.f32 %v1703, 1.442695
    %v1706 = vpow.pop %v1705
    %v1707 = vmul.f32 %v1704, 1.442695
    %v1708 = vpow.pop %v1707
    %v1709 = vsel %vm335, %v1706, 0.0
    %1710 = vadd.xlane.f32.xlu0 %v1709
    %v1711 = vpop.xlane.xlu0 %1710
    %v1712 = vsel %vm335, %v1708, 0.0
    %1713 = vadd.xlane.f32.xlu0 %v1712
    %v1714 = vpop.xlane.xlu0 %1713
    %v1715 = vrcp.pop %v1711
    %v1716 = vrcp.pop %v1714
    %v1717 = vmul.f32 %v1706, %v1715
    %v1718 = vmul.f32 %v1708, %v1716
    %v1720 = vsel %vm335, %v1717, 0
    %1722 = vmatpush.msra.mxu0 0.0
    %1723 = vmatpush.msra.mxu0 0.0
    %1724 = vmatpush.msra.mxu0 0.0
    %1725 = vmatpush.msra.mxu0 0.0
    %1726 = vmatpush.msra.mxu0 0.0
    %1727 = vmatpush.msra.mxu0 0.0
    %1728 = vmatpush.msra.mxu0 0.0
    %1729 = vmatpush.msra.mxu0 0.0
    %1730 = vmatpush.msra.mxu0 0.0
    %1731 = vmatpush.msra.mxu0 0.0
    %1732 = vmatpush.msra.mxu0 0.0
    %1733 = vmatpush.msra.mxu0 0.0
    %1734 = vmatpush.msra.mxu0 0.0
    %1735 = vmatpush.msra.mxu0 0.0
    %1736 = vmatpush.msra.mxu0 0.0
    %1737 = vmatpush.msra.mxu0 %v1625
    %1738 = vmatmul.f32.gmra.mxu0 %v1720
    %v1739 = vpop.f32.mrf.mxu0
    %v1740 = vadd.f32 0.0, %v1739
    %1741 = vdwg.mxu0
    %v1743 = vsel %vm335, %v1718, 0
    %1745 = vmatpush.msra.mxu0 0.0
    %1746 = vmatpush.msra.mxu0 0.0
    %1747 = vmatpush.msra.mxu0 0.0
    %1748 = vmatpush.msra.mxu0 0.0
    %1749 = vmatpush.msra.mxu0 0.0
    %1750 = vmatpush.msra.mxu0 0.0
    %1751 = vmatpush.msra.mxu0 0.0
    %1752 = vmatpush.msra.mxu0 0.0
    %1753 = vmatpush.msra.mxu0 0.0
    %1754 = vmatpush.msra.mxu0 0.0
    %1755 = vmatpush.msra.mxu0 0.0
    %1756 = vmatpush.msra.mxu0 0.0
    %1757 = vmatpush.msra.mxu0 0.0
    %1758 = vmatpush.msra.mxu0 0.0
    %1759 = vmatpush.msra.mxu0 0.0
    %1760 = vmatpush.msra.mxu0 %v1627
    %1761 = vmatmul.f32.gmra.mxu0 %v1743
    %v1762 = vpop.f32.mrf.mxu0
    %v1763 = vadd.f32 0.0, %v1762
    %1764 = vdwg.mxu0
    %1765 = vrot.lane.b32.xlu0 %v1586, 124
    %v1766 = vpop.permute.xlu0 %1765
    %1767 = vrot.lane.b32.xlu0 %v1586, 92
    %v1768 = vpop.permute.xlu0 %1767
    %v1769 = vsel %vm283, %v1766, 0
    %v1771 = vsel %vm283, %v1768, 0
    %1773 = vmatpush.xpose.msra.mxu0 0.0
    %1774 = vmatpush.xpose.msra.mxu0 0.0
    %1775 = vmatpush.xpose.msra.mxu0 0.0
    %1776 = vmatpush.xpose.msra.mxu0 0.0
    %1777 = vmatpush.xpose.msra.mxu0 0.0
    %1778 = vmatpush.xpose.msra.mxu0 0.0
    %1779 = vmatpush.xpose.msra.mxu0 0.0
    %1780 = vmatpush.xpose.msra.mxu0 0.0
    %1781 = vmatpush.xpose.msra.mxu0 0.0
    %1782 = vmatpush.xpose.msra.mxu0 0.0
    %1783 = vmatpush.xpose.msra.mxu0 0.0
    %1784 = vmatpush.xpose.msra.mxu0 0.0
    %1785 = vmatpush.xpose.msra.mxu0 0.0
    %1786 = vmatpush.xpose.msra.mxu0 0.0
    %1787 = vmatpush.xpose.msra.mxu0 0.0
    %1788 = vmatpush.xpose.msra.mxu0 %v1771
    %1789 = vmatmul.f32.gmra.mxu0 %v1769
    %v1790 = vpop.f32.mrf.mxu0
    %v1791 = vadd.f32 0.0, %v1790
    %1792 = vdwg.mxu0
    %1793 = vrot.lane.b32.xlu0 %v1588, 124
    %v1794 = vpop.permute.xlu0 %1793
    %1795 = vrot.lane.b32.xlu0 %v1588, 92
    %v1796 = vpop.permute.xlu0 %1795
    %v1797 = vsel %vm283, %v1794, 0
    %v1799 = vsel %vm283, %v1796, 0
    %1801 = vmatpush.xpose.msra.mxu0 0.0
    %1802 = vmatpush.xpose.msra.mxu0 0.0
    %1803 = vmatpush.xpose.msra.mxu0 0.0
    %1804 = vmatpush.xpose.msra.mxu0 0.0
    %1805 = vmatpush.xpose.msra.mxu0 0.0
    %1806 = vmatpush.xpose.msra.mxu0 0.0
    %1807 = vmatpush.xpose.msra.mxu0 0.0
    %1808 = vmatpush.xpose.msra.mxu0 0.0
    %1809 = vmatpush.xpose.msra.mxu0 0.0
    %1810 = vmatpush.xpose.msra.mxu0 0.0
    %1811 = vmatpush.xpose.msra.mxu0 0.0
    %1812 = vmatpush.xpose.msra.mxu0 0.0
    %1813 = vmatpush.xpose.msra.mxu0 0.0
    %1814 = vmatpush.xpose.msra.mxu0 0.0
    %1815 = vmatpush.xpose.msra.mxu0 0.0
    %1816 = vmatpush.xpose.msra.mxu0 %v1799
    %1817 = vmatmul.f32.gmra.mxu0 %v1797
    %v1818 = vpop.f32.mrf.mxu0
    %v1819 = vadd.f32 0.0, %v1818
    %1820 = vdwg.mxu0
    %v1821 = vsel %vm335, %v1791, -inf
    %1822 = vmax.xlane.f32.xlu0 %v1821
    %v1823 = vpop.xlane.xlu0 %1822
    %v1824 = vsel %vm335, %v1819, -inf
    %1825 = vmax.xlane.f32.xlu0 %v1824
    %v1826 = vpop.xlane.xlu0 %1825
    %v1827 = vsub.f32 %v1791, %v1823
    %v1828 = vsub.f32 %v1819, %v1826
    %v1829 = vmul.f32 %v1827, 1.442695
    %v1830 = vpow.pop %v1829
    %v1831 = vmul.f32 %v1828, 1.442695
    %v1832 = vpow.pop %v1831
    %v1833 = vsel %vm335, %v1830, 0.0
    %1834 = vadd.xlane.f32.xlu0 %v1833
    %v1835 = vpop.xlane.xlu0 %1834
    %v1836 = vsel %vm335, %v1832, 0.0
    %1837 = vadd.xlane.f32.xlu0 %v1836
    %v1838 = vpop.xlane.xlu0 %1837
    %v1839 = vrcp.pop %v1835
    %v1840 = vrcp.pop %v1838
    %v1841 = vmul.f32 %v1830, %v1839
    %v1842 = vmul.f32 %v1832, %v1840
    %1844 = vrot.lane.b32.xlu0 %v1625, 96
    %v1845 = vpop.permute.xlu0 %1844
    %v1848 = vsel %vm335, %v1841, 0
    %1850 = vmatpush.msra.mxu0 0.0
    %1851 = vmatpush.msra.mxu0 0.0
    %1852 = vmatpush.msra.mxu0 0.0
    %1853 = vmatpush.msra.mxu0 0.0
    %1854 = vmatpush.msra.mxu0 0.0
    %1855 = vmatpush.msra.mxu0 0.0
    %1856 = vmatpush.msra.mxu0 0.0
    %1857 = vmatpush.msra.mxu0 0.0
    %1858 = vmatpush.msra.mxu0 0.0
    %1859 = vmatpush.msra.mxu0 0.0
    %1860 = vmatpush.msra.mxu0 0.0
    %1861 = vmatpush.msra.mxu0 0.0
    %1862 = vmatpush.msra.mxu0 0.0
    %1863 = vmatpush.msra.mxu0 0.0
    %1864 = vmatpush.msra.mxu0 0.0
    %1865 = vmatpush.msra.mxu0 %v1845
    %1866 = vmatmul.f32.gmra.mxu0 %v1848
    %v1867 = vpop.f32.mrf.mxu0
    %v1868 = vadd.f32 0.0, %v1867
    %1869 = vdwg.mxu0
    %1871 = vrot.lane.b32.xlu0 %v1627, 96
    %v1872 = vpop.permute.xlu0 %1871
    %v1875 = vsel %vm335, %v1842, 0
    %1877 = vmatpush.msra.mxu0 0.0
    %1878 = vmatpush.msra.mxu0 0.0
    %1879 = vmatpush.msra.mxu0 0.0
    %1880 = vmatpush.msra.mxu0 0.0
    %1881 = vmatpush.msra.mxu0 0.0
    %1882 = vmatpush.msra.mxu0 0.0
    %1883 = vmatpush.msra.mxu0 0.0
    %1884 = vmatpush.msra.mxu0 0.0
    %1885 = vmatpush.msra.mxu0 0.0
    %1886 = vmatpush.msra.mxu0 0.0
    %1887 = vmatpush.msra.mxu0 0.0
    %1888 = vmatpush.msra.mxu0 0.0
    %1889 = vmatpush.msra.mxu0 0.0
    %1890 = vmatpush.msra.mxu0 0.0
    %1891 = vmatpush.msra.mxu0 0.0
    %1892 = vmatpush.msra.mxu0 %v1872
    %1893 = vmatmul.f32.gmra.mxu0 %v1875
    %v1894 = vpop.f32.mrf.mxu0
    %v1895 = vadd.f32 0.0, %v1894
    %1896 = vdwg.mxu0
    %v1897 = vadd.f32 %v1740, %v1868
    %v1898 = vadd.f32 %v1763, %v1895
    %1899 = vrot.lane.b32.xlu0 %v1586, 120
    %v1900 = vpop.permute.xlu0 %1899
    %1901 = vrot.lane.b32.xlu0 %v1586, 88
    %v1902 = vpop.permute.xlu0 %1901
    %v1903 = vsel %vm283, %v1900, 0
    %v1905 = vsel %vm283, %v1902, 0
    %1907 = vmatpush.xpose.msra.mxu0 0.0
    %1908 = vmatpush.xpose.msra.mxu0 0.0
    %1909 = vmatpush.xpose.msra.mxu0 0.0
    %1910 = vmatpush.xpose.msra.mxu0 0.0
    %1911 = vmatpush.xpose.msra.mxu0 0.0
    %1912 = vmatpush.xpose.msra.mxu0 0.0
    %1913 = vmatpush.xpose.msra.mxu0 0.0
    %1914 = vmatpush.xpose.msra.mxu0 0.0
    %1915 = vmatpush.xpose.msra.mxu0 0.0
    %1916 = vmatpush.xpose.msra.mxu0 0.0
    %1917 = vmatpush.xpose.msra.mxu0 0.0
    %1918 = vmatpush.xpose.msra.mxu0 0.0
    %1919 = vmatpush.xpose.msra.mxu0 0.0
    %1920 = vmatpush.xpose.msra.mxu0 0.0
    %1921 = vmatpush.xpose.msra.mxu0 0.0
    %1922 = vmatpush.xpose.msra.mxu0 %v1905
    %1923 = vmatmul.f32.gmra.mxu0 %v1903
    %v1924 = vpop.f32.mrf.mxu0
    %v1925 = vadd.f32 0.0, %v1924
    %1926 = vdwg.mxu0
    %1927 = vrot.lane.b32.xlu0 %v1588, 120
    %v1928 = vpop.permute.xlu0 %1927
    %1929 = vrot.lane.b32.xlu0 %v1588, 88
    %v1930 = vpop.permute.xlu0 %1929
    %v1931 = vsel %vm283, %v1928, 0
    %v1933 = vsel %vm283, %v1930, 0
    %1935 = vmatpush.xpose.msra.mxu0 0.0
    %1936 = vmatpush.xpose.msra.mxu0 0.0
    %1937 = vmatpush.xpose.msra.mxu0 0.0
    %1938 = vmatpush.xpose.msra.mxu0 0.0
    %1939 = vmatpush.xpose.msra.mxu0 0.0
    %1940 = vmatpush.xpose.msra.mxu0 0.0
    %1941 = vmatpush.xpose.msra.mxu0 0.0
    %1942 = vmatpush.xpose.msra.mxu0 0.0
    %1943 = vmatpush.xpose.msra.mxu0 0.0
    %1944 = vmatpush.xpose.msra.mxu0 0.0
    %1945 = vmatpush.xpose.msra.mxu0 0.0
    %1946 = vmatpush.xpose.msra.mxu0 0.0
    %1947 = vmatpush.xpose.msra.mxu0 0.0
    %1948 = vmatpush.xpose.msra.mxu0 0.0
    %1949 = vmatpush.xpose.msra.mxu0 0.0
    %1950 = vmatpush.xpose.msra.mxu0 %v1933
    %1951 = vmatmul.f32.gmra.mxu0 %v1931
    %v1952 = vpop.f32.mrf.mxu0
    %v1953 = vadd.f32 0.0, %v1952
    %1954 = vdwg.mxu0
    %v1955 = vsel %vm335, %v1925, -inf
    %1956 = vmax.xlane.f32.xlu0 %v1955
    %v1957 = vpop.xlane.xlu0 %1956
    %v1958 = vsel %vm335, %v1953, -inf
    %1959 = vmax.xlane.f32.xlu0 %v1958
    %v1960 = vpop.xlane.xlu0 %1959
    %v1961 = vsub.f32 %v1925, %v1957
    %v1962 = vsub.f32 %v1953, %v1960
    %v1963 = vmul.f32 %v1961, 1.442695
    %v1964 = vpow.pop %v1963
    %v1965 = vmul.f32 %v1962, 1.442695
    %v1966 = vpow.pop %v1965
    %v1967 = vsel %vm335, %v1964, 0.0
    %1968 = vadd.xlane.f32.xlu0 %v1967
    %v1969 = vpop.xlane.xlu0 %1968
    %v1970 = vsel %vm335, %v1966, 0.0
    %1971 = vadd.xlane.f32.xlu0 %v1970
    %v1972 = vpop.xlane.xlu0 %1971
    %v1973 = vrcp.pop %v1969
    %v1974 = vrcp.pop %v1972
    %v1975 = vmul.f32 %v1964, %v1973
    %v1976 = vmul.f32 %v1966, %v1974
    %1977 = vrot.lane.b32.xlu0 %v1625, 64
    %v1978 = vpop.permute.xlu0 %1977
    %v1981 = vsel %vm335, %v1975, 0
    %1983 = vmatpush.msra.mxu0 0.0
    %1984 = vmatpush.msra.mxu0 0.0
    %1985 = vmatpush.msra.mxu0 0.0
    %1986 = vmatpush.msra.mxu0 0.0
    %1987 = vmatpush.msra.mxu0 0.0
    %1988 = vmatpush.msra.mxu0 0.0
    %1989 = vmatpush.msra.mxu0 0.0
    %1990 = vmatpush.msra.mxu0 0.0
    %1991 = vmatpush.msra.mxu0 0.0
    %1992 = vmatpush.msra.mxu0 0.0
    %1993 = vmatpush.msra.mxu0 0.0
    %1994 = vmatpush.msra.mxu0 0.0
    %1995 = vmatpush.msra.mxu0 0.0
    %1996 = vmatpush.msra.mxu0 0.0
    %1997 = vmatpush.msra.mxu0 0.0
    %1998 = vmatpush.msra.mxu0 %v1978
    %1999 = vmatmul.f32.gmra.mxu0 %v1981
    %v2000 = vpop.f32.mrf.mxu0
    %v2001 = vadd.f32 0.0, %v2000
    %2002 = vdwg.mxu0
    %2003 = vrot.lane.b32.xlu0 %v1627, 64
    %v2004 = vpop.permute.xlu0 %2003
    %v2007 = vsel %vm335, %v1976, 0
    %2009 = vmatpush.msra.mxu0 0.0
    %2010 = vmatpush.msra.mxu0 0.0
    %2011 = vmatpush.msra.mxu0 0.0
    %2012 = vmatpush.msra.mxu0 0.0
    %2013 = vmatpush.msra.mxu0 0.0
    %2014 = vmatpush.msra.mxu0 0.0
    %2015 = vmatpush.msra.mxu0 0.0
    %2016 = vmatpush.msra.mxu0 0.0
    %2017 = vmatpush.msra.mxu0 0.0
    %2018 = vmatpush.msra.mxu0 0.0
    %2019 = vmatpush.msra.mxu0 0.0
    %2020 = vmatpush.msra.mxu0 0.0
    %2021 = vmatpush.msra.mxu0 0.0
    %2022 = vmatpush.msra.mxu0 0.0
    %2023 = vmatpush.msra.mxu0 0.0
    %2024 = vmatpush.msra.mxu0 %v2004
    %2025 = vmatmul.f32.gmra.mxu0 %v2007
    %v2026 = vpop.f32.mrf.mxu0
    %v2027 = vadd.f32 0.0, %v2026
    %2028 = vdwg.mxu0
    %v2029 = vadd.f32 %v1897, %v2001
    %v2030 = vadd.f32 %v1898, %v2027
    %2031 = vrot.lane.b32.xlu0 %v1586, 116
    %v2032 = vpop.permute.xlu0 %2031
    %2033 = vrot.lane.b32.xlu0 %v1586, 84
    %v2034 = vpop.permute.xlu0 %2033
    %v2035 = vsel %vm283, %v2032, 0
    %v2037 = vsel %vm283, %v2034, 0
    %2039 = vmatpush.xpose.msra.mxu0 0.0
    %2040 = vmatpush.xpose.msra.mxu0 0.0
    %2041 = vmatpush.xpose.msra.mxu0 0.0
    %2042 = vmatpush.xpose.msra.mxu0 0.0
    %2043 = vmatpush.xpose.msra.mxu0 0.0
    %2044 = vmatpush.xpose.msra.mxu0 0.0
    %2045 = vmatpush.xpose.msra.mxu0 0.0
    %2046 = vmatpush.xpose.msra.mxu0 0.0
    %2047 = vmatpush.xpose.msra.mxu0 0.0
    %2048 = vmatpush.xpose.msra.mxu0 0.0
    %2049 = vmatpush.xpose.msra.mxu0 0.0
    %2050 = vmatpush.xpose.msra.mxu0 0.0
    %2051 = vmatpush.xpose.msra.mxu0 0.0
    %2052 = vmatpush.xpose.msra.mxu0 0.0
    %2053 = vmatpush.xpose.msra.mxu0 0.0
    %2054 = vmatpush.xpose.msra.mxu0 %v2037
    %2055 = vmatmul.f32.gmra.mxu0 %v2035
    %v2056 = vpop.f32.mrf.mxu0
    %v2057 = vadd.f32 0.0, %v2056
    %2058 = vdwg.mxu0
    %2059 = vrot.lane.b32.xlu0 %v1588, 116
    %v2060 = vpop.permute.xlu0 %2059
    %2061 = vrot.lane.b32.xlu0 %v1588, 84
    %v2062 = vpop.permute.xlu0 %2061
    %v2063 = vsel %vm283, %v2060, 0
    %v2065 = vsel %vm283, %v2062, 0
    %2067 = vmatpush.xpose.msra.mxu0 0.0
    %2068 = vmatpush.xpose.msra.mxu0 0.0
    %2069 = vmatpush.xpose.msra.mxu0 0.0
    %2070 = vmatpush.xpose.msra.mxu0 0.0
    %2071 = vmatpush.xpose.msra.mxu0 0.0
    %2072 = vmatpush.xpose.msra.mxu0 0.0
    %2073 = vmatpush.xpose.msra.mxu0 0.0
    %2074 = vmatpush.xpose.msra.mxu0 0.0
    %2075 = vmatpush.xpose.msra.mxu0 0.0
    %2076 = vmatpush.xpose.msra.mxu0 0.0
    %2077 = vmatpush.xpose.msra.mxu0 0.0
    %2078 = vmatpush.xpose.msra.mxu0 0.0
    %2079 = vmatpush.xpose.msra.mxu0 0.0
    %2080 = vmatpush.xpose.msra.mxu0 0.0
    %2081 = vmatpush.xpose.msra.mxu0 0.0
    %2082 = vmatpush.xpose.msra.mxu0 %v2065
    %2083 = vmatmul.f32.gmra.mxu0 %v2063
    %v2084 = vpop.f32.mrf.mxu0
    %v2085 = vadd.f32 0.0, %v2084
    %2086 = vdwg.mxu0
    %v2087 = vsel %vm335, %v2057, -inf
    %2088 = vmax.xlane.f32.xlu0 %v2087
    %v2089 = vpop.xlane.xlu0 %2088
    %v2090 = vsel %vm335, %v2085, -inf
    %2091 = vmax.xlane.f32.xlu0 %v2090
    %v2092 = vpop.xlane.xlu0 %2091
    %v2093 = vsub.f32 %v2057, %v2089
    %v2094 = vsub.f32 %v2085, %v2092
    %v2095 = vmul.f32 %v2093, 1.442695
    %v2096 = vpow.pop %v2095
    %v2097 = vmul.f32 %v2094, 1.442695
    %v2098 = vpow.pop %v2097
    %v2099 = vsel %vm335, %v2096, 0.0
    %2100 = vadd.xlane.f32.xlu0 %v2099
    %v2101 = vpop.xlane.xlu0 %2100
    %v2102 = vsel %vm335, %v2098, 0.0
    %2103 = vadd.xlane.f32.xlu0 %v2102
    %v2104 = vpop.xlane.xlu0 %2103
    %v2105 = vrcp.pop %v2101
    %v2106 = vrcp.pop %v2104
    %v2107 = vmul.f32 %v2096, %v2105
    %v2108 = vmul.f32 %v2098, %v2106
    %2109 = vrot.lane.b32.xlu0 %v1625, 32
    %v2110 = vpop.permute.xlu0 %2109
    %v2113 = vsel %vm335, %v2107, 0
    %2115 = vmatpush.msra.mxu0 0.0
    %2116 = vmatpush.msra.mxu0 0.0
    %2117 = vmatpush.msra.mxu0 0.0
    %2118 = vmatpush.msra.mxu0 0.0
    %2119 = vmatpush.msra.mxu0 0.0
    %2120 = vmatpush.msra.mxu0 0.0
    %2121 = vmatpush.msra.mxu0 0.0
    %2122 = vmatpush.msra.mxu0 0.0
    %2123 = vmatpush.msra.mxu0 0.0
    %2124 = vmatpush.msra.mxu0 0.0
    %2125 = vmatpush.msra.mxu0 0.0
    %2126 = vmatpush.msra.mxu0 0.0
    %2127 = vmatpush.msra.mxu0 0.0
    %2128 = vmatpush.msra.mxu0 0.0
    %2129 = vmatpush.msra.mxu0 0.0
    %2130 = vmatpush.msra.mxu0 %v2110
    %2131 = vmatmul.f32.gmra.mxu0 %v2113
    %v2132 = vpop.f32.mrf.mxu0
    %v2133 = vadd.f32 0.0, %v2132
    %2134 = vdwg.mxu0
    %2135 = vrot.lane.b32.xlu0 %v1627, 32
    %v2136 = vpop.permute.xlu0 %2135
    %v2139 = vsel %vm335, %v2108, 0
    %2141 = vmatpush.msra.mxu0 0.0
    %2142 = vmatpush.msra.mxu0 0.0
    %2143 = vmatpush.msra.mxu0 0.0
    %2144 = vmatpush.msra.mxu0 0.0
    %2145 = vmatpush.msra.mxu0 0.0
    %2146 = vmatpush.msra.mxu0 0.0
    %2147 = vmatpush.msra.mxu0 0.0
    %2148 = vmatpush.msra.mxu0 0.0
    %2149 = vmatpush.msra.mxu0 0.0
    %2150 = vmatpush.msra.mxu0 0.0
    %2151 = vmatpush.msra.mxu0 0.0
    %2152 = vmatpush.msra.mxu0 0.0
    %2153 = vmatpush.msra.mxu0 0.0
    %2154 = vmatpush.msra.mxu0 0.0
    %2155 = vmatpush.msra.mxu0 0.0
    %2156 = vmatpush.msra.mxu0 %v2136
    %2157 = vmatmul.f32.gmra.mxu0 %v2139
    %v2158 = vpop.f32.mrf.mxu0
    %v2159 = vadd.f32 0.0, %v2158
    %2160 = vdwg.mxu0
    %v2161 = vadd.f32 %v2029, %v2133
    %v2162 = vadd.f32 %v2030, %v2159
    %2163 = vrot.lane.b32.xlu0 %v1586, 112
    %v2164 = vpop.permute.xlu0 %2163
    %2165 = vrot.lane.b32.xlu0 %v1586, 80
    %v2166 = vpop.permute.xlu0 %2165
    %v2167 = vsel %vm283, %v2164, 0
    %v2169 = vsel %vm283, %v2166, 0
    %2171 = vmatpush.xpose.msra.mxu0 0.0
    %2172 = vmatpush.xpose.msra.mxu0 0.0
    %2173 = vmatpush.xpose.msra.mxu0 0.0
    %2174 = vmatpush.xpose.msra.mxu0 0.0
    %2175 = vmatpush.xpose.msra.mxu0 0.0
    %2176 = vmatpush.xpose.msra.mxu0 0.0
    %2177 = vmatpush.xpose.msra.mxu0 0.0
    %2178 = vmatpush.xpose.msra.mxu0 0.0
    %2179 = vmatpush.xpose.msra.mxu0 0.0
    %2180 = vmatpush.xpose.msra.mxu0 0.0
    %2181 = vmatpush.xpose.msra.mxu0 0.0
    %2182 = vmatpush.xpose.msra.mxu0 0.0
    %2183 = vmatpush.xpose.msra.mxu0 0.0
    %2184 = vmatpush.xpose.msra.mxu0 0.0
    %2185 = vmatpush.xpose.msra.mxu0 0.0
    %2186 = vmatpush.xpose.msra.mxu0 %v2169
    %2187 = vmatmul.f32.gmra.mxu0 %v2167
    %v2188 = vpop.f32.mrf.mxu0
    %v2189 = vadd.f32 0.0, %v2188
    %2190 = vdwg.mxu0
    %2191 = vrot.lane.b32.xlu0 %v1588, 112
    %v2192 = vpop.permute.xlu0 %2191
    %2193 = vrot.lane.b32.xlu0 %v1588, 80
    %v2194 = vpop.permute.xlu0 %2193
    %v2195 = vsel %vm283, %v2192, 0
    %v2197 = vsel %vm283, %v2194, 0
    %2199 = vmatpush.xpose.msra.mxu0 0.0
    %2200 = vmatpush.xpose.msra.mxu0 0.0
    %2201 = vmatpush.xpose.msra.mxu0 0.0
    %2202 = vmatpush.xpose.msra.mxu0 0.0
    %2203 = vmatpush.xpose.msra.mxu0 0.0
    %2204 = vmatpush.xpose.msra.mxu0 0.0
    %2205 = vmatpush.xpose.msra.mxu0 0.0
    %2206 = vmatpush.xpose.msra.mxu0 0.0
    %2207 = vmatpush.xpose.msra.mxu0 0.0
    %2208 = vmatpush.xpose.msra.mxu0 0.0
    %2209 = vmatpush.xpose.msra.mxu0 0.0
    %2210 = vmatpush.xpose.msra.mxu0 0.0
    %2211 = vmatpush.xpose.msra.mxu0 0.0
    %2212 = vmatpush.xpose.msra.mxu0 0.0
    %2213 = vmatpush.xpose.msra.mxu0 0.0
    %2214 = vmatpush.xpose.msra.mxu0 %v2197
    %2215 = vmatmul.f32.gmra.mxu0 %v2195
    %v2216 = vpop.f32.mrf.mxu0
    %v2217 = vadd.f32 0.0, %v2216
    %2218 = vdwg.mxu0
    %v2219 = vsel %vm335, %v2189, -inf
    %2220 = vmax.xlane.f32.xlu0 %v2219
    %v2221 = vpop.xlane.xlu0 %2220
    %v2222 = vsel %vm335, %v2217, -inf
    %2223 = vmax.xlane.f32.xlu0 %v2222
    %v2224 = vpop.xlane.xlu0 %2223
    %v2225 = vsub.f32 %v2189, %v2221
    %v2226 = vsub.f32 %v2217, %v2224
    %v2227 = vmul.f32 %v2225, 1.442695
    %v2228 = vpow.pop %v2227
    %v2229 = vmul.f32 %v2226, 1.442695
    %v2230 = vpow.pop %v2229
    %v2231 = vsel %vm335, %v2228, 0.0
    %2232 = vadd.xlane.f32.xlu0 %v2231
    %v2233 = vpop.xlane.xlu0 %2232
    %v2234 = vsel %vm335, %v2230, 0.0
    %2235 = vadd.xlane.f32.xlu0 %v2234
    %v2236 = vpop.xlane.xlu0 %2235
    %v2237 = vrcp.pop %v2233
    %v2238 = vrcp.pop %v2236
    %v2239 = vmul.f32 %v2228, %v2237
    %v2240 = vmul.f32 %v2230, %v2238
    %v2242 = vsel %vm335, %v2239, 0
    %2244 = vmatpush.msra.mxu0 0.0
    %2245 = vmatpush.msra.mxu0 0.0
    %2246 = vmatpush.msra.mxu0 0.0
    %2247 = vmatpush.msra.mxu0 0.0
    %2248 = vmatpush.msra.mxu0 0.0
    %2249 = vmatpush.msra.mxu0 0.0
    %2250 = vmatpush.msra.mxu0 0.0
    %2251 = vmatpush.msra.mxu0 0.0
    %2252 = vmatpush.msra.mxu0 0.0
    %2253 = vmatpush.msra.mxu0 0.0
    %2254 = vmatpush.msra.mxu0 0.0
    %2255 = vmatpush.msra.mxu0 0.0
    %2256 = vmatpush.msra.mxu0 0.0
    %2257 = vmatpush.msra.mxu0 0.0
    %2258 = vmatpush.msra.mxu0 0.0
    %2259 = vmatpush.msra.mxu0 %v1639
    %2260 = vmatmul.f32.gmra.mxu0 %v2242
    %v2261 = vpop.f32.mrf.mxu0
    %v2262 = vadd.f32 0.0, %v2261
    %2263 = vdwg.mxu0
    %v2265 = vsel %vm335, %v2240, 0
    %2267 = vmatpush.msra.mxu0 0.0
    %2268 = vmatpush.msra.mxu0 0.0
    %2269 = vmatpush.msra.mxu0 0.0
    %2270 = vmatpush.msra.mxu0 0.0
    %2271 = vmatpush.msra.mxu0 0.0
    %2272 = vmatpush.msra.mxu0 0.0
    %2273 = vmatpush.msra.mxu0 0.0
    %2274 = vmatpush.msra.mxu0 0.0
    %2275 = vmatpush.msra.mxu0 0.0
    %2276 = vmatpush.msra.mxu0 0.0
    %2277 = vmatpush.msra.mxu0 0.0
    %2278 = vmatpush.msra.mxu0 0.0
    %2279 = vmatpush.msra.mxu0 0.0
    %2280 = vmatpush.msra.mxu0 0.0
    %2281 = vmatpush.msra.mxu0 0.0
    %2282 = vmatpush.msra.mxu0 %v1641
    %2283 = vmatmul.f32.gmra.mxu0 %v2265
    %v2284 = vpop.f32.mrf.mxu0
    %v2285 = vadd.f32 0.0, %v2284
    %2286 = vdwg.mxu0
    %v2287 = vadd.f32 %v2161, %v2262
    %v2288 = vadd.f32 %v2162, %v2285
    %2289 = vrot.lane.b32.xlu0 %v1586, 108
    %v2290 = vpop.permute.xlu0 %2289
    %2291 = vrot.lane.b32.xlu0 %v1586, 76
    %v2292 = vpop.permute.xlu0 %2291
    %v2293 = vsel %vm283, %v2290, 0
    %v2295 = vsel %vm283, %v2292, 0
    %2297 = vmatpush.xpose.msra.mxu0 0.0
    %2298 = vmatpush.xpose.msra.mxu0 0.0
    %2299 = vmatpush.xpose.msra.mxu0 0.0
    %2300 = vmatpush.xpose.msra.mxu0 0.0
    %2301 = vmatpush.xpose.msra.mxu0 0.0
    %2302 = vmatpush.xpose.msra.mxu0 0.0
    %2303 = vmatpush.xpose.msra.mxu0 0.0
    %2304 = vmatpush.xpose.msra.mxu0 0.0
    %2305 = vmatpush.xpose.msra.mxu0 0.0
    %2306 = vmatpush.xpose.msra.mxu0 0.0
    %2307 = vmatpush.xpose.msra.mxu0 0.0
    %2308 = vmatpush.xpose.msra.mxu0 0.0
    %2309 = vmatpush.xpose.msra.mxu0 0.0
    %2310 = vmatpush.xpose.msra.mxu0 0.0
    %2311 = vmatpush.xpose.msra.mxu0 0.0
    %2312 = vmatpush.xpose.msra.mxu0 %v2295
    %2313 = vmatmul.f32.gmra.mxu0 %v2293
    %v2314 = vpop.f32.mrf.mxu0
    %v2315 = vadd.f32 0.0, %v2314
    %2316 = vdwg.mxu0
    %2317 = vrot.lane.b32.xlu0 %v1588, 108
    %v2318 = vpop.permute.xlu0 %2317
    %2319 = vrot.lane.b32.xlu0 %v1588, 76
    %v2320 = vpop.permute.xlu0 %2319
    %v2321 = vsel %vm283, %v2318, 0
    %v2323 = vsel %vm283, %v2320, 0
    %2325 = vmatpush.xpose.msra.mxu0 0.0
    %2326 = vmatpush.xpose.msra.mxu0 0.0
    %2327 = vmatpush.xpose.msra.mxu0 0.0
    %2328 = vmatpush.xpose.msra.mxu0 0.0
    %2329 = vmatpush.xpose.msra.mxu0 0.0
    %2330 = vmatpush.xpose.msra.mxu0 0.0
    %2331 = vmatpush.xpose.msra.mxu0 0.0
    %2332 = vmatpush.xpose.msra.mxu0 0.0
    %2333 = vmatpush.xpose.msra.mxu0 0.0
    %2334 = vmatpush.xpose.msra.mxu0 0.0
    %2335 = vmatpush.xpose.msra.mxu0 0.0
    %2336 = vmatpush.xpose.msra.mxu0 0.0
    %2337 = vmatpush.xpose.msra.mxu0 0.0
    %2338 = vmatpush.xpose.msra.mxu0 0.0
    %2339 = vmatpush.xpose.msra.mxu0 0.0
    %2340 = vmatpush.xpose.msra.mxu0 %v2323
    %2341 = vmatmul.f32.gmra.mxu0 %v2321
    %v2342 = vpop.f32.mrf.mxu0
    %v2343 = vadd.f32 0.0, %v2342
    %2344 = vdwg.mxu0
    %v2345 = vsel %vm335, %v2315, -inf
    %2346 = vmax.xlane.f32.xlu0 %v2345
    %v2347 = vpop.xlane.xlu0 %2346
    %v2348 = vsel %vm335, %v2343, -inf
    %2349 = vmax.xlane.f32.xlu0 %v2348
    %v2350 = vpop.xlane.xlu0 %2349
    %v2351 = vsub.f32 %v2315, %v2347
    %v2352 = vsub.f32 %v2343, %v2350
    %v2353 = vmul.f32 %v2351, 1.442695
    %v2354 = vpow.pop %v2353
    %v2355 = vmul.f32 %v2352, 1.442695
    %v2356 = vpow.pop %v2355
    %v2357 = vsel %vm335, %v2354, 0.0
    %2358 = vadd.xlane.f32.xlu0 %v2357
    %v2359 = vpop.xlane.xlu0 %2358
    %v2360 = vsel %vm335, %v2356, 0.0
    %2361 = vadd.xlane.f32.xlu0 %v2360
    %v2362 = vpop.xlane.xlu0 %2361
    %v2363 = vrcp.pop %v2359
    %v2364 = vrcp.pop %v2362
    %v2365 = vmul.f32 %v2354, %v2363
    %v2366 = vmul.f32 %v2356, %v2364
    %2368 = vrot.lane.b32.xlu0 %v1639, 96
    %v2369 = vpop.permute.xlu0 %2368
    %v2372 = vsel %vm335, %v2365, 0
    %2374 = vmatpush.msra.mxu0 0.0
    %2375 = vmatpush.msra.mxu0 0.0
    %2376 = vmatpush.msra.mxu0 0.0
    %2377 = vmatpush.msra.mxu0 0.0
    %2378 = vmatpush.msra.mxu0 0.0
    %2379 = vmatpush.msra.mxu0 0.0
    %2380 = vmatpush.msra.mxu0 0.0
    %2381 = vmatpush.msra.mxu0 0.0
    %2382 = vmatpush.msra.mxu0 0.0
    %2383 = vmatpush.msra.mxu0 0.0
    %2384 = vmatpush.msra.mxu0 0.0
    %2385 = vmatpush.msra.mxu0 0.0
    %2386 = vmatpush.msra.mxu0 0.0
    %2387 = vmatpush.msra.mxu0 0.0
    %2388 = vmatpush.msra.mxu0 0.0
    %2389 = vmatpush.msra.mxu0 %v2369
    %2390 = vmatmul.f32.gmra.mxu0 %v2372
    %v2391 = vpop.f32.mrf.mxu0
    %v2392 = vadd.f32 0.0, %v2391
    %2393 = vdwg.mxu0
    %2395 = vrot.lane.b32.xlu0 %v1641, 96
    %v2396 = vpop.permute.xlu0 %2395
    %v2399 = vsel %vm335, %v2366, 0
    %2401 = vmatpush.msra.mxu0 0.0
    %2402 = vmatpush.msra.mxu0 0.0
    %2403 = vmatpush.msra.mxu0 0.0
    %2404 = vmatpush.msra.mxu0 0.0
    %2405 = vmatpush.msra.mxu0 0.0
    %2406 = vmatpush.msra.mxu0 0.0
    %2407 = vmatpush.msra.mxu0 0.0
    %2408 = vmatpush.msra.mxu0 0.0
    %2409 = vmatpush.msra.mxu0 0.0
    %2410 = vmatpush.msra.mxu0 0.0
    %2411 = vmatpush.msra.mxu0 0.0
    %2412 = vmatpush.msra.mxu0 0.0
    %2413 = vmatpush.msra.mxu0 0.0
    %2414 = vmatpush.msra.mxu0 0.0
    %2415 = vmatpush.msra.mxu0 0.0
    %2416 = vmatpush.msra.mxu0 %v2396
    %2417 = vmatmul.f32.gmra.mxu0 %v2399
    %v2418 = vpop.f32.mrf.mxu0
    %v2419 = vadd.f32 0.0, %v2418
    %2420 = vdwg.mxu0
    %v2421 = vadd.f32 %v2287, %v2392
    %v2422 = vadd.f32 %v2288, %v2419
    %2423 = vrot.lane.b32.xlu0 %v1586, 104
    %v2424 = vpop.permute.xlu0 %2423
    %2425 = vrot.lane.b32.xlu0 %v1586, 72
    %v2426 = vpop.permute.xlu0 %2425
    %v2427 = vsel %vm283, %v2424, 0
    %v2429 = vsel %vm283, %v2426, 0
    %2431 = vmatpush.xpose.msra.mxu0 0.0
    %2432 = vmatpush.xpose.msra.mxu0 0.0
    %2433 = vmatpush.xpose.msra.mxu0 0.0
    %2434 = vmatpush.xpose.msra.mxu0 0.0
    %2435 = vmatpush.xpose.msra.mxu0 0.0
    %2436 = vmatpush.xpose.msra.mxu0 0.0
    %2437 = vmatpush.xpose.msra.mxu0 0.0
    %2438 = vmatpush.xpose.msra.mxu0 0.0
    %2439 = vmatpush.xpose.msra.mxu0 0.0
    %2440 = vmatpush.xpose.msra.mxu0 0.0
    %2441 = vmatpush.xpose.msra.mxu0 0.0
    %2442 = vmatpush.xpose.msra.mxu0 0.0
    %2443 = vmatpush.xpose.msra.mxu0 0.0
    %2444 = vmatpush.xpose.msra.mxu0 0.0
    %2445 = vmatpush.xpose.msra.mxu0 0.0
    %2446 = vmatpush.xpose.msra.mxu0 %v2429
    %2447 = vmatmul.f32.gmra.mxu0 %v2427
    %v2448 = vpop.f32.mrf.mxu0
    %v2449 = vadd.f32 0.0, %v2448
    %2450 = vdwg.mxu0
    %2451 = vrot.lane.b32.xlu0 %v1588, 104
    %v2452 = vpop.permute.xlu0 %2451
    %2453 = vrot.lane.b32.xlu0 %v1588, 72
    %v2454 = vpop.permute.xlu0 %2453
    %v2455 = vsel %vm283, %v2452, 0
    %v2457 = vsel %vm283, %v2454, 0
    %2459 = vmatpush.xpose.msra.mxu0 0.0
    %2460 = vmatpush.xpose.msra.mxu0 0.0
    %2461 = vmatpush.xpose.msra.mxu0 0.0
    %2462 = vmatpush.xpose.msra.mxu0 0.0
    %2463 = vmatpush.xpose.msra.mxu0 0.0
    %2464 = vmatpush.xpose.msra.mxu0 0.0
    %2465 = vmatpush.xpose.msra.mxu0 0.0
    %2466 = vmatpush.xpose.msra.mxu0 0.0
    %2467 = vmatpush.xpose.msra.mxu0 0.0
    %2468 = vmatpush.xpose.msra.mxu0 0.0
    %2469 = vmatpush.xpose.msra.mxu0 0.0
    %2470 = vmatpush.xpose.msra.mxu0 0.0
    %2471 = vmatpush.xpose.msra.mxu0 0.0
    %2472 = vmatpush.xpose.msra.mxu0 0.0
    %2473 = vmatpush.xpose.msra.mxu0 0.0
    %2474 = vmatpush.xpose.msra.mxu0 %v2457
    %2475 = vmatmul.f32.gmra.mxu0 %v2455
    %v2476 = vpop.f32.mrf.mxu0
    %v2477 = vadd.f32 0.0, %v2476
    %2478 = vdwg.mxu0
    %v2479 = vsel %vm335, %v2449, -inf
    %2480 = vmax.xlane.f32.xlu0 %v2479
    %v2481 = vpop.xlane.xlu0 %2480
    %v2482 = vsel %vm335, %v2477, -inf
    %2483 = vmax.xlane.f32.xlu0 %v2482
    %v2484 = vpop.xlane.xlu0 %2483
    %v2485 = vsub.f32 %v2449, %v2481
    %v2486 = vsub.f32 %v2477, %v2484
    %v2487 = vmul.f32 %v2485, 1.442695
    %v2488 = vpow.pop %v2487
    %v2489 = vmul.f32 %v2486, 1.442695
    %v2490 = vpow.pop %v2489
    %v2491 = vsel %vm335, %v2488, 0.0
    %2492 = vadd.xlane.f32.xlu0 %v2491
    %v2493 = vpop.xlane.xlu0 %2492
    %v2494 = vsel %vm335, %v2490, 0.0
    %2495 = vadd.xlane.f32.xlu0 %v2494
    %v2496 = vpop.xlane.xlu0 %2495
    %v2497 = vrcp.pop %v2493
    %v2498 = vrcp.pop %v2496
    %v2499 = vmul.f32 %v2488, %v2497
    %v2500 = vmul.f32 %v2490, %v2498
    %2501 = vrot.lane.b32.xlu0 %v1639, 64
    %v2502 = vpop.permute.xlu0 %2501
    %v2505 = vsel %vm335, %v2499, 0
    %2507 = vmatpush.msra.mxu0 0.0
    %2508 = vmatpush.msra.mxu0 0.0
    %2509 = vmatpush.msra.mxu0 0.0
    %2510 = vmatpush.msra.mxu0 0.0
    %2511 = vmatpush.msra.mxu0 0.0
    %2512 = vmatpush.msra.mxu0 0.0
    %2513 = vmatpush.msra.mxu0 0.0
    %2514 = vmatpush.msra.mxu0 0.0
    %2515 = vmatpush.msra.mxu0 0.0
    %2516 = vmatpush.msra.mxu0 0.0
    %2517 = vmatpush.msra.mxu0 0.0
    %2518 = vmatpush.msra.mxu0 0.0
    %2519 = vmatpush.msra.mxu0 0.0
    %2520 = vmatpush.msra.mxu0 0.0
    %2521 = vmatpush.msra.mxu0 0.0
    %2522 = vmatpush.msra.mxu0 %v2502
    %2523 = vmatmul.f32.gmra.mxu0 %v2505
    %v2524 = vpop.f32.mrf.mxu0
    %v2525 = vadd.f32 0.0, %v2524
    %2526 = vdwg.mxu0
    %2527 = vrot.lane.b32.xlu0 %v1641, 64
    %v2528 = vpop.permute.xlu0 %2527
    %v2531 = vsel %vm335, %v2500, 0
    %2533 = vmatpush.msra.mxu0 0.0
    %2534 = vmatpush.msra.mxu0 0.0
    %2535 = vmatpush.msra.mxu0 0.0
    %2536 = vmatpush.msra.mxu0 0.0
    %2537 = vmatpush.msra.mxu0 0.0
    %2538 = vmatpush.msra.mxu0 0.0
    %2539 = vmatpush.msra.mxu0 0.0
    %2540 = vmatpush.msra.mxu0 0.0
    %2541 = vmatpush.msra.mxu0 0.0
    %2542 = vmatpush.msra.mxu0 0.0
    %2543 = vmatpush.msra.mxu0 0.0
    %2544 = vmatpush.msra.mxu0 0.0
    %2545 = vmatpush.msra.mxu0 0.0
    %2546 = vmatpush.msra.mxu0 0.0
    %2547 = vmatpush.msra.mxu0 0.0
    %2548 = vmatpush.msra.mxu0 %v2528
    %2549 = vmatmul.f32.gmra.mxu0 %v2531
    %v2550 = vpop.f32.mrf.mxu0
    %v2551 = vadd.f32 0.0, %v2550
    %2552 = vdwg.mxu0
    %v2553 = vadd.f32 %v2421, %v2525
    %v2554 = vadd.f32 %v2422, %v2551
    %2555 = vrot.lane.b32.xlu0 %v1586, 100
    %v2556 = vpop.permute.xlu0 %2555
    %2557 = vrot.lane.b32.xlu0 %v1586, 68
    %v2558 = vpop.permute.xlu0 %2557
    %v2559 = vsel %vm283, %v2556, 0
    %v2561 = vsel %vm283, %v2558, 0
    %2563 = vmatpush.xpose.msra.mxu0 0.0
    %2564 = vmatpush.xpose.msra.mxu0 0.0
    %2565 = vmatpush.xpose.msra.mxu0 0.0
    %2566 = vmatpush.xpose.msra.mxu0 0.0
    %2567 = vmatpush.xpose.msra.mxu0 0.0
    %2568 = vmatpush.xpose.msra.mxu0 0.0
    %2569 = vmatpush.xpose.msra.mxu0 0.0
    %2570 = vmatpush.xpose.msra.mxu0 0.0
    %2571 = vmatpush.xpose.msra.mxu0 0.0
    %2572 = vmatpush.xpose.msra.mxu0 0.0
    %2573 = vmatpush.xpose.msra.mxu0 0.0
    %2574 = vmatpush.xpose.msra.mxu0 0.0
    %2575 = vmatpush.xpose.msra.mxu0 0.0
    %2576 = vmatpush.xpose.msra.mxu0 0.0
    %2577 = vmatpush.xpose.msra.mxu0 0.0
    %2578 = vmatpush.xpose.msra.mxu0 %v2561
    %2579 = vmatmul.f32.gmra.mxu0 %v2559
    %v2580 = vpop.f32.mrf.mxu0
    %v2581 = vadd.f32 0.0, %v2580
    %2582 = vdwg.mxu0
    %2583 = vrot.lane.b32.xlu0 %v1588, 100
    %v2584 = vpop.permute.xlu0 %2583
    %2585 = vrot.lane.b32.xlu0 %v1588, 68
    %v2586 = vpop.permute.xlu0 %2585
    %v2587 = vsel %vm283, %v2584, 0
    %v2589 = vsel %vm283, %v2586, 0
    %2591 = vmatpush.xpose.msra.mxu0 0.0
    %2592 = vmatpush.xpose.msra.mxu0 0.0
    %2593 = vmatpush.xpose.msra.mxu0 0.0
    %2594 = vmatpush.xpose.msra.mxu0 0.0
    %2595 = vmatpush.xpose.msra.mxu0 0.0
    %2596 = vmatpush.xpose.msra.mxu0 0.0
    %2597 = vmatpush.xpose.msra.mxu0 0.0
    %2598 = vmatpush.xpose.msra.mxu0 0.0
    %2599 = vmatpush.xpose.msra.mxu0 0.0
    %2600 = vmatpush.xpose.msra.mxu0 0.0
    %2601 = vmatpush.xpose.msra.mxu0 0.0
    %2602 = vmatpush.xpose.msra.mxu0 0.0
    %2603 = vmatpush.xpose.msra.mxu0 0.0
    %2604 = vmatpush.xpose.msra.mxu0 0.0
    %2605 = vmatpush.xpose.msra.mxu0 0.0
    %2606 = vmatpush.xpose.msra.mxu0 %v2589
    %2607 = vmatmul.f32.gmra.mxu0 %v2587
    %v2608 = vpop.f32.mrf.mxu0
    %v2609 = vadd.f32 0.0, %v2608
    %2610 = vdwg.mxu0
    %v2611 = vsel %vm335, %v2581, -inf
    %2612 = vmax.xlane.f32.xlu0 %v2611
    %v2613 = vpop.xlane.xlu0 %2612
    %v2614 = vsel %vm335, %v2609, -inf
    %2615 = vmax.xlane.f32.xlu0 %v2614
    %v2616 = vpop.xlane.xlu0 %2615
    %v2617 = vsub.f32 %v2581, %v2613
    %v2618 = vsub.f32 %v2609, %v2616
    %v2619 = vmul.f32 %v2617, 1.442695
    %v2620 = vpow.pop %v2619
    %v2621 = vmul.f32 %v2618, 1.442695
    %v2622 = vpow.pop %v2621
    %v2623 = vsel %vm335, %v2620, 0.0
    %2624 = vadd.xlane.f32.xlu0 %v2623
    %v2625 = vpop.xlane.xlu0 %2624
    %v2626 = vsel %vm335, %v2622, 0.0
    %2627 = vadd.xlane.f32.xlu0 %v2626
    %v2628 = vpop.xlane.xlu0 %2627
    %v2629 = vrcp.pop %v2625
    %v2630 = vrcp.pop %v2628
    %v2631 = vmul.f32 %v2620, %v2629
    %v2632 = vmul.f32 %v2622, %v2630
    %2633 = vrot.lane.b32.xlu0 %v1639, 32
    %v2634 = vpop.permute.xlu0 %2633
    %v2637 = vsel %vm335, %v2631, 0
    %2639 = vmatpush.msra.mxu0 0.0
    %2640 = vmatpush.msra.mxu0 0.0
    %2641 = vmatpush.msra.mxu0 0.0
    %2642 = vmatpush.msra.mxu0 0.0
    %2643 = vmatpush.msra.mxu0 0.0
    %2644 = vmatpush.msra.mxu0 0.0
    %2645 = vmatpush.msra.mxu0 0.0
    %2646 = vmatpush.msra.mxu0 0.0
    %2647 = vmatpush.msra.mxu0 0.0
    %2648 = vmatpush.msra.mxu0 0.0
    %2649 = vmatpush.msra.mxu0 0.0
    %2650 = vmatpush.msra.mxu0 0.0
    %2651 = vmatpush.msra.mxu0 0.0
    %2652 = vmatpush.msra.mxu0 0.0
    %2653 = vmatpush.msra.mxu0 0.0
    %2654 = vmatpush.msra.mxu0 %v2634
    %2655 = vmatmul.f32.gmra.mxu0 %v2637
    %v2656 = vpop.f32.mrf.mxu0
    %v2657 = vadd.f32 0.0, %v2656
    %2658 = vdwg.mxu0
    %2659 = vrot.lane.b32.xlu0 %v1641, 32
    %v2660 = vpop.permute.xlu0 %2659
    %v2663 = vsel %vm335, %v2632, 0
    %2665 = vmatpush.msra.mxu0 0.0
    %2666 = vmatpush.msra.mxu0 0.0
    %2667 = vmatpush.msra.mxu0 0.0
    %2668 = vmatpush.msra.mxu0 0.0
    %2669 = vmatpush.msra.mxu0 0.0
    %2670 = vmatpush.msra.mxu0 0.0
    %2671 = vmatpush.msra.mxu0 0.0
    %2672 = vmatpush.msra.mxu0 0.0
    %2673 = vmatpush.msra.mxu0 0.0
    %2674 = vmatpush.msra.mxu0 0.0
    %2675 = vmatpush.msra.mxu0 0.0
    %2676 = vmatpush.msra.mxu0 0.0
    %2677 = vmatpush.msra.mxu0 0.0
    %2678 = vmatpush.msra.mxu0 0.0
    %2679 = vmatpush.msra.mxu0 0.0
    %2680 = vmatpush.msra.mxu0 %v2660
    %2681 = vmatmul.f32.gmra.mxu0 %v2663
    %v2682 = vpop.f32.mrf.mxu0
    %v2683 = vadd.f32 0.0, %v2682
    %2684 = vdwg.mxu0
    %v2685 = vadd.f32 %v2553, %v2657
    %v2686 = vadd.f32 %v2554, %v2683
    %s2687 = scalar_lea.vmem %s5, 1
    %v2688 = vld [vmem:[%s2687] sm:$0x1]
    %v2690 = vperm.slane %v2688, 0
    %v2692 = vadd.f32 %v2685, %v2690
    %v2693 = vadd.f32 %v2686, %v2690
    %v2694 = vadd.f32 %v1548, %v2692
    %v2695 = vadd.f32 %v1549, %v2693
    %s2696 = scalar_lea.vmem %s6, 1
    %v2697 = vld [vmem:[%s2696] sm:$0x1]
    %s2698 = scalar_lea.vmem %s7, 1
    %v2699 = vld [vmem:[%s2698] sm:$0x1]
    %v2700 = vsel %vm210, %v2694, 0.0
    %2701 = vadd.xlane.f32.xlu0 %v2700
    %v2702 = vpop.xlane.xlu0 %2701
    %v2703 = vsel %vm210, %v2695, 0.0
    %2704 = vadd.xlane.f32.xlu0 %v2703
    %v2705 = vpop.xlane.xlu0 %2704
    %v2706 = vmul.f32 %v2702, %v1348
    %v2707 = vmul.f32 %v2705, %v1348
    %v2708 = vsub.f32 %v2694, %v2706
    %v2709 = vsub.f32 %v2695, %v2707
    %v2710 = vmul.f32 %v2708, %v2708
    %v2711 = vmul.f32 %v2709, %v2709
    %v2712 = vsel %vm210, %v2710, 0.0
    %2713 = vadd.xlane.f32.xlu0 %v2712
    %v2714 = vpop.xlane.xlu0 %2713
    %v2715 = vsel %vm210, %v2711, 0.0
    %2716 = vadd.xlane.f32.xlu0 %v2715
    %v2717 = vpop.xlane.xlu0 %2716
    %v2718 = vmul.f32 %v2714, %v1348
    %v2719 = vmul.f32 %v2717, %v1348
    %v2720 = vadd.f32 %v2718, 1e-05
    %v2721 = vadd.f32 %v2719, 1e-05
    %v2722 = vrsqrt.pop %v2720
    %v2723 = vmul.f32 %v2722, %v2720
    %v2724 = vmul.f32 %v2723, %v2722
    %v2725 = vmul.f32 0.5, %v2724
    %v2726 = vsub.f32 1.5, %v2725
    %v2727 = vmul.f32 %v2722, %v2726
    %vm2728 = vweird.f32 %v2720
    %vm2729 = vweird.f32 %v2722
    %vm2730 = vmor %vm2728, %vm2729
    %v2731 = vsel %vm2730, %v2722, %v2727
    %v2732 = vrsqrt.pop %v2721
    %v2733 = vmul.f32 %v2732, %v2721
    %v2734 = vmul.f32 %v2733, %v2732
    %v2735 = vmul.f32 0.5, %v2734
    %v2736 = vsub.f32 1.5, %v2735
    %v2737 = vmul.f32 %v2732, %v2736
    %vm2738 = vweird.f32 %v2721
    %vm2739 = vweird.f32 %v2732
    %vm2740 = vmor %vm2738, %vm2739
    %v2741 = vsel %vm2740, %v2732, %v2737
    %v2742 = vmul.f32 %v2708, %v2731
    %v2743 = vmul.f32 %v2709, %v2741
    %v2745 = vperm.slane %v2697, 0
    %v2747 = vmul.f32 %v2742, %v2745
    %v2748 = vmul.f32 %v2743, %v2745
    %v2750 = vperm.slane %v2699, 0
    %v2752 = vadd.f32 %v2747, %v2750
    %v2753 = vadd.f32 %v2748, %v2750
    %v2754 = vpack.c.bf16 %v2753, %v2752
    %s2755 = scalar_lea.vmem [#allocation6], 16
    %v2756 = vld [vmem:[%s2755] sm:$0xf]
    %v2757 = vld [vmem:[%s2755 + $0x4] sm:$0xf]
    %v2758 = vld [vmem:[%s2755 + $0x8] sm:$0xf]
    %v2759 = vld [vmem:[%s2755 + $0xc] sm:$0xf]
    %s2760 = scalar_lea.vmem %s9, 1
    %v2761 = vld [vmem:[%s2760] sm:$0x1]
    %v2763 = vperm.slane %v2761, 0
    %v2769 = vunpack.c.l.b16 %v2756
    %v2770 = vunpack.c.l.b16 %v2757
    %v2771 = vunpack.c.l.b16 %v2758
    %v2772 = vunpack.c.l.b16 %v2759
    %v2773 = vpack.c.b16 %v2770, %v2769
    %v2774 = vpack.c.b16 %v2772, %v2771
    %v2778 = vsel %vm210, %v2754, 0
    %2780 = vmatpush.bf16.msra.mxu0 0
    %2781 = vmatpush.bf16.msra.mxu0 0
    %2782 = vmatpush.bf16.msra.mxu0 0
    %2783 = vmatpush.bf16.msra.mxu0 0
    %2784 = vmatpush.bf16.msra.mxu0 0
    %2785 = vmatpush.bf16.msra.mxu0 0
    %2786 = vmatpush.bf16.msra.mxu0 %v2774
    %2787 = vmatpush.bf16.msra.mxu0 %v2773
    %2788 = vmatmul.bf16.gmra.mxu0 %v2778
    %v2789 = vpop.f32.mrf.mxu0
    %v2790 = vadd.f32 %v2763, %v2789
    %v2791 = vpop.f32.mrf.mxu0
    %v2792 = vadd.f32 %v2763, %v2791
    %2793 = vdwg.mxu0
    %v2794 = vmax.f32 %v2790, 0.0
    %v2795 = vmax.f32 %v2792, 0.0
    %v2796 = vpack.c.bf16 %v2795, %v2794
    %s2797 = scalar_lea.vmem %s10, 32
    %v2798 = vld [vmem:[%s2797] sm:$0xf]
    %v2799 = vld [vmem:[%s2797 + $0x4] sm:$0xf]
    %v2800 = vld [vmem:[%s2797 + $0x8] sm:$0xf]
    %v2801 = vld [vmem:[%s2797 + $0xc] sm:$0xf]
    %v2802 = vld [vmem:[%s2797 + $0x10] sm:$0xf]
    %v2803 = vld [vmem:[%s2797 + $0x14] sm:$0xf]
    %v2804 = vld [vmem:[%s2797 + $0x18] sm:$0xf]
    %v2805 = vld [vmem:[%s2797 + $0x1c] sm:$0xf]
    %s2806 = scalar_lea.vmem %s11, 1
    %v2807 = vld [vmem:[%s2806] sm:$0x1]
    %v2809 = vperm.slane %v2807, 0
    %v2819 = vunpack.c.l.b16 %v2798
    %v2820 = vunpack.c.l.b16 %v2799
    %v2821 = vunpack.c.l.b16 %v2800
    %v2822 = vunpack.c.l.b16 %v2801
    %v2823 = vunpack.c.l.b16 %v2802
    %v2824 = vunpack.c.l.b16 %v2803
    %v2825 = vunpack.c.l.b16 %v2804
    %v2826 = vunpack.c.l.b16 %v2805
    %v2827 = vpack.c.b16 %v2820, %v2819
    %v2828 = vpack.c.b16 %v2822, %v2821
    %v2829 = vpack.c.b16 %v2824, %v2823
    %v2830 = vpack.c.b16 %v2826, %v2825
    %v2836 = vsel %vm1474, %v2796, 0
    %2838 = vmatpush.bf16.msra.mxu0 0
    %2839 = vmatpush.bf16.msra.mxu0 0
    %2840 = vmatpush.bf16.msra.mxu0 0
    %2841 = vmatpush.bf16.msra.mxu0 0
    %2842 = vmatpush.bf16.msra.mxu0 %v2830
    %2843 = vmatpush.bf16.msra.mxu0 %v2829
    %2844 = vmatpush.bf16.msra.mxu0 %v2828
    %2845 = vmatpush.bf16.msra.mxu0 %v2827
    %2846 = vmatmul.bf16.gmra.mxu0 %v2836
    %v2847 = vpop.f32.mrf.mxu0
    %v2848 = vadd.f32 %v2809, %v2847
    %v2849 = vpop.f32.mrf.mxu0
    %v2850 = vadd.f32 %v2809, %v2849
    %2851 = vdwg.mxu0
    %v2852 = vadd.f32 %v2752, %v2848
    %v2853 = vadd.f32 %v2753, %v2850
    %s2854 = scalar_lea.vmem %s12, 1
    %v2855 = vld [vmem:[%s2854] sm:$0x1]
    %s2856 = scalar_lea.vmem %s13, 1
    %v2857 = vld [vmem:[%s2856] sm:$0x1]
    %v2858 = vsel %vm210, %v2852, 0.0
    %2859 = vadd.xlane.f32.xlu0 %v2858
    %v2860 = vpop.xlane.xlu0 %2859
    %v2861 = vsel %vm210, %v2853, 0.0
    %2862 = vadd.xlane.f32.xlu0 %v2861
    %v2863 = vpop.xlane.xlu0 %2862
    %v2864 = vmul.f32 %v2860, %v1348
    %v2865 = vmul.f32 %v2863, %v1348
    %v2866 = vsub.f32 %v2852, %v2864
    %v2867 = vsub.f32 %v2853, %v2865
    %v2868 = vmul.f32 %v2866, %v2866
    %v2869 = vmul.f32 %v2867, %v2867
    %v2870 = vsel %vm210, %v2868, 0.0
    %2871 = vadd.xlane.f32.xlu0 %v2870
    %v2872 = vpop.xlane.xlu0 %2871
    %v2873 = vsel %vm210, %v2869, 0.0
    %2874 = vadd.xlane.f32.xlu0 %v2873
    %v2875 = vpop.xlane.xlu0 %2874
    %v2876 = vmul.f32 %v2872, %v1348
    %v2877 = vmul.f32 %v2875, %v1348
    %v2878 = vadd.f32 %v2876, 1e-05
    %v2879 = vadd.f32 %v2877, 1e-05
    %v2880 = vrsqrt.pop %v2878
    %v2881 = vmul.f32 %v2880, %v2878
    %v2882 = vmul.f32 %v2881, %v2880
    %v2883 = vmul.f32 0.5, %v2882
    %v2884 = vsub.f32 1.5, %v2883
    %v2885 = vmul.f32 %v2880, %v2884
    %vm2886 = vweird.f32 %v2878
    %vm2887 = vweird.f32 %v2880
    %vm2888 = vmor %vm2886, %vm2887
    %v2889 = vsel %vm2888, %v2880, %v2885
    %v2890 = vrsqrt.pop %v2879
    %v2891 = vmul.f32 %v2890, %v2879
    %v2892 = vmul.f32 %v2891, %v2890
    %v2893 = vmul.f32 0.5, %v2892
    %v2894 = vsub.f32 1.5, %v2893
    %v2895 = vmul.f32 %v2890, %v2894
    %vm2896 = vweird.f32 %v2879
    %vm2897 = vweird.f32 %v2890
    %vm2898 = vmor %vm2896, %vm2897
    %v2899 = vsel %vm2898, %v2890, %v2895
    %v2900 = vmul.f32 %v2866, %v2889
    %v2901 = vmul.f32 %v2867, %v2899
    %v2903 = vperm.slane %v2855, 0
    %v2905 = vmul.f32 %v2900, %v2903
    %v2906 = vmul.f32 %v2901, %v2903
    %v2908 = vperm.slane %v2857, 0
    %v2910 = vadd.f32 %v2905, %v2908
    %v2911 = vadd.f32 %v2906, %v2908
    %v2912 = vpack.c.bf16 %v2911, %v2910
    %s2913 = scalar_lea.vmem %s2, 32
    %v2914 = vld [vmem:[%s2913] sm:$0xf]
    %v2915 = vld [vmem:[%s2913 + $0x4] sm:$0xf]
    %v2916 = vld [vmem:[%s2913 + $0x8] sm:$0xf]
    %v2917 = vld [vmem:[%s2913 + $0xc] sm:$0xf]
    %s2918 = scalar_lea.vmem %s3, 2
    %v2919 = vld [vmem:[%s2918] sm:$0x1]
    %v2921 = vperm.slane %v2919, 0
    %v2927 = vunpack.c.l.b16 %v2914
    %v2928 = vunpack.c.l.b16 %v2915
    %v2929 = vunpack.c.l.b16 %v2916
    %v2930 = vunpack.c.l.b16 %v2917
    %v2931 = vpack.c.b16 %v2928, %v2927
    %v2932 = vpack.c.b16 %v2930, %v2929
    %v2936 = vsel %vm210, %v2912, 0
    %2938 = vmatpush.bf16.msra.mxu0 0
    %2939 = vmatpush.bf16.msra.mxu0 0
    %2940 = vmatpush.bf16.msra.mxu0 0
    %2941 = vmatpush.bf16.msra.mxu0 0
    %2942 = vmatpush.bf16.msra.mxu0 0
    %2943 = vmatpush.bf16.msra.mxu0 0
    %2944 = vmatpush.bf16.msra.mxu0 %v2932
    %2945 = vmatpush.bf16.msra.mxu0 %v2931
    %2946 = vmatmul.bf16.gmra.mxu0 %v2936
    %v2947 = vpop.f32.mrf.mxu0
    %v2948 = vadd.f32 %v2921, %v2947
    %v2949 = vpop.f32.mrf.mxu0
    %v2950 = vadd.f32 %v2921, %v2949
    %2951 = vdwg.mxu0
    %s2952 = scalar_lea.vmem %s4, 64
    %v2953 = vld [vmem:[%s2952] sm:$0xff]
    %v2954 = vld [vmem:[%s2952 + $0x8] sm:$0xff]
    %v2955 = vld [vmem:[%s2952 + $0x10] sm:$0xff]
    %v2956 = vld [vmem:[%s2952 + $0x18] sm:$0xff]
    %v2961 = vunpack.c.l.b16 %v2953
    %v2962 = vunpack.c.h.b16 %v2953
    %v2963 = vunpack.c.l.b16 %v2954
    %v2964 = vunpack.c.h.b16 %v2954
    %v2965 = vunpack.c.l.b16 %v2955
    %v2966 = vunpack.c.h.b16 %v2955
    %v2967 = vunpack.c.l.b16 %v2956
    %v2968 = vunpack.c.h.b16 %v2956
    %v2969 = vpack.c.b16 %v2963, %v2961
    %v2970 = vpack.c.b16 %v2964, %v2962
    %v2971 = vpack.c.b16 %v2967, %v2965
    %v2972 = vpack.c.b16 %v2968, %v2966
    %2977 = vmatpush.bf16.msra.mxu0 0
    %2978 = vmatpush.bf16.msra.mxu0 0
    %2979 = vmatpush.bf16.msra.mxu0 0
    %2980 = vmatpush.bf16.msra.mxu0 0
    %2981 = vmatpush.bf16.msra.mxu0 0
    %2982 = vmatpush.bf16.msra.mxu0 0
    %2983 = vmatpush.bf16.msra.mxu0 %v2971
    %2984 = vmatpush.bf16.msra.mxu0 %v2969
    %2985 = vmatmul.bf16.gmra.mxu0 %v2936
    %v2986 = vpop.f32.mrf.mxu0
    %v2987 = vadd.f32 0.0, %v2986
    %v2988 = vpop.f32.mrf.mxu0
    %v2989 = vadd.f32 0.0, %v2988
    %2990 = vdwg.mxu0
    %2991 = vmatpush.bf16.msra.mxu0 0
    %2992 = vmatpush.bf16.msra.mxu0 0
    %2993 = vmatpush.bf16.msra.mxu0 0
    %2994 = vmatpush.bf16.msra.mxu0 0
    %2995 = vmatpush.bf16.msra.mxu0 0
    %2996 = vmatpush.bf16.msra.mxu0 0
    %2997 = vmatpush.bf16.msra.mxu0 %v2972
    %2998 = vmatpush.bf16.msra.mxu0 %v2970
    %2999 = vmatmul.bf16.gmra.mxu0 %v2936
    %v3000 = vpop.f32.mrf.mxu0
    %v3001 = vadd.f32 0.0, %v3000
    %v3002 = vpop.f32.mrf.mxu0
    %v3003 = vadd.f32 0.0, %v3002
    %3004 = vdwg.mxu0
    %3006 = vrot.lane.b32.xlu0 %v2948, 96
    %v3007 = vpop.permute.xlu0 %3006
    %v3008 = vsel %vm283, %v2948, 0
    %v3010 = vsel %vm283, %v3007, 0
    %3012 = vmatpush.xpose.msra.mxu0 0.0
    %3013 = vmatpush.xpose.msra.mxu0 0.0
    %3014 = vmatpush.xpose.msra.mxu0 0.0
    %3015 = vmatpush.xpose.msra.mxu0 0.0
    %3016 = vmatpush.xpose.msra.mxu0 0.0
    %3017 = vmatpush.xpose.msra.mxu0 0.0
    %3018 = vmatpush.xpose.msra.mxu0 0.0
    %3019 = vmatpush.xpose.msra.mxu0 0.0
    %3020 = vmatpush.xpose.msra.mxu0 0.0
    %3021 = vmatpush.xpose.msra.mxu0 0.0
    %3022 = vmatpush.xpose.msra.mxu0 0.0
    %3023 = vmatpush.xpose.msra.mxu0 0.0
    %3024 = vmatpush.xpose.msra.mxu0 0.0
    %3025 = vmatpush.xpose.msra.mxu0 0.0
    %3026 = vmatpush.xpose.msra.mxu0 0.0
    %3027 = vmatpush.xpose.msra.mxu0 %v3010
    %3028 = vmatmul.f32.gmra.mxu0 %v3008
    %v3029 = vpop.f32.mrf.mxu0
    %v3030 = vadd.f32 0.0, %v3029
    %3031 = vdwg.mxu0
    %3033 = vrot.lane.b32.xlu0 %v2950, 96
    %v3034 = vpop.permute.xlu0 %3033
    %v3035 = vsel %vm283, %v2950, 0
    %v3037 = vsel %vm283, %v3034, 0
    %3039 = vmatpush.xpose.msra.mxu0 0.0
    %3040 = vmatpush.xpose.msra.mxu0 0.0
    %3041 = vmatpush.xpose.msra.mxu0 0.0
    %3042 = vmatpush.xpose.msra.mxu0 0.0
    %3043 = vmatpush.xpose.msra.mxu0 0.0
    %3044 = vmatpush.xpose.msra.mxu0 0.0
    %3045 = vmatpush.xpose.msra.mxu0 0.0
    %3046 = vmatpush.xpose.msra.mxu0 0.0
    %3047 = vmatpush.xpose.msra.mxu0 0.0
    %3048 = vmatpush.xpose.msra.mxu0 0.0
    %3049 = vmatpush.xpose.msra.mxu0 0.0
    %3050 = vmatpush.xpose.msra.mxu0 0.0
    %3051 = vmatpush.xpose.msra.mxu0 0.0
    %3052 = vmatpush.xpose.msra.mxu0 0.0
    %3053 = vmatpush.xpose.msra.mxu0 0.0
    %3054 = vmatpush.xpose.msra.mxu0 %v3037
    %3055 = vmatmul.f32.gmra.mxu0 %v3035
    %v3056 = vpop.f32.mrf.mxu0
    %v3057 = vadd.f32 0.0, %v3056
    %3058 = vdwg.mxu0
    %v3059 = vsel %vm335, %v3030, -inf
    %3060 = vmax.xlane.f32.xlu0 %v3059
    %v3061 = vpop.xlane.xlu0 %3060
    %v3062 = vsel %vm335, %v3057, -inf
    %3063 = vmax.xlane.f32.xlu0 %v3062
    %v3064 = vpop.xlane.xlu0 %3063
    %v3065 = vsub.f32 %v3030, %v3061
    %v3066 = vsub.f32 %v3057, %v3064
    %v3067 = vmul.f32 %v3065, 1.442695
    %v3068 = vpow.pop %v3067
    %v3069 = vmul.f32 %v3066, 1.442695
    %v3070 = vpow.pop %v3069
    %v3071 = vsel %vm335, %v3068, 0.0
    %3072 = vadd.xlane.f32.xlu0 %v3071
    %v3073 = vpop.xlane.xlu0 %3072
    %v3074 = vsel %vm335, %v3070, 0.0
    %3075 = vadd.xlane.f32.xlu0 %v3074
    %v3076 = vpop.xlane.xlu0 %3075
    %v3077 = vrcp.pop %v3073
    %v3078 = vrcp.pop %v3076
    %v3079 = vmul.f32 %v3068, %v3077
    %v3080 = vmul.f32 %v3070, %v3078
    %v3082 = vsel %vm335, %v3079, 0
    %3084 = vmatpush.msra.mxu0 0.0
    %3085 = vmatpush.msra.mxu0 0.0
    %3086 = vmatpush.msra.mxu0 0.0
    %3087 = vmatpush.msra.mxu0 0.0
    %3088 = vmatpush.msra.mxu0 0.0
    %3089 = vmatpush.msra.mxu0 0.0
    %3090 = vmatpush.msra.mxu0 0.0
    %3091 = vmatpush.msra.mxu0 0.0
    %3092 = vmatpush.msra.mxu0 0.0
    %3093 = vmatpush.msra.mxu0 0.0
    %3094 = vmatpush.msra.mxu0 0.0
    %3095 = vmatpush.msra.mxu0 0.0
    %3096 = vmatpush.msra.mxu0 0.0
    %3097 = vmatpush.msra.mxu0 0.0
    %3098 = vmatpush.msra.mxu0 0.0
    %3099 = vmatpush.msra.mxu0 %v2987
    %3100 = vmatmul.f32.gmra.mxu0 %v3082
    %v3101 = vpop.f32.mrf.mxu0
    %v3102 = vadd.f32 0.0, %v3101
    %3103 = vdwg.mxu0
    %v3105 = vsel %vm335, %v3080, 0
    %3107 = vmatpush.msra.mxu0 0.0
    %3108 = vmatpush.msra.mxu0 0.0
    %3109 = vmatpush.msra.mxu0 0.0
    %3110 = vmatpush.msra.mxu0 0.0
    %3111 = vmatpush.msra.mxu0 0.0
    %3112 = vmatpush.msra.mxu0 0.0
    %3113 = vmatpush.msra.mxu0 0.0
    %3114 = vmatpush.msra.mxu0 0.0
    %3115 = vmatpush.msra.mxu0 0.0
    %3116 = vmatpush.msra.mxu0 0.0
    %3117 = vmatpush.msra.mxu0 0.0
    %3118 = vmatpush.msra.mxu0 0.0
    %3119 = vmatpush.msra.mxu0 0.0
    %3120 = vmatpush.msra.mxu0 0.0
    %3121 = vmatpush.msra.mxu0 0.0
    %3122 = vmatpush.msra.mxu0 %v2989
    %3123 = vmatmul.f32.gmra.mxu0 %v3105
    %v3124 = vpop.f32.mrf.mxu0
    %v3125 = vadd.f32 0.0, %v3124
    %3126 = vdwg.mxu0
    %3127 = vrot.lane.b32.xlu0 %v2948, 124
    %v3128 = vpop.permute.xlu0 %3127
    %3129 = vrot.lane.b32.xlu0 %v2948, 92
    %v3130 = vpop.permute.xlu0 %3129
    %v3131 = vsel %vm283, %v3128, 0
    %v3133 = vsel %vm283, %v3130, 0
    %3135 = vmatpush.xpose.msra.mxu0 0.0
    %3136 = vmatpush.xpose.msra.mxu0 0.0
    %3137 = vmatpush.xpose.msra.mxu0 0.0
    %3138 = vmatpush.xpose.msra.mxu0 0.0
    %3139 = vmatpush.xpose.msra.mxu0 0.0
    %3140 = vmatpush.xpose.msra.mxu0 0.0
    %3141 = vmatpush.xpose.msra.mxu0 0.0
    %3142 = vmatpush.xpose.msra.mxu0 0.0
    %3143 = vmatpush.xpose.msra.mxu0 0.0
    %3144 = vmatpush.xpose.msra.mxu0 0.0
    %3145 = vmatpush.xpose.msra.mxu0 0.0
    %3146 = vmatpush.xpose.msra.mxu0 0.0
    %3147 = vmatpush.xpose.msra.mxu0 0.0
    %3148 = vmatpush.xpose.msra.mxu0 0.0
    %3149 = vmatpush.xpose.msra.mxu0 0.0
    %3150 = vmatpush.xpose.msra.mxu0 %v3133
    %3151 = vmatmul.f32.gmra.mxu0 %v3131
    %v3152 = vpop.f32.mrf.mxu0
    %v3153 = vadd.f32 0.0, %v3152
    %3154 = vdwg.mxu0
    %3155 = vrot.lane.b32.xlu0 %v2950, 124
    %v3156 = vpop.permute.xlu0 %3155
    %3157 = vrot.lane.b32.xlu0 %v2950, 92
    %v3158 = vpop.permute.xlu0 %3157
    %v3159 = vsel %vm283, %v3156, 0
    %v3161 = vsel %vm283, %v3158, 0
    %3163 = vmatpush.xpose.msra.mxu0 0.0
    %3164 = vmatpush.xpose.msra.mxu0 0.0
    %3165 = vmatpush.xpose.msra.mxu0 0.0
    %3166 = vmatpush.xpose.msra.mxu0 0.0
    %3167 = vmatpush.xpose.msra.mxu0 0.0
    %3168 = vmatpush.xpose.msra.mxu0 0.0
    %3169 = vmatpush.xpose.msra.mxu0 0.0
    %3170 = vmatpush.xpose.msra.mxu0 0.0
    %3171 = vmatpush.xpose.msra.mxu0 0.0
    %3172 = vmatpush.xpose.msra.mxu0 0.0
    %3173 = vmatpush.xpose.msra.mxu0 0.0
    %3174 = vmatpush.xpose.msra.mxu0 0.0
    %3175 = vmatpush.xpose.msra.mxu0 0.0
    %3176 = vmatpush.xpose.msra.mxu0 0.0
    %3177 = vmatpush.xpose.msra.mxu0 0.0
    %3178 = vmatpush.xpose.msra.mxu0 %v3161
    %3179 = vmatmul.f32.gmra.mxu0 %v3159
    %v3180 = vpop.f32.mrf.mxu0
    %v3181 = vadd.f32 0.0, %v3180
    %3182 = vdwg.mxu0
    %v3183 = vsel %vm335, %v3153, -inf
    %3184 = vmax.xlane.f32.xlu0 %v3183
    %v3185 = vpop.xlane.xlu0 %3184
    %v3186 = vsel %vm335, %v3181, -inf
    %3187 = vmax.xlane.f32.xlu0 %v3186
    %v3188 = vpop.xlane.xlu0 %3187
    %v3189 = vsub.f32 %v3153, %v3185
    %v3190 = vsub.f32 %v3181, %v3188
    %v3191 = vmul.f32 %v3189, 1.442695
    %v3192 = vpow.pop %v3191
    %v3193 = vmul.f32 %v3190, 1.442695
    %v3194 = vpow.pop %v3193
    %v3195 = vsel %vm335, %v3192, 0.0
    %3196 = vadd.xlane.f32.xlu0 %v3195
    %v3197 = vpop.xlane.xlu0 %3196
    %v3198 = vsel %vm335, %v3194, 0.0
    %3199 = vadd.xlane.f32.xlu0 %v3198
    %v3200 = vpop.xlane.xlu0 %3199
    %v3201 = vrcp.pop %v3197
    %v3202 = vrcp.pop %v3200
    %v3203 = vmul.f32 %v3192, %v3201
    %v3204 = vmul.f32 %v3194, %v3202
    %3206 = vrot.lane.b32.xlu0 %v2987, 96
    %v3207 = vpop.permute.xlu0 %3206
    %v3210 = vsel %vm335, %v3203, 0
    %3212 = vmatpush.msra.mxu0 0.0
    %3213 = vmatpush.msra.mxu0 0.0
    %3214 = vmatpush.msra.mxu0 0.0
    %3215 = vmatpush.msra.mxu0 0.0
    %3216 = vmatpush.msra.mxu0 0.0
    %3217 = vmatpush.msra.mxu0 0.0
    %3218 = vmatpush.msra.mxu0 0.0
    %3219 = vmatpush.msra.mxu0 0.0
    %3220 = vmatpush.msra.mxu0 0.0
    %3221 = vmatpush.msra.mxu0 0.0
    %3222 = vmatpush.msra.mxu0 0.0
    %3223 = vmatpush.msra.mxu0 0.0
    %3224 = vmatpush.msra.mxu0 0.0
    %3225 = vmatpush.msra.mxu0 0.0
    %3226 = vmatpush.msra.mxu0 0.0
    %3227 = vmatpush.msra.mxu0 %v3207
    %3228 = vmatmul.f32.gmra.mxu0 %v3210
    %v3229 = vpop.f32.mrf.mxu0
    %v3230 = vadd.f32 0.0, %v3229
    %3231 = vdwg.mxu0
    %3233 = vrot.lane.b32.xlu0 %v2989, 96
    %v3234 = vpop.permute.xlu0 %3233
    %v3237 = vsel %vm335, %v3204, 0
    %3239 = vmatpush.msra.mxu0 0.0
    %3240 = vmatpush.msra.mxu0 0.0
    %3241 = vmatpush.msra.mxu0 0.0
    %3242 = vmatpush.msra.mxu0 0.0
    %3243 = vmatpush.msra.mxu0 0.0
    %3244 = vmatpush.msra.mxu0 0.0
    %3245 = vmatpush.msra.mxu0 0.0
    %3246 = vmatpush.msra.mxu0 0.0
    %3247 = vmatpush.msra.mxu0 0.0
    %3248 = vmatpush.msra.mxu0 0.0
    %3249 = vmatpush.msra.mxu0 0.0
    %3250 = vmatpush.msra.mxu0 0.0
    %3251 = vmatpush.msra.mxu0 0.0
    %3252 = vmatpush.msra.mxu0 0.0
    %3253 = vmatpush.msra.mxu0 0.0
    %3254 = vmatpush.msra.mxu0 %v3234
    %3255 = vmatmul.f32.gmra.mxu0 %v3237
    %v3256 = vpop.f32.mrf.mxu0
    %v3257 = vadd.f32 0.0, %v3256
    %3258 = vdwg.mxu0
    %v3259 = vadd.f32 %v3102, %v3230
    %v3260 = vadd.f32 %v3125, %v3257
    %3261 = vrot.lane.b32.xlu0 %v2948, 120
    %v3262 = vpop.permute.xlu0 %3261
    %3263 = vrot.lane.b32.xlu0 %v2948, 88
    %v3264 = vpop.permute.xlu0 %3263
    %v3265 = vsel %vm283, %v3262, 0
    %v3267 = vsel %vm283, %v3264, 0
    %3269 = vmatpush.xpose.msra.mxu0 0.0
    %3270 = vmatpush.xpose.msra.mxu0 0.0
    %3271 = vmatpush.xpose.msra.mxu0 0.0
    %3272 = vmatpush.xpose.msra.mxu0 0.0
    %3273 = vmatpush.xpose.msra.mxu0 0.0
    %3274 = vmatpush.xpose.msra.mxu0 0.0
    %3275 = vmatpush.xpose.msra.mxu0 0.0
    %3276 = vmatpush.xpose.msra.mxu0 0.0
    %3277 = vmatpush.xpose.msra.mxu0 0.0
    %3278 = vmatpush.xpose.msra.mxu0 0.0
    %3279 = vmatpush.xpose.msra.mxu0 0.0
    %3280 = vmatpush.xpose.msra.mxu0 0.0
    %3281 = vmatpush.xpose.msra.mxu0 0.0
    %3282 = vmatpush.xpose.msra.mxu0 0.0
    %3283 = vmatpush.xpose.msra.mxu0 0.0
    %3284 = vmatpush.xpose.msra.mxu0 %v3267
    %3285 = vmatmul.f32.gmra.mxu0 %v3265
    %v3286 = vpop.f32.mrf.mxu0
    %v3287 = vadd.f32 0.0, %v3286
    %3288 = vdwg.mxu0
    %3289 = vrot.lane.b32.xlu0 %v2950, 120
    %v3290 = vpop.permute.xlu0 %3289
    %3291 = vrot.lane.b32.xlu0 %v2950, 88
    %v3292 = vpop.permute.xlu0 %3291
    %v3293 = vsel %vm283, %v3290, 0
    %v3295 = vsel %vm283, %v3292, 0
    %3297 = vmatpush.xpose.msra.mxu0 0.0
    %3298 = vmatpush.xpose.msra.mxu0 0.0
    %3299 = vmatpush.xpose.msra.mxu0 0.0
    %3300 = vmatpush.xpose.msra.mxu0 0.0
    %3301 = vmatpush.xpose.msra.mxu0 0.0
    %3302 = vmatpush.xpose.msra.mxu0 0.0
    %3303 = vmatpush.xpose.msra.mxu0 0.0
    %3304 = vmatpush.xpose.msra.mxu0 0.0
    %3305 = vmatpush.xpose.msra.mxu0 0.0
    %3306 = vmatpush.xpose.msra.mxu0 0.0
    %3307 = vmatpush.xpose.msra.mxu0 0.0
    %3308 = vmatpush.xpose.msra.mxu0 0.0
    %3309 = vmatpush.xpose.msra.mxu0 0.0
    %3310 = vmatpush.xpose.msra.mxu0 0.0
    %3311 = vmatpush.xpose.msra.mxu0 0.0
    %3312 = vmatpush.xpose.msra.mxu0 %v3295
    %3313 = vmatmul.f32.gmra.mxu0 %v3293
    %v3314 = vpop.f32.mrf.mxu0
    %v3315 = vadd.f32 0.0, %v3314
    %3316 = vdwg.mxu0
    %v3317 = vsel %vm335, %v3287, -inf
    %3318 = vmax.xlane.f32.xlu0 %v3317
    %v3319 = vpop.xlane.xlu0 %3318
    %v3320 = vsel %vm335, %v3315, -inf
    %3321 = vmax.xlane.f32.xlu0 %v3320
    %v3322 = vpop.xlane.xlu0 %3321
    %v3323 = vsub.f32 %v3287, %v3319
    %v3324 = vsub.f32 %v3315, %v3322
    %v3325 = vmul.f32 %v3323, 1.442695
    %v3326 = vpow.pop %v3325
    %v3327 = vmul.f32 %v3324, 1.442695
    %v3328 = vpow.pop %v3327
    %v3329 = vsel %vm335, %v3326, 0.0
    %3330 = vadd.xlane.f32.xlu0 %v3329
    %v3331 = vpop.xlane.xlu0 %3330
    %v3332 = vsel %vm335, %v3328, 0.0
    %3333 = vadd.xlane.f32.xlu0 %v3332
    %v3334 = vpop.xlane.xlu0 %3333
    %v3335 = vrcp.pop %v3331
    %v3336 = vrcp.pop %v3334
    %v3337 = vmul.f32 %v3326, %v3335
    %v3338 = vmul.f32 %v3328, %v3336
    %3339 = vrot.lane.b32.xlu0 %v2987, 64
    %v3340 = vpop.permute.xlu0 %3339
    %v3343 = vsel %vm335, %v3337, 0
    %3345 = vmatpush.msra.mxu0 0.0
    %3346 = vmatpush.msra.mxu0 0.0
    %3347 = vmatpush.msra.mxu0 0.0
    %3348 = vmatpush.msra.mxu0 0.0
    %3349 = vmatpush.msra.mxu0 0.0
    %3350 = vmatpush.msra.mxu0 0.0
    %3351 = vmatpush.msra.mxu0 0.0
    %3352 = vmatpush.msra.mxu0 0.0
    %3353 = vmatpush.msra.mxu0 0.0
    %3354 = vmatpush.msra.mxu0 0.0
    %3355 = vmatpush.msra.mxu0 0.0
    %3356 = vmatpush.msra.mxu0 0.0
    %3357 = vmatpush.msra.mxu0 0.0
    %3358 = vmatpush.msra.mxu0 0.0
    %3359 = vmatpush.msra.mxu0 0.0
    %3360 = vmatpush.msra.mxu0 %v3340
    %3361 = vmatmul.f32.gmra.mxu0 %v3343
    %v3362 = vpop.f32.mrf.mxu0
    %v3363 = vadd.f32 0.0, %v3362
    %3364 = vdwg.mxu0
    %3365 = vrot.lane.b32.xlu0 %v2989, 64
    %v3366 = vpop.permute.xlu0 %3365
    %v3369 = vsel %vm335, %v3338, 0
    %3371 = vmatpush.msra.mxu0 0.0
    %3372 = vmatpush.msra.mxu0 0.0
    %3373 = vmatpush.msra.mxu0 0.0
    %3374 = vmatpush.msra.mxu0 0.0
    %3375 = vmatpush.msra.mxu0 0.0
    %3376 = vmatpush.msra.mxu0 0.0
    %3377 = vmatpush.msra.mxu0 0.0
    %3378 = vmatpush.msra.mxu0 0.0
    %3379 = vmatpush.msra.mxu0 0.0
    %3380 = vmatpush.msra.mxu0 0.0
    %3381 = vmatpush.msra.mxu0 0.0
    %3382 = vmatpush.msra.mxu0 0.0
    %3383 = vmatpush.msra.mxu0 0.0
    %3384 = vmatpush.msra.mxu0 0.0
    %3385 = vmatpush.msra.mxu0 0.0
    %3386 = vmatpush.msra.mxu0 %v3366
    %3387 = vmatmul.f32.gmra.mxu0 %v3369
    %v3388 = vpop.f32.mrf.mxu0
    %v3389 = vadd.f32 0.0, %v3388
    %3390 = vdwg.mxu0
    %v3391 = vadd.f32 %v3259, %v3363
    %v3392 = vadd.f32 %v3260, %v3389
    %3393 = vrot.lane.b32.xlu0 %v2948, 116
    %v3394 = vpop.permute.xlu0 %3393
    %3395 = vrot.lane.b32.xlu0 %v2948, 84
    %v3396 = vpop.permute.xlu0 %3395
    %v3397 = vsel %vm283, %v3394, 0
    %v3399 = vsel %vm283, %v3396, 0
    %3401 = vmatpush.xpose.msra.mxu0 0.0
    %3402 = vmatpush.xpose.msra.mxu0 0.0
    %3403 = vmatpush.xpose.msra.mxu0 0.0
    %3404 = vmatpush.xpose.msra.mxu0 0.0
    %3405 = vmatpush.xpose.msra.mxu0 0.0
    %3406 = vmatpush.xpose.msra.mxu0 0.0
    %3407 = vmatpush.xpose.msra.mxu0 0.0
    %3408 = vmatpush.xpose.msra.mxu0 0.0
    %3409 = vmatpush.xpose.msra.mxu0 0.0
    %3410 = vmatpush.xpose.msra.mxu0 0.0
    %3411 = vmatpush.xpose.msra.mxu0 0.0
    %3412 = vmatpush.xpose.msra.mxu0 0.0
    %3413 = vmatpush.xpose.msra.mxu0 0.0
    %3414 = vmatpush.xpose.msra.mxu0 0.0
    %3415 = vmatpush.xpose.msra.mxu0 0.0
    %3416 = vmatpush.xpose.msra.mxu0 %v3399
    %3417 = vmatmul.f32.gmra.mxu0 %v3397
    %v3418 = vpop.f32.mrf.mxu0
    %v3419 = vadd.f32 0.0, %v3418
    %3420 = vdwg.mxu0
    %3421 = vrot.lane.b32.xlu0 %v2950, 116
    %v3422 = vpop.permute.xlu0 %3421
    %3423 = vrot.lane.b32.xlu0 %v2950, 84
    %v3424 = vpop.permute.xlu0 %3423
    %v3425 = vsel %vm283, %v3422, 0
    %v3427 = vsel %vm283, %v3424, 0
    %3429 = vmatpush.xpose.msra.mxu0 0.0
    %3430 = vmatpush.xpose.msra.mxu0 0.0
    %3431 = vmatpush.xpose.msra.mxu0 0.0
    %3432 = vmatpush.xpose.msra.mxu0 0.0
    %3433 = vmatpush.xpose.msra.mxu0 0.0
    %3434 = vmatpush.xpose.msra.mxu0 0.0
    %3435 = vmatpush.xpose.msra.mxu0 0.0
    %3436 = vmatpush.xpose.msra.mxu0 0.0
    %3437 = vmatpush.xpose.msra.mxu0 0.0
    %3438 = vmatpush.xpose.msra.mxu0 0.0
    %3439 = vmatpush.xpose.msra.mxu0 0.0
    %3440 = vmatpush.xpose.msra.mxu0 0.0
    %3441 = vmatpush.xpose.msra.mxu0 0.0
    %3442 = vmatpush.xpose.msra.mxu0 0.0
    %3443 = vmatpush.xpose.msra.mxu0 0.0
    %3444 = vmatpush.xpose.msra.mxu0 %v3427
    %3445 = vmatmul.f32.gmra.mxu0 %v3425
    %v3446 = vpop.f32.mrf.mxu0
    %v3447 = vadd.f32 0.0, %v3446
    %3448 = vdwg.mxu0
    %v3449 = vsel %vm335, %v3419, -inf
    %3450 = vmax.xlane.f32.xlu0 %v3449
    %v3451 = vpop.xlane.xlu0 %3450
    %v3452 = vsel %vm335, %v3447, -inf
    %3453 = vmax.xlane.f32.xlu0 %v3452
    %v3454 = vpop.xlane.xlu0 %3453
    %v3455 = vsub.f32 %v3419, %v3451
    %v3456 = vsub.f32 %v3447, %v3454
    %v3457 = vmul.f32 %v3455, 1.442695
    %v3458 = vpow.pop %v3457
    %v3459 = vmul.f32 %v3456, 1.442695
    %v3460 = vpow.pop %v3459
    %v3461 = vsel %vm335, %v3458, 0.0
    %3462 = vadd.xlane.f32.xlu0 %v3461
    %v3463 = vpop.xlane.xlu0 %3462
    %v3464 = vsel %vm335, %v3460, 0.0
    %3465 = vadd.xlane.f32.xlu0 %v3464
    %v3466 = vpop.xlane.xlu0 %3465
    %v3467 = vrcp.pop %v3463
    %v3468 = vrcp.pop %v3466
    %v3469 = vmul.f32 %v3458, %v3467
    %v3470 = vmul.f32 %v3460, %v3468
    %3471 = vrot.lane.b32.xlu0 %v2987, 32
    %v3472 = vpop.permute.xlu0 %3471
    %v3475 = vsel %vm335, %v3469, 0
    %3477 = vmatpush.msra.mxu0 0.0
    %3478 = vmatpush.msra.mxu0 0.0
    %3479 = vmatpush.msra.mxu0 0.0
    %3480 = vmatpush.msra.mxu0 0.0
    %3481 = vmatpush.msra.mxu0 0.0
    %3482 = vmatpush.msra.mxu0 0.0
    %3483 = vmatpush.msra.mxu0 0.0
    %3484 = vmatpush.msra.mxu0 0.0
    %3485 = vmatpush.msra.mxu0 0.0
    %3486 = vmatpush.msra.mxu0 0.0
    %3487 = vmatpush.msra.mxu0 0.0
    %3488 = vmatpush.msra.mxu0 0.0
    %3489 = vmatpush.msra.mxu0 0.0
    %3490 = vmatpush.msra.mxu0 0.0
    %3491 = vmatpush.msra.mxu0 0.0
    %3492 = vmatpush.msra.mxu0 %v3472
    %3493 = vmatmul.f32.gmra.mxu0 %v3475
    %v3494 = vpop.f32.mrf.mxu0
    %v3495 = vadd.f32 0.0, %v3494
    %3496 = vdwg.mxu0
    %3497 = vrot.lane.b32.xlu0 %v2989, 32
    %v3498 = vpop.permute.xlu0 %3497
    %v3501 = vsel %vm335, %v3470, 0
    %3503 = vmatpush.msra.mxu0 0.0
    %3504 = vmatpush.msra.mxu0 0.0
    %3505 = vmatpush.msra.mxu0 0.0
    %3506 = vmatpush.msra.mxu0 0.0
    %3507 = vmatpush.msra.mxu0 0.0
    %3508 = vmatpush.msra.mxu0 0.0
    %3509 = vmatpush.msra.mxu0 0.0
    %3510 = vmatpush.msra.mxu0 0.0
    %3511 = vmatpush.msra.mxu0 0.0
    %3512 = vmatpush.msra.mxu0 0.0
    %3513 = vmatpush.msra.mxu0 0.0
    %3514 = vmatpush.msra.mxu0 0.0
    %3515 = vmatpush.msra.mxu0 0.0
    %3516 = vmatpush.msra.mxu0 0.0
    %3517 = vmatpush.msra.mxu0 0.0
    %3518 = vmatpush.msra.mxu0 %v3498
    %3519 = vmatmul.f32.gmra.mxu0 %v3501
    %v3520 = vpop.f32.mrf.mxu0
    %v3521 = vadd.f32 0.0, %v3520
    %3522 = vdwg.mxu0
    %v3523 = vadd.f32 %v3391, %v3495
    %v3524 = vadd.f32 %v3392, %v3521
    %3525 = vrot.lane.b32.xlu0 %v2948, 112
    %v3526 = vpop.permute.xlu0 %3525
    %3527 = vrot.lane.b32.xlu0 %v2948, 80
    %v3528 = vpop.permute.xlu0 %3527
    %v3529 = vsel %vm283, %v3526, 0
    %v3531 = vsel %vm283, %v3528, 0
    %3533 = vmatpush.xpose.msra.mxu0 0.0
    %3534 = vmatpush.xpose.msra.mxu0 0.0
    %3535 = vmatpush.xpose.msra.mxu0 0.0
    %3536 = vmatpush.xpose.msra.mxu0 0.0
    %3537 = vmatpush.xpose.msra.mxu0 0.0
    %3538 = vmatpush.xpose.msra.mxu0 0.0
    %3539 = vmatpush.xpose.msra.mxu0 0.0
    %3540 = vmatpush.xpose.msra.mxu0 0.0
    %3541 = vmatpush.xpose.msra.mxu0 0.0
    %3542 = vmatpush.xpose.msra.mxu0 0.0
    %3543 = vmatpush.xpose.msra.mxu0 0.0
    %3544 = vmatpush.xpose.msra.mxu0 0.0
    %3545 = vmatpush.xpose.msra.mxu0 0.0
    %3546 = vmatpush.xpose.msra.mxu0 0.0
    %3547 = vmatpush.xpose.msra.mxu0 0.0
    %3548 = vmatpush.xpose.msra.mxu0 %v3531
    %3549 = vmatmul.f32.gmra.mxu0 %v3529
    %v3550 = vpop.f32.mrf.mxu0
    %v3551 = vadd.f32 0.0, %v3550
    %3552 = vdwg.mxu0
    %3553 = vrot.lane.b32.xlu0 %v2950, 112
    %v3554 = vpop.permute.xlu0 %3553
    %3555 = vrot.lane.b32.xlu0 %v2950, 80
    %v3556 = vpop.permute.xlu0 %3555
    %v3557 = vsel %vm283, %v3554, 0
    %v3559 = vsel %vm283, %v3556, 0
    %3561 = vmatpush.xpose.msra.mxu0 0.0
    %3562 = vmatpush.xpose.msra.mxu0 0.0
    %3563 = vmatpush.xpose.msra.mxu0 0.0
    %3564 = vmatpush.xpose.msra.mxu0 0.0
    %3565 = vmatpush.xpose.msra.mxu0 0.0
    %3566 = vmatpush.xpose.msra.mxu0 0.0
    %3567 = vmatpush.xpose.msra.mxu0 0.0
    %3568 = vmatpush.xpose.msra.mxu0 0.0
    %3569 = vmatpush.xpose.msra.mxu0 0.0
    %3570 = vmatpush.xpose.msra.mxu0 0.0
    %3571 = vmatpush.xpose.msra.mxu0 0.0
    %3572 = vmatpush.xpose.msra.mxu0 0.0
    %3573 = vmatpush.xpose.msra.mxu0 0.0
    %3574 = vmatpush.xpose.msra.mxu0 0.0
    %3575 = vmatpush.xpose.msra.mxu0 0.0
    %3576 = vmatpush.xpose.msra.mxu0 %v3559
    %3577 = vmatmul.f32.gmra.mxu0 %v3557
    %v3578 = vpop.f32.mrf.mxu0
    %v3579 = vadd.f32 0.0, %v3578
    %3580 = vdwg.mxu0
    %v3581 = vsel %vm335, %v3551, -inf
    %3582 = vmax.xlane.f32.xlu0 %v3581
    %v3583 = vpop.xlane.xlu0 %3582
    %v3584 = vsel %vm335, %v3579, -inf
    %3585 = vmax.xlane.f32.xlu0 %v3584
    %v3586 = vpop.xlane.xlu0 %3585
    %v3587 = vsub.f32 %v3551, %v3583
    %v3588 = vsub.f32 %v3579, %v3586
    %v3589 = vmul.f32 %v3587, 1.442695
    %v3590 = vpow.pop %v3589
    %v3591 = vmul.f32 %v3588, 1.442695
    %v3592 = vpow.pop %v3591
    %v3593 = vsel %vm335, %v3590, 0.0
    %3594 = vadd.xlane.f32.xlu0 %v3593
    %v3595 = vpop.xlane.xlu0 %3594
    %v3596 = vsel %vm335, %v3592, 0.0
    %3597 = vadd.xlane.f32.xlu0 %v3596
    %v3598 = vpop.xlane.xlu0 %3597
    %v3599 = vrcp.pop %v3595
    %v3600 = vrcp.pop %v3598
    %v3601 = vmul.f32 %v3590, %v3599
    %v3602 = vmul.f32 %v3592, %v3600
    %v3604 = vsel %vm335, %v3601, 0
    %3606 = vmatpush.msra.mxu0 0.0
    %3607 = vmatpush.msra.mxu0 0.0
    %3608 = vmatpush.msra.mxu0 0.0
    %3609 = vmatpush.msra.mxu0 0.0
    %3610 = vmatpush.msra.mxu0 0.0
    %3611 = vmatpush.msra.mxu0 0.0
    %3612 = vmatpush.msra.mxu0 0.0
    %3613 = vmatpush.msra.mxu0 0.0
    %3614 = vmatpush.msra.mxu0 0.0
    %3615 = vmatpush.msra.mxu0 0.0
    %3616 = vmatpush.msra.mxu0 0.0
    %3617 = vmatpush.msra.mxu0 0.0
    %3618 = vmatpush.msra.mxu0 0.0
    %3619 = vmatpush.msra.mxu0 0.0
    %3620 = vmatpush.msra.mxu0 0.0
    %3621 = vmatpush.msra.mxu0 %v3001
    %3622 = vmatmul.f32.gmra.mxu0 %v3604
    %v3623 = vpop.f32.mrf.mxu0
    %v3624 = vadd.f32 0.0, %v3623
    %3625 = vdwg.mxu0
    %v3627 = vsel %vm335, %v3602, 0
    %3629 = vmatpush.msra.mxu0 0.0
    %3630 = vmatpush.msra.mxu0 0.0
    %3631 = vmatpush.msra.mxu0 0.0
    %3632 = vmatpush.msra.mxu0 0.0
    %3633 = vmatpush.msra.mxu0 0.0
    %3634 = vmatpush.msra.mxu0 0.0
    %3635 = vmatpush.msra.mxu0 0.0
    %3636 = vmatpush.msra.mxu0 0.0
    %3637 = vmatpush.msra.mxu0 0.0
    %3638 = vmatpush.msra.mxu0 0.0
    %3639 = vmatpush.msra.mxu0 0.0
    %3640 = vmatpush.msra.mxu0 0.0
    %3641 = vmatpush.msra.mxu0 0.0
    %3642 = vmatpush.msra.mxu0 0.0
    %3643 = vmatpush.msra.mxu0 0.0
    %3644 = vmatpush.msra.mxu0 %v3003
    %3645 = vmatmul.f32.gmra.mxu0 %v3627
    %v3646 = vpop.f32.mrf.mxu0
    %v3647 = vadd.f32 0.0, %v3646
    %3648 = vdwg.mxu0
    %v3649 = vadd.f32 %v3523, %v3624
    %v3650 = vadd.f32 %v3524, %v3647
    %3651 = vrot.lane.b32.xlu0 %v2948, 108
    %v3652 = vpop.permute.xlu0 %3651
    %3653 = vrot.lane.b32.xlu0 %v2948, 76
    %v3654 = vpop.permute.xlu0 %3653
    %v3655 = vsel %vm283, %v3652, 0
    %v3657 = vsel %vm283, %v3654, 0
    %3659 = vmatpush.xpose.msra.mxu0 0.0
    %3660 = vmatpush.xpose.msra.mxu0 0.0
    %3661 = vmatpush.xpose.msra.mxu0 0.0
    %3662 = vmatpush.xpose.msra.mxu0 0.0
    %3663 = vmatpush.xpose.msra.mxu0 0.0
    %3664 = vmatpush.xpose.msra.mxu0 0.0
    %3665 = vmatpush.xpose.msra.mxu0 0.0
    %3666 = vmatpush.xpose.msra.mxu0 0.0
    %3667 = vmatpush.xpose.msra.mxu0 0.0
    %3668 = vmatpush.xpose.msra.mxu0 0.0
    %3669 = vmatpush.xpose.msra.mxu0 0.0
    %3670 = vmatpush.xpose.msra.mxu0 0.0
    %3671 = vmatpush.xpose.msra.mxu0 0.0
    %3672 = vmatpush.xpose.msra.mxu0 0.0
    %3673 = vmatpush.xpose.msra.mxu0 0.0
    %3674 = vmatpush.xpose.msra.mxu0 %v3657
    %3675 = vmatmul.f32.gmra.mxu0 %v3655
    %v3676 = vpop.f32.mrf.mxu0
    %v3677 = vadd.f32 0.0, %v3676
    %3678 = vdwg.mxu0
    %3679 = vrot.lane.b32.xlu0 %v2950, 108
    %v3680 = vpop.permute.xlu0 %3679
    %3681 = vrot.lane.b32.xlu0 %v2950, 76
    %v3682 = vpop.permute.xlu0 %3681
    %v3683 = vsel %vm283, %v3680, 0
    %v3685 = vsel %vm283, %v3682, 0
    %3687 = vmatpush.xpose.msra.mxu0 0.0
    %3688 = vmatpush.xpose.msra.mxu0 0.0
    %3689 = vmatpush.xpose.msra.mxu0 0.0
    %3690 = vmatpush.xpose.msra.mxu0 0.0
    %3691 = vmatpush.xpose.msra.mxu0 0.0
    %3692 = vmatpush.xpose.msra.mxu0 0.0
    %3693 = vmatpush.xpose.msra.mxu0 0.0
    %3694 = vmatpush.xpose.msra.mxu0 0.0
    %3695 = vmatpush.xpose.msra.mxu0 0.0
    %3696 = vmatpush.xpose.msra.mxu0 0.0
    %3697 = vmatpush.xpose.msra.mxu0 0.0
    %3698 = vmatpush.xpose.msra.mxu0 0.0
    %3699 = vmatpush.xpose.msra.mxu0 0.0
    %3700 = vmatpush.xpose.msra.mxu0 0.0
    %3701 = vmatpush.xpose.msra.mxu0 0.0
    %3702 = vmatpush.xpose.msra.mxu0 %v3685
    %3703 = vmatmul.f32.gmra.mxu0 %v3683
    %v3704 = vpop.f32.mrf.mxu0
    %v3705 = vadd.f32 0.0, %v3704
    %3706 = vdwg.mxu0
    %v3707 = vsel %vm335, %v3677, -inf
    %3708 = vmax.xlane.f32.xlu0 %v3707
    %v3709 = vpop.xlane.xlu0 %3708
    %v3710 = vsel %vm335, %v3705, -inf
    %3711 = vmax.xlane.f32.xlu0 %v3710
    %v3712 = vpop.xlane.xlu0 %3711
    %v3713 = vsub.f32 %v3677, %v3709
    %v3714 = vsub.f32 %v3705, %v3712
    %v3715 = vmul.f32 %v3713, 1.442695
    %v3716 = vpow.pop %v3715
    %v3717 = vmul.f32 %v3714, 1.442695
    %v3718 = vpow.pop %v3717
    %v3719 = vsel %vm335, %v3716, 0.0
    %3720 = vadd.xlane.f32.xlu0 %v3719
    %v3721 = vpop.xlane.xlu0 %3720
    %v3722 = vsel %vm335, %v3718, 0.0
    %3723 = vadd.xlane.f32.xlu0 %v3722
    %v3724 = vpop.xlane.xlu0 %3723
    %v3725 = vrcp.pop %v3721
    %v3726 = vrcp.pop %v3724
    %v3727 = vmul.f32 %v3716, %v3725
    %v3728 = vmul.f32 %v3718, %v3726
    %3730 = vrot.lane.b32.xlu0 %v3001, 96
    %v3731 = vpop.permute.xlu0 %3730
    %v3734 = vsel %vm335, %v3727, 0
    %3736 = vmatpush.msra.mxu0 0.0
    %3737 = vmatpush.msra.mxu0 0.0
    %3738 = vmatpush.msra.mxu0 0.0
    %3739 = vmatpush.msra.mxu0 0.0
    %3740 = vmatpush.msra.mxu0 0.0
    %3741 = vmatpush.msra.mxu0 0.0
    %3742 = vmatpush.msra.mxu0 0.0
    %3743 = vmatpush.msra.mxu0 0.0
    %3744 = vmatpush.msra.mxu0 0.0
    %3745 = vmatpush.msra.mxu0 0.0
    %3746 = vmatpush.msra.mxu0 0.0
    %3747 = vmatpush.msra.mxu0 0.0
    %3748 = vmatpush.msra.mxu0 0.0
    %3749 = vmatpush.msra.mxu0 0.0
    %3750 = vmatpush.msra.mxu0 0.0
    %3751 = vmatpush.msra.mxu0 %v3731
    %3752 = vmatmul.f32.gmra.mxu0 %v3734
    %v3753 = vpop.f32.mrf.mxu0
    %v3754 = vadd.f32 0.0, %v3753
    %3755 = vdwg.mxu0
    %3757 = vrot.lane.b32.xlu0 %v3003, 96
    %v3758 = vpop.permute.xlu0 %3757
    %v3761 = vsel %vm335, %v3728, 0
    %3763 = vmatpush.msra.mxu0 0.0
    %3764 = vmatpush.msra.mxu0 0.0
    %3765 = vmatpush.msra.mxu0 0.0
    %3766 = vmatpush.msra.mxu0 0.0
    %3767 = vmatpush.msra.mxu0 0.0
    %3768 = vmatpush.msra.mxu0 0.0
    %3769 = vmatpush.msra.mxu0 0.0
    %3770 = vmatpush.msra.mxu0 0.0
    %3771 = vmatpush.msra.mxu0 0.0
    %3772 = vmatpush.msra.mxu0 0.0
    %3773 = vmatpush.msra.mxu0 0.0
    %3774 = vmatpush.msra.mxu0 0.0
    %3775 = vmatpush.msra.mxu0 0.0
    %3776 = vmatpush.msra.mxu0 0.0
    %3777 = vmatpush.msra.mxu0 0.0
    %3778 = vmatpush.msra.mxu0 %v3758
    %3779 = vmatmul.f32.gmra.mxu0 %v3761
    %v3780 = vpop.f32.mrf.mxu0
    %v3781 = vadd.f32 0.0, %v3780
    %3782 = vdwg.mxu0
    %v3783 = vadd.f32 %v3649, %v3754
    %v3784 = vadd.f32 %v3650, %v3781
    %3785 = vrot.lane.b32.xlu0 %v2948, 104
    %v3786 = vpop.permute.xlu0 %3785
    %3787 = vrot.lane.b32.xlu0 %v2948, 72
    %v3788 = vpop.permute.xlu0 %3787
    %v3789 = vsel %vm283, %v3786, 0
    %v3791 = vsel %vm283, %v3788, 0
    %3793 = vmatpush.xpose.msra.mxu0 0.0
    %3794 = vmatpush.xpose.msra.mxu0 0.0
    %3795 = vmatpush.xpose.msra.mxu0 0.0
    %3796 = vmatpush.xpose.msra.mxu0 0.0
    %3797 = vmatpush.xpose.msra.mxu0 0.0
    %3798 = vmatpush.xpose.msra.mxu0 0.0
    %3799 = vmatpush.xpose.msra.mxu0 0.0
    %3800 = vmatpush.xpose.msra.mxu0 0.0
    %3801 = vmatpush.xpose.msra.mxu0 0.0
    %3802 = vmatpush.xpose.msra.mxu0 0.0
    %3803 = vmatpush.xpose.msra.mxu0 0.0
    %3804 = vmatpush.xpose.msra.mxu0 0.0
    %3805 = vmatpush.xpose.msra.mxu0 0.0
    %3806 = vmatpush.xpose.msra.mxu0 0.0
    %3807 = vmatpush.xpose.msra.mxu0 0.0
    %3808 = vmatpush.xpose.msra.mxu0 %v3791
    %3809 = vmatmul.f32.gmra.mxu0 %v3789
    %v3810 = vpop.f32.mrf.mxu0
    %v3811 = vadd.f32 0.0, %v3810
    %3812 = vdwg.mxu0
    %3813 = vrot.lane.b32.xlu0 %v2950, 104
    %v3814 = vpop.permute.xlu0 %3813
    %3815 = vrot.lane.b32.xlu0 %v2950, 72
    %v3816 = vpop.permute.xlu0 %3815
    %v3817 = vsel %vm283, %v3814, 0
    %v3819 = vsel %vm283, %v3816, 0
    %3821 = vmatpush.xpose.msra.mxu0 0.0
    %3822 = vmatpush.xpose.msra.mxu0 0.0
    %3823 = vmatpush.xpose.msra.mxu0 0.0
    %3824 = vmatpush.xpose.msra.mxu0 0.0
    %3825 = vmatpush.xpose.msra.mxu0 0.0
    %3826 = vmatpush.xpose.msra.mxu0 0.0
    %3827 = vmatpush.xpose.msra.mxu0 0.0
    %3828 = vmatpush.xpose.msra.mxu0 0.0
    %3829 = vmatpush.xpose.msra.mxu0 0.0
    %3830 = vmatpush.xpose.msra.mxu0 0.0
    %3831 = vmatpush.xpose.msra.mxu0 0.0
    %3832 = vmatpush.xpose.msra.mxu0 0.0
    %3833 = vmatpush.xpose.msra.mxu0 0.0
    %3834 = vmatpush.xpose.msra.mxu0 0.0
    %3835 = vmatpush.xpose.msra.mxu0 0.0
    %3836 = vmatpush.xpose.msra.mxu0 %v3819
    %3837 = vmatmul.f32.gmra.mxu0 %v3817
    %v3838 = vpop.f32.mrf.mxu0
    %v3839 = vadd.f32 0.0, %v3838
    %3840 = vdwg.mxu0
    %v3841 = vsel %vm335, %v3811, -inf
    %3842 = vmax.xlane.f32.xlu0 %v3841
    %v3843 = vpop.xlane.xlu0 %3842
    %v3844 = vsel %vm335, %v3839, -inf
    %3845 = vmax.xlane.f32.xlu0 %v3844
    %v3846 = vpop.xlane.xlu0 %3845
    %v3847 = vsub.f32 %v3811, %v3843
    %v3848 = vsub.f32 %v3839, %v3846
    %v3849 = vmul.f32 %v3847, 1.442695
    %v3850 = vpow.pop %v3849
    %v3851 = vmul.f32 %v3848, 1.442695
    %v3852 = vpow.pop %v3851
    %v3853 = vsel %vm335, %v3850, 0.0
    %3854 = vadd.xlane.f32.xlu0 %v3853
    %v3855 = vpop.xlane.xlu0 %3854
    %v3856 = vsel %vm335, %v3852, 0.0
    %3857 = vadd.xlane.f32.xlu0 %v3856
    %v3858 = vpop.xlane.xlu0 %3857
    %v3859 = vrcp.pop %v3855
    %v3860 = vrcp.pop %v3858
    %v3861 = vmul.f32 %v3850, %v3859
    %v3862 = vmul.f32 %v3852, %v3860
    %3863 = vrot.lane.b32.xlu0 %v3001, 64
    %v3864 = vpop.permute.xlu0 %3863
    %v3867 = vsel %vm335, %v3861, 0
    %3869 = vmatpush.msra.mxu0 0.0
    %3870 = vmatpush.msra.mxu0 0.0
    %3871 = vmatpush.msra.mxu0 0.0
    %3872 = vmatpush.msra.mxu0 0.0
    %3873 = vmatpush.msra.mxu0 0.0
    %3874 = vmatpush.msra.mxu0 0.0
    %3875 = vmatpush.msra.mxu0 0.0
    %3876 = vmatpush.msra.mxu0 0.0
    %3877 = vmatpush.msra.mxu0 0.0
    %3878 = vmatpush.msra.mxu0 0.0
    %3879 = vmatpush.msra.mxu0 0.0
    %3880 = vmatpush.msra.mxu0 0.0
    %3881 = vmatpush.msra.mxu0 0.0
    %3882 = vmatpush.msra.mxu0 0.0
    %3883 = vmatpush.msra.mxu0 0.0
    %3884 = vmatpush.msra.mxu0 %v3864
    %3885 = vmatmul.f32.gmra.mxu0 %v3867
    %v3886 = vpop.f32.mrf.mxu0
    %v3887 = vadd.f32 0.0, %v3886
    %3888 = vdwg.mxu0
    %3889 = vrot.lane.b32.xlu0 %v3003, 64
    %v3890 = vpop.permute.xlu0 %3889
    %v3893 = vsel %vm335, %v3862, 0
    %3895 = vmatpush.msra.mxu0 0.0
    %3896 = vmatpush.msra.mxu0 0.0
    %3897 = vmatpush.msra.mxu0 0.0
    %3898 = vmatpush.msra.mxu0 0.0
    %3899 = vmatpush.msra.mxu0 0.0
    %3900 = vmatpush.msra.mxu0 0.0
    %3901 = vmatpush.msra.mxu0 0.0
    %3902 = vmatpush.msra.mxu0 0.0
    %3903 = vmatpush.msra.mxu0 0.0
    %3904 = vmatpush.msra.mxu0 0.0
    %3905 = vmatpush.msra.mxu0 0.0
    %3906 = vmatpush.msra.mxu0 0.0
    %3907 = vmatpush.msra.mxu0 0.0
    %3908 = vmatpush.msra.mxu0 0.0
    %3909 = vmatpush.msra.mxu0 0.0
    %3910 = vmatpush.msra.mxu0 %v3890
    %3911 = vmatmul.f32.gmra.mxu0 %v3893
    %v3912 = vpop.f32.mrf.mxu0
    %v3913 = vadd.f32 0.0, %v3912
    %3914 = vdwg.mxu0
    %v3915 = vadd.f32 %v3783, %v3887
    %v3916 = vadd.f32 %v3784, %v3913
    %3917 = vrot.lane.b32.xlu0 %v2948, 100
    %v3918 = vpop.permute.xlu0 %3917
    %3919 = vrot.lane.b32.xlu0 %v2948, 68
    %v3920 = vpop.permute.xlu0 %3919
    %v3921 = vsel %vm283, %v3918, 0
    %v3923 = vsel %vm283, %v3920, 0
    %3925 = vmatpush.xpose.msra.mxu0 0.0
    %3926 = vmatpush.xpose.msra.mxu0 0.0
    %3927 = vmatpush.xpose.msra.mxu0 0.0
    %3928 = vmatpush.xpose.msra.mxu0 0.0
    %3929 = vmatpush.xpose.msra.mxu0 0.0
    %3930 = vmatpush.xpose.msra.mxu0 0.0
    %3931 = vmatpush.xpose.msra.mxu0 0.0
    %3932 = vmatpush.xpose.msra.mxu0 0.0
    %3933 = vmatpush.xpose.msra.mxu0 0.0
    %3934 = vmatpush.xpose.msra.mxu0 0.0
    %3935 = vmatpush.xpose.msra.mxu0 0.0
    %3936 = vmatpush.xpose.msra.mxu0 0.0
    %3937 = vmatpush.xpose.msra.mxu0 0.0
    %3938 = vmatpush.xpose.msra.mxu0 0.0
    %3939 = vmatpush.xpose.msra.mxu0 0.0
    %3940 = vmatpush.xpose.msra.mxu0 %v3923
    %3941 = vmatmul.f32.gmra.mxu0 %v3921
    %v3942 = vpop.f32.mrf.mxu0
    %v3943 = vadd.f32 0.0, %v3942
    %3944 = vdwg.mxu0
    %3945 = vrot.lane.b32.xlu0 %v2950, 100
    %v3946 = vpop.permute.xlu0 %3945
    %3947 = vrot.lane.b32.xlu0 %v2950, 68
    %v3948 = vpop.permute.xlu0 %3947
    %v3949 = vsel %vm283, %v3946, 0
    %v3951 = vsel %vm283, %v3948, 0
    %3953 = vmatpush.xpose.msra.mxu0 0.0
    %3954 = vmatpush.xpose.msra.mxu0 0.0
    %3955 = vmatpush.xpose.msra.mxu0 0.0
    %3956 = vmatpush.xpose.msra.mxu0 0.0
    %3957 = vmatpush.xpose.msra.mxu0 0.0
    %3958 = vmatpush.xpose.msra.mxu0 0.0
    %3959 = vmatpush.xpose.msra.mxu0 0.0
    %3960 = vmatpush.xpose.msra.mxu0 0.0
    %3961 = vmatpush.xpose.msra.mxu0 0.0
    %3962 = vmatpush.xpose.msra.mxu0 0.0
    %3963 = vmatpush.xpose.msra.mxu0 0.0
    %3964 = vmatpush.xpose.msra.mxu0 0.0
    %3965 = vmatpush.xpose.msra.mxu0 0.0
    %3966 = vmatpush.xpose.msra.mxu0 0.0
    %3967 = vmatpush.xpose.msra.mxu0 0.0
    %3968 = vmatpush.xpose.msra.mxu0 %v3951
    %3969 = vmatmul.f32.gmra.mxu0 %v3949
    %v3970 = vpop.f32.mrf.mxu0
    %v3971 = vadd.f32 0.0, %v3970
    %3972 = vdwg.mxu0
    %v3973 = vsel %vm335, %v3943, -inf
    %3974 = vmax.xlane.f32.xlu0 %v3973
    %v3975 = vpop.xlane.xlu0 %3974
    %v3976 = vsel %vm335, %v3971, -inf
    %3977 = vmax.xlane.f32.xlu0 %v3976
    %v3978 = vpop.xlane.xlu0 %3977
    %v3979 = vsub.f32 %v3943, %v3975
    %v3980 = vsub.f32 %v3971, %v3978
    %v3981 = vmul.f32 %v3979, 1.442695
    %v3982 = vpow.pop %v3981
    %v3983 = vmul.f32 %v3980, 1.442695
    %v3984 = vpow.pop %v3983
    %v3985 = vsel %vm335, %v3982, 0.0
    %3986 = vadd.xlane.f32.xlu0 %v3985
    %v3987 = vpop.xlane.xlu0 %3986
    %v3988 = vsel %vm335, %v3984, 0.0
    %3989 = vadd.xlane.f32.xlu0 %v3988
    %v3990 = vpop.xlane.xlu0 %3989
    %v3991 = vrcp.pop %v3987
    %v3992 = vrcp.pop %v3990
    %v3993 = vmul.f32 %v3982, %v3991
    %v3994 = vmul.f32 %v3984, %v3992
    %3995 = vrot.lane.b32.xlu0 %v3001, 32
    %v3996 = vpop.permute.xlu0 %3995
    %v3999 = vsel %vm335, %v3993, 0
    %4001 = vmatpush.msra.mxu0 0.0
    %4002 = vmatpush.msra.mxu0 0.0
    %4003 = vmatpush.msra.mxu0 0.0
    %4004 = vmatpush.msra.mxu0 0.0
    %4005 = vmatpush.msra.mxu0 0.0
    %4006 = vmatpush.msra.mxu0 0.0
    %4007 = vmatpush.msra.mxu0 0.0
    %4008 = vmatpush.msra.mxu0 0.0
    %4009 = vmatpush.msra.mxu0 0.0
    %4010 = vmatpush.msra.mxu0 0.0
    %4011 = vmatpush.msra.mxu0 0.0
    %4012 = vmatpush.msra.mxu0 0.0
    %4013 = vmatpush.msra.mxu0 0.0
    %4014 = vmatpush.msra.mxu0 0.0
    %4015 = vmatpush.msra.mxu0 0.0
    %4016 = vmatpush.msra.mxu0 %v3996
    %4017 = vmatmul.f32.gmra.mxu0 %v3999
    %v4018 = vpop.f32.mrf.mxu0
    %v4019 = vadd.f32 0.0, %v4018
    %4020 = vdwg.mxu0
    %4021 = vrot.lane.b32.xlu0 %v3003, 32
    %v4022 = vpop.permute.xlu0 %4021
    %v4025 = vsel %vm335, %v3994, 0
    %4027 = vmatpush.msra.mxu0 0.0
    %4028 = vmatpush.msra.mxu0 0.0
    %4029 = vmatpush.msra.mxu0 0.0
    %4030 = vmatpush.msra.mxu0 0.0
    %4031 = vmatpush.msra.mxu0 0.0
    %4032 = vmatpush.msra.mxu0 0.0
    %4033 = vmatpush.msra.mxu0 0.0
    %4034 = vmatpush.msra.mxu0 0.0
    %4035 = vmatpush.msra.mxu0 0.0
    %4036 = vmatpush.msra.mxu0 0.0
    %4037 = vmatpush.msra.mxu0 0.0
    %4038 = vmatpush.msra.mxu0 0.0
    %4039 = vmatpush.msra.mxu0 0.0
    %4040 = vmatpush.msra.mxu0 0.0
    %4041 = vmatpush.msra.mxu0 0.0
    %4042 = vmatpush.msra.mxu0 %v4022
    %4043 = vmatmul.f32.gmra.mxu0 %v4025
    %v4044 = vpop.f32.mrf.mxu0
    %v4045 = vadd.f32 0.0, %v4044
    %4046 = vdwg.mxu0
    %v4047 = vadd.f32 %v3915, %v4019
    %v4048 = vadd.f32 %v3916, %v4045
    %s4049 = scalar_lea.vmem %s5, 2
    %v4050 = vld [vmem:[%s4049] sm:$0x1]
    %v4052 = vperm.slane %v4050, 0
    %v4054 = vadd.f32 %v4047, %v4052
    %v4055 = vadd.f32 %v4048, %v4052
    %v4056 = vadd.f32 %v2910, %v4054
    %v4057 = vadd.f32 %v2911, %v4055
    %s4058 = scalar_lea.vmem %s6, 2
    %v4059 = vld [vmem:[%s4058] sm:$0x1]
    %s4060 = scalar_lea.vmem %s7, 2
    %v4061 = vld [vmem:[%s4060] sm:$0x1]
    %v4062 = vsel %vm210, %v4056, 0.0
    %4063 = vadd.xlane.f32.xlu0 %v4062
    %v4064 = vpop.xlane.xlu0 %4063
    %v4065 = vsel %vm210, %v4057, 0.0
    %4066 = vadd.xlane.f32.xlu0 %v4065
    %v4067 = vpop.xlane.xlu0 %4066
    %v4068 = vmul.f32 %v4064, %v1348
    %v4069 = vmul.f32 %v4067, %v1348
    %v4070 = vsub.f32 %v4056, %v4068
    %v4071 = vsub.f32 %v4057, %v4069
    %v4072 = vmul.f32 %v4070, %v4070
    %v4073 = vmul.f32 %v4071, %v4071
    %v4074 = vsel %vm210, %v4072, 0.0
    %4075 = vadd.xlane.f32.xlu0 %v4074
    %v4076 = vpop.xlane.xlu0 %4075
    %v4077 = vsel %vm210, %v4073, 0.0
    %4078 = vadd.xlane.f32.xlu0 %v4077
    %v4079 = vpop.xlane.xlu0 %4078
    %v4080 = vmul.f32 %v4076, %v1348
    %v4081 = vmul.f32 %v4079, %v1348
    %v4082 = vadd.f32 %v4080, 1e-05
    %v4083 = vadd.f32 %v4081, 1e-05
    %v4084 = vrsqrt.pop %v4082
    %v4085 = vmul.f32 %v4084, %v4082
    %v4086 = vmul.f32 %v4085, %v4084
    %v4087 = vmul.f32 0.5, %v4086
    %v4088 = vsub.f32 1.5, %v4087
    %v4089 = vmul.f32 %v4084, %v4088
    %vm4090 = vweird.f32 %v4082
    %vm4091 = vweird.f32 %v4084
    %vm4092 = vmor %vm4090, %vm4091
    %v4093 = vsel %vm4092, %v4084, %v4089
    %v4094 = vrsqrt.pop %v4083
    %v4095 = vmul.f32 %v4094, %v4083
    %v4096 = vmul.f32 %v4095, %v4094
    %v4097 = vmul.f32 0.5, %v4096
    %v4098 = vsub.f32 1.5, %v4097
    %v4099 = vmul.f32 %v4094, %v4098
    %vm4100 = vweird.f32 %v4083
    %vm4101 = vweird.f32 %v4094
    %vm4102 = vmor %vm4100, %vm4101
    %v4103 = vsel %vm4102, %v4094, %v4099
    %v4104 = vmul.f32 %v4070, %v4093
    %v4105 = vmul.f32 %v4071, %v4103
    %v4107 = vperm.slane %v4059, 0
    %v4109 = vmul.f32 %v4104, %v4107
    %v4110 = vmul.f32 %v4105, %v4107
    %v4112 = vperm.slane %v4061, 0
    %v4114 = vadd.f32 %v4109, %v4112
    %v4115 = vadd.f32 %v4110, %v4112
    %v4116 = vpack.c.bf16 %v4115, %v4114
    %s4117 = scalar_lea.vmem [#allocation6], 32
    %v4118 = vld [vmem:[%s4117] sm:$0xf]
    %v4119 = vld [vmem:[%s4117 + $0x4] sm:$0xf]
    %v4120 = vld [vmem:[%s4117 + $0x8] sm:$0xf]
    %v4121 = vld [vmem:[%s4117 + $0xc] sm:$0xf]
    %s4122 = scalar_lea.vmem %s9, 2
    %v4123 = vld [vmem:[%s4122] sm:$0x1]
    %v4125 = vperm.slane %v4123, 0
    %v4131 = vunpack.c.l.b16 %v4118
    %v4132 = vunpack.c.l.b16 %v4119
    %v4133 = vunpack.c.l.b16 %v4120
    %v4134 = vunpack.c.l.b16 %v4121
    %v4135 = vpack.c.b16 %v4132, %v4131
    %v4136 = vpack.c.b16 %v4134, %v4133
    %v4140 = vsel %vm210, %v4116, 0
    %4142 = vmatpush.bf16.msra.mxu0 0
    %4143 = vmatpush.bf16.msra.mxu0 0
    %4144 = vmatpush.bf16.msra.mxu0 0
    %4145 = vmatpush.bf16.msra.mxu0 0
    %4146 = vmatpush.bf16.msra.mxu0 0
    %4147 = vmatpush.bf16.msra.mxu0 0
    %4148 = vmatpush.bf16.msra.mxu0 %v4136
    %4149 = vmatpush.bf16.msra.mxu0 %v4135
    %4150 = vmatmul.bf16.gmra.mxu0 %v4140
    %v4151 = vpop.f32.mrf.mxu0
    %v4152 = vadd.f32 %v4125, %v4151
    %v4153 = vpop.f32.mrf.mxu0
    %v4154 = vadd.f32 %v4125, %v4153
    %4155 = vdwg.mxu0
    %v4156 = vmax.f32 %v4152, 0.0
    %v4157 = vmax.f32 %v4154, 0.0
    %v4158 = vpack.c.bf16 %v4157, %v4156
    %s4159 = scalar_lea.vmem %s10, 64
    %v4160 = vld [vmem:[%s4159] sm:$0xf]
    %v4161 = vld [vmem:[%s4159 + $0x4] sm:$0xf]
    %v4162 = vld [vmem:[%s4159 + $0x8] sm:$0xf]
    %v4163 = vld [vmem:[%s4159 + $0xc] sm:$0xf]
    %v4164 = vld [vmem:[%s4159 + $0x10] sm:$0xf]
    %v4165 = vld [vmem:[%s4159 + $0x14] sm:$0xf]
    %v4166 = vld [vmem:[%s4159 + $0x18] sm:$0xf]
    %v4167 = vld [vmem:[%s4159 + $0x1c] sm:$0xf]
    %s4168 = scalar_lea.vmem %s11, 2
    %v4169 = vld [vmem:[%s4168] sm:$0x1]
    %v4171 = vperm.slane %v4169, 0
    %v4181 = vunpack.c.l.b16 %v4160
    %v4182 = vunpack.c.l.b16 %v4161
    %v4183 = vunpack.c.l.b16 %v4162
    %v4184 = vunpack.c.l.b16 %v4163
    %v4185 = vunpack.c.l.b16 %v4164
    %v4186 = vunpack.c.l.b16 %v4165
    %v4187 = vunpack.c.l.b16 %v4166
    %v4188 = vunpack.c.l.b16 %v4167
    %v4189 = vpack.c.b16 %v4182, %v4181
    %v4190 = vpack.c.b16 %v4184, %v4183
    %v4191 = vpack.c.b16 %v4186, %v4185
    %v4192 = vpack.c.b16 %v4188, %v4187
    %v4198 = vsel %vm1474, %v4158, 0
    %4200 = vmatpush.bf16.msra.mxu0 0
    %4201 = vmatpush.bf16.msra.mxu0 0
    %4202 = vmatpush.bf16.msra.mxu0 0
    %4203 = vmatpush.bf16.msra.mxu0 0
    %4204 = vmatpush.bf16.msra.mxu0 %v4192
    %4205 = vmatpush.bf16.msra.mxu0 %v4191
    %4206 = vmatpush.bf16.msra.mxu0 %v4190
    %4207 = vmatpush.bf16.msra.mxu0 %v4189
    %4208 = vmatmul.bf16.gmra.mxu0 %v4198
    %v4209 = vpop.f32.mrf.mxu0
    %v4210 = vadd.f32 %v4171, %v4209
    %v4211 = vpop.f32.mrf.mxu0
    %v4212 = vadd.f32 %v4171, %v4211
    %4213 = vdwg.mxu0
    %v4214 = vadd.f32 %v4114, %v4210
    %v4215 = vadd.f32 %v4115, %v4212
    %s4216 = scalar_lea.vmem %s12, 2
    %v4217 = vld [vmem:[%s4216] sm:$0x1]
    %s4218 = scalar_lea.vmem %s13, 2
    %v4219 = vld [vmem:[%s4218] sm:$0x1]
    %v4220 = vsel %vm210, %v4214, 0.0
    %4221 = vadd.xlane.f32.xlu0 %v4220
    %v4222 = vpop.xlane.xlu0 %4221
    %v4223 = vsel %vm210, %v4215, 0.0
    %4224 = vadd.xlane.f32.xlu0 %v4223
    %v4225 = vpop.xlane.xlu0 %4224
    %v4226 = vmul.f32 %v4222, %v1348
    %v4227 = vmul.f32 %v4225, %v1348
    %v4228 = vsub.f32 %v4214, %v4226
    %v4229 = vsub.f32 %v4215, %v4227
    %v4230 = vmul.f32 %v4228, %v4228
    %v4231 = vmul.f32 %v4229, %v4229
    %v4232 = vsel %vm210, %v4230, 0.0
    %4233 = vadd.xlane.f32.xlu0 %v4232
    %v4234 = vpop.xlane.xlu0 %4233
    %v4235 = vsel %vm210, %v4231, 0.0
    %4236 = vadd.xlane.f32.xlu0 %v4235
    %v4237 = vpop.xlane.xlu0 %4236
    %v4238 = vmul.f32 %v4234, %v1348
    %v4239 = vmul.f32 %v4237, %v1348
    %v4240 = vadd.f32 %v4238, 1e-05
    %v4241 = vadd.f32 %v4239, 1e-05
    %v4242 = vrsqrt.pop %v4240
    %v4243 = vmul.f32 %v4242, %v4240
    %v4244 = vmul.f32 %v4243, %v4242
    %v4245 = vmul.f32 0.5, %v4244
    %v4246 = vsub.f32 1.5, %v4245
    %v4247 = vmul.f32 %v4242, %v4246
    %vm4248 = vweird.f32 %v4240
    %vm4249 = vweird.f32 %v4242
    %vm4250 = vmor %vm4248, %vm4249
    %v4251 = vsel %vm4250, %v4242, %v4247
    %v4252 = vrsqrt.pop %v4241
    %v4253 = vmul.f32 %v4252, %v4241
    %v4254 = vmul.f32 %v4253, %v4252
    %v4255 = vmul.f32 0.5, %v4254
    %v4256 = vsub.f32 1.5, %v4255
    %v4257 = vmul.f32 %v4252, %v4256
    %vm4258 = vweird.f32 %v4241
    %vm4259 = vweird.f32 %v4252
    %vm4260 = vmor %vm4258, %vm4259
    %v4261 = vsel %vm4260, %v4252, %v4257
    %v4262 = vmul.f32 %v4228, %v4251
    %v4263 = vmul.f32 %v4229, %v4261
    %v4265 = vperm.slane %v4217, 0
    %v4267 = vmul.f32 %v4262, %v4265
    %v4268 = vmul.f32 %v4263, %v4265
    %v4270 = vperm.slane %v4219, 0
    %v4272 = vadd.f32 %v4267, %v4270
    %v4273 = vadd.f32 %v4268, %v4270
    %v4274 = vpack.c.bf16 %v4273, %v4272
    %s4275 = scalar_lea.vmem %s2, 48
    %v4276 = vld [vmem:[%s4275] sm:$0xf]
    %v4277 = vld [vmem:[%s4275 + $0x4] sm:$0xf]
    %v4278 = vld [vmem:[%s4275 + $0x8] sm:$0xf]
    %v4279 = vld [vmem:[%s4275 + $0xc] sm:$0xf]
    %s4280 = scalar_lea.vmem %s3, 3
    %v4281 = vld [vmem:[%s4280] sm:$0x1]
    %v4283 = vperm.slane %v4281, 0
    %v4289 = vunpack.c.l.b16 %v4276
    %v4290 = vunpack.c.l.b16 %v4277
    %v4291 = vunpack.c.l.b16 %v4278
    %v4292 = vunpack.c.l.b16 %v4279
    %v4293 = vpack.c.b16 %v4290, %v4289
    %v4294 = vpack.c.b16 %v4292, %v4291
    %v4298 = vsel %vm210, %v4274, 0
    %4300 = vmatpush.bf16.msra.mxu0 0
    %4301 = vmatpush.bf16.msra.mxu0 0
    %4302 = vmatpush.bf16.msra.mxu0 0
    %4303 = vmatpush.bf16.msra.mxu0 0
    %4304 = vmatpush.bf16.msra.mxu0 0
    %4305 = vmatpush.bf16.msra.mxu0 0
    %4306 = vmatpush.bf16.msra.mxu0 %v4294
    %4307 = vmatpush.bf16.msra.mxu0 %v4293
    %4308 = vmatmul.bf16.gmra.mxu0 %v4298
    %v4309 = vpop.f32.mrf.mxu0
    %v4310 = vadd.f32 %v4283, %v4309
    %v4311 = vpop.f32.mrf.mxu0
    %v4312 = vadd.f32 %v4283, %v4311
    %4313 = vdwg.mxu0
    %s4314 = scalar_lea.vmem %s4, 96
    %v4315 = vld [vmem:[%s4314] sm:$0xff]
    %v4316 = vld [vmem:[%s4314 + $0x8] sm:$0xff]
    %v4317 = vld [vmem:[%s4314 + $0x10] sm:$0xff]
    %v4318 = vld [vmem:[%s4314 + $0x18] sm:$0xff]
    %v4323 = vunpack.c.l.b16 %v4315
    %v4324 = vunpack.c.h.b16 %v4315
    %v4325 = vunpack.c.l.b16 %v4316
    %v4326 = vunpack.c.h.b16 %v4316
    %v4327 = vunpack.c.l.b16 %v4317
    %v4328 = vunpack.c.h.b16 %v4317
    %v4329 = vunpack.c.l.b16 %v4318
    %v4330 = vunpack.c.h.b16 %v4318
    %v4331 = vpack.c.b16 %v4325, %v4323
    %v4332 = vpack.c.b16 %v4326, %v4324
    %v4333 = vpack.c.b16 %v4329, %v4327
    %v4334 = vpack.c.b16 %v4330, %v4328
    %4339 = vmatpush.bf16.msra.mxu0 0
    %4340 = vmatpush.bf16.msra.mxu0 0
    %4341 = vmatpush.bf16.msra.mxu0 0
    %4342 = vmatpush.bf16.msra.mxu0 0
    %4343 = vmatpush.bf16.msra.mxu0 0
    %4344 = vmatpush.bf16.msra.mxu0 0
    %4345 = vmatpush.bf16.msra.mxu0 %v4333
    %4346 = vmatpush.bf16.msra.mxu0 %v4331
    %4347 = vmatmul.bf16.gmra.mxu0 %v4298
    %v4348 = vpop.f32.mrf.mxu0
    %v4349 = vadd.f32 0.0, %v4348
    %v4350 = vpop.f32.mrf.mxu0
    %v4351 = vadd.f32 0.0, %v4350
    %4352 = vdwg.mxu0
    %4353 = vmatpush.bf16.msra.mxu0 0
    %4354 = vmatpush.bf16.msra.mxu0 0
    %4355 = vmatpush.bf16.msra.mxu0 0
    %4356 = vmatpush.bf16.msra.mxu0 0
    %4357 = vmatpush.bf16.msra.mxu0 0
    %4358 = vmatpush.bf16.msra.mxu0 0
    %4359 = vmatpush.bf16.msra.mxu0 %v4334
    %4360 = vmatpush.bf16.msra.mxu0 %v4332
    %4361 = vmatmul.bf16.gmra.mxu0 %v4298
    %v4362 = vpop.f32.mrf.mxu0
    %v4363 = vadd.f32 0.0, %v4362
    %v4364 = vpop.f32.mrf.mxu0
    %v4365 = vadd.f32 0.0, %v4364
    %4366 = vdwg.mxu0
    %4368 = vrot.lane.b32.xlu0 %v4310, 96
    %v4369 = vpop.permute.xlu0 %4368
    %v4370 = vsel %vm283, %v4310, 0
    %v4372 = vsel %vm283, %v4369, 0
    %4374 = vmatpush.xpose.msra.mxu0 0.0
    %4375 = vmatpush.xpose.msra.mxu0 0.0
    %4376 = vmatpush.xpose.msra.mxu0 0.0
    %4377 = vmatpush.xpose.msra.mxu0 0.0
    %4378 = vmatpush.xpose.msra.mxu0 0.0
    %4379 = vmatpush.xpose.msra.mxu0 0.0
    %4380 = vmatpush.xpose.msra.mxu0 0.0
    %4381 = vmatpush.xpose.msra.mxu0 0.0
    %4382 = vmatpush.xpose.msra.mxu0 0.0
    %4383 = vmatpush.xpose.msra.mxu0 0.0
    %4384 = vmatpush.xpose.msra.mxu0 0.0
    %4385 = vmatpush.xpose.msra.mxu0 0.0
    %4386 = vmatpush.xpose.msra.mxu0 0.0
    %4387 = vmatpush.xpose.msra.mxu0 0.0
    %4388 = vmatpush.xpose.msra.mxu0 0.0
    %4389 = vmatpush.xpose.msra.mxu0 %v4372
    %4390 = vmatmul.f32.gmra.mxu0 %v4370
    %v4391 = vpop.f32.mrf.mxu0
    %v4392 = vadd.f32 0.0, %v4391
    %4393 = vdwg.mxu0
    %4395 = vrot.lane.b32.xlu0 %v4312, 96
    %v4396 = vpop.permute.xlu0 %4395
    %v4397 = vsel %vm283, %v4312, 0
    %v4399 = vsel %vm283, %v4396, 0
    %4401 = vmatpush.xpose.msra.mxu0 0.0
    %4402 = vmatpush.xpose.msra.mxu0 0.0
    %4403 = vmatpush.xpose.msra.mxu0 0.0
    %4404 = vmatpush.xpose.msra.mxu0 0.0
    %4405 = vmatpush.xpose.msra.mxu0 0.0
    %4406 = vmatpush.xpose.msra.mxu0 0.0
    %4407 = vmatpush.xpose.msra.mxu0 0.0
    %4408 = vmatpush.xpose.msra.mxu0 0.0
    %4409 = vmatpush.xpose.msra.mxu0 0.0
    %4410 = vmatpush.xpose.msra.mxu0 0.0
    %4411 = vmatpush.xpose.msra.mxu0 0.0
    %4412 = vmatpush.xpose.msra.mxu0 0.0
    %4413 = vmatpush.xpose.msra.mxu0 0.0
    %4414 = vmatpush.xpose.msra.mxu0 0.0
    %4415 = vmatpush.xpose.msra.mxu0 0.0
    %4416 = vmatpush.xpose.msra.mxu0 %v4399
    %4417 = vmatmul.f32.gmra.mxu0 %v4397
    %v4418 = vpop.f32.mrf.mxu0
    %v4419 = vadd.f32 0.0, %v4418
    %4420 = vdwg.mxu0
    %v4421 = vsel %vm335, %v4392, -inf
    %4422 = vmax.xlane.f32.xlu0 %v4421
    %v4423 = vpop.xlane.xlu0 %4422
    %v4424 = vsel %vm335, %v4419, -inf
    %4425 = vmax.xlane.f32.xlu0 %v4424
    %v4426 = vpop.xlane.xlu0 %4425
    %v4427 = vsub.f32 %v4392, %v4423
    %v4428 = vsub.f32 %v4419, %v4426
    %v4429 = vmul.f32 %v4427, 1.442695
    %v4430 = vpow.pop %v4429
    %v4431 = vmul.f32 %v4428, 1.442695
    %v4432 = vpow.pop %v4431
    %v4433 = vsel %vm335, %v4430, 0.0
    %4434 = vadd.xlane.f32.xlu0 %v4433
    %v4435 = vpop.xlane.xlu0 %4434
    %v4436 = vsel %vm335, %v4432, 0.0
    %4437 = vadd.xlane.f32.xlu0 %v4436
    %v4438 = vpop.xlane.xlu0 %4437
    %v4439 = vrcp.pop %v4435
    %v4440 = vrcp.pop %v4438
    %v4441 = vmul.f32 %v4430, %v4439
    %v4442 = vmul.f32 %v4432, %v4440
    %v4444 = vsel %vm335, %v4441, 0
    %4446 = vmatpush.msra.mxu0 0.0
    %4447 = vmatpush.msra.mxu0 0.0
    %4448 = vmatpush.msra.mxu0 0.0
    %4449 = vmatpush.msra.mxu0 0.0
    %4450 = vmatpush.msra.mxu0 0.0
    %4451 = vmatpush.msra.mxu0 0.0
    %4452 = vmatpush.msra.mxu0 0.0
    %4453 = vmatpush.msra.mxu0 0.0
    %4454 = vmatpush.msra.mxu0 0.0
    %4455 = vmatpush.msra.mxu0 0.0
    %4456 = vmatpush.msra.mxu0 0.0
    %4457 = vmatpush.msra.mxu0 0.0
    %4458 = vmatpush.msra.mxu0 0.0
    %4459 = vmatpush.msra.mxu0 0.0
    %4460 = vmatpush.msra.mxu0 0.0
    %4461 = vmatpush.msra.mxu0 %v4349
    %4462 = vmatmul.f32.gmra.mxu0 %v4444
    %v4463 = vpop.f32.mrf.mxu0
    %v4464 = vadd.f32 0.0, %v4463
    %4465 = vdwg.mxu0
    %v4467 = vsel %vm335, %v4442, 0
    %4469 = vmatpush.msra.mxu0 0.0
    %4470 = vmatpush.msra.mxu0 0.0
    %4471 = vmatpush.msra.mxu0 0.0
    %4472 = vmatpush.msra.mxu0 0.0
    %4473 = vmatpush.msra.mxu0 0.0
    %4474 = vmatpush.msra.mxu0 0.0
    %4475 = vmatpush.msra.mxu0 0.0
    %4476 = vmatpush.msra.mxu0 0.0
    %4477 = vmatpush.msra.mxu0 0.0
    %4478 = vmatpush.msra.mxu0 0.0
    %4479 = vmatpush.msra.mxu0 0.0
    %4480 = vmatpush.msra.mxu0 0.0
    %4481 = vmatpush.msra.mxu0 0.0
    %4482 = vmatpush.msra.mxu0 0.0
    %4483 = vmatpush.msra.mxu0 0.0
    %4484 = vmatpush.msra.mxu0 %v4351
    %4485 = vmatmul.f32.gmra.mxu0 %v4467
    %v4486 = vpop.f32.mrf.mxu0
    %v4487 = vadd.f32 0.0, %v4486
    %4488 = vdwg.mxu0
    %4489 = vrot.lane.b32.xlu0 %v4310, 124
    %v4490 = vpop.permute.xlu0 %4489
    %4491 = vrot.lane.b32.xlu0 %v4310, 92
    %v4492 = vpop.permute.xlu0 %4491
    %v4493 = vsel %vm283, %v4490, 0
    %v4495 = vsel %vm283, %v4492, 0
    %4497 = vmatpush.xpose.msra.mxu0 0.0
    %4498 = vmatpush.xpose.msra.mxu0 0.0
    %4499 = vmatpush.xpose.msra.mxu0 0.0
    %4500 = vmatpush.xpose.msra.mxu0 0.0
    %4501 = vmatpush.xpose.msra.mxu0 0.0
    %4502 = vmatpush.xpose.msra.mxu0 0.0
    %4503 = vmatpush.xpose.msra.mxu0 0.0
    %4504 = vmatpush.xpose.msra.mxu0 0.0
    %4505 = vmatpush.xpose.msra.mxu0 0.0
    %4506 = vmatpush.xpose.msra.mxu0 0.0
    %4507 = vmatpush.xpose.msra.mxu0 0.0
    %4508 = vmatpush.xpose.msra.mxu0 0.0
    %4509 = vmatpush.xpose.msra.mxu0 0.0
    %4510 = vmatpush.xpose.msra.mxu0 0.0
    %4511 = vmatpush.xpose.msra.mxu0 0.0
    %4512 = vmatpush.xpose.msra.mxu0 %v4495
    %4513 = vmatmul.f32.gmra.mxu0 %v4493
    %v4514 = vpop.f32.mrf.mxu0
    %v4515 = vadd.f32 0.0, %v4514
    %4516 = vdwg.mxu0
    %4517 = vrot.lane.b32.xlu0 %v4312, 124
    %v4518 = vpop.permute.xlu0 %4517
    %4519 = vrot.lane.b32.xlu0 %v4312, 92
    %v4520 = vpop.permute.xlu0 %4519
    %v4521 = vsel %vm283, %v4518, 0
    %v4523 = vsel %vm283, %v4520, 0
    %4525 = vmatpush.xpose.msra.mxu0 0.0
    %4526 = vmatpush.xpose.msra.mxu0 0.0
    %4527 = vmatpush.xpose.msra.mxu0 0.0
    %4528 = vmatpush.xpose.msra.mxu0 0.0
    %4529 = vmatpush.xpose.msra.mxu0 0.0
    %4530 = vmatpush.xpose.msra.mxu0 0.0
    %4531 = vmatpush.xpose.msra.mxu0 0.0
    %4532 = vmatpush.xpose.msra.mxu0 0.0
    %4533 = vmatpush.xpose.msra.mxu0 0.0
    %4534 = vmatpush.xpose.msra.mxu0 0.0
    %4535 = vmatpush.xpose.msra.mxu0 0.0
    %4536 = vmatpush.xpose.msra.mxu0 0.0
    %4537 = vmatpush.xpose.msra.mxu0 0.0
    %4538 = vmatpush.xpose.msra.mxu0 0.0
    %4539 = vmatpush.xpose.msra.mxu0 0.0
    %4540 = vmatpush.xpose.msra.mxu0 %v4523
    %4541 = vmatmul.f32.gmra.mxu0 %v4521
    %v4542 = vpop.f32.mrf.mxu0
    %v4543 = vadd.f32 0.0, %v4542
    %4544 = vdwg.mxu0
    %v4545 = vsel %vm335, %v4515, -inf
    %4546 = vmax.xlane.f32.xlu0 %v4545
    %v4547 = vpop.xlane.xlu0 %4546
    %v4548 = vsel %vm335, %v4543, -inf
    %4549 = vmax.xlane.f32.xlu0 %v4548
    %v4550 = vpop.xlane.xlu0 %4549
    %v4551 = vsub.f32 %v4515, %v4547
    %v4552 = vsub.f32 %v4543, %v4550
    %v4553 = vmul.f32 %v4551, 1.442695
    %v4554 = vpow.pop %v4553
    %v4555 = vmul.f32 %v4552, 1.442695
    %v4556 = vpow.pop %v4555
    %v4557 = vsel %vm335, %v4554, 0.0
    %4558 = vadd.xlane.f32.xlu0 %v4557
    %v4559 = vpop.xlane.xlu0 %4558
    %v4560 = vsel %vm335, %v4556, 0.0
    %4561 = vadd.xlane.f32.xlu0 %v4560
    %v4562 = vpop.xlane.xlu0 %4561
    %v4563 = vrcp.pop %v4559
    %v4564 = vrcp.pop %v4562
    %v4565 = vmul.f32 %v4554, %v4563
    %v4566 = vmul.f32 %v4556, %v4564
    %4568 = vrot.lane.b32.xlu0 %v4349, 96
    %v4569 = vpop.permute.xlu0 %4568
    %v4572 = vsel %vm335, %v4565, 0
    %4574 = vmatpush.msra.mxu0 0.0
    %4575 = vmatpush.msra.mxu0 0.0
    %4576 = vmatpush.msra.mxu0 0.0
    %4577 = vmatpush.msra.mxu0 0.0
    %4578 = vmatpush.msra.mxu0 0.0
    %4579 = vmatpush.msra.mxu0 0.0
    %4580 = vmatpush.msra.mxu0 0.0
    %4581 = vmatpush.msra.mxu0 0.0
    %4582 = vmatpush.msra.mxu0 0.0
    %4583 = vmatpush.msra.mxu0 0.0
    %4584 = vmatpush.msra.mxu0 0.0
    %4585 = vmatpush.msra.mxu0 0.0
    %4586 = vmatpush.msra.mxu0 0.0
    %4587 = vmatpush.msra.mxu0 0.0
    %4588 = vmatpush.msra.mxu0 0.0
    %4589 = vmatpush.msra.mxu0 %v4569
    %4590 = vmatmul.f32.gmra.mxu0 %v4572
    %v4591 = vpop.f32.mrf.mxu0
    %v4592 = vadd.f32 0.0, %v4591
    %4593 = vdwg.mxu0
    %4595 = vrot.lane.b32.xlu0 %v4351, 96
    %v4596 = vpop.permute.xlu0 %4595
    %v4599 = vsel %vm335, %v4566, 0
    %4601 = vmatpush.msra.mxu0 0.0
    %4602 = vmatpush.msra.mxu0 0.0
    %4603 = vmatpush.msra.mxu0 0.0
    %4604 = vmatpush.msra.mxu0 0.0
    %4605 = vmatpush.msra.mxu0 0.0
    %4606 = vmatpush.msra.mxu0 0.0
    %4607 = vmatpush.msra.mxu0 0.0
    %4608 = vmatpush.msra.mxu0 0.0
    %4609 = vmatpush.msra.mxu0 0.0
    %4610 = vmatpush.msra.mxu0 0.0
    %4611 = vmatpush.msra.mxu0 0.0
    %4612 = vmatpush.msra.mxu0 0.0
    %4613 = vmatpush.msra.mxu0 0.0
    %4614 = vmatpush.msra.mxu0 0.0
    %4615 = vmatpush.msra.mxu0 0.0
    %4616 = vmatpush.msra.mxu0 %v4596
    %4617 = vmatmul.f32.gmra.mxu0 %v4599
    %v4618 = vpop.f32.mrf.mxu0
    %v4619 = vadd.f32 0.0, %v4618
    %4620 = vdwg.mxu0
    %v4621 = vadd.f32 %v4464, %v4592
    %v4622 = vadd.f32 %v4487, %v4619
    %4623 = vrot.lane.b32.xlu0 %v4310, 120
    %v4624 = vpop.permute.xlu0 %4623
    %4625 = vrot.lane.b32.xlu0 %v4310, 88
    %v4626 = vpop.permute.xlu0 %4625
    %v4627 = vsel %vm283, %v4624, 0
    %v4629 = vsel %vm283, %v4626, 0
    %4631 = vmatpush.xpose.msra.mxu0 0.0
    %4632 = vmatpush.xpose.msra.mxu0 0.0
    %4633 = vmatpush.xpose.msra.mxu0 0.0
    %4634 = vmatpush.xpose.msra.mxu0 0.0
    %4635 = vmatpush.xpose.msra.mxu0 0.0
    %4636 = vmatpush.xpose.msra.mxu0 0.0
    %4637 = vmatpush.xpose.msra.mxu0 0.0
    %4638 = vmatpush.xpose.msra.mxu0 0.0
    %4639 = vmatpush.xpose.msra.mxu0 0.0
    %4640 = vmatpush.xpose.msra.mxu0 0.0
    %4641 = vmatpush.xpose.msra.mxu0 0.0
    %4642 = vmatpush.xpose.msra.mxu0 0.0
    %4643 = vmatpush.xpose.msra.mxu0 0.0
    %4644 = vmatpush.xpose.msra.mxu0 0.0
    %4645 = vmatpush.xpose.msra.mxu0 0.0
    %4646 = vmatpush.xpose.msra.mxu0 %v4629
    %4647 = vmatmul.f32.gmra.mxu0 %v4627
    %v4648 = vpop.f32.mrf.mxu0
    %v4649 = vadd.f32 0.0, %v4648
    %4650 = vdwg.mxu0
    %4651 = vrot.lane.b32.xlu0 %v4312, 120
    %v4652 = vpop.permute.xlu0 %4651
    %4653 = vrot.lane.b32.xlu0 %v4312, 88
    %v4654 = vpop.permute.xlu0 %4653
    %v4655 = vsel %vm283, %v4652, 0
    %v4657 = vsel %vm283, %v4654, 0
    %4659 = vmatpush.xpose.msra.mxu0 0.0
    %4660 = vmatpush.xpose.msra.mxu0 0.0
    %4661 = vmatpush.xpose.msra.mxu0 0.0
    %4662 = vmatpush.xpose.msra.mxu0 0.0
    %4663 = vmatpush.xpose.msra.mxu0 0.0
    %4664 = vmatpush.xpose.msra.mxu0 0.0
    %4665 = vmatpush.xpose.msra.mxu0 0.0
    %4666 = vmatpush.xpose.msra.mxu0 0.0
    %4667 = vmatpush.xpose.msra.mxu0 0.0
    %4668 = vmatpush.xpose.msra.mxu0 0.0
    %4669 = vmatpush.xpose.msra.mxu0 0.0
    %4670 = vmatpush.xpose.msra.mxu0 0.0
    %4671 = vmatpush.xpose.msra.mxu0 0.0
    %4672 = vmatpush.xpose.msra.mxu0 0.0
    %4673 = vmatpush.xpose.msra.mxu0 0.0
    %4674 = vmatpush.xpose.msra.mxu0 %v4657
    %4675 = vmatmul.f32.gmra.mxu0 %v4655
    %v4676 = vpop.f32.mrf.mxu0
    %v4677 = vadd.f32 0.0, %v4676
    %4678 = vdwg.mxu0
    %v4679 = vsel %vm335, %v4649, -inf
    %4680 = vmax.xlane.f32.xlu0 %v4679
    %v4681 = vpop.xlane.xlu0 %4680
    %v4682 = vsel %vm335, %v4677, -inf
    %4683 = vmax.xlane.f32.xlu0 %v4682
    %v4684 = vpop.xlane.xlu0 %4683
    %v4685 = vsub.f32 %v4649, %v4681
    %v4686 = vsub.f32 %v4677, %v4684
    %v4687 = vmul.f32 %v4685, 1.442695
    %v4688 = vpow.pop %v4687
    %v4689 = vmul.f32 %v4686, 1.442695
    %v4690 = vpow.pop %v4689
    %v4691 = vsel %vm335, %v4688, 0.0
    %4692 = vadd.xlane.f32.xlu0 %v4691
    %v4693 = vpop.xlane.xlu0 %4692
    %v4694 = vsel %vm335, %v4690, 0.0
    %4695 = vadd.xlane.f32.xlu0 %v4694
    %v4696 = vpop.xlane.xlu0 %4695
    %v4697 = vrcp.pop %v4693
    %v4698 = vrcp.pop %v4696
    %v4699 = vmul.f32 %v4688, %v4697
    %v4700 = vmul.f32 %v4690, %v4698
    %4701 = vrot.lane.b32.xlu0 %v4349, 64
    %v4702 = vpop.permute.xlu0 %4701
    %v4705 = vsel %vm335, %v4699, 0
    %4707 = vmatpush.msra.mxu0 0.0
    %4708 = vmatpush.msra.mxu0 0.0
    %4709 = vmatpush.msra.mxu0 0.0
    %4710 = vmatpush.msra.mxu0 0.0
    %4711 = vmatpush.msra.mxu0 0.0
    %4712 = vmatpush.msra.mxu0 0.0
    %4713 = vmatpush.msra.mxu0 0.0
    %4714 = vmatpush.msra.mxu0 0.0
    %4715 = vmatpush.msra.mxu0 0.0
    %4716 = vmatpush.msra.mxu0 0.0
    %4717 = vmatpush.msra.mxu0 0.0
    %4718 = vmatpush.msra.mxu0 0.0
    %4719 = vmatpush.msra.mxu0 0.0
    %4720 = vmatpush.msra.mxu0 0.0
    %4721 = vmatpush.msra.mxu0 0.0
    %4722 = vmatpush.msra.mxu0 %v4702
    %4723 = vmatmul.f32.gmra.mxu0 %v4705
    %v4724 = vpop.f32.mrf.mxu0
    %v4725 = vadd.f32 0.0, %v4724
    %4726 = vdwg.mxu0
    %4727 = vrot.lane.b32.xlu0 %v4351, 64
    %v4728 = vpop.permute.xlu0 %4727
    %v4731 = vsel %vm335, %v4700, 0
    %4733 = vmatpush.msra.mxu0 0.0
    %4734 = vmatpush.msra.mxu0 0.0
    %4735 = vmatpush.msra.mxu0 0.0
    %4736 = vmatpush.msra.mxu0 0.0
    %4737 = vmatpush.msra.mxu0 0.0
    %4738 = vmatpush.msra.mxu0 0.0
    %4739 = vmatpush.msra.mxu0 0.0
    %4740 = vmatpush.msra.mxu0 0.0
    %4741 = vmatpush.msra.mxu0 0.0
    %4742 = vmatpush.msra.mxu0 0.0
    %4743 = vmatpush.msra.mxu0 0.0
    %4744 = vmatpush.msra.mxu0 0.0
    %4745 = vmatpush.msra.mxu0 0.0
    %4746 = vmatpush.msra.mxu0 0.0
    %4747 = vmatpush.msra.mxu0 0.0
    %4748 = vmatpush.msra.mxu0 %v4728
    %4749 = vmatmul.f32.gmra.mxu0 %v4731
    %v4750 = vpop.f32.mrf.mxu0
    %v4751 = vadd.f32 0.0, %v4750
    %4752 = vdwg.mxu0
    %v4753 = vadd.f32 %v4621, %v4725
    %v4754 = vadd.f32 %v4622, %v4751
    %4755 = vrot.lane.b32.xlu0 %v4310, 116
    %v4756 = vpop.permute.xlu0 %4755
    %4757 = vrot.lane.b32.xlu0 %v4310, 84
    %v4758 = vpop.permute.xlu0 %4757
    %v4759 = vsel %vm283, %v4756, 0
    %v4761 = vsel %vm283, %v4758, 0
    %4763 = vmatpush.xpose.msra.mxu0 0.0
    %4764 = vmatpush.xpose.msra.mxu0 0.0
    %4765 = vmatpush.xpose.msra.mxu0 0.0
    %4766 = vmatpush.xpose.msra.mxu0 0.0
    %4767 = vmatpush.xpose.msra.mxu0 0.0
    %4768 = vmatpush.xpose.msra.mxu0 0.0
    %4769 = vmatpush.xpose.msra.mxu0 0.0
    %4770 = vmatpush.xpose.msra.mxu0 0.0
    %4771 = vmatpush.xpose.msra.mxu0 0.0
    %4772 = vmatpush.xpose.msra.mxu0 0.0
    %4773 = vmatpush.xpose.msra.mxu0 0.0
    %4774 = vmatpush.xpose.msra.mxu0 0.0
    %4775 = vmatpush.xpose.msra.mxu0 0.0
    %4776 = vmatpush.xpose.msra.mxu0 0.0
    %4777 = vmatpush.xpose.msra.mxu0 0.0
    %4778 = vmatpush.xpose.msra.mxu0 %v4761
    %4779 = vmatmul.f32.gmra.mxu0 %v4759
    %v4780 = vpop.f32.mrf.mxu0
    %v4781 = vadd.f32 0.0, %v4780
    %4782 = vdwg.mxu0
    %4783 = vrot.lane.b32.xlu0 %v4312, 116
    %v4784 = vpop.permute.xlu0 %4783
    %4785 = vrot.lane.b32.xlu0 %v4312, 84
    %v4786 = vpop.permute.xlu0 %4785
    %v4787 = vsel %vm283, %v4784, 0
    %v4789 = vsel %vm283, %v4786, 0
    %4791 = vmatpush.xpose.msra.mxu0 0.0
    %4792 = vmatpush.xpose.msra.mxu0 0.0
    %4793 = vmatpush.xpose.msra.mxu0 0.0
    %4794 = vmatpush.xpose.msra.mxu0 0.0
    %4795 = vmatpush.xpose.msra.mxu0 0.0
    %4796 = vmatpush.xpose.msra.mxu0 0.0
    %4797 = vmatpush.xpose.msra.mxu0 0.0
    %4798 = vmatpush.xpose.msra.mxu0 0.0
    %4799 = vmatpush.xpose.msra.mxu0 0.0
    %4800 = vmatpush.xpose.msra.mxu0 0.0
    %4801 = vmatpush.xpose.msra.mxu0 0.0
    %4802 = vmatpush.xpose.msra.mxu0 0.0
    %4803 = vmatpush.xpose.msra.mxu0 0.0
    %4804 = vmatpush.xpose.msra.mxu0 0.0
    %4805 = vmatpush.xpose.msra.mxu0 0.0
    %4806 = vmatpush.xpose.msra.mxu0 %v4789
    %4807 = vmatmul.f32.gmra.mxu0 %v4787
    %v4808 = vpop.f32.mrf.mxu0
    %v4809 = vadd.f32 0.0, %v4808
    %4810 = vdwg.mxu0
    %v4811 = vsel %vm335, %v4781, -inf
    %4812 = vmax.xlane.f32.xlu0 %v4811
    %v4813 = vpop.xlane.xlu0 %4812
    %v4814 = vsel %vm335, %v4809, -inf
    %4815 = vmax.xlane.f32.xlu0 %v4814
    %v4816 = vpop.xlane.xlu0 %4815
    %v4817 = vsub.f32 %v4781, %v4813
    %v4818 = vsub.f32 %v4809, %v4816
    %v4819 = vmul.f32 %v4817, 1.442695
    %v4820 = vpow.pop %v4819
    %v4821 = vmul.f32 %v4818, 1.442695
    %v4822 = vpow.pop %v4821
    %v4823 = vsel %vm335, %v4820, 0.0
    %4824 = vadd.xlane.f32.xlu0 %v4823
    %v4825 = vpop.xlane.xlu0 %4824
    %v4826 = vsel %vm335, %v4822, 0.0
    %4827 = vadd.xlane.f32.xlu0 %v4826
    %v4828 = vpop.xlane.xlu0 %4827
    %v4829 = vrcp.pop %v4825
    %v4830 = vrcp.pop %v4828
    %v4831 = vmul.f32 %v4820, %v4829
    %v4832 = vmul.f32 %v4822, %v4830
    %4833 = vrot.lane.b32.xlu0 %v4349, 32
    %v4834 = vpop.permute.xlu0 %4833
    %v4837 = vsel %vm335, %v4831, 0
    %4839 = vmatpush.msra.mxu0 0.0
    %4840 = vmatpush.msra.mxu0 0.0
    %4841 = vmatpush.msra.mxu0 0.0
    %4842 = vmatpush.msra.mxu0 0.0
    %4843 = vmatpush.msra.mxu0 0.0
    %4844 = vmatpush.msra.mxu0 0.0
    %4845 = vmatpush.msra.mxu0 0.0
    %4846 = vmatpush.msra.mxu0 0.0
    %4847 = vmatpush.msra.mxu0 0.0
    %4848 = vmatpush.msra.mxu0 0.0
    %4849 = vmatpush.msra.mxu0 0.0
    %4850 = vmatpush.msra.mxu0 0.0
    %4851 = vmatpush.msra.mxu0 0.0
    %4852 = vmatpush.msra.mxu0 0.0
    %4853 = vmatpush.msra.mxu0 0.0
    %4854 = vmatpush.msra.mxu0 %v4834
    %4855 = vmatmul.f32.gmra.mxu0 %v4837
    %v4856 = vpop.f32.mrf.mxu0
    %v4857 = vadd.f32 0.0, %v4856
    %4858 = vdwg.mxu0
    %4859 = vrot.lane.b32.xlu0 %v4351, 32
    %v4860 = vpop.permute.xlu0 %4859
    %v4863 = vsel %vm335, %v4832, 0
    %4865 = vmatpush.msra.mxu0 0.0
    %4866 = vmatpush.msra.mxu0 0.0
    %4867 = vmatpush.msra.mxu0 0.0
    %4868 = vmatpush.msra.mxu0 0.0
    %4869 = vmatpush.msra.mxu0 0.0
    %4870 = vmatpush.msra.mxu0 0.0
    %4871 = vmatpush.msra.mxu0 0.0
    %4872 = vmatpush.msra.mxu0 0.0
    %4873 = vmatpush.msra.mxu0 0.0
    %4874 = vmatpush.msra.mxu0 0.0
    %4875 = vmatpush.msra.mxu0 0.0
    %4876 = vmatpush.msra.mxu0 0.0
    %4877 = vmatpush.msra.mxu0 0.0
    %4878 = vmatpush.msra.mxu0 0.0
    %4879 = vmatpush.msra.mxu0 0.0
    %4880 = vmatpush.msra.mxu0 %v4860
    %4881 = vmatmul.f32.gmra.mxu0 %v4863
    %v4882 = vpop.f32.mrf.mxu0
    %v4883 = vadd.f32 0.0, %v4882
    %4884 = vdwg.mxu0
    %v4885 = vadd.f32 %v4753, %v4857
    %v4886 = vadd.f32 %v4754, %v4883
    %4887 = vrot.lane.b32.xlu0 %v4310, 112
    %v4888 = vpop.permute.xlu0 %4887
    %4889 = vrot.lane.b32.xlu0 %v4310, 80
    %v4890 = vpop.permute.xlu0 %4889
    %v4891 = vsel %vm283, %v4888, 0
    %v4893 = vsel %vm283, %v4890, 0
    %4895 = vmatpush.xpose.msra.mxu0 0.0
    %4896 = vmatpush.xpose.msra.mxu0 0.0
    %4897 = vmatpush.xpose.msra.mxu0 0.0
    %4898 = vmatpush.xpose.msra.mxu0 0.0
    %4899 = vmatpush.xpose.msra.mxu0 0.0
    %4900 = vmatpush.xpose.msra.mxu0 0.0
    %4901 = vmatpush.xpose.msra.mxu0 0.0
    %4902 = vmatpush.xpose.msra.mxu0 0.0
    %4903 = vmatpush.xpose.msra.mxu0 0.0
    %4904 = vmatpush.xpose.msra.mxu0 0.0
    %4905 = vmatpush.xpose.msra.mxu0 0.0
    %4906 = vmatpush.xpose.msra.mxu0 0.0
    %4907 = vmatpush.xpose.msra.mxu0 0.0
    %4908 = vmatpush.xpose.msra.mxu0 0.0
    %4909 = vmatpush.xpose.msra.mxu0 0.0
    %4910 = vmatpush.xpose.msra.mxu0 %v4893
    %4911 = vmatmul.f32.gmra.mxu0 %v4891
    %v4912 = vpop.f32.mrf.mxu0
    %v4913 = vadd.f32 0.0, %v4912
    %4914 = vdwg.mxu0
    %4915 = vrot.lane.b32.xlu0 %v4312, 112
    %v4916 = vpop.permute.xlu0 %4915
    %4917 = vrot.lane.b32.xlu0 %v4312, 80
    %v4918 = vpop.permute.xlu0 %4917
    %v4919 = vsel %vm283, %v4916, 0
    %v4921 = vsel %vm283, %v4918, 0
    %4923 = vmatpush.xpose.msra.mxu0 0.0
    %4924 = vmatpush.xpose.msra.mxu0 0.0
    %4925 = vmatpush.xpose.msra.mxu0 0.0
    %4926 = vmatpush.xpose.msra.mxu0 0.0
    %4927 = vmatpush.xpose.msra.mxu0 0.0
    %4928 = vmatpush.xpose.msra.mxu0 0.0
    %4929 = vmatpush.xpose.msra.mxu0 0.0
    %4930 = vmatpush.xpose.msra.mxu0 0.0
    %4931 = vmatpush.xpose.msra.mxu0 0.0
    %4932 = vmatpush.xpose.msra.mxu0 0.0
    %4933 = vmatpush.xpose.msra.mxu0 0.0
    %4934 = vmatpush.xpose.msra.mxu0 0.0
    %4935 = vmatpush.xpose.msra.mxu0 0.0
    %4936 = vmatpush.xpose.msra.mxu0 0.0
    %4937 = vmatpush.xpose.msra.mxu0 0.0
    %4938 = vmatpush.xpose.msra.mxu0 %v4921
    %4939 = vmatmul.f32.gmra.mxu0 %v4919
    %v4940 = vpop.f32.mrf.mxu0
    %v4941 = vadd.f32 0.0, %v4940
    %4942 = vdwg.mxu0
    %v4943 = vsel %vm335, %v4913, -inf
    %4944 = vmax.xlane.f32.xlu0 %v4943
    %v4945 = vpop.xlane.xlu0 %4944
    %v4946 = vsel %vm335, %v4941, -inf
    %4947 = vmax.xlane.f32.xlu0 %v4946
    %v4948 = vpop.xlane.xlu0 %4947
    %v4949 = vsub.f32 %v4913, %v4945
    %v4950 = vsub.f32 %v4941, %v4948
    %v4951 = vmul.f32 %v4949, 1.442695
    %v4952 = vpow.pop %v4951
    %v4953 = vmul.f32 %v4950, 1.442695
    %v4954 = vpow.pop %v4953
    %v4955 = vsel %vm335, %v4952, 0.0
    %4956 = vadd.xlane.f32.xlu0 %v4955
    %v4957 = vpop.xlane.xlu0 %4956
    %v4958 = vsel %vm335, %v4954, 0.0
    %4959 = vadd.xlane.f32.xlu0 %v4958
    %v4960 = vpop.xlane.xlu0 %4959
    %v4961 = vrcp.pop %v4957
    %v4962 = vrcp.pop %v4960
    %v4963 = vmul.f32 %v4952, %v4961
    %v4964 = vmul.f32 %v4954, %v4962
    %v4966 = vsel %vm335, %v4963, 0
    %4968 = vmatpush.msra.mxu0 0.0
    %4969 = vmatpush.msra.mxu0 0.0
    %4970 = vmatpush.msra.mxu0 0.0
    %4971 = vmatpush.msra.mxu0 0.0
    %4972 = vmatpush.msra.mxu0 0.0
    %4973 = vmatpush.msra.mxu0 0.0
    %4974 = vmatpush.msra.mxu0 0.0
    %4975 = vmatpush.msra.mxu0 0.0
    %4976 = vmatpush.msra.mxu0 0.0
    %4977 = vmatpush.msra.mxu0 0.0
    %4978 = vmatpush.msra.mxu0 0.0
    %4979 = vmatpush.msra.mxu0 0.0
    %4980 = vmatpush.msra.mxu0 0.0
    %4981 = vmatpush.msra.mxu0 0.0
    %4982 = vmatpush.msra.mxu0 0.0
    %4983 = vmatpush.msra.mxu0 %v4363
    %4984 = vmatmul.f32.gmra.mxu0 %v4966
    %v4985 = vpop.f32.mrf.mxu0
    %v4986 = vadd.f32 0.0, %v4985
    %4987 = vdwg.mxu0
    %v4989 = vsel %vm335, %v4964, 0
    %4991 = vmatpush.msra.mxu0 0.0
    %4992 = vmatpush.msra.mxu0 0.0
    %4993 = vmatpush.msra.mxu0 0.0
    %4994 = vmatpush.msra.mxu0 0.0
    %4995 = vmatpush.msra.mxu0 0.0
    %4996 = vmatpush.msra.mxu0 0.0
    %4997 = vmatpush.msra.mxu0 0.0
    %4998 = vmatpush.msra.mxu0 0.0
    %4999 = vmatpush.msra.mxu0 0.0
    %5000 = vmatpush.msra.mxu0 0.0
    %5001 = vmatpush.msra.mxu0 0.0
    %5002 = vmatpush.msra.mxu0 0.0
    %5003 = vmatpush.msra.mxu0 0.0
    %5004 = vmatpush.msra.mxu0 0.0
    %5005 = vmatpush.msra.mxu0 0.0
    %5006 = vmatpush.msra.mxu0 %v4365
    %5007 = vmatmul.f32.gmra.mxu0 %v4989
    %v5008 = vpop.f32.mrf.mxu0
    %v5009 = vadd.f32 0.0, %v5008
    %5010 = vdwg.mxu0
    %v5011 = vadd.f32 %v4885, %v4986
    %v5012 = vadd.f32 %v4886, %v5009
    %5013 = vrot.lane.b32.xlu0 %v4310, 108
    %v5014 = vpop.permute.xlu0 %5013
    %5015 = vrot.lane.b32.xlu0 %v4310, 76
    %v5016 = vpop.permute.xlu0 %5015
    %v5017 = vsel %vm283, %v5014, 0
    %v5019 = vsel %vm283, %v5016, 0
    %5021 = vmatpush.xpose.msra.mxu0 0.0
    %5022 = vmatpush.xpose.msra.mxu0 0.0
    %5023 = vmatpush.xpose.msra.mxu0 0.0
    %5024 = vmatpush.xpose.msra.mxu0 0.0
    %5025 = vmatpush.xpose.msra.mxu0 0.0
    %5026 = vmatpush.xpose.msra.mxu0 0.0
    %5027 = vmatpush.xpose.msra.mxu0 0.0
    %5028 = vmatpush.xpose.msra.mxu0 0.0
    %5029 = vmatpush.xpose.msra.mxu0 0.0
    %5030 = vmatpush.xpose.msra.mxu0 0.0
    %5031 = vmatpush.xpose.msra.mxu0 0.0
    %5032 = vmatpush.xpose.msra.mxu0 0.0
    %5033 = vmatpush.xpose.msra.mxu0 0.0
    %5034 = vmatpush.xpose.msra.mxu0 0.0
    %5035 = vmatpush.xpose.msra.mxu0 0.0
    %5036 = vmatpush.xpose.msra.mxu0 %v5019
    %5037 = vmatmul.f32.gmra.mxu0 %v5017
    %v5038 = vpop.f32.mrf.mxu0
    %v5039 = vadd.f32 0.0, %v5038
    %5040 = vdwg.mxu0
    %5041 = vrot.lane.b32.xlu0 %v4312, 108
    %v5042 = vpop.permute.xlu0 %5041
    %5043 = vrot.lane.b32.xlu0 %v4312, 76
    %v5044 = vpop.permute.xlu0 %5043
    %v5045 = vsel %vm283, %v5042, 0
    %v5047 = vsel %vm283, %v5044, 0
    %5049 = vmatpush.xpose.msra.mxu0 0.0
    %5050 = vmatpush.xpose.msra.mxu0 0.0
    %5051 = vmatpush.xpose.msra.mxu0 0.0
    %5052 = vmatpush.xpose.msra.mxu0 0.0
    %5053 = vmatpush.xpose.msra.mxu0 0.0
    %5054 = vmatpush.xpose.msra.mxu0 0.0
    %5055 = vmatpush.xpose.msra.mxu0 0.0
    %5056 = vmatpush.xpose.msra.mxu0 0.0
    %5057 = vmatpush.xpose.msra.mxu0 0.0
    %5058 = vmatpush.xpose.msra.mxu0 0.0
    %5059 = vmatpush.xpose.msra.mxu0 0.0
    %5060 = vmatpush.xpose.msra.mxu0 0.0
    %5061 = vmatpush.xpose.msra.mxu0 0.0
    %5062 = vmatpush.xpose.msra.mxu0 0.0
    %5063 = vmatpush.xpose.msra.mxu0 0.0
    %5064 = vmatpush.xpose.msra.mxu0 %v5047
    %5065 = vmatmul.f32.gmra.mxu0 %v5045
    %v5066 = vpop.f32.mrf.mxu0
    %v5067 = vadd.f32 0.0, %v5066
    %5068 = vdwg.mxu0
    %v5069 = vsel %vm335, %v5039, -inf
    %5070 = vmax.xlane.f32.xlu0 %v5069
    %v5071 = vpop.xlane.xlu0 %5070
    %v5072 = vsel %vm335, %v5067, -inf
    %5073 = vmax.xlane.f32.xlu0 %v5072
    %v5074 = vpop.xlane.xlu0 %5073
    %v5075 = vsub.f32 %v5039, %v5071
    %v5076 = vsub.f32 %v5067, %v5074
    %v5077 = vmul.f32 %v5075, 1.442695
    %v5078 = vpow.pop %v5077
    %v5079 = vmul.f32 %v5076, 1.442695
    %v5080 = vpow.pop %v5079
    %v5081 = vsel %vm335, %v5078, 0.0
    %5082 = vadd.xlane.f32.xlu0 %v5081
    %v5083 = vpop.xlane.xlu0 %5082
    %v5084 = vsel %vm335, %v5080, 0.0
    %5085 = vadd.xlane.f32.xlu0 %v5084
    %v5086 = vpop.xlane.xlu0 %5085
    %v5087 = vrcp.pop %v5083
    %v5088 = vrcp.pop %v5086
    %v5089 = vmul.f32 %v5078, %v5087
    %v5090 = vmul.f32 %v5080, %v5088
    %5092 = vrot.lane.b32.xlu0 %v4363, 96
    %v5093 = vpop.permute.xlu0 %5092
    %v5096 = vsel %vm335, %v5089, 0
    %5098 = vmatpush.msra.mxu0 0.0
    %5099 = vmatpush.msra.mxu0 0.0
    %5100 = vmatpush.msra.mxu0 0.0
    %5101 = vmatpush.msra.mxu0 0.0
    %5102 = vmatpush.msra.mxu0 0.0
    %5103 = vmatpush.msra.mxu0 0.0
    %5104 = vmatpush.msra.mxu0 0.0
    %5105 = vmatpush.msra.mxu0 0.0
    %5106 = vmatpush.msra.mxu0 0.0
    %5107 = vmatpush.msra.mxu0 0.0
    %5108 = vmatpush.msra.mxu0 0.0
    %5109 = vmatpush.msra.mxu0 0.0
    %5110 = vmatpush.msra.mxu0 0.0
    %5111 = vmatpush.msra.mxu0 0.0
    %5112 = vmatpush.msra.mxu0 0.0
    %5113 = vmatpush.msra.mxu0 %v5093
    %5114 = vmatmul.f32.gmra.mxu0 %v5096
    %v5115 = vpop.f32.mrf.mxu0
    %v5116 = vadd.f32 0.0, %v5115
    %5117 = vdwg.mxu0
    %5119 = vrot.lane.b32.xlu0 %v4365, 96
    %v5120 = vpop.permute.xlu0 %5119
    %v5123 = vsel %vm335, %v5090, 0
    %5125 = vmatpush.msra.mxu0 0.0
    %5126 = vmatpush.msra.mxu0 0.0
    %5127 = vmatpush.msra.mxu0 0.0
    %5128 = vmatpush.msra.mxu0 0.0
    %5129 = vmatpush.msra.mxu0 0.0
    %5130 = vmatpush.msra.mxu0 0.0
    %5131 = vmatpush.msra.mxu0 0.0
    %5132 = vmatpush.msra.mxu0 0.0
    %5133 = vmatpush.msra.mxu0 0.0
    %5134 = vmatpush.msra.mxu0 0.0
    %5135 = vmatpush.msra.mxu0 0.0
    %5136 = vmatpush.msra.mxu0 0.0
    %5137 = vmatpush.msra.mxu0 0.0
    %5138 = vmatpush.msra.mxu0 0.0
    %5139 = vmatpush.msra.mxu0 0.0
    %5140 = vmatpush.msra.mxu0 %v5120
    %5141 = vmatmul.f32.gmra.mxu0 %v5123
    %v5142 = vpop.f32.mrf.mxu0
    %v5143 = vadd.f32 0.0, %v5142
    %5144 = vdwg.mxu0
    %v5145 = vadd.f32 %v5011, %v5116
    %v5146 = vadd.f32 %v5012, %v5143
    %5147 = vrot.lane.b32.xlu0 %v4310, 104
    %v5148 = vpop.permute.xlu0 %5147
    %5149 = vrot.lane.b32.xlu0 %v4310, 72
    %v5150 = vpop.permute.xlu0 %5149
    %v5151 = vsel %vm283, %v5148, 0
    %v5153 = vsel %vm283, %v5150, 0
    %5155 = vmatpush.xpose.msra.mxu0 0.0
    %5156 = vmatpush.xpose.msra.mxu0 0.0
    %5157 = vmatpush.xpose.msra.mxu0 0.0
    %5158 = vmatpush.xpose.msra.mxu0 0.0
    %5159 = vmatpush.xpose.msra.mxu0 0.0
    %5160 = vmatpush.xpose.msra.mxu0 0.0
    %5161 = vmatpush.xpose.msra.mxu0 0.0
    %5162 = vmatpush.xpose.msra.mxu0 0.0
    %5163 = vmatpush.xpose.msra.mxu0 0.0
    %5164 = vmatpush.xpose.msra.mxu0 0.0
    %5165 = vmatpush.xpose.msra.mxu0 0.0
    %5166 = vmatpush.xpose.msra.mxu0 0.0
    %5167 = vmatpush.xpose.msra.mxu0 0.0
    %5168 = vmatpush.xpose.msra.mxu0 0.0
    %5169 = vmatpush.xpose.msra.mxu0 0.0
    %5170 = vmatpush.xpose.msra.mxu0 %v5153
    %5171 = vmatmul.f32.gmra.mxu0 %v5151
    %v5172 = vpop.f32.mrf.mxu0
    %v5173 = vadd.f32 0.0, %v5172
    %5174 = vdwg.mxu0
    %5175 = vrot.lane.b32.xlu0 %v4312, 104
    %v5176 = vpop.permute.xlu0 %5175
    %5177 = vrot.lane.b32.xlu0 %v4312, 72
    %v5178 = vpop.permute.xlu0 %5177
    %v5179 = vsel %vm283, %v5176, 0
    %v5181 = vsel %vm283, %v5178, 0
    %5183 = vmatpush.xpose.msra.mxu0 0.0
    %5184 = vmatpush.xpose.msra.mxu0 0.0
    %5185 = vmatpush.xpose.msra.mxu0 0.0
    %5186 = vmatpush.xpose.msra.mxu0 0.0
    %5187 = vmatpush.xpose.msra.mxu0 0.0
    %5188 = vmatpush.xpose.msra.mxu0 0.0
    %5189 = vmatpush.xpose.msra.mxu0 0.0
    %5190 = vmatpush.xpose.msra.mxu0 0.0
    %5191 = vmatpush.xpose.msra.mxu0 0.0
    %5192 = vmatpush.xpose.msra.mxu0 0.0
    %5193 = vmatpush.xpose.msra.mxu0 0.0
    %5194 = vmatpush.xpose.msra.mxu0 0.0
    %5195 = vmatpush.xpose.msra.mxu0 0.0
    %5196 = vmatpush.xpose.msra.mxu0 0.0
    %5197 = vmatpush.xpose.msra.mxu0 0.0
    %5198 = vmatpush.xpose.msra.mxu0 %v5181
    %5199 = vmatmul.f32.gmra.mxu0 %v5179
    %v5200 = vpop.f32.mrf.mxu0
    %v5201 = vadd.f32 0.0, %v5200
    %5202 = vdwg.mxu0
    %v5203 = vsel %vm335, %v5173, -inf
    %5204 = vmax.xlane.f32.xlu0 %v5203
    %v5205 = vpop.xlane.xlu0 %5204
    %v5206 = vsel %vm335, %v5201, -inf
    %5207 = vmax.xlane.f32.xlu0 %v5206
    %v5208 = vpop.xlane.xlu0 %5207
    %v5209 = vsub.f32 %v5173, %v5205
    %v5210 = vsub.f32 %v5201, %v5208
    %v5211 = vmul.f32 %v5209, 1.442695
    %v5212 = vpow.pop %v5211
    %v5213 = vmul.f32 %v5210, 1.442695
    %v5214 = vpow.pop %v5213
    %v5215 = vsel %vm335, %v5212, 0.0
    %5216 = vadd.xlane.f32.xlu0 %v5215
    %v5217 = vpop.xlane.xlu0 %5216
    %v5218 = vsel %vm335, %v5214, 0.0
    %5219 = vadd.xlane.f32.xlu0 %v5218
    %v5220 = vpop.xlane.xlu0 %5219
    %v5221 = vrcp.pop %v5217
    %v5222 = vrcp.pop %v5220
    %v5223 = vmul.f32 %v5212, %v5221
    %v5224 = vmul.f32 %v5214, %v5222
    %5225 = vrot.lane.b32.xlu0 %v4363, 64
    %v5226 = vpop.permute.xlu0 %5225
    %v5229 = vsel %vm335, %v5223, 0
    %5231 = vmatpush.msra.mxu0 0.0
    %5232 = vmatpush.msra.mxu0 0.0
    %5233 = vmatpush.msra.mxu0 0.0
    %5234 = vmatpush.msra.mxu0 0.0
    %5235 = vmatpush.msra.mxu0 0.0
    %5236 = vmatpush.msra.mxu0 0.0
    %5237 = vmatpush.msra.mxu0 0.0
    %5238 = vmatpush.msra.mxu0 0.0
    %5239 = vmatpush.msra.mxu0 0.0
    %5240 = vmatpush.msra.mxu0 0.0
    %5241 = vmatpush.msra.mxu0 0.0
    %5242 = vmatpush.msra.mxu0 0.0
    %5243 = vmatpush.msra.mxu0 0.0
    %5244 = vmatpush.msra.mxu0 0.0
    %5245 = vmatpush.msra.mxu0 0.0
    %5246 = vmatpush.msra.mxu0 %v5226
    %5247 = vmatmul.f32.gmra.mxu0 %v5229
    %v5248 = vpop.f32.mrf.mxu0
    %v5249 = vadd.f32 0.0, %v5248
    %5250 = vdwg.mxu0
    %5251 = vrot.lane.b32.xlu0 %v4365, 64
    %v5252 = vpop.permute.xlu0 %5251
    %v5255 = vsel %vm335, %v5224, 0
    %5257 = vmatpush.msra.mxu0 0.0
    %5258 = vmatpush.msra.mxu0 0.0
    %5259 = vmatpush.msra.mxu0 0.0
    %5260 = vmatpush.msra.mxu0 0.0
    %5261 = vmatpush.msra.mxu0 0.0
    %5262 = vmatpush.msra.mxu0 0.0
    %5263 = vmatpush.msra.mxu0 0.0
    %5264 = vmatpush.msra.mxu0 0.0
    %5265 = vmatpush.msra.mxu0 0.0
    %5266 = vmatpush.msra.mxu0 0.0
    %5267 = vmatpush.msra.mxu0 0.0
    %5268 = vmatpush.msra.mxu0 0.0
    %5269 = vmatpush.msra.mxu0 0.0
    %5270 = vmatpush.msra.mxu0 0.0
    %5271 = vmatpush.msra.mxu0 0.0
    %5272 = vmatpush.msra.mxu0 %v5252
    %5273 = vmatmul.f32.gmra.mxu0 %v5255
    %v5274 = vpop.f32.mrf.mxu0
    %v5275 = vadd.f32 0.0, %v5274
    %5276 = vdwg.mxu0
    %v5277 = vadd.f32 %v5145, %v5249
    %v5278 = vadd.f32 %v5146, %v5275
    %5279 = vrot.lane.b32.xlu0 %v4310, 100
    %v5280 = vpop.permute.xlu0 %5279
    %5281 = vrot.lane.b32.xlu0 %v4310, 68
    %v5282 = vpop.permute.xlu0 %5281
    %v5283 = vsel %vm283, %v5280, 0
    %v5285 = vsel %vm283, %v5282, 0
    %5287 = vmatpush.xpose.msra.mxu0 0.0
    %5288 = vmatpush.xpose.msra.mxu0 0.0
    %5289 = vmatpush.xpose.msra.mxu0 0.0
    %5290 = vmatpush.xpose.msra.mxu0 0.0
    %5291 = vmatpush.xpose.msra.mxu0 0.0
    %5292 = vmatpush.xpose.msra.mxu0 0.0
    %5293 = vmatpush.xpose.msra.mxu0 0.0
    %5294 = vmatpush.xpose.msra.mxu0 0.0
    %5295 = vmatpush.xpose.msra.mxu0 0.0
    %5296 = vmatpush.xpose.msra.mxu0 0.0
    %5297 = vmatpush.xpose.msra.mxu0 0.0
    %5298 = vmatpush.xpose.msra.mxu0 0.0
    %5299 = vmatpush.xpose.msra.mxu0 0.0
    %5300 = vmatpush.xpose.msra.mxu0 0.0
    %5301 = vmatpush.xpose.msra.mxu0 0.0
    %5302 = vmatpush.xpose.msra.mxu0 %v5285
    %5303 = vmatmul.f32.gmra.mxu0 %v5283
    %v5304 = vpop.f32.mrf.mxu0
    %v5305 = vadd.f32 0.0, %v5304
    %5306 = vdwg.mxu0
    %5307 = vrot.lane.b32.xlu0 %v4312, 100
    %v5308 = vpop.permute.xlu0 %5307
    %5309 = vrot.lane.b32.xlu0 %v4312, 68
    %v5310 = vpop.permute.xlu0 %5309
    %v5311 = vsel %vm283, %v5308, 0
    %v5313 = vsel %vm283, %v5310, 0
    %5315 = vmatpush.xpose.msra.mxu0 0.0
    %5316 = vmatpush.xpose.msra.mxu0 0.0
    %5317 = vmatpush.xpose.msra.mxu0 0.0
    %5318 = vmatpush.xpose.msra.mxu0 0.0
    %5319 = vmatpush.xpose.msra.mxu0 0.0
    %5320 = vmatpush.xpose.msra.mxu0 0.0
    %5321 = vmatpush.xpose.msra.mxu0 0.0
    %5322 = vmatpush.xpose.msra.mxu0 0.0
    %5323 = vmatpush.xpose.msra.mxu0 0.0
    %5324 = vmatpush.xpose.msra.mxu0 0.0
    %5325 = vmatpush.xpose.msra.mxu0 0.0
    %5326 = vmatpush.xpose.msra.mxu0 0.0
    %5327 = vmatpush.xpose.msra.mxu0 0.0
    %5328 = vmatpush.xpose.msra.mxu0 0.0
    %5329 = vmatpush.xpose.msra.mxu0 0.0
    %5330 = vmatpush.xpose.msra.mxu0 %v5313
    %5331 = vmatmul.f32.gmra.mxu0 %v5311
    %v5332 = vpop.f32.mrf.mxu0
    %v5333 = vadd.f32 0.0, %v5332
    %5334 = vdwg.mxu0
    %v5335 = vsel %vm335, %v5305, -inf
    %5336 = vmax.xlane.f32.xlu0 %v5335
    %v5337 = vpop.xlane.xlu0 %5336
    %v5338 = vsel %vm335, %v5333, -inf
    %5339 = vmax.xlane.f32.xlu0 %v5338
    %v5340 = vpop.xlane.xlu0 %5339
    %v5341 = vsub.f32 %v5305, %v5337
    %v5342 = vsub.f32 %v5333, %v5340
    %v5343 = vmul.f32 %v5341, 1.442695
    %v5344 = vpow.pop %v5343
    %v5345 = vmul.f32 %v5342, 1.442695
    %v5346 = vpow.pop %v5345
    %v5347 = vsel %vm335, %v5344, 0.0
    %5348 = vadd.xlane.f32.xlu0 %v5347
    %v5349 = vpop.xlane.xlu0 %5348
    %v5350 = vsel %vm335, %v5346, 0.0
    %5351 = vadd.xlane.f32.xlu0 %v5350
    %v5352 = vpop.xlane.xlu0 %5351
    %v5353 = vrcp.pop %v5349
    %v5354 = vrcp.pop %v5352
    %v5355 = vmul.f32 %v5344, %v5353
    %v5356 = vmul.f32 %v5346, %v5354
    %5357 = vrot.lane.b32.xlu0 %v4363, 32
    %v5358 = vpop.permute.xlu0 %5357
    %v5361 = vsel %vm335, %v5355, 0
    %5363 = vmatpush.msra.mxu0 0.0
    %5364 = vmatpush.msra.mxu0 0.0
    %5365 = vmatpush.msra.mxu0 0.0
    %5366 = vmatpush.msra.mxu0 0.0
    %5367 = vmatpush.msra.mxu0 0.0
    %5368 = vmatpush.msra.mxu0 0.0
    %5369 = vmatpush.msra.mxu0 0.0
    %5370 = vmatpush.msra.mxu0 0.0
    %5371 = vmatpush.msra.mxu0 0.0
    %5372 = vmatpush.msra.mxu0 0.0
    %5373 = vmatpush.msra.mxu0 0.0
    %5374 = vmatpush.msra.mxu0 0.0
    %5375 = vmatpush.msra.mxu0 0.0
    %5376 = vmatpush.msra.mxu0 0.0
    %5377 = vmatpush.msra.mxu0 0.0
    %5378 = vmatpush.msra.mxu0 %v5358
    %5379 = vmatmul.f32.gmra.mxu0 %v5361
    %v5380 = vpop.f32.mrf.mxu0
    %v5381 = vadd.f32 0.0, %v5380
    %5382 = vdwg.mxu0
    %5383 = vrot.lane.b32.xlu0 %v4365, 32
    %v5384 = vpop.permute.xlu0 %5383
    %v5387 = vsel %vm335, %v5356, 0
    %5389 = vmatpush.msra.mxu0 0.0
    %5390 = vmatpush.msra.mxu0 0.0
    %5391 = vmatpush.msra.mxu0 0.0
    %5392 = vmatpush.msra.mxu0 0.0
    %5393 = vmatpush.msra.mxu0 0.0
    %5394 = vmatpush.msra.mxu0 0.0
    %5395 = vmatpush.msra.mxu0 0.0
    %5396 = vmatpush.msra.mxu0 0.0
    %5397 = vmatpush.msra.mxu0 0.0
    %5398 = vmatpush.msra.mxu0 0.0
    %5399 = vmatpush.msra.mxu0 0.0
    %5400 = vmatpush.msra.mxu0 0.0
    %5401 = vmatpush.msra.mxu0 0.0
    %5402 = vmatpush.msra.mxu0 0.0
    %5403 = vmatpush.msra.mxu0 0.0
    %5404 = vmatpush.msra.mxu0 %v5384
    %5405 = vmatmul.f32.gmra.mxu0 %v5387
    %v5406 = vpop.f32.mrf.mxu0
    %v5407 = vadd.f32 0.0, %v5406
    %5408 = vdwg.mxu0
    %v5409 = vadd.f32 %v5277, %v5381
    %v5410 = vadd.f32 %v5278, %v5407
    %s5411 = scalar_lea.vmem %s5, 3
    %v5412 = vld [vmem:[%s5411] sm:$0x1]
    %v5414 = vperm.slane %v5412, 0
    %v5416 = vadd.f32 %v5409, %v5414
    %v5417 = vadd.f32 %v5410, %v5414
    %v5418 = vadd.f32 %v4272, %v5416
    %v5419 = vadd.f32 %v4273, %v5417
    %s5420 = scalar_lea.vmem %s6, 3
    %v5421 = vld [vmem:[%s5420] sm:$0x1]
    %s5422 = scalar_lea.vmem %s7, 3
    %v5423 = vld [vmem:[%s5422] sm:$0x1]
    %v5424 = vsel %vm210, %v5418, 0.0
    %5425 = vadd.xlane.f32.xlu0 %v5424
    %v5426 = vpop.xlane.xlu0 %5425
    %v5427 = vsel %vm210, %v5419, 0.0
    %5428 = vadd.xlane.f32.xlu0 %v5427
    %v5429 = vpop.xlane.xlu0 %5428
    %v5430 = vmul.f32 %v5426, %v1348
    %v5431 = vmul.f32 %v5429, %v1348
    %v5432 = vsub.f32 %v5418, %v5430
    %v5433 = vsub.f32 %v5419, %v5431
    %v5434 = vmul.f32 %v5432, %v5432
    %v5435 = vmul.f32 %v5433, %v5433
    %v5436 = vsel %vm210, %v5434, 0.0
    %5437 = vadd.xlane.f32.xlu0 %v5436
    %v5438 = vpop.xlane.xlu0 %5437
    %v5439 = vsel %vm210, %v5435, 0.0
    %5440 = vadd.xlane.f32.xlu0 %v5439
    %v5441 = vpop.xlane.xlu0 %5440
    %v5442 = vmul.f32 %v5438, %v1348
    %v5443 = vmul.f32 %v5441, %v1348
    %v5444 = vadd.f32 %v5442, 1e-05
    %v5445 = vadd.f32 %v5443, 1e-05
    %v5446 = vrsqrt.pop %v5444
    %v5447 = vmul.f32 %v5446, %v5444
    %v5448 = vmul.f32 %v5447, %v5446
    %v5449 = vmul.f32 0.5, %v5448
    %v5450 = vsub.f32 1.5, %v5449
    %v5451 = vmul.f32 %v5446, %v5450
    %vm5452 = vweird.f32 %v5444
    %vm5453 = vweird.f32 %v5446
    %vm5454 = vmor %vm5452, %vm5453
    %v5455 = vsel %vm5454, %v5446, %v5451
    %v5456 = vrsqrt.pop %v5445
    %v5457 = vmul.f32 %v5456, %v5445
    %v5458 = vmul.f32 %v5457, %v5456
    %v5459 = vmul.f32 0.5, %v5458
    %v5460 = vsub.f32 1.5, %v5459
    %v5461 = vmul.f32 %v5456, %v5460
    %vm5462 = vweird.f32 %v5445
    %vm5463 = vweird.f32 %v5456
    %vm5464 = vmor %vm5462, %vm5463
    %v5465 = vsel %vm5464, %v5456, %v5461
    %v5466 = vmul.f32 %v5432, %v5455
    %v5467 = vmul.f32 %v5433, %v5465
    %v5469 = vperm.slane %v5421, 0
    %v5471 = vmul.f32 %v5466, %v5469
    %v5472 = vmul.f32 %v5467, %v5469
    %v5474 = vperm.slane %v5423, 0
    %v5476 = vadd.f32 %v5471, %v5474
    %v5477 = vadd.f32 %v5472, %v5474
    %v5478 = vpack.c.bf16 %v5477, %v5476
    %s5479 = scalar_lea.vmem [#allocation6], 48
    %v5480 = vld [vmem:[%s5479] sm:$0xf]
    %v5481 = vld [vmem:[%s5479 + $0x4] sm:$0xf]
    %v5482 = vld [vmem:[%s5479 + $0x8] sm:$0xf]
    %v5483 = vld [vmem:[%s5479 + $0xc] sm:$0xf]
    %s5484 = scalar_lea.vmem %s9, 3
    %v5485 = vld [vmem:[%s5484] sm:$0x1]
    %v5487 = vperm.slane %v5485, 0
    %v5493 = vunpack.c.l.b16 %v5480
    %v5494 = vunpack.c.l.b16 %v5481
    %v5495 = vunpack.c.l.b16 %v5482
    %v5496 = vunpack.c.l.b16 %v5483
    %v5497 = vpack.c.b16 %v5494, %v5493
    %v5498 = vpack.c.b16 %v5496, %v5495
    %v5502 = vsel %vm210, %v5478, 0
    %5504 = vmatpush.bf16.msra.mxu0 0
    %5505 = vmatpush.bf16.msra.mxu0 0
    %5506 = vmatpush.bf16.msra.mxu0 0
    %5507 = vmatpush.bf16.msra.mxu0 0
    %5508 = vmatpush.bf16.msra.mxu0 0
    %5509 = vmatpush.bf16.msra.mxu0 0
    %5510 = vmatpush.bf16.msra.mxu0 %v5498
    %5511 = vmatpush.bf16.msra.mxu0 %v5497
    %5512 = vmatmul.bf16.gmra.mxu0 %v5502
    %v5513 = vpop.f32.mrf.mxu0
    %v5514 = vadd.f32 %v5487, %v5513
    %v5515 = vpop.f32.mrf.mxu0
    %v5516 = vadd.f32 %v5487, %v5515
    %5517 = vdwg.mxu0
    %v5518 = vmax.f32 %v5514, 0.0
    %v5519 = vmax.f32 %v5516, 0.0
    %v5520 = vpack.c.bf16 %v5519, %v5518
    %s5521 = scalar_lea.vmem %s10, 96
    %v5522 = vld [vmem:[%s5521] sm:$0xf]
    %v5523 = vld [vmem:[%s5521 + $0x4] sm:$0xf]
    %v5524 = vld [vmem:[%s5521 + $0x8] sm:$0xf]
    %v5525 = vld [vmem:[%s5521 + $0xc] sm:$0xf]
    %v5526 = vld [vmem:[%s5521 + $0x10] sm:$0xf]
    %v5527 = vld [vmem:[%s5521 + $0x14] sm:$0xf]
    %v5528 = vld [vmem:[%s5521 + $0x18] sm:$0xf]
    %v5529 = vld [vmem:[%s5521 + $0x1c] sm:$0xf]
    %s5530 = scalar_lea.vmem %s11, 3
    %v5531 = vld [vmem:[%s5530] sm:$0x1]
    %v5533 = vperm.slane %v5531, 0
    %v5543 = vunpack.c.l.b16 %v5522
    %v5544 = vunpack.c.l.b16 %v5523
    %v5545 = vunpack.c.l.b16 %v5524
    %v5546 = vunpack.c.l.b16 %v5525
    %v5547 = vunpack.c.l.b16 %v5526
    %v5548 = vunpack.c.l.b16 %v5527
    %v5549 = vunpack.c.l.b16 %v5528
    %v5550 = vunpack.c.l.b16 %v5529
    %v5551 = vpack.c.b16 %v5544, %v5543
    %v5552 = vpack.c.b16 %v5546, %v5545
    %v5553 = vpack.c.b16 %v5548, %v5547
    %v5554 = vpack.c.b16 %v5550, %v5549
    %v5560 = vsel %vm1474, %v5520, 0
    %5562 = vmatpush.bf16.msra.mxu0 0
    %5563 = vmatpush.bf16.msra.mxu0 0
    %5564 = vmatpush.bf16.msra.mxu0 0
    %5565 = vmatpush.bf16.msra.mxu0 0
    %5566 = vmatpush.bf16.msra.mxu0 %v5554
    %5567 = vmatpush.bf16.msra.mxu0 %v5553
    %5568 = vmatpush.bf16.msra.mxu0 %v5552
    %5569 = vmatpush.bf16.msra.mxu0 %v5551
    %5570 = vmatmul.bf16.gmra.mxu0 %v5560
    %v5571 = vpop.f32.mrf.mxu0
    %v5572 = vadd.f32 %v5533, %v5571
    %v5573 = vpop.f32.mrf.mxu0
    %v5574 = vadd.f32 %v5533, %v5573
    %5575 = vdwg.mxu0
    %v5576 = vadd.f32 %v5476, %v5572
    %v5577 = vadd.f32 %v5477, %v5574
    %s5578 = scalar_lea.vmem %s12, 3
    %v5579 = vld [vmem:[%s5578] sm:$0x1]
    %s5580 = scalar_lea.vmem %s13, 3
    %v5581 = vld [vmem:[%s5580] sm:$0x1]
    %v5582 = vsel %vm210, %v5576, 0.0
    %5583 = vadd.xlane.f32.xlu0 %v5582
    %v5584 = vpop.xlane.xlu0 %5583
    %v5585 = vsel %vm210, %v5577, 0.0
    %5586 = vadd.xlane.f32.xlu0 %v5585
    %v5587 = vpop.xlane.xlu0 %5586
    %v5588 = vmul.f32 %v5584, %v1348
    %v5589 = vmul.f32 %v5587, %v1348
    %v5590 = vsub.f32 %v5576, %v5588
    %v5591 = vsub.f32 %v5577, %v5589
    %v5592 = vmul.f32 %v5590, %v5590
    %v5593 = vmul.f32 %v5591, %v5591
    %v5594 = vsel %vm210, %v5592, 0.0
    %5595 = vadd.xlane.f32.xlu0 %v5594
    %v5596 = vpop.xlane.xlu0 %5595
    %v5597 = vsel %vm210, %v5593, 0.0
    %5598 = vadd.xlane.f32.xlu0 %v5597
    %v5599 = vpop.xlane.xlu0 %5598
    %v5600 = vmul.f32 %v5596, %v1348
    %v5601 = vmul.f32 %v5599, %v1348
    %v5602 = vadd.f32 %v5600, 1e-05
    %v5603 = vadd.f32 %v5601, 1e-05
    %v5604 = vrsqrt.pop %v5602
    %v5605 = vmul.f32 %v5604, %v5602
    %v5606 = vmul.f32 %v5605, %v5604
    %v5607 = vmul.f32 0.5, %v5606
    %v5608 = vsub.f32 1.5, %v5607
    %v5609 = vmul.f32 %v5604, %v5608
    %vm5610 = vweird.f32 %v5602
    %vm5611 = vweird.f32 %v5604
    %vm5612 = vmor %vm5610, %vm5611
    %v5613 = vsel %vm5612, %v5604, %v5609
    %v5614 = vrsqrt.pop %v5603
    %v5615 = vmul.f32 %v5614, %v5603
    %v5616 = vmul.f32 %v5615, %v5614
    %v5617 = vmul.f32 0.5, %v5616
    %v5618 = vsub.f32 1.5, %v5617
    %v5619 = vmul.f32 %v5614, %v5618
    %vm5620 = vweird.f32 %v5603
    %vm5621 = vweird.f32 %v5614
    %vm5622 = vmor %vm5620, %vm5621
    %v5623 = vsel %vm5622, %v5614, %v5619
    %v5624 = vmul.f32 %v5590, %v5613
    %v5625 = vmul.f32 %v5591, %v5623
    %v5627 = vperm.slane %v5579, 0
    %v5629 = vmul.f32 %v5624, %v5627
    %v5630 = vmul.f32 %v5625, %v5627
    %v5632 = vperm.slane %v5581, 0
    %v5634 = vadd.f32 %v5629, %v5632
    %v5635 = vadd.f32 %v5630, %v5632
    %v5636 = vpack.c.bf16 %v5635, %v5634
    %s5637 = scalar_lea.vmem %s2, 64
    %v5638 = vld [vmem:[%s5637] sm:$0xf]
    %v5639 = vld [vmem:[%s5637 + $0x4] sm:$0xf]
    %v5640 = vld [vmem:[%s5637 + $0x8] sm:$0xf]
    %v5641 = vld [vmem:[%s5637 + $0xc] sm:$0xf]
    %s5642 = scalar_lea.vmem %s3, 4
    %v5643 = vld [vmem:[%s5642] sm:$0x1]
    %v5645 = vperm.slane %v5643, 0
    %v5651 = vunpack.c.l.b16 %v5638
    %v5652 = vunpack.c.l.b16 %v5639
    %v5653 = vunpack.c.l.b16 %v5640
    %v5654 = vunpack.c.l.b16 %v5641
    %v5655 = vpack.c.b16 %v5652, %v5651
    %v5656 = vpack.c.b16 %v5654, %v5653
    %v5660 = vsel %vm210, %v5636, 0
    %5662 = vmatpush.bf16.msra.mxu0 0
    %5663 = vmatpush.bf16.msra.mxu0 0
    %5664 = vmatpush.bf16.msra.mxu0 0
    %5665 = vmatpush.bf16.msra.mxu0 0
    %5666 = vmatpush.bf16.msra.mxu0 0
    %5667 = vmatpush.bf16.msra.mxu0 0
    %5668 = vmatpush.bf16.msra.mxu0 %v5656
    %5669 = vmatpush.bf16.msra.mxu0 %v5655
    %5670 = vmatmul.bf16.gmra.mxu0 %v5660
    %v5671 = vpop.f32.mrf.mxu0
    %v5672 = vadd.f32 %v5645, %v5671
    %v5673 = vpop.f32.mrf.mxu0
    %v5674 = vadd.f32 %v5645, %v5673
    %5675 = vdwg.mxu0
    %s5676 = scalar_lea.vmem %s4, 128
    %v5677 = vld [vmem:[%s5676] sm:$0xff]
    %v5678 = vld [vmem:[%s5676 + $0x8] sm:$0xff]
    %v5679 = vld [vmem:[%s5676 + $0x10] sm:$0xff]
    %v5680 = vld [vmem:[%s5676 + $0x18] sm:$0xff]
    %v5685 = vunpack.c.l.b16 %v5677
    %v5686 = vunpack.c.h.b16 %v5677
    %v5687 = vunpack.c.l.b16 %v5678
    %v5688 = vunpack.c.h.b16 %v5678
    %v5689 = vunpack.c.l.b16 %v5679
    %v5690 = vunpack.c.h.b16 %v5679
    %v5691 = vunpack.c.l.b16 %v5680
    %v5692 = vunpack.c.h.b16 %v5680
    %v5693 = vpack.c.b16 %v5687, %v5685
    %v5694 = vpack.c.b16 %v5688, %v5686
    %v5695 = vpack.c.b16 %v5691, %v5689
    %v5696 = vpack.c.b16 %v5692, %v5690
    %5701 = vmatpush.bf16.msra.mxu0 0
    %5702 = vmatpush.bf16.msra.mxu0 0
    %5703 = vmatpush.bf16.msra.mxu0 0
    %5704 = vmatpush.bf16.msra.mxu0 0
    %5705 = vmatpush.bf16.msra.mxu0 0
    %5706 = vmatpush.bf16.msra.mxu0 0
    %5707 = vmatpush.bf16.msra.mxu0 %v5695
    %5708 = vmatpush.bf16.msra.mxu0 %v5693
    %5709 = vmatmul.bf16.gmra.mxu0 %v5660
    %v5710 = vpop.f32.mrf.mxu0
    %v5711 = vadd.f32 0.0, %v5710
    %v5712 = vpop.f32.mrf.mxu0
    %v5713 = vadd.f32 0.0, %v5712
    %5714 = vdwg.mxu0
    %5715 = vmatpush.bf16.msra.mxu0 0
    %5716 = vmatpush.bf16.msra.mxu0 0
    %5717 = vmatpush.bf16.msra.mxu0 0
    %5718 = vmatpush.bf16.msra.mxu0 0
    %5719 = vmatpush.bf16.msra.mxu0 0
    %5720 = vmatpush.bf16.msra.mxu0 0
    %5721 = vmatpush.bf16.msra.mxu0 %v5696
    %5722 = vmatpush.bf16.msra.mxu0 %v5694
    %5723 = vmatmul.bf16.gmra.mxu0 %v5660
    %v5724 = vpop.f32.mrf.mxu0
    %v5725 = vadd.f32 0.0, %v5724
    %v5726 = vpop.f32.mrf.mxu0
    %v5727 = vadd.f32 0.0, %v5726
    %5728 = vdwg.mxu0
    %5730 = vrot.lane.b32.xlu0 %v5672, 96
    %v5731 = vpop.permute.xlu0 %5730
    %v5732 = vsel %vm283, %v5672, 0
    %v5734 = vsel %vm283, %v5731, 0
    %5736 = vmatpush.xpose.msra.mxu0 0.0
    %5737 = vmatpush.xpose.msra.mxu0 0.0
    %5738 = vmatpush.xpose.msra.mxu0 0.0
    %5739 = vmatpush.xpose.msra.mxu0 0.0
    %5740 = vmatpush.xpose.msra.mxu0 0.0
    %5741 = vmatpush.xpose.msra.mxu0 0.0
    %5742 = vmatpush.xpose.msra.mxu0 0.0
    %5743 = vmatpush.xpose.msra.mxu0 0.0
    %5744 = vmatpush.xpose.msra.mxu0 0.0
    %5745 = vmatpush.xpose.msra.mxu0 0.0
    %5746 = vmatpush.xpose.msra.mxu0 0.0
    %5747 = vmatpush.xpose.msra.mxu0 0.0
    %5748 = vmatpush.xpose.msra.mxu0 0.0
    %5749 = vmatpush.xpose.msra.mxu0 0.0
    %5750 = vmatpush.xpose.msra.mxu0 0.0
    %5751 = vmatpush.xpose.msra.mxu0 %v5734
    %5752 = vmatmul.f32.gmra.mxu0 %v5732
    %v5753 = vpop.f32.mrf.mxu0
    %v5754 = vadd.f32 0.0, %v5753
    %5755 = vdwg.mxu0
    %5757 = vrot.lane.b32.xlu0 %v5674, 96
    %v5758 = vpop.permute.xlu0 %5757
    %v5759 = vsel %vm283, %v5674, 0
    %v5761 = vsel %vm283, %v5758, 0
    %5763 = vmatpush.xpose.msra.mxu0 0.0
    %5764 = vmatpush.xpose.msra.mxu0 0.0
    %5765 = vmatpush.xpose.msra.mxu0 0.0
    %5766 = vmatpush.xpose.msra.mxu0 0.0
    %5767 = vmatpush.xpose.msra.mxu0 0.0
    %5768 = vmatpush.xpose.msra.mxu0 0.0
    %5769 = vmatpush.xpose.msra.mxu0 0.0
    %5770 = vmatpush.xpose.msra.mxu0 0.0
    %5771 = vmatpush.xpose.msra.mxu0 0.0
    %5772 = vmatpush.xpose.msra.mxu0 0.0
    %5773 = vmatpush.xpose.msra.mxu0 0.0
    %5774 = vmatpush.xpose.msra.mxu0 0.0
    %5775 = vmatpush.xpose.msra.mxu0 0.0
    %5776 = vmatpush.xpose.msra.mxu0 0.0
    %5777 = vmatpush.xpose.msra.mxu0 0.0
    %5778 = vmatpush.xpose.msra.mxu0 %v5761
    %5779 = vmatmul.f32.gmra.mxu0 %v5759
    %v5780 = vpop.f32.mrf.mxu0
    %v5781 = vadd.f32 0.0, %v5780
    %5782 = vdwg.mxu0
    %v5783 = vsel %vm335, %v5754, -inf
    %5784 = vmax.xlane.f32.xlu0 %v5783
    %v5785 = vpop.xlane.xlu0 %5784
    %v5786 = vsel %vm335, %v5781, -inf
    %5787 = vmax.xlane.f32.xlu0 %v5786
    %v5788 = vpop.xlane.xlu0 %5787
    %v5789 = vsub.f32 %v5754, %v5785
    %v5790 = vsub.f32 %v5781, %v5788
    %v5791 = vmul.f32 %v5789, 1.442695
    %v5792 = vpow.pop %v5791
    %v5793 = vmul.f32 %v5790, 1.442695
    %v5794 = vpow.pop %v5793
    %v5795 = vsel %vm335, %v5792, 0.0
    %5796 = vadd.xlane.f32.xlu0 %v5795
    %v5797 = vpop.xlane.xlu0 %5796
    %v5798 = vsel %vm335, %v5794, 0.0
    %5799 = vadd.xlane.f32.xlu0 %v5798
    %v5800 = vpop.xlane.xlu0 %5799
    %v5801 = vrcp.pop %v5797
    %v5802 = vrcp.pop %v5800
    %v5803 = vmul.f32 %v5792, %v5801
    %v5804 = vmul.f32 %v5794, %v5802
    %v5806 = vsel %vm335, %v5803, 0
    %5808 = vmatpush.msra.mxu0 0.0
    %5809 = vmatpush.msra.mxu0 0.0
    %5810 = vmatpush.msra.mxu0 0.0
    %5811 = vmatpush.msra.mxu0 0.0
    %5812 = vmatpush.msra.mxu0 0.0
    %5813 = vmatpush.msra.mxu0 0.0
    %5814 = vmatpush.msra.mxu0 0.0
    %5815 = vmatpush.msra.mxu0 0.0
    %5816 = vmatpush.msra.mxu0 0.0
    %5817 = vmatpush.msra.mxu0 0.0
    %5818 = vmatpush.msra.mxu0 0.0
    %5819 = vmatpush.msra.mxu0 0.0
    %5820 = vmatpush.msra.mxu0 0.0
    %5821 = vmatpush.msra.mxu0 0.0
    %5822 = vmatpush.msra.mxu0 0.0
    %5823 = vmatpush.msra.mxu0 %v5711
    %5824 = vmatmul.f32.gmra.mxu0 %v5806
    %v5825 = vpop.f32.mrf.mxu0
    %v5826 = vadd.f32 0.0, %v5825
    %5827 = vdwg.mxu0
    %v5829 = vsel %vm335, %v5804, 0
    %5831 = vmatpush.msra.mxu0 0.0
    %5832 = vmatpush.msra.mxu0 0.0
    %5833 = vmatpush.msra.mxu0 0.0
    %5834 = vmatpush.msra.mxu0 0.0
    %5835 = vmatpush.msra.mxu0 0.0
    %5836 = vmatpush.msra.mxu0 0.0
    %5837 = vmatpush.msra.mxu0 0.0
    %5838 = vmatpush.msra.mxu0 0.0
    %5839 = vmatpush.msra.mxu0 0.0
    %5840 = vmatpush.msra.mxu0 0.0
    %5841 = vmatpush.msra.mxu0 0.0
    %5842 = vmatpush.msra.mxu0 0.0
    %5843 = vmatpush.msra.mxu0 0.0
    %5844 = vmatpush.msra.mxu0 0.0
    %5845 = vmatpush.msra.mxu0 0.0
    %5846 = vmatpush.msra.mxu0 %v5713
    %5847 = vmatmul.f32.gmra.mxu0 %v5829
    %v5848 = vpop.f32.mrf.mxu0
    %v5849 = vadd.f32 0.0, %v5848
    %5850 = vdwg.mxu0
    %5851 = vrot.lane.b32.xlu0 %v5672, 124
    %v5852 = vpop.permute.xlu0 %5851
    %5853 = vrot.lane.b32.xlu0 %v5672, 92
    %v5854 = vpop.permute.xlu0 %5853
    %v5855 = vsel %vm283, %v5852, 0
    %v5857 = vsel %vm283, %v5854, 0
    %5859 = vmatpush.xpose.msra.mxu0 0.0
    %5860 = vmatpush.xpose.msra.mxu0 0.0
    %5861 = vmatpush.xpose.msra.mxu0 0.0
    %5862 = vmatpush.xpose.msra.mxu0 0.0
    %5863 = vmatpush.xpose.msra.mxu0 0.0
    %5864 = vmatpush.xpose.msra.mxu0 0.0
    %5865 = vmatpush.xpose.msra.mxu0 0.0
    %5866 = vmatpush.xpose.msra.mxu0 0.0
    %5867 = vmatpush.xpose.msra.mxu0 0.0
    %5868 = vmatpush.xpose.msra.mxu0 0.0
    %5869 = vmatpush.xpose.msra.mxu0 0.0
    %5870 = vmatpush.xpose.msra.mxu0 0.0
    %5871 = vmatpush.xpose.msra.mxu0 0.0
    %5872 = vmatpush.xpose.msra.mxu0 0.0
    %5873 = vmatpush.xpose.msra.mxu0 0.0
    %5874 = vmatpush.xpose.msra.mxu0 %v5857
    %5875 = vmatmul.f32.gmra.mxu0 %v5855
    %v5876 = vpop.f32.mrf.mxu0
    %v5877 = vadd.f32 0.0, %v5876
    %5878 = vdwg.mxu0
    %5879 = vrot.lane.b32.xlu0 %v5674, 124
    %v5880 = vpop.permute.xlu0 %5879
    %5881 = vrot.lane.b32.xlu0 %v5674, 92
    %v5882 = vpop.permute.xlu0 %5881
    %v5883 = vsel %vm283, %v5880, 0
    %v5885 = vsel %vm283, %v5882, 0
    %5887 = vmatpush.xpose.msra.mxu0 0.0
    %5888 = vmatpush.xpose.msra.mxu0 0.0
    %5889 = vmatpush.xpose.msra.mxu0 0.0
    %5890 = vmatpush.xpose.msra.mxu0 0.0
    %5891 = vmatpush.xpose.msra.mxu0 0.0
    %5892 = vmatpush.xpose.msra.mxu0 0.0
    %5893 = vmatpush.xpose.msra.mxu0 0.0
    %5894 = vmatpush.xpose.msra.mxu0 0.0
    %5895 = vmatpush.xpose.msra.mxu0 0.0
    %5896 = vmatpush.xpose.msra.mxu0 0.0
    %5897 = vmatpush.xpose.msra.mxu0 0.0
    %5898 = vmatpush.xpose.msra.mxu0 0.0
    %5899 = vmatpush.xpose.msra.mxu0 0.0
    %5900 = vmatpush.xpose.msra.mxu0 0.0
    %5901 = vmatpush.xpose.msra.mxu0 0.0
    %5902 = vmatpush.xpose.msra.mxu0 %v5885
    %5903 = vmatmul.f32.gmra.mxu0 %v5883
    %v5904 = vpop.f32.mrf.mxu0
    %v5905 = vadd.f32 0.0, %v5904
    %5906 = vdwg.mxu0
    %v5907 = vsel %vm335, %v5877, -inf
    %5908 = vmax.xlane.f32.xlu0 %v5907
    %v5909 = vpop.xlane.xlu0 %5908
    %v5910 = vsel %vm335, %v5905, -inf
    %5911 = vmax.xlane.f32.xlu0 %v5910
    %v5912 = vpop.xlane.xlu0 %5911
    %v5913 = vsub.f32 %v5877, %v5909
    %v5914 = vsub.f32 %v5905, %v5912
    %v5915 = vmul.f32 %v5913, 1.442695
    %v5916 = vpow.pop %v5915
    %v5917 = vmul.f32 %v5914, 1.442695
    %v5918 = vpow.pop %v5917
    %v5919 = vsel %vm335, %v5916, 0.0
    %5920 = vadd.xlane.f32.xlu0 %v5919
    %v5921 = vpop.xlane.xlu0 %5920
    %v5922 = vsel %vm335, %v5918, 0.0
    %5923 = vadd.xlane.f32.xlu0 %v5922
    %v5924 = vpop.xlane.xlu0 %5923
    %v5925 = vrcp.pop %v5921
    %v5926 = vrcp.pop %v5924
    %v5927 = vmul.f32 %v5916, %v5925
    %v5928 = vmul.f32 %v5918, %v5926
    %5930 = vrot.lane.b32.xlu0 %v5711, 96
    %v5931 = vpop.permute.xlu0 %5930
    %v5934 = vsel %vm335, %v5927, 0
    %5936 = vmatpush.msra.mxu0 0.0
    %5937 = vmatpush.msra.mxu0 0.0
    %5938 = vmatpush.msra.mxu0 0.0
    %5939 = vmatpush.msra.mxu0 0.0
    %5940 = vmatpush.msra.mxu0 0.0
    %5941 = vmatpush.msra.mxu0 0.0
    %5942 = vmatpush.msra.mxu0 0.0
    %5943 = vmatpush.msra.mxu0 0.0
    %5944 = vmatpush.msra.mxu0 0.0
    %5945 = vmatpush.msra.mxu0 0.0
    %5946 = vmatpush.msra.mxu0 0.0
    %5947 = vmatpush.msra.mxu0 0.0
    %5948 = vmatpush.msra.mxu0 0.0
    %5949 = vmatpush.msra.mxu0 0.0
    %5950 = vmatpush.msra.mxu0 0.0
    %5951 = vmatpush.msra.mxu0 %v5931
    %5952 = vmatmul.f32.gmra.mxu0 %v5934
    %v5953 = vpop.f32.mrf.mxu0
    %v5954 = vadd.f32 0.0, %v5953
    %5955 = vdwg.mxu0
    %5957 = vrot.lane.b32.xlu0 %v5713, 96
    %v5958 = vpop.permute.xlu0 %5957
    %v5961 = vsel %vm335, %v5928, 0
    %5963 = vmatpush.msra.mxu0 0.0
    %5964 = vmatpush.msra.mxu0 0.0
    %5965 = vmatpush.msra.mxu0 0.0
    %5966 = vmatpush.msra.mxu0 0.0
    %5967 = vmatpush.msra.mxu0 0.0
    %5968 = vmatpush.msra.mxu0 0.0
    %5969 = vmatpush.msra.mxu0 0.0
    %5970 = vmatpush.msra.mxu0 0.0
    %5971 = vmatpush.msra.mxu0 0.0
    %5972 = vmatpush.msra.mxu0 0.0
    %5973 = vmatpush.msra.mxu0 0.0
    %5974 = vmatpush.msra.mxu0 0.0
    %5975 = vmatpush.msra.mxu0 0.0
    %5976 = vmatpush.msra.mxu0 0.0
    %5977 = vmatpush.msra.mxu0 0.0
    %5978 = vmatpush.msra.mxu0 %v5958
    %5979 = vmatmul.f32.gmra.mxu0 %v5961
    %v5980 = vpop.f32.mrf.mxu0
    %v5981 = vadd.f32 0.0, %v5980
    %5982 = vdwg.mxu0
    %v5983 = vadd.f32 %v5826, %v5954
    %v5984 = vadd.f32 %v5849, %v5981
    %5985 = vrot.lane.b32.xlu0 %v5672, 120
    %v5986 = vpop.permute.xlu0 %5985
    %5987 = vrot.lane.b32.xlu0 %v5672, 88
    %v5988 = vpop.permute.xlu0 %5987
    %v5989 = vsel %vm283, %v5986, 0
    %v5991 = vsel %vm283, %v5988, 0
    %5993 = vmatpush.xpose.msra.mxu0 0.0
    %5994 = vmatpush.xpose.msra.mxu0 0.0
    %5995 = vmatpush.xpose.msra.mxu0 0.0
    %5996 = vmatpush.xpose.msra.mxu0 0.0
    %5997 = vmatpush.xpose.msra.mxu0 0.0
    %5998 = vmatpush.xpose.msra.mxu0 0.0
    %5999 = vmatpush.xpose.msra.mxu0 0.0
    %6000 = vmatpush.xpose.msra.mxu0 0.0
    %6001 = vmatpush.xpose.msra.mxu0 0.0
    %6002 = vmatpush.xpose.msra.mxu0 0.0
    %6003 = vmatpush.xpose.msra.mxu0 0.0
    %6004 = vmatpush.xpose.msra.mxu0 0.0
    %6005 = vmatpush.xpose.msra.mxu0 0.0
    %6006 = vmatpush.xpose.msra.mxu0 0.0
    %6007 = vmatpush.xpose.msra.mxu0 0.0
    %6008 = vmatpush.xpose.msra.mxu0 %v5991
    %6009 = vmatmul.f32.gmra.mxu0 %v5989
    %v6010 = vpop.f32.mrf.mxu0
    %v6011 = vadd.f32 0.0, %v6010
    %6012 = vdwg.mxu0
    %6013 = vrot.lane.b32.xlu0 %v5674, 120
    %v6014 = vpop.permute.xlu0 %6013
    %6015 = vrot.lane.b32.xlu0 %v5674, 88
    %v6016 = vpop.permute.xlu0 %6015
    %v6017 = vsel %vm283, %v6014, 0
    %v6019 = vsel %vm283, %v6016, 0
    %6021 = vmatpush.xpose.msra.mxu0 0.0
    %6022 = vmatpush.xpose.msra.mxu0 0.0
    %6023 = vmatpush.xpose.msra.mxu0 0.0
    %6024 = vmatpush.xpose.msra.mxu0 0.0
    %6025 = vmatpush.xpose.msra.mxu0 0.0
    %6026 = vmatpush.xpose.msra.mxu0 0.0
    %6027 = vmatpush.xpose.msra.mxu0 0.0
    %6028 = vmatpush.xpose.msra.mxu0 0.0
    %6029 = vmatpush.xpose.msra.mxu0 0.0
    %6030 = vmatpush.xpose.msra.mxu0 0.0
    %6031 = vmatpush.xpose.msra.mxu0 0.0
    %6032 = vmatpush.xpose.msra.mxu0 0.0
    %6033 = vmatpush.xpose.msra.mxu0 0.0
    %6034 = vmatpush.xpose.msra.mxu0 0.0
    %6035 = vmatpush.xpose.msra.mxu0 0.0
    %6036 = vmatpush.xpose.msra.mxu0 %v6019
    %6037 = vmatmul.f32.gmra.mxu0 %v6017
    %v6038 = vpop.f32.mrf.mxu0
    %v6039 = vadd.f32 0.0, %v6038
    %6040 = vdwg.mxu0
    %v6041 = vsel %vm335, %v6011, -inf
    %6042 = vmax.xlane.f32.xlu0 %v6041
    %v6043 = vpop.xlane.xlu0 %6042
    %v6044 = vsel %vm335, %v6039, -inf
    %6045 = vmax.xlane.f32.xlu0 %v6044
    %v6046 = vpop.xlane.xlu0 %6045
    %v6047 = vsub.f32 %v6011, %v6043
    %v6048 = vsub.f32 %v6039, %v6046
    %v6049 = vmul.f32 %v6047, 1.442695
    %v6050 = vpow.pop %v6049
    %v6051 = vmul.f32 %v6048, 1.442695
    %v6052 = vpow.pop %v6051
    %v6053 = vsel %vm335, %v6050, 0.0
    %6054 = vadd.xlane.f32.xlu0 %v6053
    %v6055 = vpop.xlane.xlu0 %6054
    %v6056 = vsel %vm335, %v6052, 0.0
    %6057 = vadd.xlane.f32.xlu0 %v6056
    %v6058 = vpop.xlane.xlu0 %6057
    %v6059 = vrcp.pop %v6055
    %v6060 = vrcp.pop %v6058
    %v6061 = vmul.f32 %v6050, %v6059
    %v6062 = vmul.f32 %v6052, %v6060
    %6063 = vrot.lane.b32.xlu0 %v5711, 64
    %v6064 = vpop.permute.xlu0 %6063
    %v6067 = vsel %vm335, %v6061, 0
    %6069 = vmatpush.msra.mxu0 0.0
    %6070 = vmatpush.msra.mxu0 0.0
    %6071 = vmatpush.msra.mxu0 0.0
    %6072 = vmatpush.msra.mxu0 0.0
    %6073 = vmatpush.msra.mxu0 0.0
    %6074 = vmatpush.msra.mxu0 0.0
    %6075 = vmatpush.msra.mxu0 0.0
    %6076 = vmatpush.msra.mxu0 0.0
    %6077 = vmatpush.msra.mxu0 0.0
    %6078 = vmatpush.msra.mxu0 0.0
    %6079 = vmatpush.msra.mxu0 0.0
    %6080 = vmatpush.msra.mxu0 0.0
    %6081 = vmatpush.msra.mxu0 0.0
    %6082 = vmatpush.msra.mxu0 0.0
    %6083 = vmatpush.msra.mxu0 0.0
    %6084 = vmatpush.msra.mxu0 %v6064
    %6085 = vmatmul.f32.gmra.mxu0 %v6067
    %v6086 = vpop.f32.mrf.mxu0
    %v6087 = vadd.f32 0.0, %v6086
    %6088 = vdwg.mxu0
    %6089 = vrot.lane.b32.xlu0 %v5713, 64
    %v6090 = vpop.permute.xlu0 %6089
    %v6093 = vsel %vm335, %v6062, 0
    %6095 = vmatpush.msra.mxu0 0.0
    %6096 = vmatpush.msra.mxu0 0.0
    %6097 = vmatpush.msra.mxu0 0.0
    %6098 = vmatpush.msra.mxu0 0.0
    %6099 = vmatpush.msra.mxu0 0.0
    %6100 = vmatpush.msra.mxu0 0.0
    %6101 = vmatpush.msra.mxu0 0.0
    %6102 = vmatpush.msra.mxu0 0.0
    %6103 = vmatpush.msra.mxu0 0.0
    %6104 = vmatpush.msra.mxu0 0.0
    %6105 = vmatpush.msra.mxu0 0.0
    %6106 = vmatpush.msra.mxu0 0.0
    %6107 = vmatpush.msra.mxu0 0.0
    %6108 = vmatpush.msra.mxu0 0.0
    %6109 = vmatpush.msra.mxu0 0.0
    %6110 = vmatpush.msra.mxu0 %v6090
    %6111 = vmatmul.f32.gmra.mxu0 %v6093
    %v6112 = vpop.f32.mrf.mxu0
    %v6113 = vadd.f32 0.0, %v6112
    %6114 = vdwg.mxu0
    %v6115 = vadd.f32 %v5983, %v6087
    %v6116 = vadd.f32 %v5984, %v6113
    %6117 = vrot.lane.b32.xlu0 %v5672, 116
    %v6118 = vpop.permute.xlu0 %6117
    %6119 = vrot.lane.b32.xlu0 %v5672, 84
    %v6120 = vpop.permute.xlu0 %6119
    %v6121 = vsel %vm283, %v6118, 0
    %v6123 = vsel %vm283, %v6120, 0
    %6125 = vmatpush.xpose.msra.mxu0 0.0
    %6126 = vmatpush.xpose.msra.mxu0 0.0
    %6127 = vmatpush.xpose.msra.mxu0 0.0
    %6128 = vmatpush.xpose.msra.mxu0 0.0
    %6129 = vmatpush.xpose.msra.mxu0 0.0
    %6130 = vmatpush.xpose.msra.mxu0 0.0
    %6131 = vmatpush.xpose.msra.mxu0 0.0
    %6132 = vmatpush.xpose.msra.mxu0 0.0
    %6133 = vmatpush.xpose.msra.mxu0 0.0
    %6134 = vmatpush.xpose.msra.mxu0 0.0
    %6135 = vmatpush.xpose.msra.mxu0 0.0
    %6136 = vmatpush.xpose.msra.mxu0 0.0
    %6137 = vmatpush.xpose.msra.mxu0 0.0
    %6138 = vmatpush.xpose.msra.mxu0 0.0
    %6139 = vmatpush.xpose.msra.mxu0 0.0
    %6140 = vmatpush.xpose.msra.mxu0 %v6123
    %6141 = vmatmul.f32.gmra.mxu0 %v6121
    %v6142 = vpop.f32.mrf.mxu0
    %v6143 = vadd.f32 0.0, %v6142
    %6144 = vdwg.mxu0
    %6145 = vrot.lane.b32.xlu0 %v5674, 116
    %v6146 = vpop.permute.xlu0 %6145
    %6147 = vrot.lane.b32.xlu0 %v5674, 84
    %v6148 = vpop.permute.xlu0 %6147
    %v6149 = vsel %vm283, %v6146, 0
    %v6151 = vsel %vm283, %v6148, 0
    %6153 = vmatpush.xpose.msra.mxu0 0.0
    %6154 = vmatpush.xpose.msra.mxu0 0.0
    %6155 = vmatpush.xpose.msra.mxu0 0.0
    %6156 = vmatpush.xpose.msra.mxu0 0.0
    %6157 = vmatpush.xpose.msra.mxu0 0.0
    %6158 = vmatpush.xpose.msra.mxu0 0.0
    %6159 = vmatpush.xpose.msra.mxu0 0.0
    %6160 = vmatpush.xpose.msra.mxu0 0.0
    %6161 = vmatpush.xpose.msra.mxu0 0.0
    %6162 = vmatpush.xpose.msra.mxu0 0.0
    %6163 = vmatpush.xpose.msra.mxu0 0.0
    %6164 = vmatpush.xpose.msra.mxu0 0.0
    %6165 = vmatpush.xpose.msra.mxu0 0.0
    %6166 = vmatpush.xpose.msra.mxu0 0.0
    %6167 = vmatpush.xpose.msra.mxu0 0.0
    %6168 = vmatpush.xpose.msra.mxu0 %v6151
    %6169 = vmatmul.f32.gmra.mxu0 %v6149
    %v6170 = vpop.f32.mrf.mxu0
    %v6171 = vadd.f32 0.0, %v6170
    %6172 = vdwg.mxu0
    %v6173 = vsel %vm335, %v6143, -inf
    %6174 = vmax.xlane.f32.xlu0 %v6173
    %v6175 = vpop.xlane.xlu0 %6174
    %v6176 = vsel %vm335, %v6171, -inf
    %6177 = vmax.xlane.f32.xlu0 %v6176
    %v6178 = vpop.xlane.xlu0 %6177
    %v6179 = vsub.f32 %v6143, %v6175
    %v6180 = vsub.f32 %v6171, %v6178
    %v6181 = vmul.f32 %v6179, 1.442695
    %v6182 = vpow.pop %v6181
    %v6183 = vmul.f32 %v6180, 1.442695
    %v6184 = vpow.pop %v6183
    %v6185 = vsel %vm335, %v6182, 0.0
    %6186 = vadd.xlane.f32.xlu0 %v6185
    %v6187 = vpop.xlane.xlu0 %6186
    %v6188 = vsel %vm335, %v6184, 0.0
    %6189 = vadd.xlane.f32.xlu0 %v6188
    %v6190 = vpop.xlane.xlu0 %6189
    %v6191 = vrcp.pop %v6187
    %v6192 = vrcp.pop %v6190
    %v6193 = vmul.f32 %v6182, %v6191
    %v6194 = vmul.f32 %v6184, %v6192
    %6195 = vrot.lane.b32.xlu0 %v5711, 32
    %v6196 = vpop.permute.xlu0 %6195
    %v6199 = vsel %vm335, %v6193, 0
    %6201 = vmatpush.msra.mxu0 0.0
    %6202 = vmatpush.msra.mxu0 0.0
    %6203 = vmatpush.msra.mxu0 0.0
    %6204 = vmatpush.msra.mxu0 0.0
    %6205 = vmatpush.msra.mxu0 0.0
    %6206 = vmatpush.msra.mxu0 0.0
    %6207 = vmatpush.msra.mxu0 0.0
    %6208 = vmatpush.msra.mxu0 0.0
    %6209 = vmatpush.msra.mxu0 0.0
    %6210 = vmatpush.msra.mxu0 0.0
    %6211 = vmatpush.msra.mxu0 0.0
    %6212 = vmatpush.msra.mxu0 0.0
    %6213 = vmatpush.msra.mxu0 0.0
    %6214 = vmatpush.msra.mxu0 0.0
    %6215 = vmatpush.msra.mxu0 0.0
    %6216 = vmatpush.msra.mxu0 %v6196
    %6217 = vmatmul.f32.gmra.mxu0 %v6199
    %v6218 = vpop.f32.mrf.mxu0
    %v6219 = vadd.f32 0.0, %v6218
    %6220 = vdwg.mxu0
    %6221 = vrot.lane.b32.xlu0 %v5713, 32
    %v6222 = vpop.permute.xlu0 %6221
    %v6225 = vsel %vm335, %v6194, 0
    %6227 = vmatpush.msra.mxu0 0.0
    %6228 = vmatpush.msra.mxu0 0.0
    %6229 = vmatpush.msra.mxu0 0.0
    %6230 = vmatpush.msra.mxu0 0.0
    %6231 = vmatpush.msra.mxu0 0.0
    %6232 = vmatpush.msra.mxu0 0.0
    %6233 = vmatpush.msra.mxu0 0.0
    %6234 = vmatpush.msra.mxu0 0.0
    %6235 = vmatpush.msra.mxu0 0.0
    %6236 = vmatpush.msra.mxu0 0.0
    %6237 = vmatpush.msra.mxu0 0.0
    %6238 = vmatpush.msra.mxu0 0.0
    %6239 = vmatpush.msra.mxu0 0.0
    %6240 = vmatpush.msra.mxu0 0.0
    %6241 = vmatpush.msra.mxu0 0.0
    %6242 = vmatpush.msra.mxu0 %v6222
    %6243 = vmatmul.f32.gmra.mxu0 %v6225
    %v6244 = vpop.f32.mrf.mxu0
    %v6245 = vadd.f32 0.0, %v6244
    %6246 = vdwg.mxu0
    %v6247 = vadd.f32 %v6115, %v6219
    %v6248 = vadd.f32 %v6116, %v6245
    %6249 = vrot.lane.b32.xlu0 %v5672, 112
    %v6250 = vpop.permute.xlu0 %6249
    %6251 = vrot.lane.b32.xlu0 %v5672, 80
    %v6252 = vpop.permute.xlu0 %6251
    %v6253 = vsel %vm283, %v6250, 0
    %v6255 = vsel %vm283, %v6252, 0
    %6257 = vmatpush.xpose.msra.mxu0 0.0
    %6258 = vmatpush.xpose.msra.mxu0 0.0
    %6259 = vmatpush.xpose.msra.mxu0 0.0
    %6260 = vmatpush.xpose.msra.mxu0 0.0
    %6261 = vmatpush.xpose.msra.mxu0 0.0
    %6262 = vmatpush.xpose.msra.mxu0 0.0
    %6263 = vmatpush.xpose.msra.mxu0 0.0
    %6264 = vmatpush.xpose.msra.mxu0 0.0
    %6265 = vmatpush.xpose.msra.mxu0 0.0
    %6266 = vmatpush.xpose.msra.mxu0 0.0
    %6267 = vmatpush.xpose.msra.mxu0 0.0
    %6268 = vmatpush.xpose.msra.mxu0 0.0
    %6269 = vmatpush.xpose.msra.mxu0 0.0
    %6270 = vmatpush.xpose.msra.mxu0 0.0
    %6271 = vmatpush.xpose.msra.mxu0 0.0
    %6272 = vmatpush.xpose.msra.mxu0 %v6255
    %6273 = vmatmul.f32.gmra.mxu0 %v6253
    %v6274 = vpop.f32.mrf.mxu0
    %v6275 = vadd.f32 0.0, %v6274
    %6276 = vdwg.mxu0
    %6277 = vrot.lane.b32.xlu0 %v5674, 112
    %v6278 = vpop.permute.xlu0 %6277
    %6279 = vrot.lane.b32.xlu0 %v5674, 80
    %v6280 = vpop.permute.xlu0 %6279
    %v6281 = vsel %vm283, %v6278, 0
    %v6283 = vsel %vm283, %v6280, 0
    %6285 = vmatpush.xpose.msra.mxu0 0.0
    %6286 = vmatpush.xpose.msra.mxu0 0.0
    %6287 = vmatpush.xpose.msra.mxu0 0.0
    %6288 = vmatpush.xpose.msra.mxu0 0.0
    %6289 = vmatpush.xpose.msra.mxu0 0.0
    %6290 = vmatpush.xpose.msra.mxu0 0.0
    %6291 = vmatpush.xpose.msra.mxu0 0.0
    %6292 = vmatpush.xpose.msra.mxu0 0.0
    %6293 = vmatpush.xpose.msra.mxu0 0.0
    %6294 = vmatpush.xpose.msra.mxu0 0.0
    %6295 = vmatpush.xpose.msra.mxu0 0.0
    %6296 = vmatpush.xpose.msra.mxu0 0.0
    %6297 = vmatpush.xpose.msra.mxu0 0.0
    %6298 = vmatpush.xpose.msra.mxu0 0.0
    %6299 = vmatpush.xpose.msra.mxu0 0.0
    %6300 = vmatpush.xpose.msra.mxu0 %v6283
    %6301 = vmatmul.f32.gmra.mxu0 %v6281
    %v6302 = vpop.f32.mrf.mxu0
    %v6303 = vadd.f32 0.0, %v6302
    %6304 = vdwg.mxu0
    %v6305 = vsel %vm335, %v6275, -inf
    %6306 = vmax.xlane.f32.xlu0 %v6305
    %v6307 = vpop.xlane.xlu0 %6306
    %v6308 = vsel %vm335, %v6303, -inf
    %6309 = vmax.xlane.f32.xlu0 %v6308
    %v6310 = vpop.xlane.xlu0 %6309
    %v6311 = vsub.f32 %v6275, %v6307
    %v6312 = vsub.f32 %v6303, %v6310
    %v6313 = vmul.f32 %v6311, 1.442695
    %v6314 = vpow.pop %v6313
    %v6315 = vmul.f32 %v6312, 1.442695
    %v6316 = vpow.pop %v6315
    %v6317 = vsel %vm335, %v6314, 0.0
    %6318 = vadd.xlane.f32.xlu0 %v6317
    %v6319 = vpop.xlane.xlu0 %6318
    %v6320 = vsel %vm335, %v6316, 0.0
    %6321 = vadd.xlane.f32.xlu0 %v6320
    %v6322 = vpop.xlane.xlu0 %6321
    %v6323 = vrcp.pop %v6319
    %v6324 = vrcp.pop %v6322
    %v6325 = vmul.f32 %v6314, %v6323
    %v6326 = vmul.f32 %v6316, %v6324
    %v6328 = vsel %vm335, %v6325, 0
    %6330 = vmatpush.msra.mxu0 0.0
    %6331 = vmatpush.msra.mxu0 0.0
    %6332 = vmatpush.msra.mxu0 0.0
    %6333 = vmatpush.msra.mxu0 0.0
    %6334 = vmatpush.msra.mxu0 0.0
    %6335 = vmatpush.msra.mxu0 0.0
    %6336 = vmatpush.msra.mxu0 0.0
    %6337 = vmatpush.msra.mxu0 0.0
    %6338 = vmatpush.msra.mxu0 0.0
    %6339 = vmatpush.msra.mxu0 0.0
    %6340 = vmatpush.msra.mxu0 0.0
    %6341 = vmatpush.msra.mxu0 0.0
    %6342 = vmatpush.msra.mxu0 0.0
    %6343 = vmatpush.msra.mxu0 0.0
    %6344 = vmatpush.msra.mxu0 0.0
    %6345 = vmatpush.msra.mxu0 %v5725
    %6346 = vmatmul.f32.gmra.mxu0 %v6328
    %v6347 = vpop.f32.mrf.mxu0
    %v6348 = vadd.f32 0.0, %v6347
    %6349 = vdwg.mxu0
    %v6351 = vsel %vm335, %v6326, 0
    %6353 = vmatpush.msra.mxu0 0.0
    %6354 = vmatpush.msra.mxu0 0.0
    %6355 = vmatpush.msra.mxu0 0.0
    %6356 = vmatpush.msra.mxu0 0.0
    %6357 = vmatpush.msra.mxu0 0.0
    %6358 = vmatpush.msra.mxu0 0.0
    %6359 = vmatpush.msra.mxu0 0.0
    %6360 = vmatpush.msra.mxu0 0.0
    %6361 = vmatpush.msra.mxu0 0.0
    %6362 = vmatpush.msra.mxu0 0.0
    %6363 = vmatpush.msra.mxu0 0.0
    %6364 = vmatpush.msra.mxu0 0.0
    %6365 = vmatpush.msra.mxu0 0.0
    %6366 = vmatpush.msra.mxu0 0.0
    %6367 = vmatpush.msra.mxu0 0.0
    %6368 = vmatpush.msra.mxu0 %v5727
    %6369 = vmatmul.f32.gmra.mxu0 %v6351
    %v6370 = vpop.f32.mrf.mxu0
    %v6371 = vadd.f32 0.0, %v6370
    %6372 = vdwg.mxu0
    %v6373 = vadd.f32 %v6247, %v6348
    %v6374 = vadd.f32 %v6248, %v6371
    %6375 = vrot.lane.b32.xlu0 %v5672, 108
    %v6376 = vpop.permute.xlu0 %6375
    %6377 = vrot.lane.b32.xlu0 %v5672, 76
    %v6378 = vpop.permute.xlu0 %6377
    %v6379 = vsel %vm283, %v6376, 0
    %v6381 = vsel %vm283, %v6378, 0
    %6383 = vmatpush.xpose.msra.mxu0 0.0
    %6384 = vmatpush.xpose.msra.mxu0 0.0
    %6385 = vmatpush.xpose.msra.mxu0 0.0
    %6386 = vmatpush.xpose.msra.mxu0 0.0
    %6387 = vmatpush.xpose.msra.mxu0 0.0
    %6388 = vmatpush.xpose.msra.mxu0 0.0
    %6389 = vmatpush.xpose.msra.mxu0 0.0
    %6390 = vmatpush.xpose.msra.mxu0 0.0
    %6391 = vmatpush.xpose.msra.mxu0 0.0
    %6392 = vmatpush.xpose.msra.mxu0 0.0
    %6393 = vmatpush.xpose.msra.mxu0 0.0
    %6394 = vmatpush.xpose.msra.mxu0 0.0
    %6395 = vmatpush.xpose.msra.mxu0 0.0
    %6396 = vmatpush.xpose.msra.mxu0 0.0
    %6397 = vmatpush.xpose.msra.mxu0 0.0
    %6398 = vmatpush.xpose.msra.mxu0 %v6381
    %6399 = vmatmul.f32.gmra.mxu0 %v6379
    %v6400 = vpop.f32.mrf.mxu0
    %v6401 = vadd.f32 0.0, %v6400
    %6402 = vdwg.mxu0
    %6403 = vrot.lane.b32.xlu0 %v5674, 108
    %v6404 = vpop.permute.xlu0 %6403
    %6405 = vrot.lane.b32.xlu0 %v5674, 76
    %v6406 = vpop.permute.xlu0 %6405
    %v6407 = vsel %vm283, %v6404, 0
    %v6409 = vsel %vm283, %v6406, 0
    %6411 = vmatpush.xpose.msra.mxu0 0.0
    %6412 = vmatpush.xpose.msra.mxu0 0.0
    %6413 = vmatpush.xpose.msra.mxu0 0.0
    %6414 = vmatpush.xpose.msra.mxu0 0.0
    %6415 = vmatpush.xpose.msra.mxu0 0.0
    %6416 = vmatpush.xpose.msra.mxu0 0.0
    %6417 = vmatpush.xpose.msra.mxu0 0.0
    %6418 = vmatpush.xpose.msra.mxu0 0.0
    %6419 = vmatpush.xpose.msra.mxu0 0.0
    %6420 = vmatpush.xpose.msra.mxu0 0.0
    %6421 = vmatpush.xpose.msra.mxu0 0.0
    %6422 = vmatpush.xpose.msra.mxu0 0.0
    %6423 = vmatpush.xpose.msra.mxu0 0.0
    %6424 = vmatpush.xpose.msra.mxu0 0.0
    %6425 = vmatpush.xpose.msra.mxu0 0.0
    %6426 = vmatpush.xpose.msra.mxu0 %v6409
    %6427 = vmatmul.f32.gmra.mxu0 %v6407
    %v6428 = vpop.f32.mrf.mxu0
    %v6429 = vadd.f32 0.0, %v6428
    %6430 = vdwg.mxu0
    %v6431 = vsel %vm335, %v6401, -inf
    %6432 = vmax.xlane.f32.xlu0 %v6431
    %v6433 = vpop.xlane.xlu0 %6432
    %v6434 = vsel %vm335, %v6429, -inf
    %6435 = vmax.xlane.f32.xlu0 %v6434
    %v6436 = vpop.xlane.xlu0 %6435
    %v6437 = vsub.f32 %v6401, %v6433
    %v6438 = vsub.f32 %v6429, %v6436
    %v6439 = vmul.f32 %v6437, 1.442695
    %v6440 = vpow.pop %v6439
    %v6441 = vmul.f32 %v6438, 1.442695
    %v6442 = vpow.pop %v6441
    %v6443 = vsel %vm335, %v6440, 0.0
    %6444 = vadd.xlane.f32.xlu0 %v6443
    %v6445 = vpop.xlane.xlu0 %6444
    %v6446 = vsel %vm335, %v6442, 0.0
    %6447 = vadd.xlane.f32.xlu0 %v6446
    %v6448 = vpop.xlane.xlu0 %6447
    %v6449 = vrcp.pop %v6445
    %v6450 = vrcp.pop %v6448
    %v6451 = vmul.f32 %v6440, %v6449
    %v6452 = vmul.f32 %v6442, %v6450
    %6454 = vrot.lane.b32.xlu0 %v5725, 96
    %v6455 = vpop.permute.xlu0 %6454
    %v6458 = vsel %vm335, %v6451, 0
    %6460 = vmatpush.msra.mxu0 0.0
    %6461 = vmatpush.msra.mxu0 0.0
    %6462 = vmatpush.msra.mxu0 0.0
    %6463 = vmatpush.msra.mxu0 0.0
    %6464 = vmatpush.msra.mxu0 0.0
    %6465 = vmatpush.msra.mxu0 0.0
    %6466 = vmatpush.msra.mxu0 0.0
    %6467 = vmatpush.msra.mxu0 0.0
    %6468 = vmatpush.msra.mxu0 0.0
    %6469 = vmatpush.msra.mxu0 0.0
    %6470 = vmatpush.msra.mxu0 0.0
    %6471 = vmatpush.msra.mxu0 0.0
    %6472 = vmatpush.msra.mxu0 0.0
    %6473 = vmatpush.msra.mxu0 0.0
    %6474 = vmatpush.msra.mxu0 0.0
    %6475 = vmatpush.msra.mxu0 %v6455
    %6476 = vmatmul.f32.gmra.mxu0 %v6458
    %v6477 = vpop.f32.mrf.mxu0
    %v6478 = vadd.f32 0.0, %v6477
    %6479 = vdwg.mxu0
    %6481 = vrot.lane.b32.xlu0 %v5727, 96
    %v6482 = vpop.permute.xlu0 %6481
    %v6485 = vsel %vm335, %v6452, 0
    %6487 = vmatpush.msra.mxu0 0.0
    %6488 = vmatpush.msra.mxu0 0.0
    %6489 = vmatpush.msra.mxu0 0.0
    %6490 = vmatpush.msra.mxu0 0.0
    %6491 = vmatpush.msra.mxu0 0.0
    %6492 = vmatpush.msra.mxu0 0.0
    %6493 = vmatpush.msra.mxu0 0.0
    %6494 = vmatpush.msra.mxu0 0.0
    %6495 = vmatpush.msra.mxu0 0.0
    %6496 = vmatpush.msra.mxu0 0.0
    %6497 = vmatpush.msra.mxu0 0.0
    %6498 = vmatpush.msra.mxu0 0.0
    %6499 = vmatpush.msra.mxu0 0.0
    %6500 = vmatpush.msra.mxu0 0.0
    %6501 = vmatpush.msra.mxu0 0.0
    %6502 = vmatpush.msra.mxu0 %v6482
    %6503 = vmatmul.f32.gmra.mxu0 %v6485
    %v6504 = vpop.f32.mrf.mxu0
    %v6505 = vadd.f32 0.0, %v6504
    %6506 = vdwg.mxu0
    %v6507 = vadd.f32 %v6373, %v6478
    %v6508 = vadd.f32 %v6374, %v6505
    %6509 = vrot.lane.b32.xlu0 %v5672, 104
    %v6510 = vpop.permute.xlu0 %6509
    %6511 = vrot.lane.b32.xlu0 %v5672, 72
    %v6512 = vpop.permute.xlu0 %6511
    %v6513 = vsel %vm283, %v6510, 0
    %v6515 = vsel %vm283, %v6512, 0
    %6517 = vmatpush.xpose.msra.mxu0 0.0
    %6518 = vmatpush.xpose.msra.mxu0 0.0
    %6519 = vmatpush.xpose.msra.mxu0 0.0
    %6520 = vmatpush.xpose.msra.mxu0 0.0
    %6521 = vmatpush.xpose.msra.mxu0 0.0
    %6522 = vmatpush.xpose.msra.mxu0 0.0
    %6523 = vmatpush.xpose.msra.mxu0 0.0
    %6524 = vmatpush.xpose.msra.mxu0 0.0
    %6525 = vmatpush.xpose.msra.mxu0 0.0
    %6526 = vmatpush.xpose.msra.mxu0 0.0
    %6527 = vmatpush.xpose.msra.mxu0 0.0
    %6528 = vmatpush.xpose.msra.mxu0 0.0
    %6529 = vmatpush.xpose.msra.mxu0 0.0
    %6530 = vmatpush.xpose.msra.mxu0 0.0
    %6531 = vmatpush.xpose.msra.mxu0 0.0
    %6532 = vmatpush.xpose.msra.mxu0 %v6515
    %6533 = vmatmul.f32.gmra.mxu0 %v6513
    %v6534 = vpop.f32.mrf.mxu0
    %v6535 = vadd.f32 0.0, %v6534
    %6536 = vdwg.mxu0
    %6537 = vrot.lane.b32.xlu0 %v5674, 104
    %v6538 = vpop.permute.xlu0 %6537
    %6539 = vrot.lane.b32.xlu0 %v5674, 72
    %v6540 = vpop.permute.xlu0 %6539
    %v6541 = vsel %vm283, %v6538, 0
    %v6543 = vsel %vm283, %v6540, 0
    %6545 = vmatpush.xpose.msra.mxu0 0.0
    %6546 = vmatpush.xpose.msra.mxu0 0.0
    %6547 = vmatpush.xpose.msra.mxu0 0.0
    %6548 = vmatpush.xpose.msra.mxu0 0.0
    %6549 = vmatpush.xpose.msra.mxu0 0.0
    %6550 = vmatpush.xpose.msra.mxu0 0.0
    %6551 = vmatpush.xpose.msra.mxu0 0.0
    %6552 = vmatpush.xpose.msra.mxu0 0.0
    %6553 = vmatpush.xpose.msra.mxu0 0.0
    %6554 = vmatpush.xpose.msra.mxu0 0.0
    %6555 = vmatpush.xpose.msra.mxu0 0.0
    %6556 = vmatpush.xpose.msra.mxu0 0.0
    %6557 = vmatpush.xpose.msra.mxu0 0.0
    %6558 = vmatpush.xpose.msra.mxu0 0.0
    %6559 = vmatpush.xpose.msra.mxu0 0.0
    %6560 = vmatpush.xpose.msra.mxu0 %v6543
    %6561 = vmatmul.f32.gmra.mxu0 %v6541
    %v6562 = vpop.f32.mrf.mxu0
    %v6563 = vadd.f32 0.0, %v6562
    %6564 = vdwg.mxu0
    %v6565 = vsel %vm335, %v6535, -inf
    %6566 = vmax.xlane.f32.xlu0 %v6565
    %v6567 = vpop.xlane.xlu0 %6566
    %v6568 = vsel %vm335, %v6563, -inf
    %6569 = vmax.xlane.f32.xlu0 %v6568
    %v6570 = vpop.xlane.xlu0 %6569
    %v6571 = vsub.f32 %v6535, %v6567
    %v6572 = vsub.f32 %v6563, %v6570
    %v6573 = vmul.f32 %v6571, 1.442695
    %v6574 = vpow.pop %v6573
    %v6575 = vmul.f32 %v6572, 1.442695
    %v6576 = vpow.pop %v6575
    %v6577 = vsel %vm335, %v6574, 0.0
    %6578 = vadd.xlane.f32.xlu0 %v6577
    %v6579 = vpop.xlane.xlu0 %6578
    %v6580 = vsel %vm335, %v6576, 0.0
    %6581 = vadd.xlane.f32.xlu0 %v6580
    %v6582 = vpop.xlane.xlu0 %6581
    %v6583 = vrcp.pop %v6579
    %v6584 = vrcp.pop %v6582
    %v6585 = vmul.f32 %v6574, %v6583
    %v6586 = vmul.f32 %v6576, %v6584
    %6587 = vrot.lane.b32.xlu0 %v5725, 64
    %v6588 = vpop.permute.xlu0 %6587
    %v6591 = vsel %vm335, %v6585, 0
    %6593 = vmatpush.msra.mxu0 0.0
    %6594 = vmatpush.msra.mxu0 0.0
    %6595 = vmatpush.msra.mxu0 0.0
    %6596 = vmatpush.msra.mxu0 0.0
    %6597 = vmatpush.msra.mxu0 0.0
    %6598 = vmatpush.msra.mxu0 0.0
    %6599 = vmatpush.msra.mxu0 0.0
    %6600 = vmatpush.msra.mxu0 0.0
    %6601 = vmatpush.msra.mxu0 0.0
    %6602 = vmatpush.msra.mxu0 0.0
    %6603 = vmatpush.msra.mxu0 0.0
    %6604 = vmatpush.msra.mxu0 0.0
    %6605 = vmatpush.msra.mxu0 0.0
    %6606 = vmatpush.msra.mxu0 0.0
    %6607 = vmatpush.msra.mxu0 0.0
    %6608 = vmatpush.msra.mxu0 %v6588
    %6609 = vmatmul.f32.gmra.mxu0 %v6591
    %v6610 = vpop.f32.mrf.mxu0
    %v6611 = vadd.f32 0.0, %v6610
    %6612 = vdwg.mxu0
    %6613 = vrot.lane.b32.xlu0 %v5727, 64
    %v6614 = vpop.permute.xlu0 %6613
    %v6617 = vsel %vm335, %v6586, 0
    %6619 = vmatpush.msra.mxu0 0.0
    %6620 = vmatpush.msra.mxu0 0.0
    %6621 = vmatpush.msra.mxu0 0.0
    %6622 = vmatpush.msra.mxu0 0.0
    %6623 = vmatpush.msra.mxu0 0.0
    %6624 = vmatpush.msra.mxu0 0.0
    %6625 = vmatpush.msra.mxu0 0.0
    %6626 = vmatpush.msra.mxu0 0.0
    %6627 = vmatpush.msra.mxu0 0.0
    %6628 = vmatpush.msra.mxu0 0.0
    %6629 = vmatpush.msra.mxu0 0.0
    %6630 = vmatpush.msra.mxu0 0.0
    %6631 = vmatpush.msra.mxu0 0.0
    %6632 = vmatpush.msra.mxu0 0.0
    %6633 = vmatpush.msra.mxu0 0.0
    %6634 = vmatpush.msra.mxu0 %v6614
    %6635 = vmatmul.f32.gmra.mxu0 %v6617
    %v6636 = vpop.f32.mrf.mxu0
    %v6637 = vadd.f32 0.0, %v6636
    %6638 = vdwg.mxu0
    %v6639 = vadd.f32 %v6507, %v6611
    %v6640 = vadd.f32 %v6508, %v6637
    %6641 = vrot.lane.b32.xlu0 %v5672, 100
    %v6642 = vpop.permute.xlu0 %6641
    %6643 = vrot.lane.b32.xlu0 %v5672, 68
    %v6644 = vpop.permute.xlu0 %6643
    %v6645 = vsel %vm283, %v6642, 0
    %v6647 = vsel %vm283, %v6644, 0
    %6649 = vmatpush.xpose.msra.mxu0 0.0
    %6650 = vmatpush.xpose.msra.mxu0 0.0
    %6651 = vmatpush.xpose.msra.mxu0 0.0
    %6652 = vmatpush.xpose.msra.mxu0 0.0
    %6653 = vmatpush.xpose.msra.mxu0 0.0
    %6654 = vmatpush.xpose.msra.mxu0 0.0
    %6655 = vmatpush.xpose.msra.mxu0 0.0
    %6656 = vmatpush.xpose.msra.mxu0 0.0
    %6657 = vmatpush.xpose.msra.mxu0 0.0
    %6658 = vmatpush.xpose.msra.mxu0 0.0
    %6659 = vmatpush.xpose.msra.mxu0 0.0
    %6660 = vmatpush.xpose.msra.mxu0 0.0
    %6661 = vmatpush.xpose.msra.mxu0 0.0
    %6662 = vmatpush.xpose.msra.mxu0 0.0
    %6663 = vmatpush.xpose.msra.mxu0 0.0
    %6664 = vmatpush.xpose.msra.mxu0 %v6647
    %6665 = vmatmul.f32.gmra.mxu0 %v6645
    %v6666 = vpop.f32.mrf.mxu0
    %v6667 = vadd.f32 0.0, %v6666
    %6668 = vdwg.mxu0
    %6669 = vrot.lane.b32.xlu0 %v5674, 100
    %v6670 = vpop.permute.xlu0 %6669
    %6671 = vrot.lane.b32.xlu0 %v5674, 68
    %v6672 = vpop.permute.xlu0 %6671
    %v6673 = vsel %vm283, %v6670, 0
    %v6675 = vsel %vm283, %v6672, 0
    %6677 = vmatpush.xpose.msra.mxu0 0.0
    %6678 = vmatpush.xpose.msra.mxu0 0.0
    %6679 = vmatpush.xpose.msra.mxu0 0.0
    %6680 = vmatpush.xpose.msra.mxu0 0.0
    %6681 = vmatpush.xpose.msra.mxu0 0.0
    %6682 = vmatpush.xpose.msra.mxu0 0.0
    %6683 = vmatpush.xpose.msra.mxu0 0.0
    %6684 = vmatpush.xpose.msra.mxu0 0.0
    %6685 = vmatpush.xpose.msra.mxu0 0.0
    %6686 = vmatpush.xpose.msra.mxu0 0.0
    %6687 = vmatpush.xpose.msra.mxu0 0.0
    %6688 = vmatpush.xpose.msra.mxu0 0.0
    %6689 = vmatpush.xpose.msra.mxu0 0.0
    %6690 = vmatpush.xpose.msra.mxu0 0.0
    %6691 = vmatpush.xpose.msra.mxu0 0.0
    %6692 = vmatpush.xpose.msra.mxu0 %v6675
    %6693 = vmatmul.f32.gmra.mxu0 %v6673
    %v6694 = vpop.f32.mrf.mxu0
    %v6695 = vadd.f32 0.0, %v6694
    %6696 = vdwg.mxu0
    %v6697 = vsel %vm335, %v6667, -inf
    %6698 = vmax.xlane.f32.xlu0 %v6697
    %v6699 = vpop.xlane.xlu0 %6698
    %v6700 = vsel %vm335, %v6695, -inf
    %6701 = vmax.xlane.f32.xlu0 %v6700
    %v6702 = vpop.xlane.xlu0 %6701
    %v6703 = vsub.f32 %v6667, %v6699
    %v6704 = vsub.f32 %v6695, %v6702
    %v6705 = vmul.f32 %v6703, 1.442695
    %v6706 = vpow.pop %v6705
    %v6707 = vmul.f32 %v6704, 1.442695
    %v6708 = vpow.pop %v6707
    %v6709 = vsel %vm335, %v6706, 0.0
    %6710 = vadd.xlane.f32.xlu0 %v6709
    %v6711 = vpop.xlane.xlu0 %6710
    %v6712 = vsel %vm335, %v6708, 0.0
    %6713 = vadd.xlane.f32.xlu0 %v6712
    %v6714 = vpop.xlane.xlu0 %6713
    %v6715 = vrcp.pop %v6711
    %v6716 = vrcp.pop %v6714
    %v6717 = vmul.f32 %v6706, %v6715
    %v6718 = vmul.f32 %v6708, %v6716
    %6719 = vrot.lane.b32.xlu0 %v5725, 32
    %v6720 = vpop.permute.xlu0 %6719
    %v6723 = vsel %vm335, %v6717, 0
    %6725 = vmatpush.msra.mxu0 0.0
    %6726 = vmatpush.msra.mxu0 0.0
    %6727 = vmatpush.msra.mxu0 0.0
    %6728 = vmatpush.msra.mxu0 0.0
    %6729 = vmatpush.msra.mxu0 0.0
    %6730 = vmatpush.msra.mxu0 0.0
    %6731 = vmatpush.msra.mxu0 0.0
    %6732 = vmatpush.msra.mxu0 0.0
    %6733 = vmatpush.msra.mxu0 0.0
    %6734 = vmatpush.msra.mxu0 0.0
    %6735 = vmatpush.msra.mxu0 0.0
    %6736 = vmatpush.msra.mxu0 0.0
    %6737 = vmatpush.msra.mxu0 0.0
    %6738 = vmatpush.msra.mxu0 0.0
    %6739 = vmatpush.msra.mxu0 0.0
    %6740 = vmatpush.msra.mxu0 %v6720
    %6741 = vmatmul.f32.gmra.mxu0 %v6723
    %v6742 = vpop.f32.mrf.mxu0
    %v6743 = vadd.f32 0.0, %v6742
    %6744 = vdwg.mxu0
    %6745 = vrot.lane.b32.xlu0 %v5727, 32
    %v6746 = vpop.permute.xlu0 %6745
    %v6749 = vsel %vm335, %v6718, 0
    %6751 = vmatpush.msra.mxu0 0.0
    %6752 = vmatpush.msra.mxu0 0.0
    %6753 = vmatpush.msra.mxu0 0.0
    %6754 = vmatpush.msra.mxu0 0.0
    %6755 = vmatpush.msra.mxu0 0.0
    %6756 = vmatpush.msra.mxu0 0.0
    %6757 = vmatpush.msra.mxu0 0.0
    %6758 = vmatpush.msra.mxu0 0.0
    %6759 = vmatpush.msra.mxu0 0.0
    %6760 = vmatpush.msra.mxu0 0.0
    %6761 = vmatpush.msra.mxu0 0.0
    %6762 = vmatpush.msra.mxu0 0.0
    %6763 = vmatpush.msra.mxu0 0.0
    %6764 = vmatpush.msra.mxu0 0.0
    %6765 = vmatpush.msra.mxu0 0.0
    %6766 = vmatpush.msra.mxu0 %v6746
    %6767 = vmatmul.f32.gmra.mxu0 %v6749
    %v6768 = vpop.f32.mrf.mxu0
    %v6769 = vadd.f32 0.0, %v6768
    %6770 = vdwg.mxu0
    %v6771 = vadd.f32 %v6639, %v6743
    %v6772 = vadd.f32 %v6640, %v6769
    %s6773 = scalar_lea.vmem %s5, 4
    %v6774 = vld [vmem:[%s6773] sm:$0x1]
    %v6776 = vperm.slane %v6774, 0
    %v6778 = vadd.f32 %v6771, %v6776
    %v6779 = vadd.f32 %v6772, %v6776
    %v6780 = vadd.f32 %v5634, %v6778
    %v6781 = vadd.f32 %v5635, %v6779
    %s6782 = scalar_lea.vmem %s6, 4
    %v6783 = vld [vmem:[%s6782] sm:$0x1]
    %s6784 = scalar_lea.vmem %s7, 4
    %v6785 = vld [vmem:[%s6784] sm:$0x1]
    %v6786 = vsel %vm210, %v6780, 0.0
    %6787 = vadd.xlane.f32.xlu0 %v6786
    %v6788 = vpop.xlane.xlu0 %6787
    %v6789 = vsel %vm210, %v6781, 0.0
    %6790 = vadd.xlane.f32.xlu0 %v6789
    %v6791 = vpop.xlane.xlu0 %6790
    %v6792 = vmul.f32 %v6788, %v1348
    %v6793 = vmul.f32 %v6791, %v1348
    %v6794 = vsub.f32 %v6780, %v6792
    %v6795 = vsub.f32 %v6781, %v6793
    %v6796 = vmul.f32 %v6794, %v6794
    %v6797 = vmul.f32 %v6795, %v6795
    %v6798 = vsel %vm210, %v6796, 0.0
    %6799 = vadd.xlane.f32.xlu0 %v6798
    %v6800 = vpop.xlane.xlu0 %6799
    %v6801 = vsel %vm210, %v6797, 0.0
    %6802 = vadd.xlane.f32.xlu0 %v6801
    %v6803 = vpop.xlane.xlu0 %6802
    %v6804 = vmul.f32 %v6800, %v1348
    %v6805 = vmul.f32 %v6803, %v1348
    %v6806 = vadd.f32 %v6804, 1e-05
    %v6807 = vadd.f32 %v6805, 1e-05
    %v6808 = vrsqrt.pop %v6806
    %v6809 = vmul.f32 %v6808, %v6806
    %v6810 = vmul.f32 %v6809, %v6808
    %v6811 = vmul.f32 0.5, %v6810
    %v6812 = vsub.f32 1.5, %v6811
    %v6813 = vmul.f32 %v6808, %v6812
    %vm6814 = vweird.f32 %v6806
    %vm6815 = vweird.f32 %v6808
    %vm6816 = vmor %vm6814, %vm6815
    %v6817 = vsel %vm6816, %v6808, %v6813
    %v6818 = vrsqrt.pop %v6807
    %v6819 = vmul.f32 %v6818, %v6807
    %v6820 = vmul.f32 %v6819, %v6818
    %v6821 = vmul.f32 0.5, %v6820
    %v6822 = vsub.f32 1.5, %v6821
    %v6823 = vmul.f32 %v6818, %v6822
    %vm6824 = vweird.f32 %v6807
    %vm6825 = vweird.f32 %v6818
    %vm6826 = vmor %vm6824, %vm6825
    %v6827 = vsel %vm6826, %v6818, %v6823
    %v6828 = vmul.f32 %v6794, %v6817
    %v6829 = vmul.f32 %v6795, %v6827
    %v6831 = vperm.slane %v6783, 0
    %v6833 = vmul.f32 %v6828, %v6831
    %v6834 = vmul.f32 %v6829, %v6831
    %v6836 = vperm.slane %v6785, 0
    %v6838 = vadd.f32 %v6833, %v6836
    %v6839 = vadd.f32 %v6834, %v6836
    %v6840 = vpack.c.bf16 %v6839, %v6838
    %s6841 = scalar_lea.vmem [#allocation6], 64
    %v6842 = vld [vmem:[%s6841] sm:$0xf]
    %v6843 = vld [vmem:[%s6841 + $0x4] sm:$0xf]
    %v6844 = vld [vmem:[%s6841 + $0x8] sm:$0xf]
    %v6845 = vld [vmem:[%s6841 + $0xc] sm:$0xf]
    %s6846 = scalar_lea.vmem %s9, 4
    %v6847 = vld [vmem:[%s6846] sm:$0x1]
    %v6849 = vperm.slane %v6847, 0
    %v6855 = vunpack.c.l.b16 %v6842
    %v6856 = vunpack.c.l.b16 %v6843
    %v6857 = vunpack.c.l.b16 %v6844
    %v6858 = vunpack.c.l.b16 %v6845
    %v6859 = vpack.c.b16 %v6856, %v6855
    %v6860 = vpack.c.b16 %v6858, %v6857
    %v6864 = vsel %vm210, %v6840, 0
    %6866 = vmatpush.bf16.msra.mxu0 0
    %6867 = vmatpush.bf16.msra.mxu0 0
    %6868 = vmatpush.bf16.msra.mxu0 0
    %6869 = vmatpush.bf16.msra.mxu0 0
    %6870 = vmatpush.bf16.msra.mxu0 0
    %6871 = vmatpush.bf16.msra.mxu0 0
    %6872 = vmatpush.bf16.msra.mxu0 %v6860
    %6873 = vmatpush.bf16.msra.mxu0 %v6859
    %6874 = vmatmul.bf16.gmra.mxu0 %v6864
    %v6875 = vpop.f32.mrf.mxu0
    %v6876 = vadd.f32 %v6849, %v6875
    %v6877 = vpop.f32.mrf.mxu0
    %v6878 = vadd.f32 %v6849, %v6877
    %6879 = vdwg.mxu0
    %v6880 = vmax.f32 %v6876, 0.0
    %v6881 = vmax.f32 %v6878, 0.0
    %v6882 = vpack.c.bf16 %v6881, %v6880
    %s6883 = scalar_lea.vmem %s10, 128
    %v6884 = vld [vmem:[%s6883] sm:$0xf]
    %v6885 = vld [vmem:[%s6883 + $0x4] sm:$0xf]
    %v6886 = vld [vmem:[%s6883 + $0x8] sm:$0xf]
    %v6887 = vld [vmem:[%s6883 + $0xc] sm:$0xf]
    %v6888 = vld [vmem:[%s6883 + $0x10] sm:$0xf]
    %v6889 = vld [vmem:[%s6883 + $0x14] sm:$0xf]
    %v6890 = vld [vmem:[%s6883 + $0x18] sm:$0xf]
    %v6891 = vld [vmem:[%s6883 + $0x1c] sm:$0xf]
    %s6892 = scalar_lea.vmem %s11, 4
    %v6893 = vld [vmem:[%s6892] sm:$0x1]
    %v6895 = vperm.slane %v6893, 0
    %v6905 = vunpack.c.l.b16 %v6884
    %v6906 = vunpack.c.l.b16 %v6885
    %v6907 = vunpack.c.l.b16 %v6886
    %v6908 = vunpack.c.l.b16 %v6887
    %v6909 = vunpack.c.l.b16 %v6888
    %v6910 = vunpack.c.l.b16 %v6889
    %v6911 = vunpack.c.l.b16 %v6890
    %v6912 = vunpack.c.l.b16 %v6891
    %v6913 = vpack.c.b16 %v6906, %v6905
    %v6914 = vpack.c.b16 %v6908, %v6907
    %v6915 = vpack.c.b16 %v6910, %v6909
    %v6916 = vpack.c.b16 %v6912, %v6911
    %v6922 = vsel %vm1474, %v6882, 0
    %6924 = vmatpush.bf16.msra.mxu0 0
    %6925 = vmatpush.bf16.msra.mxu0 0
    %6926 = vmatpush.bf16.msra.mxu0 0
    %6927 = vmatpush.bf16.msra.mxu0 0
    %6928 = vmatpush.bf16.msra.mxu0 %v6916
    %6929 = vmatpush.bf16.msra.mxu0 %v6915
    %6930 = vmatpush.bf16.msra.mxu0 %v6914
    %6931 = vmatpush.bf16.msra.mxu0 %v6913
    %6932 = vmatmul.bf16.gmra.mxu0 %v6922
    %v6933 = vpop.f32.mrf.mxu0
    %v6934 = vadd.f32 %v6895, %v6933
    %v6935 = vpop.f32.mrf.mxu0
    %v6936 = vadd.f32 %v6895, %v6935
    %6937 = vdwg.mxu0
    %v6938 = vadd.f32 %v6838, %v6934
    %v6939 = vadd.f32 %v6839, %v6936
    %s6940 = scalar_lea.vmem %s12, 4
    %v6941 = vld [vmem:[%s6940] sm:$0x1]
    %s6942 = scalar_lea.vmem %s13, 4
    %v6943 = vld [vmem:[%s6942] sm:$0x1]
    %v6944 = vsel %vm210, %v6938, 0.0
    %6945 = vadd.xlane.f32.xlu0 %v6944
    %v6946 = vpop.xlane.xlu0 %6945
    %v6947 = vsel %vm210, %v6939, 0.0
    %6948 = vadd.xlane.f32.xlu0 %v6947
    %v6949 = vpop.xlane.xlu0 %6948
    %v6950 = vmul.f32 %v6946, %v1348
    %v6951 = vmul.f32 %v6949, %v1348
    %v6952 = vsub.f32 %v6938, %v6950
    %v6953 = vsub.f32 %v6939, %v6951
    %v6954 = vmul.f32 %v6952, %v6952
    %v6955 = vmul.f32 %v6953, %v6953
    %v6956 = vsel %vm210, %v6954, 0.0
    %6957 = vadd.xlane.f32.xlu0 %v6956
    %v6958 = vpop.xlane.xlu0 %6957
    %v6959 = vsel %vm210, %v6955, 0.0
    %6960 = vadd.xlane.f32.xlu0 %v6959
    %v6961 = vpop.xlane.xlu0 %6960
    %v6962 = vmul.f32 %v6958, %v1348
    %v6963 = vmul.f32 %v6961, %v1348
    %v6964 = vadd.f32 %v6962, 1e-05
    %v6965 = vadd.f32 %v6963, 1e-05
    %v6966 = vrsqrt.pop %v6964
    %v6967 = vmul.f32 %v6966, %v6964
    %v6968 = vmul.f32 %v6967, %v6966
    %v6969 = vmul.f32 0.5, %v6968
    %v6970 = vsub.f32 1.5, %v6969
    %v6971 = vmul.f32 %v6966, %v6970
    %vm6972 = vweird.f32 %v6964
    %vm6973 = vweird.f32 %v6966
    %vm6974 = vmor %vm6972, %vm6973
    %v6975 = vsel %vm6974, %v6966, %v6971
    %v6976 = vrsqrt.pop %v6965
    %v6977 = vmul.f32 %v6976, %v6965
    %v6978 = vmul.f32 %v6977, %v6976
    %v6979 = vmul.f32 0.5, %v6978
    %v6980 = vsub.f32 1.5, %v6979
    %v6981 = vmul.f32 %v6976, %v6980
    %vm6982 = vweird.f32 %v6965
    %vm6983 = vweird.f32 %v6976
    %vm6984 = vmor %vm6982, %vm6983
    %v6985 = vsel %vm6984, %v6976, %v6981
    %v6986 = vmul.f32 %v6952, %v6975
    %v6987 = vmul.f32 %v6953, %v6985
    %v6989 = vperm.slane %v6941, 0
    %v6991 = vmul.f32 %v6986, %v6989
    %v6992 = vmul.f32 %v6987, %v6989
    %v6994 = vperm.slane %v6943, 0
    %v6996 = vadd.f32 %v6991, %v6994
    %v6997 = vadd.f32 %v6992, %v6994
    %v6998 = vpack.c.bf16 %v6997, %v6996
    %s6999 = scalar_lea.vmem %s2, 80
    %v7000 = vld [vmem:[%s6999] sm:$0xf]
    %v7001 = vld [vmem:[%s6999 + $0x4] sm:$0xf]
    %v7002 = vld [vmem:[%s6999 + $0x8] sm:$0xf]
    %v7003 = vld [vmem:[%s6999 + $0xc] sm:$0xf]
    %s7004 = scalar_lea.vmem %s3, 5
    %v7005 = vld [vmem:[%s7004] sm:$0x1]
    %v7007 = vperm.slane %v7005, 0
    %v7013 = vunpack.c.l.b16 %v7000
    %v7014 = vunpack.c.l.b16 %v7001
    %v7015 = vunpack.c.l.b16 %v7002
    %v7016 = vunpack.c.l.b16 %v7003
    %v7017 = vpack.c.b16 %v7014, %v7013
    %v7018 = vpack.c.b16 %v7016, %v7015
    %v7022 = vsel %vm210, %v6998, 0
    %7024 = vmatpush.bf16.msra.mxu0 0
    %7025 = vmatpush.bf16.msra.mxu0 0
    %7026 = vmatpush.bf16.msra.mxu0 0
    %7027 = vmatpush.bf16.msra.mxu0 0
    %7028 = vmatpush.bf16.msra.mxu0 0
    %7029 = vmatpush.bf16.msra.mxu0 0
    %7030 = vmatpush.bf16.msra.mxu0 %v7018
    %7031 = vmatpush.bf16.msra.mxu0 %v7017
    %7032 = vmatmul.bf16.gmra.mxu0 %v7022
    %v7033 = vpop.f32.mrf.mxu0
    %v7034 = vadd.f32 %v7007, %v7033
    %v7035 = vpop.f32.mrf.mxu0
    %v7036 = vadd.f32 %v7007, %v7035
    %7037 = vdwg.mxu0
    %s7038 = scalar_lea.vmem %s4, 160
    %v7039 = vld [vmem:[%s7038] sm:$0xff]
    %v7040 = vld [vmem:[%s7038 + $0x8] sm:$0xff]
    %v7041 = vld [vmem:[%s7038 + $0x10] sm:$0xff]
    %v7042 = vld [vmem:[%s7038 + $0x18] sm:$0xff]
    %v7047 = vunpack.c.l.b16 %v7039
    %v7048 = vunpack.c.h.b16 %v7039
    %v7049 = vunpack.c.l.b16 %v7040
    %v7050 = vunpack.c.h.b16 %v7040
    %v7051 = vunpack.c.l.b16 %v7041
    %v7052 = vunpack.c.h.b16 %v7041
    %v7053 = vunpack.c.l.b16 %v7042
    %v7054 = vunpack.c.h.b16 %v7042
    %v7055 = vpack.c.b16 %v7049, %v7047
    %v7056 = vpack.c.b16 %v7050, %v7048
    %v7057 = vpack.c.b16 %v7053, %v7051
    %v7058 = vpack.c.b16 %v7054, %v7052
    %7063 = vmatpush.bf16.msra.mxu0 0
    %7064 = vmatpush.bf16.msra.mxu0 0
    %7065 = vmatpush.bf16.msra.mxu0 0
    %7066 = vmatpush.bf16.msra.mxu0 0
    %7067 = vmatpush.bf16.msra.mxu0 0
    %7068 = vmatpush.bf16.msra.mxu0 0
    %7069 = vmatpush.bf16.msra.mxu0 %v7057
    %7070 = vmatpush.bf16.msra.mxu0 %v7055
    %7071 = vmatmul.bf16.gmra.mxu0 %v7022
    %v7072 = vpop.f32.mrf.mxu0
    %v7073 = vadd.f32 0.0, %v7072
    %v7074 = vpop.f32.mrf.mxu0
    %v7075 = vadd.f32 0.0, %v7074
    %7076 = vdwg.mxu0
    %7077 = vmatpush.bf16.msra.mxu0 0
    %7078 = vmatpush.bf16.msra.mxu0 0
    %7079 = vmatpush.bf16.msra.mxu0 0
    %7080 = vmatpush.bf16.msra.mxu0 0
    %7081 = vmatpush.bf16.msra.mxu0 0
    %7082 = vmatpush.bf16.msra.mxu0 0
    %7083 = vmatpush.bf16.msra.mxu0 %v7058
    %7084 = vmatpush.bf16.msra.mxu0 %v7056
    %7085 = vmatmul.bf16.gmra.mxu0 %v7022
    %v7086 = vpop.f32.mrf.mxu0
    %v7087 = vadd.f32 0.0, %v7086
    %v7088 = vpop.f32.mrf.mxu0
    %v7089 = vadd.f32 0.0, %v7088
    %7090 = vdwg.mxu0
    %7092 = vrot.lane.b32.xlu0 %v7034, 96
    %v7093 = vpop.permute.xlu0 %7092
    %v7094 = vsel %vm283, %v7034, 0
    %v7096 = vsel %vm283, %v7093, 0
    %7098 = vmatpush.xpose.msra.mxu0 0.0
    %7099 = vmatpush.xpose.msra.mxu0 0.0
    %7100 = vmatpush.xpose.msra.mxu0 0.0
    %7101 = vmatpush.xpose.msra.mxu0 0.0
    %7102 = vmatpush.xpose.msra.mxu0 0.0
    %7103 = vmatpush.xpose.msra.mxu0 0.0
    %7104 = vmatpush.xpose.msra.mxu0 0.0
    %7105 = vmatpush.xpose.msra.mxu0 0.0
    %7106 = vmatpush.xpose.msra.mxu0 0.0
    %7107 = vmatpush.xpose.msra.mxu0 0.0
    %7108 = vmatpush.xpose.msra.mxu0 0.0
    %7109 = vmatpush.xpose.msra.mxu0 0.0
    %7110 = vmatpush.xpose.msra.mxu0 0.0
    %7111 = vmatpush.xpose.msra.mxu0 0.0
    %7112 = vmatpush.xpose.msra.mxu0 0.0
    %7113 = vmatpush.xpose.msra.mxu0 %v7096
    %7114 = vmatmul.f32.gmra.mxu0 %v7094
    %v7115 = vpop.f32.mrf.mxu0
    %v7116 = vadd.f32 0.0, %v7115
    %7117 = vdwg.mxu0
    %7119 = vrot.lane.b32.xlu0 %v7036, 96
    %v7120 = vpop.permute.xlu0 %7119
    %v7121 = vsel %vm283, %v7036, 0
    %v7123 = vsel %vm283, %v7120, 0
    %7125 = vmatpush.xpose.msra.mxu0 0.0
    %7126 = vmatpush.xpose.msra.mxu0 0.0
    %7127 = vmatpush.xpose.msra.mxu0 0.0
    %7128 = vmatpush.xpose.msra.mxu0 0.0
    %7129 = vmatpush.xpose.msra.mxu0 0.0
    %7130 = vmatpush.xpose.msra.mxu0 0.0
    %7131 = vmatpush.xpose.msra.mxu0 0.0
    %7132 = vmatpush.xpose.msra.mxu0 0.0
    %7133 = vmatpush.xpose.msra.mxu0 0.0
    %7134 = vmatpush.xpose.msra.mxu0 0.0
    %7135 = vmatpush.xpose.msra.mxu0 0.0
    %7136 = vmatpush.xpose.msra.mxu0 0.0
    %7137 = vmatpush.xpose.msra.mxu0 0.0
    %7138 = vmatpush.xpose.msra.mxu0 0.0
    %7139 = vmatpush.xpose.msra.mxu0 0.0
    %7140 = vmatpush.xpose.msra.mxu0 %v7123
    %7141 = vmatmul.f32.gmra.mxu0 %v7121
    %v7142 = vpop.f32.mrf.mxu0
    %v7143 = vadd.f32 0.0, %v7142
    %7144 = vdwg.mxu0
    %v7145 = vsel %vm335, %v7116, -inf
    %7146 = vmax.xlane.f32.xlu0 %v7145
    %v7147 = vpop.xlane.xlu0 %7146
    %v7148 = vsel %vm335, %v7143, -inf
    %7149 = vmax.xlane.f32.xlu0 %v7148
    %v7150 = vpop.xlane.xlu0 %7149
    %v7151 = vsub.f32 %v7116, %v7147
    %v7152 = vsub.f32 %v7143, %v7150
    %v7153 = vmul.f32 %v7151, 1.442695
    %v7154 = vpow.pop %v7153
    %v7155 = vmul.f32 %v7152, 1.442695
    %v7156 = vpow.pop %v7155
    %v7157 = vsel %vm335, %v7154, 0.0
    %7158 = vadd.xlane.f32.xlu0 %v7157
    %v7159 = vpop.xlane.xlu0 %7158
    %v7160 = vsel %vm335, %v7156, 0.0
    %7161 = vadd.xlane.f32.xlu0 %v7160
    %v7162 = vpop.xlane.xlu0 %7161
    %v7163 = vrcp.pop %v7159
    %v7164 = vrcp.pop %v7162
    %v7165 = vmul.f32 %v7154, %v7163
    %v7166 = vmul.f32 %v7156, %v7164
    %v7168 = vsel %vm335, %v7165, 0
    %7170 = vmatpush.msra.mxu0 0.0
    %7171 = vmatpush.msra.mxu0 0.0
    %7172 = vmatpush.msra.mxu0 0.0
    %7173 = vmatpush.msra.mxu0 0.0
    %7174 = vmatpush.msra.mxu0 0.0
    %7175 = vmatpush.msra.mxu0 0.0
    %7176 = vmatpush.msra.mxu0 0.0
    %7177 = vmatpush.msra.mxu0 0.0
    %7178 = vmatpush.msra.mxu0 0.0
    %7179 = vmatpush.msra.mxu0 0.0
    %7180 = vmatpush.msra.mxu0 0.0
    %7181 = vmatpush.msra.mxu0 0.0
    %7182 = vmatpush.msra.mxu0 0.0
    %7183 = vmatpush.msra.mxu0 0.0
    %7184 = vmatpush.msra.mxu0 0.0
    %7185 = vmatpush.msra.mxu0 %v7073
    %7186 = vmatmul.f32.gmra.mxu0 %v7168
    %v7187 = vpop.f32.mrf.mxu0
    %v7188 = vadd.f32 0.0, %v7187
    %7189 = vdwg.mxu0
    %v7191 = vsel %vm335, %v7166, 0
    %7193 = vmatpush.msra.mxu0 0.0
    %7194 = vmatpush.msra.mxu0 0.0
    %7195 = vmatpush.msra.mxu0 0.0
    %7196 = vmatpush.msra.mxu0 0.0
    %7197 = vmatpush.msra.mxu0 0.0
    %7198 = vmatpush.msra.mxu0 0.0
    %7199 = vmatpush.msra.mxu0 0.0
    %7200 = vmatpush.msra.mxu0 0.0
    %7201 = vmatpush.msra.mxu0 0.0
    %7202 = vmatpush.msra.mxu0 0.0
    %7203 = vmatpush.msra.mxu0 0.0
    %7204 = vmatpush.msra.mxu0 0.0
    %7205 = vmatpush.msra.mxu0 0.0
    %7206 = vmatpush.msra.mxu0 0.0
    %7207 = vmatpush.msra.mxu0 0.0
    %7208 = vmatpush.msra.mxu0 %v7075
    %7209 = vmatmul.f32.gmra.mxu0 %v7191
    %v7210 = vpop.f32.mrf.mxu0
    %v7211 = vadd.f32 0.0, %v7210
    %7212 = vdwg.mxu0
    %7213 = vrot.lane.b32.xlu0 %v7034, 124
    %v7214 = vpop.permute.xlu0 %7213
    %7215 = vrot.lane.b32.xlu0 %v7034, 92
    %v7216 = vpop.permute.xlu0 %7215
    %v7217 = vsel %vm283, %v7214, 0
    %v7219 = vsel %vm283, %v7216, 0
    %7221 = vmatpush.xpose.msra.mxu0 0.0
    %7222 = vmatpush.xpose.msra.mxu0 0.0
    %7223 = vmatpush.xpose.msra.mxu0 0.0
    %7224 = vmatpush.xpose.msra.mxu0 0.0
    %7225 = vmatpush.xpose.msra.mxu0 0.0
    %7226 = vmatpush.xpose.msra.mxu0 0.0
    %7227 = vmatpush.xpose.msra.mxu0 0.0
    %7228 = vmatpush.xpose.msra.mxu0 0.0
    %7229 = vmatpush.xpose.msra.mxu0 0.0
    %7230 = vmatpush.xpose.msra.mxu0 0.0
    %7231 = vmatpush.xpose.msra.mxu0 0.0
    %7232 = vmatpush.xpose.msra.mxu0 0.0
    %7233 = vmatpush.xpose.msra.mxu0 0.0
    %7234 = vmatpush.xpose.msra.mxu0 0.0
    %7235 = vmatpush.xpose.msra.mxu0 0.0
    %7236 = vmatpush.xpose.msra.mxu0 %v7219
    %7237 = vmatmul.f32.gmra.mxu0 %v7217
    %v7238 = vpop.f32.mrf.mxu0
    %v7239 = vadd.f32 0.0, %v7238
    %7240 = vdwg.mxu0
    %7241 = vrot.lane.b32.xlu0 %v7036, 124
    %v7242 = vpop.permute.xlu0 %7241
    %7243 = vrot.lane.b32.xlu0 %v7036, 92
    %v7244 = vpop.permute.xlu0 %7243
    %v7245 = vsel %vm283, %v7242, 0
    %v7247 = vsel %vm283, %v7244, 0
    %7249 = vmatpush.xpose.msra.mxu0 0.0
    %7250 = vmatpush.xpose.msra.mxu0 0.0
    %7251 = vmatpush.xpose.msra.mxu0 0.0
    %7252 = vmatpush.xpose.msra.mxu0 0.0
    %7253 = vmatpush.xpose.msra.mxu0 0.0
    %7254 = vmatpush.xpose.msra.mxu0 0.0
    %7255 = vmatpush.xpose.msra.mxu0 0.0
    %7256 = vmatpush.xpose.msra.mxu0 0.0
    %7257 = vmatpush.xpose.msra.mxu0 0.0
    %7258 = vmatpush.xpose.msra.mxu0 0.0
    %7259 = vmatpush.xpose.msra.mxu0 0.0
    %7260 = vmatpush.xpose.msra.mxu0 0.0
    %7261 = vmatpush.xpose.msra.mxu0 0.0
    %7262 = vmatpush.xpose.msra.mxu0 0.0
    %7263 = vmatpush.xpose.msra.mxu0 0.0
    %7264 = vmatpush.xpose.msra.mxu0 %v7247
    %7265 = vmatmul.f32.gmra.mxu0 %v7245
    %v7266 = vpop.f32.mrf.mxu0
    %v7267 = vadd.f32 0.0, %v7266
    %7268 = vdwg.mxu0
    %v7269 = vsel %vm335, %v7239, -inf
    %7270 = vmax.xlane.f32.xlu0 %v7269
    %v7271 = vpop.xlane.xlu0 %7270
    %v7272 = vsel %vm335, %v7267, -inf
    %7273 = vmax.xlane.f32.xlu0 %v7272
    %v7274 = vpop.xlane.xlu0 %7273
    %v7275 = vsub.f32 %v7239, %v7271
    %v7276 = vsub.f32 %v7267, %v7274
    %v7277 = vmul.f32 %v7275, 1.442695
    %v7278 = vpow.pop %v7277
    %v7279 = vmul.f32 %v7276, 1.442695
    %v7280 = vpow.pop %v7279
    %v7281 = vsel %vm335, %v7278, 0.0
    %7282 = vadd.xlane.f32.xlu0 %v7281
    %v7283 = vpop.xlane.xlu0 %7282
    %v7284 = vsel %vm335, %v7280, 0.0
    %7285 = vadd.xlane.f32.xlu0 %v7284
    %v7286 = vpop.xlane.xlu0 %7285
    %v7287 = vrcp.pop %v7283
    %v7288 = vrcp.pop %v7286
    %v7289 = vmul.f32 %v7278, %v7287
    %v7290 = vmul.f32 %v7280, %v7288
    %7292 = vrot.lane.b32.xlu0 %v7073, 96
    %v7293 = vpop.permute.xlu0 %7292
    %v7296 = vsel %vm335, %v7289, 0
    %7298 = vmatpush.msra.mxu0 0.0
    %7299 = vmatpush.msra.mxu0 0.0
    %7300 = vmatpush.msra.mxu0 0.0
    %7301 = vmatpush.msra.mxu0 0.0
    %7302 = vmatpush.msra.mxu0 0.0
    %7303 = vmatpush.msra.mxu0 0.0
    %7304 = vmatpush.msra.mxu0 0.0
    %7305 = vmatpush.msra.mxu0 0.0
    %7306 = vmatpush.msra.mxu0 0.0
    %7307 = vmatpush.msra.mxu0 0.0
    %7308 = vmatpush.msra.mxu0 0.0
    %7309 = vmatpush.msra.mxu0 0.0
    %7310 = vmatpush.msra.mxu0 0.0
    %7311 = vmatpush.msra.mxu0 0.0
    %7312 = vmatpush.msra.mxu0 0.0
    %7313 = vmatpush.msra.mxu0 %v7293
    %7314 = vmatmul.f32.gmra.mxu0 %v7296
    %v7315 = vpop.f32.mrf.mxu0
    %v7316 = vadd.f32 0.0, %v7315
    %7317 = vdwg.mxu0
    %7319 = vrot.lane.b32.xlu0 %v7075, 96
    %v7320 = vpop.permute.xlu0 %7319
    %v7323 = vsel %vm335, %v7290, 0
    %7325 = vmatpush.msra.mxu0 0.0
    %7326 = vmatpush.msra.mxu0 0.0
    %7327 = vmatpush.msra.mxu0 0.0
    %7328 = vmatpush.msra.mxu0 0.0
    %7329 = vmatpush.msra.mxu0 0.0
    %7330 = vmatpush.msra.mxu0 0.0
    %7331 = vmatpush.msra.mxu0 0.0
    %7332 = vmatpush.msra.mxu0 0.0
    %7333 = vmatpush.msra.mxu0 0.0
    %7334 = vmatpush.msra.mxu0 0.0
    %7335 = vmatpush.msra.mxu0 0.0
    %7336 = vmatpush.msra.mxu0 0.0
    %7337 = vmatpush.msra.mxu0 0.0
    %7338 = vmatpush.msra.mxu0 0.0
    %7339 = vmatpush.msra.mxu0 0.0
    %7340 = vmatpush.msra.mxu0 %v7320
    %7341 = vmatmul.f32.gmra.mxu0 %v7323
    %v7342 = vpop.f32.mrf.mxu0
    %v7343 = vadd.f32 0.0, %v7342
    %7344 = vdwg.mxu0
    %v7345 = vadd.f32 %v7188, %v7316
    %v7346 = vadd.f32 %v7211, %v7343
    %7347 = vrot.lane.b32.xlu0 %v7034, 120
    %v7348 = vpop.permute.xlu0 %7347
    %7349 = vrot.lane.b32.xlu0 %v7034, 88
    %v7350 = vpop.permute.xlu0 %7349
    %v7351 = vsel %vm283, %v7348, 0
    %v7353 = vsel %vm283, %v7350, 0
    %7355 = vmatpush.xpose.msra.mxu0 0.0
    %7356 = vmatpush.xpose.msra.mxu0 0.0
    %7357 = vmatpush.xpose.msra.mxu0 0.0
    %7358 = vmatpush.xpose.msra.mxu0 0.0
    %7359 = vmatpush.xpose.msra.mxu0 0.0
    %7360 = vmatpush.xpose.msra.mxu0 0.0
    %7361 = vmatpush.xpose.msra.mxu0 0.0
    %7362 = vmatpush.xpose.msra.mxu0 0.0
    %7363 = vmatpush.xpose.msra.mxu0 0.0
    %7364 = vmatpush.xpose.msra.mxu0 0.0
    %7365 = vmatpush.xpose.msra.mxu0 0.0
    %7366 = vmatpush.xpose.msra.mxu0 0.0
    %7367 = vmatpush.xpose.msra.mxu0 0.0
    %7368 = vmatpush.xpose.msra.mxu0 0.0
    %7369 = vmatpush.xpose.msra.mxu0 0.0
    %7370 = vmatpush.xpose.msra.mxu0 %v7353
    %7371 = vmatmul.f32.gmra.mxu0 %v7351
    %v7372 = vpop.f32.mrf.mxu0
    %v7373 = vadd.f32 0.0, %v7372
    %7374 = vdwg.mxu0
    %7375 = vrot.lane.b32.xlu0 %v7036, 120
    %v7376 = vpop.permute.xlu0 %7375
    %7377 = vrot.lane.b32.xlu0 %v7036, 88
    %v7378 = vpop.permute.xlu0 %7377
    %v7379 = vsel %vm283, %v7376, 0
    %v7381 = vsel %vm283, %v7378, 0
    %7383 = vmatpush.xpose.msra.mxu0 0.0
    %7384 = vmatpush.xpose.msra.mxu0 0.0
    %7385 = vmatpush.xpose.msra.mxu0 0.0
    %7386 = vmatpush.xpose.msra.mxu0 0.0
    %7387 = vmatpush.xpose.msra.mxu0 0.0
    %7388 = vmatpush.xpose.msra.mxu0 0.0
    %7389 = vmatpush.xpose.msra.mxu0 0.0
    %7390 = vmatpush.xpose.msra.mxu0 0.0
    %7391 = vmatpush.xpose.msra.mxu0 0.0
    %7392 = vmatpush.xpose.msra.mxu0 0.0
    %7393 = vmatpush.xpose.msra.mxu0 0.0
    %7394 = vmatpush.xpose.msra.mxu0 0.0
    %7395 = vmatpush.xpose.msra.mxu0 0.0
    %7396 = vmatpush.xpose.msra.mxu0 0.0
    %7397 = vmatpush.xpose.msra.mxu0 0.0
    %7398 = vmatpush.xpose.msra.mxu0 %v7381
    %7399 = vmatmul.f32.gmra.mxu0 %v7379
    %v7400 = vpop.f32.mrf.mxu0
    %v7401 = vadd.f32 0.0, %v7400
    %7402 = vdwg.mxu0
    %v7403 = vsel %vm335, %v7373, -inf
    %7404 = vmax.xlane.f32.xlu0 %v7403
    %v7405 = vpop.xlane.xlu0 %7404
    %v7406 = vsel %vm335, %v7401, -inf
    %7407 = vmax.xlane.f32.xlu0 %v7406
    %v7408 = vpop.xlane.xlu0 %7407
    %v7409 = vsub.f32 %v7373, %v7405
    %v7410 = vsub.f32 %v7401, %v7408
    %v7411 = vmul.f32 %v7409, 1.442695
    %v7412 = vpow.pop %v7411
    %v7413 = vmul.f32 %v7410, 1.442695
    %v7414 = vpow.pop %v7413
    %v7415 = vsel %vm335, %v7412, 0.0
    %7416 = vadd.xlane.f32.xlu0 %v7415
    %v7417 = vpop.xlane.xlu0 %7416
    %v7418 = vsel %vm335, %v7414, 0.0
    %7419 = vadd.xlane.f32.xlu0 %v7418
    %v7420 = vpop.xlane.xlu0 %7419
    %v7421 = vrcp.pop %v7417
    %v7422 = vrcp.pop %v7420
    %v7423 = vmul.f32 %v7412, %v7421
    %v7424 = vmul.f32 %v7414, %v7422
    %7425 = vrot.lane.b32.xlu0 %v7073, 64
    %v7426 = vpop.permute.xlu0 %7425
    %v7429 = vsel %vm335, %v7423, 0
    %7431 = vmatpush.msra.mxu0 0.0
    %7432 = vmatpush.msra.mxu0 0.0
    %7433 = vmatpush.msra.mxu0 0.0
    %7434 = vmatpush.msra.mxu0 0.0
    %7435 = vmatpush.msra.mxu0 0.0
    %7436 = vmatpush.msra.mxu0 0.0
    %7437 = vmatpush.msra.mxu0 0.0
    %7438 = vmatpush.msra.mxu0 0.0
    %7439 = vmatpush.msra.mxu0 0.0
    %7440 = vmatpush.msra.mxu0 0.0
    %7441 = vmatpush.msra.mxu0 0.0
    %7442 = vmatpush.msra.mxu0 0.0
    %7443 = vmatpush.msra.mxu0 0.0
    %7444 = vmatpush.msra.mxu0 0.0
    %7445 = vmatpush.msra.mxu0 0.0
    %7446 = vmatpush.msra.mxu0 %v7426
    %7447 = vmatmul.f32.gmra.mxu0 %v7429
    %v7448 = vpop.f32.mrf.mxu0
    %v7449 = vadd.f32 0.0, %v7448
    %7450 = vdwg.mxu0
    %7451 = vrot.lane.b32.xlu0 %v7075, 64
    %v7452 = vpop.permute.xlu0 %7451
    %v7455 = vsel %vm335, %v7424, 0
    %7457 = vmatpush.msra.mxu0 0.0
    %7458 = vmatpush.msra.mxu0 0.0
    %7459 = vmatpush.msra.mxu0 0.0
    %7460 = vmatpush.msra.mxu0 0.0
    %7461 = vmatpush.msra.mxu0 0.0
    %7462 = vmatpush.msra.mxu0 0.0
    %7463 = vmatpush.msra.mxu0 0.0
    %7464 = vmatpush.msra.mxu0 0.0
    %7465 = vmatpush.msra.mxu0 0.0
    %7466 = vmatpush.msra.mxu0 0.0
    %7467 = vmatpush.msra.mxu0 0.0
    %7468 = vmatpush.msra.mxu0 0.0
    %7469 = vmatpush.msra.mxu0 0.0
    %7470 = vmatpush.msra.mxu0 0.0
    %7471 = vmatpush.msra.mxu0 0.0
    %7472 = vmatpush.msra.mxu0 %v7452
    %7473 = vmatmul.f32.gmra.mxu0 %v7455
    %v7474 = vpop.f32.mrf.mxu0
    %v7475 = vadd.f32 0.0, %v7474
    %7476 = vdwg.mxu0
    %v7477 = vadd.f32 %v7345, %v7449
    %v7478 = vadd.f32 %v7346, %v7475
    %7479 = vrot.lane.b32.xlu0 %v7034, 116
    %v7480 = vpop.permute.xlu0 %7479
    %7481 = vrot.lane.b32.xlu0 %v7034, 84
    %v7482 = vpop.permute.xlu0 %7481
    %v7483 = vsel %vm283, %v7480, 0
    %v7485 = vsel %vm283, %v7482, 0
    %7487 = vmatpush.xpose.msra.mxu0 0.0
    %7488 = vmatpush.xpose.msra.mxu0 0.0
    %7489 = vmatpush.xpose.msra.mxu0 0.0
    %7490 = vmatpush.xpose.msra.mxu0 0.0
    %7491 = vmatpush.xpose.msra.mxu0 0.0
    %7492 = vmatpush.xpose.msra.mxu0 0.0
    %7493 = vmatpush.xpose.msra.mxu0 0.0
    %7494 = vmatpush.xpose.msra.mxu0 0.0
    %7495 = vmatpush.xpose.msra.mxu0 0.0
    %7496 = vmatpush.xpose.msra.mxu0 0.0
    %7497 = vmatpush.xpose.msra.mxu0 0.0
    %7498 = vmatpush.xpose.msra.mxu0 0.0
    %7499 = vmatpush.xpose.msra.mxu0 0.0
    %7500 = vmatpush.xpose.msra.mxu0 0.0
    %7501 = vmatpush.xpose.msra.mxu0 0.0
    %7502 = vmatpush.xpose.msra.mxu0 %v7485
    %7503 = vmatmul.f32.gmra.mxu0 %v7483
    %v7504 = vpop.f32.mrf.mxu0
    %v7505 = vadd.f32 0.0, %v7504
    %7506 = vdwg.mxu0
    %7507 = vrot.lane.b32.xlu0 %v7036, 116
    %v7508 = vpop.permute.xlu0 %7507
    %7509 = vrot.lane.b32.xlu0 %v7036, 84
    %v7510 = vpop.permute.xlu0 %7509
    %v7511 = vsel %vm283, %v7508, 0
    %v7513 = vsel %vm283, %v7510, 0
    %7515 = vmatpush.xpose.msra.mxu0 0.0
    %7516 = vmatpush.xpose.msra.mxu0 0.0
    %7517 = vmatpush.xpose.msra.mxu0 0.0
    %7518 = vmatpush.xpose.msra.mxu0 0.0
    %7519 = vmatpush.xpose.msra.mxu0 0.0
    %7520 = vmatpush.xpose.msra.mxu0 0.0
    %7521 = vmatpush.xpose.msra.mxu0 0.0
    %7522 = vmatpush.xpose.msra.mxu0 0.0
    %7523 = vmatpush.xpose.msra.mxu0 0.0
    %7524 = vmatpush.xpose.msra.mxu0 0.0
    %7525 = vmatpush.xpose.msra.mxu0 0.0
    %7526 = vmatpush.xpose.msra.mxu0 0.0
    %7527 = vmatpush.xpose.msra.mxu0 0.0
    %7528 = vmatpush.xpose.msra.mxu0 0.0
    %7529 = vmatpush.xpose.msra.mxu0 0.0
    %7530 = vmatpush.xpose.msra.mxu0 %v7513
    %7531 = vmatmul.f32.gmra.mxu0 %v7511
    %v7532 = vpop.f32.mrf.mxu0
    %v7533 = vadd.f32 0.0, %v7532
    %7534 = vdwg.mxu0
    %v7535 = vsel %vm335, %v7505, -inf
    %7536 = vmax.xlane.f32.xlu0 %v7535
    %v7537 = vpop.xlane.xlu0 %7536
    %v7538 = vsel %vm335, %v7533, -inf
    %7539 = vmax.xlane.f32.xlu0 %v7538
    %v7540 = vpop.xlane.xlu0 %7539
    %v7541 = vsub.f32 %v7505, %v7537
    %v7542 = vsub.f32 %v7533, %v7540
    %v7543 = vmul.f32 %v7541, 1.442695
    %v7544 = vpow.pop %v7543
    %v7545 = vmul.f32 %v7542, 1.442695
    %v7546 = vpow.pop %v7545
    %v7547 = vsel %vm335, %v7544, 0.0
    %7548 = vadd.xlane.f32.xlu0 %v7547
    %v7549 = vpop.xlane.xlu0 %7548
    %v7550 = vsel %vm335, %v7546, 0.0
    %7551 = vadd.xlane.f32.xlu0 %v7550
    %v7552 = vpop.xlane.xlu0 %7551
    %v7553 = vrcp.pop %v7549
    %v7554 = vrcp.pop %v7552
    %v7555 = vmul.f32 %v7544, %v7553
    %v7556 = vmul.f32 %v7546, %v7554
    %7557 = vrot.lane.b32.xlu0 %v7073, 32
    %v7558 = vpop.permute.xlu0 %7557
    %v7561 = vsel %vm335, %v7555, 0
    %7563 = vmatpush.msra.mxu0 0.0
    %7564 = vmatpush.msra.mxu0 0.0
    %7565 = vmatpush.msra.mxu0 0.0
    %7566 = vmatpush.msra.mxu0 0.0
    %7567 = vmatpush.msra.mxu0 0.0
    %7568 = vmatpush.msra.mxu0 0.0
    %7569 = vmatpush.msra.mxu0 0.0
    %7570 = vmatpush.msra.mxu0 0.0
    %7571 = vmatpush.msra.mxu0 0.0
    %7572 = vmatpush.msra.mxu0 0.0
    %7573 = vmatpush.msra.mxu0 0.0
    %7574 = vmatpush.msra.mxu0 0.0
    %7575 = vmatpush.msra.mxu0 0.0
    %7576 = vmatpush.msra.mxu0 0.0
    %7577 = vmatpush.msra.mxu0 0.0
    %7578 = vmatpush.msra.mxu0 %v7558
    %7579 = vmatmul.f32.gmra.mxu0 %v7561
    %v7580 = vpop.f32.mrf.mxu0
    %v7581 = vadd.f32 0.0, %v7580
    %7582 = vdwg.mxu0
    %7583 = vrot.lane.b32.xlu0 %v7075, 32
    %v7584 = vpop.permute.xlu0 %7583
    %v7587 = vsel %vm335, %v7556, 0
    %7589 = vmatpush.msra.mxu0 0.0
    %7590 = vmatpush.msra.mxu0 0.0
    %7591 = vmatpush.msra.mxu0 0.0
    %7592 = vmatpush.msra.mxu0 0.0
    %7593 = vmatpush.msra.mxu0 0.0
    %7594 = vmatpush.msra.mxu0 0.0
    %7595 = vmatpush.msra.mxu0 0.0
    %7596 = vmatpush.msra.mxu0 0.0
    %7597 = vmatpush.msra.mxu0 0.0
    %7598 = vmatpush.msra.mxu0 0.0
    %7599 = vmatpush.msra.mxu0 0.0
    %7600 = vmatpush.msra.mxu0 0.0
    %7601 = vmatpush.msra.mxu0 0.0
    %7602 = vmatpush.msra.mxu0 0.0
    %7603 = vmatpush.msra.mxu0 0.0
    %7604 = vmatpush.msra.mxu0 %v7584
    %7605 = vmatmul.f32.gmra.mxu0 %v7587
    %v7606 = vpop.f32.mrf.mxu0
    %v7607 = vadd.f32 0.0, %v7606
    %7608 = vdwg.mxu0
    %v7609 = vadd.f32 %v7477, %v7581
    %v7610 = vadd.f32 %v7478, %v7607
    %7611 = vrot.lane.b32.xlu0 %v7034, 112
    %v7612 = vpop.permute.xlu0 %7611
    %7613 = vrot.lane.b32.xlu0 %v7034, 80
    %v7614 = vpop.permute.xlu0 %7613
    %v7615 = vsel %vm283, %v7612, 0
    %v7617 = vsel %vm283, %v7614, 0
    %7619 = vmatpush.xpose.msra.mxu0 0.0
    %7620 = vmatpush.xpose.msra.mxu0 0.0
    %7621 = vmatpush.xpose.msra.mxu0 0.0
    %7622 = vmatpush.xpose.msra.mxu0 0.0
    %7623 = vmatpush.xpose.msra.mxu0 0.0
    %7624 = vmatpush.xpose.msra.mxu0 0.0
    %7625 = vmatpush.xpose.msra.mxu0 0.0
    %7626 = vmatpush.xpose.msra.mxu0 0.0
    %7627 = vmatpush.xpose.msra.mxu0 0.0
    %7628 = vmatpush.xpose.msra.mxu0 0.0
    %7629 = vmatpush.xpose.msra.mxu0 0.0
    %7630 = vmatpush.xpose.msra.mxu0 0.0
    %7631 = vmatpush.xpose.msra.mxu0 0.0
    %7632 = vmatpush.xpose.msra.mxu0 0.0
    %7633 = vmatpush.xpose.msra.mxu0 0.0
    %7634 = vmatpush.xpose.msra.mxu0 %v7617
    %7635 = vmatmul.f32.gmra.mxu0 %v7615
    %v7636 = vpop.f32.mrf.mxu0
    %v7637 = vadd.f32 0.0, %v7636
    %7638 = vdwg.mxu0
    %7639 = vrot.lane.b32.xlu0 %v7036, 112
    %v7640 = vpop.permute.xlu0 %7639
    %7641 = vrot.lane.b32.xlu0 %v7036, 80
    %v7642 = vpop.permute.xlu0 %7641
    %v7643 = vsel %vm283, %v7640, 0
    %v7645 = vsel %vm283, %v7642, 0
    %7647 = vmatpush.xpose.msra.mxu0 0.0
    %7648 = vmatpush.xpose.msra.mxu0 0.0
    %7649 = vmatpush.xpose.msra.mxu0 0.0
    %7650 = vmatpush.xpose.msra.mxu0 0.0
    %7651 = vmatpush.xpose.msra.mxu0 0.0
    %7652 = vmatpush.xpose.msra.mxu0 0.0
    %7653 = vmatpush.xpose.msra.mxu0 0.0
    %7654 = vmatpush.xpose.msra.mxu0 0.0
    %7655 = vmatpush.xpose.msra.mxu0 0.0
    %7656 = vmatpush.xpose.msra.mxu0 0.0
    %7657 = vmatpush.xpose.msra.mxu0 0.0
    %7658 = vmatpush.xpose.msra.mxu0 0.0
    %7659 = vmatpush.xpose.msra.mxu0 0.0
    %7660 = vmatpush.xpose.msra.mxu0 0.0
    %7661 = vmatpush.xpose.msra.mxu0 0.0
    %7662 = vmatpush.xpose.msra.mxu0 %v7645
    %7663 = vmatmul.f32.gmra.mxu0 %v7643
    %v7664 = vpop.f32.mrf.mxu0
    %v7665 = vadd.f32 0.0, %v7664
    %7666 = vdwg.mxu0
    %v7667 = vsel %vm335, %v7637, -inf
    %7668 = vmax.xlane.f32.xlu0 %v7667
    %v7669 = vpop.xlane.xlu0 %7668
    %v7670 = vsel %vm335, %v7665, -inf
    %7671 = vmax.xlane.f32.xlu0 %v7670
    %v7672 = vpop.xlane.xlu0 %7671
    %v7673 = vsub.f32 %v7637, %v7669
    %v7674 = vsub.f32 %v7665, %v7672
    %v7675 = vmul.f32 %v7673, 1.442695
    %v7676 = vpow.pop %v7675
    %v7677 = vmul.f32 %v7674, 1.442695
    %v7678 = vpow.pop %v7677
    %v7679 = vsel %vm335, %v7676, 0.0
    %7680 = vadd.xlane.f32.xlu0 %v7679
    %v7681 = vpop.xlane.xlu0 %7680
    %v7682 = vsel %vm335, %v7678, 0.0
    %7683 = vadd.xlane.f32.xlu0 %v7682
    %v7684 = vpop.xlane.xlu0 %7683
    %v7685 = vrcp.pop %v7681
    %v7686 = vrcp.pop %v7684
    %v7687 = vmul.f32 %v7676, %v7685
    %v7688 = vmul.f32 %v7678, %v7686
    %v7690 = vsel %vm335, %v7687, 0
    %7692 = vmatpush.msra.mxu0 0.0
    %7693 = vmatpush.msra.mxu0 0.0
    %7694 = vmatpush.msra.mxu0 0.0
    %7695 = vmatpush.msra.mxu0 0.0
    %7696 = vmatpush.msra.mxu0 0.0
    %7697 = vmatpush.msra.mxu0 0.0
    %7698 = vmatpush.msra.mxu0 0.0
    %7699 = vmatpush.msra.mxu0 0.0
    %7700 = vmatpush.msra.mxu0 0.0
    %7701 = vmatpush.msra.mxu0 0.0
    %7702 = vmatpush.msra.mxu0 0.0
    %7703 = vmatpush.msra.mxu0 0.0
    %7704 = vmatpush.msra.mxu0 0.0
    %7705 = vmatpush.msra.mxu0 0.0
    %7706 = vmatpush.msra.mxu0 0.0
    %7707 = vmatpush.msra.mxu0 %v7087
    %7708 = vmatmul.f32.gmra.mxu0 %v7690
    %v7709 = vpop.f32.mrf.mxu0
    %v7710 = vadd.f32 0.0, %v7709
    %7711 = vdwg.mxu0
    %v7713 = vsel %vm335, %v7688, 0
    %7715 = vmatpush.msra.mxu0 0.0
    %7716 = vmatpush.msra.mxu0 0.0
    %7717 = vmatpush.msra.mxu0 0.0
    %7718 = vmatpush.msra.mxu0 0.0
    %7719 = vmatpush.msra.mxu0 0.0
    %7720 = vmatpush.msra.mxu0 0.0
    %7721 = vmatpush.msra.mxu0 0.0
    %7722 = vmatpush.msra.mxu0 0.0
    %7723 = vmatpush.msra.mxu0 0.0
    %7724 = vmatpush.msra.mxu0 0.0
    %7725 = vmatpush.msra.mxu0 0.0
    %7726 = vmatpush.msra.mxu0 0.0
    %7727 = vmatpush.msra.mxu0 0.0
    %7728 = vmatpush.msra.mxu0 0.0
    %7729 = vmatpush.msra.mxu0 0.0
    %7730 = vmatpush.msra.mxu0 %v7089
    %7731 = vmatmul.f32.gmra.mxu0 %v7713
    %v7732 = vpop.f32.mrf.mxu0
    %v7733 = vadd.f32 0.0, %v7732
    %7734 = vdwg.mxu0
    %v7735 = vadd.f32 %v7609, %v7710
    %v7736 = vadd.f32 %v7610, %v7733
    %7737 = vrot.lane.b32.xlu0 %v7034, 108
    %v7738 = vpop.permute.xlu0 %7737
    %7739 = vrot.lane.b32.xlu0 %v7034, 76
    %v7740 = vpop.permute.xlu0 %7739
    %v7741 = vsel %vm283, %v7738, 0
    %v7743 = vsel %vm283, %v7740, 0
    %7745 = vmatpush.xpose.msra.mxu0 0.0
    %7746 = vmatpush.xpose.msra.mxu0 0.0
    %7747 = vmatpush.xpose.msra.mxu0 0.0
    %7748 = vmatpush.xpose.msra.mxu0 0.0
    %7749 = vmatpush.xpose.msra.mxu0 0.0
    %7750 = vmatpush.xpose.msra.mxu0 0.0
    %7751 = vmatpush.xpose.msra.mxu0 0.0
    %7752 = vmatpush.xpose.msra.mxu0 0.0
    %7753 = vmatpush.xpose.msra.mxu0 0.0
    %7754 = vmatpush.xpose.msra.mxu0 0.0
    %7755 = vmatpush.xpose.msra.mxu0 0.0
    %7756 = vmatpush.xpose.msra.mxu0 0.0
    %7757 = vmatpush.xpose.msra.mxu0 0.0
    %7758 = vmatpush.xpose.msra.mxu0 0.0
    %7759 = vmatpush.xpose.msra.mxu0 0.0
    %7760 = vmatpush.xpose.msra.mxu0 %v7743
    %7761 = vmatmul.f32.gmra.mxu0 %v7741
    %v7762 = vpop.f32.mrf.mxu0
    %v7763 = vadd.f32 0.0, %v7762
    %7764 = vdwg.mxu0
    %7765 = vrot.lane.b32.xlu0 %v7036, 108
    %v7766 = vpop.permute.xlu0 %7765
    %7767 = vrot.lane.b32.xlu0 %v7036, 76
    %v7768 = vpop.permute.xlu0 %7767
    %v7769 = vsel %vm283, %v7766, 0
    %v7771 = vsel %vm283, %v7768, 0
    %7773 = vmatpush.xpose.msra.mxu0 0.0
    %7774 = vmatpush.xpose.msra.mxu0 0.0
    %7775 = vmatpush.xpose.msra.mxu0 0.0
    %7776 = vmatpush.xpose.msra.mxu0 0.0
    %7777 = vmatpush.xpose.msra.mxu0 0.0
    %7778 = vmatpush.xpose.msra.mxu0 0.0
    %7779 = vmatpush.xpose.msra.mxu0 0.0
    %7780 = vmatpush.xpose.msra.mxu0 0.0
    %7781 = vmatpush.xpose.msra.mxu0 0.0
    %7782 = vmatpush.xpose.msra.mxu0 0.0
    %7783 = vmatpush.xpose.msra.mxu0 0.0
    %7784 = vmatpush.xpose.msra.mxu0 0.0
    %7785 = vmatpush.xpose.msra.mxu0 0.0
    %7786 = vmatpush.xpose.msra.mxu0 0.0
    %7787 = vmatpush.xpose.msra.mxu0 0.0
    %7788 = vmatpush.xpose.msra.mxu0 %v7771
    %7789 = vmatmul.f32.gmra.mxu0 %v7769
    %v7790 = vpop.f32.mrf.mxu0
    %v7791 = vadd.f32 0.0, %v7790
    %7792 = vdwg.mxu0
    %v7793 = vsel %vm335, %v7763, -inf
    %7794 = vmax.xlane.f32.xlu0 %v7793
    %v7795 = vpop.xlane.xlu0 %7794
    %v7796 = vsel %vm335, %v7791, -inf
    %7797 = vmax.xlane.f32.xlu0 %v7796
    %v7798 = vpop.xlane.xlu0 %7797
    %v7799 = vsub.f32 %v7763, %v7795
    %v7800 = vsub.f32 %v7791, %v7798
    %v7801 = vmul.f32 %v7799, 1.442695
    %v7802 = vpow.pop %v7801
    %v7803 = vmul.f32 %v7800, 1.442695
    %v7804 = vpow.pop %v7803
    %v7805 = vsel %vm335, %v7802, 0.0
    %7806 = vadd.xlane.f32.xlu0 %v7805
    %v7807 = vpop.xlane.xlu0 %7806
    %v7808 = vsel %vm335, %v7804, 0.0
    %7809 = vadd.xlane.f32.xlu0 %v7808
    %v7810 = vpop.xlane.xlu0 %7809
    %v7811 = vrcp.pop %v7807
    %v7812 = vrcp.pop %v7810
    %v7813 = vmul.f32 %v7802, %v7811
    %v7814 = vmul.f32 %v7804, %v7812
    %7816 = vrot.lane.b32.xlu0 %v7087, 96
    %v7817 = vpop.permute.xlu0 %7816
    %v7820 = vsel %vm335, %v7813, 0
    %7822 = vmatpush.msra.mxu0 0.0
    %7823 = vmatpush.msra.mxu0 0.0
    %7824 = vmatpush.msra.mxu0 0.0
    %7825 = vmatpush.msra.mxu0 0.0
    %7826 = vmatpush.msra.mxu0 0.0
    %7827 = vmatpush.msra.mxu0 0.0
    %7828 = vmatpush.msra.mxu0 0.0
    %7829 = vmatpush.msra.mxu0 0.0
    %7830 = vmatpush.msra.mxu0 0.0
    %7831 = vmatpush.msra.mxu0 0.0
    %7832 = vmatpush.msra.mxu0 0.0
    %7833 = vmatpush.msra.mxu0 0.0
    %7834 = vmatpush.msra.mxu0 0.0
    %7835 = vmatpush.msra.mxu0 0.0
    %7836 = vmatpush.msra.mxu0 0.0
    %7837 = vmatpush.msra.mxu0 %v7817
    %7838 = vmatmul.f32.gmra.mxu0 %v7820
    %v7839 = vpop.f32.mrf.mxu0
    %v7840 = vadd.f32 0.0, %v7839
    %7841 = vdwg.mxu0
    %7843 = vrot.lane.b32.xlu0 %v7089, 96
    %v7844 = vpop.permute.xlu0 %7843
    %v7847 = vsel %vm335, %v7814, 0
    %7849 = vmatpush.msra.mxu0 0.0
    %7850 = vmatpush.msra.mxu0 0.0
    %7851 = vmatpush.msra.mxu0 0.0
    %7852 = vmatpush.msra.mxu0 0.0
    %7853 = vmatpush.msra.mxu0 0.0
    %7854 = vmatpush.msra.mxu0 0.0
    %7855 = vmatpush.msra.mxu0 0.0
    %7856 = vmatpush.msra.mxu0 0.0
    %7857 = vmatpush.msra.mxu0 0.0
    %7858 = vmatpush.msra.mxu0 0.0
    %7859 = vmatpush.msra.mxu0 0.0
    %7860 = vmatpush.msra.mxu0 0.0
    %7861 = vmatpush.msra.mxu0 0.0
    %7862 = vmatpush.msra.mxu0 0.0
    %7863 = vmatpush.msra.mxu0 0.0
    %7864 = vmatpush.msra.mxu0 %v7844
    %7865 = vmatmul.f32.gmra.mxu0 %v7847
    %v7866 = vpop.f32.mrf.mxu0
    %v7867 = vadd.f32 0.0, %v7866
    %7868 = vdwg.mxu0
    %v7869 = vadd.f32 %v7735, %v7840
    %v7870 = vadd.f32 %v7736, %v7867
    %7871 = vrot.lane.b32.xlu0 %v7034, 104
    %v7872 = vpop.permute.xlu0 %7871
    %7873 = vrot.lane.b32.xlu0 %v7034, 72
    %v7874 = vpop.permute.xlu0 %7873
    %v7875 = vsel %vm283, %v7872, 0
    %v7877 = vsel %vm283, %v7874, 0
    %7879 = vmatpush.xpose.msra.mxu0 0.0
    %7880 = vmatpush.xpose.msra.mxu0 0.0
    %7881 = vmatpush.xpose.msra.mxu0 0.0
    %7882 = vmatpush.xpose.msra.mxu0 0.0
    %7883 = vmatpush.xpose.msra.mxu0 0.0
    %7884 = vmatpush.xpose.msra.mxu0 0.0
    %7885 = vmatpush.xpose.msra.mxu0 0.0
    %7886 = vmatpush.xpose.msra.mxu0 0.0
    %7887 = vmatpush.xpose.msra.mxu0 0.0
    %7888 = vmatpush.xpose.msra.mxu0 0.0
    %7889 = vmatpush.xpose.msra.mxu0 0.0
    %7890 = vmatpush.xpose.msra.mxu0 0.0
    %7891 = vmatpush.xpose.msra.mxu0 0.0
    %7892 = vmatpush.xpose.msra.mxu0 0.0
    %7893 = vmatpush.xpose.msra.mxu0 0.0
    %7894 = vmatpush.xpose.msra.mxu0 %v7877
    %7895 = vmatmul.f32.gmra.mxu0 %v7875
    %v7896 = vpop.f32.mrf.mxu0
    %v7897 = vadd.f32 0.0, %v7896
    %7898 = vdwg.mxu0
    %7899 = vrot.lane.b32.xlu0 %v7036, 104
    %v7900 = vpop.permute.xlu0 %7899
    %7901 = vrot.lane.b32.xlu0 %v7036, 72
    %v7902 = vpop.permute.xlu0 %7901
    %v7903 = vsel %vm283, %v7900, 0
    %v7905 = vsel %vm283, %v7902, 0
    %7907 = vmatpush.xpose.msra.mxu0 0.0
    %7908 = vmatpush.xpose.msra.mxu0 0.0
    %7909 = vmatpush.xpose.msra.mxu0 0.0
    %7910 = vmatpush.xpose.msra.mxu0 0.0
    %7911 = vmatpush.xpose.msra.mxu0 0.0
    %7912 = vmatpush.xpose.msra.mxu0 0.0
    %7913 = vmatpush.xpose.msra.mxu0 0.0
    %7914 = vmatpush.xpose.msra.mxu0 0.0
    %7915 = vmatpush.xpose.msra.mxu0 0.0
    %7916 = vmatpush.xpose.msra.mxu0 0.0
    %7917 = vmatpush.xpose.msra.mxu0 0.0
    %7918 = vmatpush.xpose.msra.mxu0 0.0
    %7919 = vmatpush.xpose.msra.mxu0 0.0
    %7920 = vmatpush.xpose.msra.mxu0 0.0
    %7921 = vmatpush.xpose.msra.mxu0 0.0
    %7922 = vmatpush.xpose.msra.mxu0 %v7905
    %7923 = vmatmul.f32.gmra.mxu0 %v7903
    %v7924 = vpop.f32.mrf.mxu0
    %v7925 = vadd.f32 0.0, %v7924
    %7926 = vdwg.mxu0
    %v7927 = vsel %vm335, %v7897, -inf
    %7928 = vmax.xlane.f32.xlu0 %v7927
    %v7929 = vpop.xlane.xlu0 %7928
    %v7930 = vsel %vm335, %v7925, -inf
    %7931 = vmax.xlane.f32.xlu0 %v7930
    %v7932 = vpop.xlane.xlu0 %7931
    %v7933 = vsub.f32 %v7897, %v7929
    %v7934 = vsub.f32 %v7925, %v7932
    %v7935 = vmul.f32 %v7933, 1.442695
    %v7936 = vpow.pop %v7935
    %v7937 = vmul.f32 %v7934, 1.442695
    %v7938 = vpow.pop %v7937
    %v7939 = vsel %vm335, %v7936, 0.0
    %7940 = vadd.xlane.f32.xlu0 %v7939
    %v7941 = vpop.xlane.xlu0 %7940
    %v7942 = vsel %vm335, %v7938, 0.0
    %7943 = vadd.xlane.f32.xlu0 %v7942
    %v7944 = vpop.xlane.xlu0 %7943
    %v7945 = vrcp.pop %v7941
    %v7946 = vrcp.pop %v7944
    %v7947 = vmul.f32 %v7936, %v7945
    %v7948 = vmul.f32 %v7938, %v7946
    %7949 = vrot.lane.b32.xlu0 %v7087, 64
    %v7950 = vpop.permute.xlu0 %7949
    %v7953 = vsel %vm335, %v7947, 0
    %7955 = vmatpush.msra.mxu0 0.0
    %7956 = vmatpush.msra.mxu0 0.0
    %7957 = vmatpush.msra.mxu0 0.0
    %7958 = vmatpush.msra.mxu0 0.0
    %7959 = vmatpush.msra.mxu0 0.0
    %7960 = vmatpush.msra.mxu0 0.0
    %7961 = vmatpush.msra.mxu0 0.0
    %7962 = vmatpush.msra.mxu0 0.0
    %7963 = vmatpush.msra.mxu0 0.0
    %7964 = vmatpush.msra.mxu0 0.0
    %7965 = vmatpush.msra.mxu0 0.0
    %7966 = vmatpush.msra.mxu0 0.0
    %7967 = vmatpush.msra.mxu0 0.0
    %7968 = vmatpush.msra.mxu0 0.0
    %7969 = vmatpush.msra.mxu0 0.0
    %7970 = vmatpush.msra.mxu0 %v7950
    %7971 = vmatmul.f32.gmra.mxu0 %v7953
    %v7972 = vpop.f32.mrf.mxu0
    %v7973 = vadd.f32 0.0, %v7972
    %7974 = vdwg.mxu0
    %7975 = vrot.lane.b32.xlu0 %v7089, 64
    %v7976 = vpop.permute.xlu0 %7975
    %v7979 = vsel %vm335, %v7948, 0
    %7981 = vmatpush.msra.mxu0 0.0
    %7982 = vmatpush.msra.mxu0 0.0
    %7983 = vmatpush.msra.mxu0 0.0
    %7984 = vmatpush.msra.mxu0 0.0
    %7985 = vmatpush.msra.mxu0 0.0
    %7986 = vmatpush.msra.mxu0 0.0
    %7987 = vmatpush.msra.mxu0 0.0
    %7988 = vmatpush.msra.mxu0 0.0
    %7989 = vmatpush.msra.mxu0 0.0
    %7990 = vmatpush.msra.mxu0 0.0
    %7991 = vmatpush.msra.mxu0 0.0
    %7992 = vmatpush.msra.mxu0 0.0
    %7993 = vmatpush.msra.mxu0 0.0
    %7994 = vmatpush.msra.mxu0 0.0
    %7995 = vmatpush.msra.mxu0 0.0
    %7996 = vmatpush.msra.mxu0 %v7976
    %7997 = vmatmul.f32.gmra.mxu0 %v7979
    %v7998 = vpop.f32.mrf.mxu0
    %v7999 = vadd.f32 0.0, %v7998
    %8000 = vdwg.mxu0
    %v8001 = vadd.f32 %v7869, %v7973
    %v8002 = vadd.f32 %v7870, %v7999
    %8003 = vrot.lane.b32.xlu0 %v7034, 100
    %v8004 = vpop.permute.xlu0 %8003
    %8005 = vrot.lane.b32.xlu0 %v7034, 68
    %v8006 = vpop.permute.xlu0 %8005
    %v8007 = vsel %vm283, %v8004, 0
    %v8009 = vsel %vm283, %v8006, 0
    %8011 = vmatpush.xpose.msra.mxu0 0.0
    %8012 = vmatpush.xpose.msra.mxu0 0.0
    %8013 = vmatpush.xpose.msra.mxu0 0.0
    %8014 = vmatpush.xpose.msra.mxu0 0.0
    %8015 = vmatpush.xpose.msra.mxu0 0.0
    %8016 = vmatpush.xpose.msra.mxu0 0.0
    %8017 = vmatpush.xpose.msra.mxu0 0.0
    %8018 = vmatpush.xpose.msra.mxu0 0.0
    %8019 = vmatpush.xpose.msra.mxu0 0.0
    %8020 = vmatpush.xpose.msra.mxu0 0.0
    %8021 = vmatpush.xpose.msra.mxu0 0.0
    %8022 = vmatpush.xpose.msra.mxu0 0.0
    %8023 = vmatpush.xpose.msra.mxu0 0.0
    %8024 = vmatpush.xpose.msra.mxu0 0.0
    %8025 = vmatpush.xpose.msra.mxu0 0.0
    %8026 = vmatpush.xpose.msra.mxu0 %v8009
    %8027 = vmatmul.f32.gmra.mxu0 %v8007
    %v8028 = vpop.f32.mrf.mxu0
    %v8029 = vadd.f32 0.0, %v8028
    %8030 = vdwg.mxu0
    %8031 = vrot.lane.b32.xlu0 %v7036, 100
    %v8032 = vpop.permute.xlu0 %8031
    %8033 = vrot.lane.b32.xlu0 %v7036, 68
    %v8034 = vpop.permute.xlu0 %8033
    %v8035 = vsel %vm283, %v8032, 0
    %v8037 = vsel %vm283, %v8034, 0
    %8039 = vmatpush.xpose.msra.mxu0 0.0
    %8040 = vmatpush.xpose.msra.mxu0 0.0
    %8041 = vmatpush.xpose.msra.mxu0 0.0
    %8042 = vmatpush.xpose.msra.mxu0 0.0
    %8043 = vmatpush.xpose.msra.mxu0 0.0
    %8044 = vmatpush.xpose.msra.mxu0 0.0
    %8045 = vmatpush.xpose.msra.mxu0 0.0
    %8046 = vmatpush.xpose.msra.mxu0 0.0
    %8047 = vmatpush.xpose.msra.mxu0 0.0
    %8048 = vmatpush.xpose.msra.mxu0 0.0
    %8049 = vmatpush.xpose.msra.mxu0 0.0
    %8050 = vmatpush.xpose.msra.mxu0 0.0
    %8051 = vmatpush.xpose.msra.mxu0 0.0
    %8052 = vmatpush.xpose.msra.mxu0 0.0
    %8053 = vmatpush.xpose.msra.mxu0 0.0
    %8054 = vmatpush.xpose.msra.mxu0 %v8037
    %8055 = vmatmul.f32.gmra.mxu0 %v8035
    %v8056 = vpop.f32.mrf.mxu0
    %v8057 = vadd.f32 0.0, %v8056
    %8058 = vdwg.mxu0
    %v8059 = vsel %vm335, %v8029, -inf
    %8060 = vmax.xlane.f32.xlu0 %v8059
    %v8061 = vpop.xlane.xlu0 %8060
    %v8062 = vsel %vm335, %v8057, -inf
    %8063 = vmax.xlane.f32.xlu0 %v8062
    %v8064 = vpop.xlane.xlu0 %8063
    %v8065 = vsub.f32 %v8029, %v8061
    %v8066 = vsub.f32 %v8057, %v8064
    %v8067 = vmul.f32 %v8065, 1.442695
    %v8068 = vpow.pop %v8067
    %v8069 = vmul.f32 %v8066, 1.442695
    %v8070 = vpow.pop %v8069
    %v8071 = vsel %vm335, %v8068, 0.0
    %8072 = vadd.xlane.f32.xlu0 %v8071
    %v8073 = vpop.xlane.xlu0 %8072
    %v8074 = vsel %vm335, %v8070, 0.0
    %8075 = vadd.xlane.f32.xlu0 %v8074
    %v8076 = vpop.xlane.xlu0 %8075
    %v8077 = vrcp.pop %v8073
    %v8078 = vrcp.pop %v8076
    %v8079 = vmul.f32 %v8068, %v8077
    %v8080 = vmul.f32 %v8070, %v8078
    %8081 = vrot.lane.b32.xlu0 %v7087, 32
    %v8082 = vpop.permute.xlu0 %8081
    %v8085 = vsel %vm335, %v8079, 0
    %8087 = vmatpush.msra.mxu0 0.0
    %8088 = vmatpush.msra.mxu0 0.0
    %8089 = vmatpush.msra.mxu0 0.0
    %8090 = vmatpush.msra.mxu0 0.0
    %8091 = vmatpush.msra.mxu0 0.0
    %8092 = vmatpush.msra.mxu0 0.0
    %8093 = vmatpush.msra.mxu0 0.0
    %8094 = vmatpush.msra.mxu0 0.0
    %8095 = vmatpush.msra.mxu0 0.0
    %8096 = vmatpush.msra.mxu0 0.0
    %8097 = vmatpush.msra.mxu0 0.0
    %8098 = vmatpush.msra.mxu0 0.0
    %8099 = vmatpush.msra.mxu0 0.0
    %8100 = vmatpush.msra.mxu0 0.0
    %8101 = vmatpush.msra.mxu0 0.0
    %8102 = vmatpush.msra.mxu0 %v8082
    %8103 = vmatmul.f32.gmra.mxu0 %v8085
    %v8104 = vpop.f32.mrf.mxu0
    %v8105 = vadd.f32 0.0, %v8104
    %8106 = vdwg.mxu0
    %8107 = vrot.lane.b32.xlu0 %v7089, 32
    %v8108 = vpop.permute.xlu0 %8107
    %v8111 = vsel %vm335, %v8080, 0
    %8113 = vmatpush.msra.mxu0 0.0
    %8114 = vmatpush.msra.mxu0 0.0
    %8115 = vmatpush.msra.mxu0 0.0
    %8116 = vmatpush.msra.mxu0 0.0
    %8117 = vmatpush.msra.mxu0 0.0
    %8118 = vmatpush.msra.mxu0 0.0
    %8119 = vmatpush.msra.mxu0 0.0
    %8120 = vmatpush.msra.mxu0 0.0
    %8121 = vmatpush.msra.mxu0 0.0
    %8122 = vmatpush.msra.mxu0 0.0
    %8123 = vmatpush.msra.mxu0 0.0
    %8124 = vmatpush.msra.mxu0 0.0
    %8125 = vmatpush.msra.mxu0 0.0
    %8126 = vmatpush.msra.mxu0 0.0
    %8127 = vmatpush.msra.mxu0 0.0
    %8128 = vmatpush.msra.mxu0 %v8108
    %8129 = vmatmul.f32.gmra.mxu0 %v8111
    %v8130 = vpop.f32.mrf.mxu0
    %v8131 = vadd.f32 0.0, %v8130
    %8132 = vdwg.mxu0
    %v8133 = vadd.f32 %v8001, %v8105
    %v8134 = vadd.f32 %v8002, %v8131
    %s8135 = scalar_lea.vmem %s5, 5
    %v8136 = vld [vmem:[%s8135] sm:$0x1]
    %v8138 = vperm.slane %v8136, 0
    %v8140 = vadd.f32 %v8133, %v8138
    %v8141 = vadd.f32 %v8134, %v8138
    %v8142 = vadd.f32 %v6996, %v8140
    %v8143 = vadd.f32 %v6997, %v8141
    %s8144 = scalar_lea.vmem %s6, 5
    %v8145 = vld [vmem:[%s8144] sm:$0x1]
    %s8146 = scalar_lea.vmem %s7, 5
    %v8147 = vld [vmem:[%s8146] sm:$0x1]
    %v8148 = vsel %vm210, %v8142, 0.0
    %8149 = vadd.xlane.f32.xlu0 %v8148
    %v8150 = vpop.xlane.xlu0 %8149
    %v8151 = vsel %vm210, %v8143, 0.0
    %8152 = vadd.xlane.f32.xlu0 %v8151
    %v8153 = vpop.xlane.xlu0 %8152
    %v8154 = vmul.f32 %v8150, %v1348
    %v8155 = vmul.f32 %v8153, %v1348
    %v8156 = vsub.f32 %v8142, %v8154
    %v8157 = vsub.f32 %v8143, %v8155
    %v8158 = vmul.f32 %v8156, %v8156
    %v8159 = vmul.f32 %v8157, %v8157
    %v8160 = vsel %vm210, %v8158, 0.0
    %8161 = vadd.xlane.f32.xlu0 %v8160
    %v8162 = vpop.xlane.xlu0 %8161
    %v8163 = vsel %vm210, %v8159, 0.0
    %8164 = vadd.xlane.f32.xlu0 %v8163
    %v8165 = vpop.xlane.xlu0 %8164
    %v8166 = vmul.f32 %v8162, %v1348
    %v8167 = vmul.f32 %v8165, %v1348
    %v8168 = vadd.f32 %v8166, 1e-05
    %v8169 = vadd.f32 %v8167, 1e-05
    %v8170 = vrsqrt.pop %v8168
    %v8171 = vmul.f32 %v8170, %v8168
    %v8172 = vmul.f32 %v8171, %v8170
    %v8173 = vmul.f32 0.5, %v8172
    %v8174 = vsub.f32 1.5, %v8173
    %v8175 = vmul.f32 %v8170, %v8174
    %vm8176 = vweird.f32 %v8168
    %vm8177 = vweird.f32 %v8170
    %vm8178 = vmor %vm8176, %vm8177
    %v8179 = vsel %vm8178, %v8170, %v8175
    %v8180 = vrsqrt.pop %v8169
    %v8181 = vmul.f32 %v8180, %v8169
    %v8182 = vmul.f32 %v8181, %v8180
    %v8183 = vmul.f32 0.5, %v8182
    %v8184 = vsub.f32 1.5, %v8183
    %v8185 = vmul.f32 %v8180, %v8184
    %vm8186 = vweird.f32 %v8169
    %vm8187 = vweird.f32 %v8180
    %vm8188 = vmor %vm8186, %vm8187
    %v8189 = vsel %vm8188, %v8180, %v8185
    %v8190 = vmul.f32 %v8156, %v8179
    %v8191 = vmul.f32 %v8157, %v8189
    %v8193 = vperm.slane %v8145, 0
    %v8195 = vmul.f32 %v8190, %v8193
    %v8196 = vmul.f32 %v8191, %v8193
    %v8198 = vperm.slane %v8147, 0
    %v8200 = vadd.f32 %v8195, %v8198
    %v8201 = vadd.f32 %v8196, %v8198
    %v8202 = vpack.c.bf16 %v8201, %v8200
    %s8203 = scalar_lea.vmem [#allocation6], 80
    %v8204 = vld [vmem:[%s8203] sm:$0xf]
    %v8205 = vld [vmem:[%s8203 + $0x4] sm:$0xf]
    %v8206 = vld [vmem:[%s8203 + $0x8] sm:$0xf]
    %v8207 = vld [vmem:[%s8203 + $0xc] sm:$0xf]
    %s8208 = scalar_lea.vmem %s9, 5
    %v8209 = vld [vmem:[%s8208] sm:$0x1]
    %v8211 = vperm.slane %v8209, 0
    %v8217 = vunpack.c.l.b16 %v8204
    %v8218 = vunpack.c.l.b16 %v8205
    %v8219 = vunpack.c.l.b16 %v8206
    %v8220 = vunpack.c.l.b16 %v8207
    %v8221 = vpack.c.b16 %v8218, %v8217
    %v8222 = vpack.c.b16 %v8220, %v8219
    %v8226 = vsel %vm210, %v8202, 0
    %8228 = vmatpush.bf16.msra.mxu0 0
    %8229 = vmatpush.bf16.msra.mxu0 0
    %8230 = vmatpush.bf16.msra.mxu0 0
    %8231 = vmatpush.bf16.msra.mxu0 0
    %8232 = vmatpush.bf16.msra.mxu0 0
    %8233 = vmatpush.bf16.msra.mxu0 0
    %8234 = vmatpush.bf16.msra.mxu0 %v8222
    %8235 = vmatpush.bf16.msra.mxu0 %v8221
    %8236 = vmatmul.bf16.gmra.mxu0 %v8226
    %v8237 = vpop.f32.mrf.mxu0
    %v8238 = vadd.f32 %v8211, %v8237
    %v8239 = vpop.f32.mrf.mxu0
    %v8240 = vadd.f32 %v8211, %v8239
    %8241 = vdwg.mxu0
    %v8242 = vmax.f32 %v8238, 0.0
    %v8243 = vmax.f32 %v8240, 0.0
    %v8244 = vpack.c.bf16 %v8243, %v8242
    %s8245 = scalar_lea.vmem %s10, 160
    %v8246 = vld [vmem:[%s8245] sm:$0xf]
    %v8247 = vld [vmem:[%s8245 + $0x4] sm:$0xf]
    %v8248 = vld [vmem:[%s8245 + $0x8] sm:$0xf]
    %v8249 = vld [vmem:[%s8245 + $0xc] sm:$0xf]
    %v8250 = vld [vmem:[%s8245 + $0x10] sm:$0xf]
    %v8251 = vld [vmem:[%s8245 + $0x14] sm:$0xf]
    %v8252 = vld [vmem:[%s8245 + $0x18] sm:$0xf]
    %v8253 = vld [vmem:[%s8245 + $0x1c] sm:$0xf]
    %s8254 = scalar_lea.vmem %s11, 5
    %v8255 = vld [vmem:[%s8254] sm:$0x1]
    %v8257 = vperm.slane %v8255, 0
    %v8267 = vunpack.c.l.b16 %v8246
    %v8268 = vunpack.c.l.b16 %v8247
    %v8269 = vunpack.c.l.b16 %v8248
    %v8270 = vunpack.c.l.b16 %v8249
    %v8271 = vunpack.c.l.b16 %v8250
    %v8272 = vunpack.c.l.b16 %v8251
    %v8273 = vunpack.c.l.b16 %v8252
    %v8274 = vunpack.c.l.b16 %v8253
    %v8275 = vpack.c.b16 %v8268, %v8267
    %v8276 = vpack.c.b16 %v8270, %v8269
    %v8277 = vpack.c.b16 %v8272, %v8271
    %v8278 = vpack.c.b16 %v8274, %v8273
    %v8284 = vsel %vm1474, %v8244, 0
    %8286 = vmatpush.bf16.msra.mxu0 0
    %8287 = vmatpush.bf16.msra.mxu0 0
    %8288 = vmatpush.bf16.msra.mxu0 0
    %8289 = vmatpush.bf16.msra.mxu0 0
    %8290 = vmatpush.bf16.msra.mxu0 %v8278
    %8291 = vmatpush.bf16.msra.mxu0 %v8277
    %8292 = vmatpush.bf16.msra.mxu0 %v8276
    %8293 = vmatpush.bf16.msra.mxu0 %v8275
    %8294 = vmatmul.bf16.gmra.mxu0 %v8284
    %v8295 = vpop.f32.mrf.mxu0
    %v8296 = vadd.f32 %v8257, %v8295
    %v8297 = vpop.f32.mrf.mxu0
    %v8298 = vadd.f32 %v8257, %v8297
    %8299 = vdwg.mxu0
    %v8300 = vadd.f32 %v8200, %v8296
    %v8301 = vadd.f32 %v8201, %v8298
    %s8302 = scalar_lea.vmem %s12, 5
    %v8303 = vld [vmem:[%s8302] sm:$0x1]
    %s8304 = scalar_lea.vmem %s13, 5
    %v8305 = vld [vmem:[%s8304] sm:$0x1]
    %v8306 = vsel %vm210, %v8300, 0.0
    %8307 = vadd.xlane.f32.xlu0 %v8306
    %v8308 = vpop.xlane.xlu0 %8307
    %v8309 = vsel %vm210, %v8301, 0.0
    %8310 = vadd.xlane.f32.xlu0 %v8309
    %v8311 = vpop.xlane.xlu0 %8310
    %v8312 = vmul.f32 %v8308, %v1348
    %v8313 = vmul.f32 %v8311, %v1348
    %v8314 = vsub.f32 %v8300, %v8312
    %v8315 = vsub.f32 %v8301, %v8313
    %v8316 = vmul.f32 %v8314, %v8314
    %v8317 = vmul.f32 %v8315, %v8315
    %v8318 = vsel %vm210, %v8316, 0.0
    %8319 = vadd.xlane.f32.xlu0 %v8318
    %v8320 = vpop.xlane.xlu0 %8319
    %v8321 = vsel %vm210, %v8317, 0.0
    %8322 = vadd.xlane.f32.xlu0 %v8321
    %v8323 = vpop.xlane.xlu0 %8322
    %v8324 = vmul.f32 %v8320, %v1348
    %v8325 = vmul.f32 %v8323, %v1348
    %v8326 = vadd.f32 %v8324, 1e-05
    %v8327 = vadd.f32 %v8325, 1e-05
    %v8328 = vrsqrt.pop %v8326
    %v8329 = vmul.f32 %v8328, %v8326
    %v8330 = vmul.f32 %v8329, %v8328
    %v8331 = vmul.f32 0.5, %v8330
    %v8332 = vsub.f32 1.5, %v8331
    %v8333 = vmul.f32 %v8328, %v8332
    %vm8334 = vweird.f32 %v8326
    %vm8335 = vweird.f32 %v8328
    %vm8336 = vmor %vm8334, %vm8335
    %v8337 = vsel %vm8336, %v8328, %v8333
    %v8338 = vrsqrt.pop %v8327
    %v8339 = vmul.f32 %v8338, %v8327
    %v8340 = vmul.f32 %v8339, %v8338
    %v8341 = vmul.f32 0.5, %v8340
    %v8342 = vsub.f32 1.5, %v8341
    %v8343 = vmul.f32 %v8338, %v8342
    %vm8344 = vweird.f32 %v8327
    %vm8345 = vweird.f32 %v8338
    %vm8346 = vmor %vm8344, %vm8345
    %v8347 = vsel %vm8346, %v8338, %v8343
    %v8348 = vmul.f32 %v8314, %v8337
    %v8349 = vmul.f32 %v8315, %v8347
    %v8351 = vperm.slane %v8303, 0
    %v8353 = vmul.f32 %v8348, %v8351
    %v8354 = vmul.f32 %v8349, %v8351
    %v8356 = vperm.slane %v8305, 0
    %v8358 = vadd.f32 %v8353, %v8356
    %v8359 = vadd.f32 %v8354, %v8356
    %v8360 = vadd.f32 %v8358, %v8359
    %v8361 = vmul.f32 %v8360, 0.5
    %v8362 = vmul.f32 %v8361, %v8361
    %v8363 = vsel %vm210, %v8362, 0.0
    %8364 = vadd.xlane.f32.xlu0 %v8363
    %v8365 = vpop.xlane.xlu0 %8364
    %v8366 = vmax.f32 %v8365, 1e-24
    %v8367 = vrsqrt.pop %v8366
    %v8368 = vmul.f32 %v8367, %v8366
    %v8369 = vmul.f32 %v8368, %v8367
    %v8370 = vmul.f32 0.5, %v8369
    %v8371 = vsub.f32 1.5, %v8370
    %v8372 = vmul.f32 %v8367, %v8371
    %vm8373 = vweird.f32 %v8366
    %vm8374 = vweird.f32 %v8367
    %vm8375 = vmor %vm8373, %vm8374
    %v8376 = vsel %vm8375, %v8367, %v8372
    %v8377 = vmul.f32 %v8361, %v8376
    %8378 = vst.msk [vmem:[#allocation7] sm:$0xff] %vm210, %v8377
    // Predicated region
    $region66: #{text_model_forward.1} parent=1 // pred_check
      _
    $region67: #{text_model_forward.1} parent=1 // pred_check_branch
      %8380 = sbr.rel (0) target = $region69
    $region68: #{text_model_forward.1} parent=1 // pred_region
      %8382 = vsyncadd [#allocation4], 0
      %s8384 = sshll.u32 [#allocation7], 4
      %s8385 = int_to_ptr.vmem [resolvable:$true] %s8384
      %s8386 = sshll.u32 %s14, 4
      %s8387 = int_to_ptr.hbm [resolvable:$true] %s8386
      %8389 = dma.vmem_to_hbm [thread:$0]  %s8385, 128, %s8387, [#allocation4]
    $region69: #{text_model_forward.1} parent=1 // pred_fallthru
      _
    // Predicated region
    $region70: #{text_model_forward.1} parent=1 // pred_check
      _
    $region71: #{text_model_forward.1} parent=1 // pred_check_branch
      %8391 = sbr.rel (0) target = $region73
    $region72: #{text_model_forward.1} parent=1 // pred_region
      %8393 = dma.done [#allocation4], 128
    $region73: #{text_model_forward.1} parent=1 // pred_fallthru
      _
    %8394 = vsyncpa [#allocation3], 1
    %8395 = vsyncpa [#allocation4], 1
    %8396 = vsyncpa [#allocation5], 1

</llo_original>
